<compile_context>
chip_gen: v6e
topology: v6e:2x2x1
jax: 0.10.0
libtpu: 0.0.40
codegen_flags: <defaults>
</compile_context>

<pallas_src>
import jax
import jax.numpy as jnp
from jax import lax
from jax.experimental import pallas as pl
from jax.experimental.pallas import tpu as pltpu


def _up_conv_kernel(x_ref, w_ref, shift_ref, o_ref, xpad_ref):
    """Fused nearest-upsample(x2) + conv3x3 + BN(eval) + ReLU for one batch element.

    x_ref     : (1, H, W, C_in)      f32   input tile (NHWC)
    w_ref     : (4, 4*C_in, C_out)   bf16  phase-folded weights (phase = 2*di + dj)
    shift_ref : (1, C_out)           f32   folded conv-bias + BatchNorm shift
    o_ref     : (1, 4, H, W, C_out)  f32   phase-separated output (phase = 2*di + dj)
    xpad_ref  : (H+2, W+2, C_in)     f32   VMEM scratch: zero-padded input (1-px halo)
    """
    _, H, W, C_in = x_ref.shape
    C_out = o_ref.shape[-1]

    # Build the 1-px zero halo in VMEM (no jnp.pad round-trip through HBM).
    xpad_ref[...] = jnp.zeros_like(xpad_ref)
    xpad_ref[1:H + 1, 1:W + 1, :] = x_ref[0]

    shift = shift_ref[...]  # (1, C_out); broadcasts over the row dim

    # Output pixel (2i+di, 2j+dj) = 2x2 conv over the original input with phase-combined
    # weights; tap (a, b) of phase (di, dj) reads xpad[di+a+i, dj+b+j, :].
    for di in range(2):
        for dj in range(2):
            slabs = [
                xpad_ref[di + a:di + a + H, dj + b:dj + b + W, :].astype(jnp.bfloat16)
                for a in range(2) for b in range(2)
            ]
            patch = jnp.concatenate(slabs, axis=-1)            # (H, W, 4*C_in) bf16
            patch = patch.reshape(H * W, 4 * C_in)             # lane dim unchanged
            y = jnp.dot(patch, w_ref[2 * di + dj],
                        preferred_element_type=jnp.float32)    # (H*W, C_out) f32 acc
            y = jnp.maximum(y + shift, 0.0)                    # folded bias+BN, ReLU
            o_ref[0, 2 * di + dj] = y.reshape(H, W, C_out).astype(o_ref.dtype)


# Mixing matrix M[d, a, k]: which of the three original taps (k) of the 3x3 kernel fold
# into tap a of the 2-tap phase-d conv over the original-resolution input.
_PHASE_MIX = jnp.array([[[1., 0., 0.],    # d=0, a=0 : k=0
                         [0., 1., 1.]],   # d=0, a=1 : k=1,2
                        [[1., 1., 0.],    # d=1, a=0 : k=0,1
                         [0., 0., 1.]]],  # d=1, a=1 : k=2
                       jnp.float32)


def _fold_params(w_oihw, bias, gamma, beta, running_mean, running_var, eps):
    """Fold upsample phases, conv bias and eval-mode BN into (phase weights, shift)."""
    C_out, C_in, _, _ = w_oihw.shape
    bn_scale = gamma * lax.rsqrt(running_var + eps)             # (C_out,)
    shift = (bias - running_mean) * bn_scale + beta             # (C_out,)
    w_hwio = jnp.transpose(w_oihw, (2, 3, 1, 0))                # (3, 3, C_in, C_out)
    # w_phase[di, dj, a, b, cin, cout]
    w_phase = jnp.einsum('pak,qbl,klio->pqabio', _PHASE_MIX, _PHASE_MIX, w_hwio)
    w_phase = w_phase * bn_scale                                # fold BN scale into weights
    w_taps = w_phase.reshape(4, 4 * C_in, C_out).astype(jnp.bfloat16)
    return w_taps, shift.reshape(1, C_out).astype(jnp.float32)


@jax.jit
def up_conv_forward(x_nchw, w_oihw, bias, gamma, beta, running_mean, running_var,
                    eps=1e-5):
    """up_conv forward: Upsample(x2, nearest) -> Conv3x3(pad=1, bias) -> BN(eval) -> ReLU.

    x_nchw: (N, C_in, H, W)  ->  (N, C_out, 2H, 2W)
    """
    N, C_in, H, W = x_nchw.shape
    C_out = w_oihw.shape[0]
    w_taps, shift = _fold_params(w_oihw, bias, gamma, beta, running_mean, running_var, eps)

    x_nhwc = jnp.transpose(x_nchw, (0, 2, 3, 1))  # NCHW -> NHWC (channels on the lane axis)

    out = pl.pallas_call(
        _up_conv_kernel,
        out_shape=jax.ShapeDtypeStruct((N, 4, H, W, C_out), jnp.float32),
        grid_spec=pltpu.PrefetchScalarGridSpec(
            num_scalar_prefetch=0,
            grid=(N,),
            in_specs=[
                pl.BlockSpec((1, H, W, C_in), lambda n: (n, 0, 0, 0)),
                pl.BlockSpec((4, 4 * C_in, C_out), lambda n: (0, 0, 0)),
                pl.BlockSpec((1, C_out), lambda n: (0, 0)),
            ],
            out_specs=pl.BlockSpec((1, 4, H, W, C_out), lambda n: (n, 0, 0, 0, 0)),
            scratch_shapes=[pltpu.VMEM((H + 2, W + 2, C_in), jnp.float32)],
        ),
        compiler_params=pltpu.CompilerParams(
            dimension_semantics=("parallel",),
        ),
    )(x_nhwc, w_taps, shift)

    # Untangle output phases: (N, [di,dj], H, W, C) -> NCHW (N, C, 2H, 2W).
    out = out.reshape(N, 2, 2, H, W, C_out)
    out = jnp.transpose(out, (0, 5, 3, 1, 4, 2)).reshape(N, C_out, 2 * H, 2 * W)
    return out


def reference_up_conv(x_nchw, w_oihw, bias, gamma, beta, running_mean, running_var,
                      eps=1e-5):
    """Pure-JAX reference (explicit upsample + lax.conv) for correctness checking."""
    u = jnp.repeat(jnp.repeat(x_nchw, 2, axis=2), 2, axis=3)    # nearest x2
    y = lax.conv_general_dilated(
        u, w_oihw, window_strides=(1, 1), padding="SAME",
        dimension_numbers=("NCHW", "OIHW", "NCHW"),
        precision=lax.Precision.HIGHEST)
    y = y + bias[None, :, None, None]
    inv = gamma * lax.rsqrt(running_var + eps)
    y = (y - running_mean[None, :, None, None]) * inv[None, :, None, None] \
        + beta[None, :, None, None]
    return jnp.maximum(y, 0.0)


if __name__ == "__main__":
    key = jax.random.PRNGKey(0)
    k = jax.random.split(key, 7)

    # Standard U-Net decoder config: up_conv(ch_in=256, ch_out=128) on a 16x16 feature map.
    N, C_in, C_out, H, W = 2, 256, 128, 16, 16

    x = jax.random.normal(k[0], (N, C_in, H, W), jnp.float32)
    w = jax.random.normal(k[1], (C_out, C_in, 3, 3), jnp.float32) / jnp.sqrt(9.0 * C_in)
    bias = 0.1 * jax.random.normal(k[2], (C_out,), jnp.float32)
    gamma = 1.0 + 0.1 * jax.random.normal(k[3], (C_out,), jnp.float32)
    beta = 0.1 * jax.random.normal(k[4], (C_out,), jnp.float32)
    running_mean = 0.1 * jax.random.normal(k[5], (C_out,), jnp.float32)
    running_var = 1.0 + 0.2 * jax.random.uniform(k[6], (C_out,), jnp.float32)

    out = up_conv_forward(x, w, bias, gamma, beta, running_mean, running_var)
    out = jax.block_until_ready(out)

    ref = reference_up_conv(x, w, bias, gamma, beta, running_mean, running_var)
    assert out.shape == (N, C_out, 2 * H, 2 * W)
    # bf16 MXU operands with f32 accumulation -> relaxed tolerance vs the f32 reference.
    assert jnp.allclose(out, ref, atol=5e-2, rtol=2e-2), (
        f"mismatch vs reference, max abs err = {jnp.max(jnp.abs(out - ref))}")
    print("KERNEL_OK")
</pallas_src>

<mosaic_0001>
module attributes {stable_mosaic.version = 11 : i64} {
  func.func @_up_conv_kernel(%arg0: i32, %arg1: memref<1x16x16x256xf32, #tpu.memory_space<vmem>>, %arg2: memref<4x1024x128xbf16, #tpu.memory_space<vmem>>, %arg3: memref<1x128xf32, #tpu.memory_space<vmem>>, %arg4: memref<1x4x16x16x128xf32, #tpu.memory_space<vmem>>, %arg5: memref<18x18x256xf32, #tpu.memory_space<vmem>>) attributes {dimension_semantics = [#tpu.dimension_semantics<parallel>], iteration_bounds = array<i64: 2>, scalar_prefetch = 0 : i64, scratch_operands = 1 : i64, tpu.core_type = #tpu.core_type<tc>, window_params = [{transform_indices = @transform_0, window_bounds = array<i64: 1, 16, 16, 256>}, {pipeline_mode = #tpu.pipeline_mode<synchronous>, transform_indices = @transform_1, window_bounds = array<i64: 4, 1024, 128>}, {pipeline_mode = #tpu.pipeline_mode<synchronous>, transform_indices = @transform_2, window_bounds = array<i64: 1, 128>}, {transform_indices = @transform_3, window_bounds = array<i64: 1, 4, 16, 16, 128>}]} {
    %cst = arith.constant 0.000000e+00 : f32
    %0 = vector.broadcast %cst : f32 to vector<18x18x256xf32>
    %c0 = arith.constant 0 : index
    %c0_0 = arith.constant 0 : index
    %c0_1 = arith.constant 0 : index
    %1 = vector.load %arg5[%c0, %c0_0, %c0_1] : memref<18x18x256xf32, #tpu.memory_space<vmem>>, vector<18x18x256xf32>
    tpu.vector_store %arg5[%c0, %c0_0, %c0_1], %0 {strides = array<i32>} : memref<18x18x256xf32, #tpu.memory_space<vmem>>, vector<18x18x256xf32>,
    %c0_2 = arith.constant 0 : index
    %c0_3 = arith.constant 0 : index
    %c0_4 = arith.constant 0 : index
    %c0_5 = arith.constant 0 : index
    %2 = vector.load %arg1[%c0_2, %c0_3, %c0_4, %c0_5] : memref<1x16x16x256xf32, #tpu.memory_space<vmem>>, vector<1x16x16x256xf32>
    %3 = vector.shape_cast %2 : vector<1x16x16x256xf32> to vector<16x16x256xf32>
    %c1 = arith.constant 1 : index
    %c1_6 = arith.constant 1 : index
    %c0_7 = arith.constant 0 : index
    %4 = vector.load %arg5[%c1, %c1_6, %c0_7] : memref<18x18x256xf32, #tpu.memory_space<vmem>>, vector<16x16x256xf32>
    tpu.vector_store %arg5[%c1, %c1_6, %c0_7], %3 {strides = array<i32>} : memref<18x18x256xf32, #tpu.memory_space<vmem>>, vector<16x16x256xf32>,
    %c0_8 = arith.constant 0 : index
    %c0_9 = arith.constant 0 : index
    %5 = vector.load %arg3[%c0_8, %c0_9] : memref<1x128xf32, #tpu.memory_space<vmem>>, vector<1x128xf32>
    %c0_10 = arith.constant 0 : index
    %c0_11 = arith.constant 0 : index
    %c0_12 = arith.constant 0 : index
    %6 = vector.load %arg5[%c0_10, %c0_11, %c0_12] : memref<18x18x256xf32, #tpu.memory_space<vmem>>, vector<16x16x256xf32>
    %7 = arith.truncf %6 : vector<16x16x256xf32> to vector<16x16x256xbf16>
    %c0_13 = arith.constant 0 : index
    %c1_14 = arith.constant 1 : index
    %c0_15 = arith.constant 0 : index
    %8 = vector.load %arg5[%c0_13, %c1_14, %c0_15] : memref<18x18x256xf32, #tpu.memory_space<vmem>>, vector<16x16x256xf32>
    %9 = arith.truncf %8 : vector<16x16x256xf32> to vector<16x16x256xbf16>
    %c1_16 = arith.constant 1 : index
    %c0_17 = arith.constant 0 : index
    %c0_18 = arith.constant 0 : index
    %10 = vector.load %arg5[%c1_16, %c0_17, %c0_18] : memref<18x18x256xf32, #tpu.memory_space<vmem>>, vector<16x16x256xf32>
    %11 = arith.truncf %10 : vector<16x16x256xf32> to vector<16x16x256xbf16>
    %c1_19 = arith.constant 1 : index
    %c1_20 = arith.constant 1 : index
    %c0_21 = arith.constant 0 : index
    %12 = vector.load %arg5[%c1_19, %c1_20, %c0_21] : memref<18x18x256xf32, #tpu.memory_space<vmem>>, vector<16x16x256xf32>
    %13 = arith.truncf %12 : vector<16x16x256xf32> to vector<16x16x256xbf16>
    %14 = tpu.concatenate %7, %9, %11, %13 in 2 : vector<16x16x256xbf16>, vector<16x16x256xbf16>, vector<16x16x256xbf16>, vector<16x16x256xbf16> -> vector<16x16x1024xbf16>
    %15 = vector.shape_cast %14 : vector<16x16x1024xbf16> to vector<256x1024xbf16>
    %c0_22 = arith.constant 0 : index
    %c0_23 = arith.constant 0 : index
    %c0_24 = arith.constant 0 : index
    %16 = vector.load %arg2[%c0_22, %c0_23, %c0_24] : memref<4x1024x128xbf16, #tpu.memory_space<vmem>>, vector<1x1024x128xbf16>
    %17 = vector.shape_cast %16 : vector<1x1024x128xbf16> to vector<1024x128xbf16>
    %cst_25 = arith.constant dense<0.000000e+00> : vector<256x128xf32>
    %18 = tpu.matmul %15, %17, %cst_25 {dimension_numbers = #tpu.dot_dimension_numbers<[1], [0], [0], [1], [0, 0, 1, 1], [], []>} : vector<256x1024xbf16>, vector<1024x128xbf16>, vector<256x128xf32> -> vector<256x128xf32>
    %19 = vector.broadcast %5 : vector<1x128xf32> to vector<256x128xf32>
    %20 = arith.addf %18, %19 : vector<256x128xf32>
    %cst_26 = arith.constant 0.000000e+00 : f32
    %21 = vector.broadcast %cst_26 : f32 to vector<256x128xf32>
    %22 = arith.maximumf %20, %21 : vector<256x128xf32>
    %23 = vector.shape_cast %22 : vector<256x128xf32> to vector<16x16x128xf32>
    %c0_27 = arith.constant 0 : index
    %c0_28 = arith.constant 0 : index
    %c0_29 = arith.constant 0 : index
    %c0_30 = arith.constant 0 : index
    %c0_31 = arith.constant 0 : index
    %24 = vector.load %arg4[%c0_27, %c0_28, %c0_29, %c0_30, %c0_31] : memref<1x4x16x16x128xf32, #tpu.memory_space<vmem>>, vector<1x1x16x16x128xf32>
    %25 = vector.shape_cast %24 : vector<1x1x16x16x128xf32> to vector<16x16x128xf32>
    %26 = vector.shape_cast %23 : vector<16x16x128xf32> to vector<1x1x16x16x128xf32>
    tpu.vector_store %arg4[%c0_27, %c0_28, %c0_29, %c0_30, %c0_31], %26 {strides = array<i32>} : memref<1x4x16x16x128xf32, #tpu.memory_space<vmem>>, vector<1x1x16x16x128xf32>,
    %c0_32 = arith.constant 0 : index
    %c1_33 = arith.constant 1 : index
    %c0_34 = arith.constant 0 : index
    %27 = vector.load %arg5[%c0_32, %c1_33, %c0_34] : memref<18x18x256xf32, #tpu.memory_space<vmem>>, vector<16x16x256xf32>
    %28 = arith.truncf %27 : vector<16x16x256xf32> to vector<16x16x256xbf16>
    %c0_35 = arith.constant 0 : index
    %c2 = arith.constant 2 : index
    %c0_36 = arith.constant 0 : index
    %29 = vector.load %arg5[%c0_35, %c2, %c0_36] : memref<18x18x256xf32, #tpu.memory_space<vmem>>, vector<16x16x256xf32>
    %30 = arith.truncf %29 : vector<16x16x256xf32> to vector<16x16x256xbf16>
    %c1_37 = arith.constant 1 : index
    %c1_38 = arith.constant 1 : index
    %c0_39 = arith.constant 0 : index
    %31 = vector.load %arg5[%c1_37, %c1_38, %c0_39] : memref<18x18x256xf32, #tpu.memory_space<vmem>>, vector<16x16x256xf32>
    %32 = arith.truncf %31 : vector<16x16x256xf32> to vector<16x16x256xbf16>
    %c1_40 = arith.constant 1 : index
    %c2_41 = arith.constant 2 : index
    %c0_42 = arith.constant 0 : index
    %33 = vector.load %arg5[%c1_40, %c2_41, %c0_42] : memref<18x18x256xf32, #tpu.memory_space<vmem>>, vector<16x16x256xf32>
    %34 = arith.truncf %33 : vector<16x16x256xf32> to vector<16x16x256xbf16>
    %35 = tpu.concatenate %28, %30, %32, %34 in 2 : vector<16x16x256xbf16>, vector<16x16x256xbf16>, vector<16x16x256xbf16>, vector<16x16x256xbf16> -> vector<16x16x1024xbf16>
    %36 = vector.shape_cast %35 : vector<16x16x1024xbf16> to vector<256x1024xbf16>
    %c1_43 = arith.constant 1 : index
    %c0_44 = arith.constant 0 : index
    %c0_45 = arith.constant 0 : index
    %37 = vector.load %arg2[%c1_43, %c0_44, %c0_45] : memref<4x1024x128xbf16, #tpu.memory_space<vmem>>, vector<1x1024x128xbf16>
    %38 = vector.shape_cast %37 : vector<1x1024x128xbf16> to vector<1024x128xbf16>
    %cst_46 = arith.constant dense<0.000000e+00> : vector<256x128xf32>
    %39 = tpu.matmul %36, %38, %cst_46 {dimension_numbers = #tpu.dot_dimension_numbers<[1], [0], [0], [1], [0, 0, 1, 1], [], []>} : vector<256x1024xbf16>, vector<1024x128xbf16>, vector<256x128xf32> -> vector<256x128xf32>
    %40 = vector.broadcast %5 : vector<1x128xf32> to vector<256x128xf32>
    %41 = arith.addf %39, %40 : vector<256x128xf32>
    %cst_47 = arith.constant 0.000000e+00 : f32
    %42 = vector.broadcast %cst_47 : f32 to vector<256x128xf32>
    %43 = arith.maximumf %41, %42 : vector<256x128xf32>
    %44 = vector.shape_cast %43 : vector<256x128xf32> to vector<16x16x128xf32>
    %c0_48 = arith.constant 0 : index
    %c1_49 = arith.constant 1 : index
    %c0_50 = arith.constant 0 : index
    %c0_51 = arith.constant 0 : index
    %c0_52 = arith.constant 0 : index
    %45 = vector.load %arg4[%c0_48, %c1_49, %c0_50, %c0_51, %c0_52] : memref<1x4x16x16x128xf32, #tpu.memory_space<vmem>>, vector<1x1x16x16x128xf32>
    %46 = vector.shape_cast %45 : vector<1x1x16x16x128xf32> to vector<16x16x128xf32>
    %47 = vector.shape_cast %44 : vector<16x16x128xf32> to vector<1x1x16x16x128xf32>
    tpu.vector_store %arg4[%c0_48, %c1_49, %c0_50, %c0_51, %c0_52], %47 {strides = array<i32>} : memref<1x4x16x16x128xf32, #tpu.memory_space<vmem>>, vector<1x1x16x16x128xf32>,
    %c1_53 = arith.constant 1 : index
    %c0_54 = arith.constant 0 : index
    %c0_55 = arith.constant 0 : index
    %48 = vector.load %arg5[%c1_53, %c0_54, %c0_55] : memref<18x18x256xf32, #tpu.memory_space<vmem>>, vector<16x16x256xf32>
    %49 = arith.truncf %48 : vector<16x16x256xf32> to vector<16x16x256xbf16>
    %c1_56 = arith.constant 1 : index
    %c1_57 = arith.constant 1 : index
    %c0_58 = arith.constant 0 : index
    %50 = vector.load %arg5[%c1_56, %c1_57, %c0_58] : memref<18x18x256xf32, #tpu.memory_space<vmem>>, vector<16x16x256xf32>
    %51 = arith.truncf %50 : vector<16x16x256xf32> to vector<16x16x256xbf16>
    %c2_59 = arith.constant 2 : index
    %c0_60 = arith.constant 0 : index
    %c0_61 = arith.constant 0 : index
    %52 = vector.load %arg5[%c2_59, %c0_60, %c0_61] : memref<18x18x256xf32, #tpu.memory_space<vmem>>, vector<16x16x256xf32>
    %53 = arith.truncf %52 : vector<16x16x256xf32> to vector<16x16x256xbf16>
    %c2_62 = arith.constant 2 : index
    %c1_63 = arith.constant 1 : index
    %c0_64 = arith.constant 0 : index
    %54 = vector.load %arg5[%c2_62, %c1_63, %c0_64] : memref<18x18x256xf32, #tpu.memory_space<vmem>>, vector<16x16x256xf32>
    %55 = arith.truncf %54 : vector<16x16x256xf32> to vector<16x16x256xbf16>
    %56 = tpu.concatenate %49, %51, %53, %55 in 2 : vector<16x16x256xbf16>, vector<16x16x256xbf16>, vector<16x16x256xbf16>, vector<16x16x256xbf16> -> vector<16x16x1024xbf16>
    %57 = vector.shape_cast %56 : vector<16x16x1024xbf16> to vector<256x1024xbf16>
    %c2_65 = arith.constant 2 : index
    %c0_66 = arith.constant 0 : index
    %c0_67 = arith.constant 0 : index
    %58 = vector.load %arg2[%c2_65, %c0_66, %c0_67] : memref<4x1024x128xbf16, #tpu.memory_space<vmem>>, vector<1x1024x128xbf16>
    %59 = vector.shape_cast %58 : vector<1x1024x128xbf16> to vector<1024x128xbf16>
    %cst_68 = arith.constant dense<0.000000e+00> : vector<256x128xf32>
    %60 = tpu.matmul %57, %59, %cst_68 {dimension_numbers = #tpu.dot_dimension_numbers<[1], [0], [0], [1], [0, 0, 1, 1], [], []>} : vector<256x1024xbf16>, vector<1024x128xbf16>, vector<256x128xf32> -> vector<256x128xf32>
    %61 = vector.broadcast %5 : vector<1x128xf32> to vector<256x128xf32>
    %62 = arith.addf %60, %61 : vector<256x128xf32>
    %cst_69 = arith.constant 0.000000e+00 : f32
    %63 = vector.broadcast %cst_69 : f32 to vector<256x128xf32>
    %64 = arith.maximumf %62, %63 : vector<256x128xf32>
    %65 = vector.shape_cast %64 : vector<256x128xf32> to vector<16x16x128xf32>
    %c0_70 = arith.constant 0 : index
    %c2_71 = arith.constant 2 : index
    %c0_72 = arith.constant 0 : index
    %c0_73 = arith.constant 0 : index
    %c0_74 = arith.constant 0 : index
    %66 = vector.load %arg4[%c0_70, %c2_71, %c0_72, %c0_73, %c0_74] : memref<1x4x16x16x128xf32, #tpu.memory_space<vmem>>, vector<1x1x16x16x128xf32>
    %67 = vector.shape_cast %66 : vector<1x1x16x16x128xf32> to vector<16x16x128xf32>
    %68 = vector.shape_cast %65 : vector<16x16x128xf32> to vector<1x1x16x16x128xf32>
    tpu.vector_store %arg4[%c0_70, %c2_71, %c0_72, %c0_73, %c0_74], %68 {strides = array<i32>} : memref<1x4x16x16x128xf32, #tpu.memory_space<vmem>>, vector<1x1x16x16x128xf32>,
    %c1_75 = arith.constant 1 : index
    %c1_76 = arith.constant 1 : index
    %c0_77 = arith.constant 0 : index
    %69 = vector.load %arg5[%c1_75, %c1_76, %c0_77] : memref<18x18x256xf32, #tpu.memory_space<vmem>>, vector<16x16x256xf32>
    %70 = arith.truncf %69 : vector<16x16x256xf32> to vector<16x16x256xbf16>
    %c1_78 = arith.constant 1 : index
    %c2_79 = arith.constant 2 : index
    %c0_80 = arith.constant 0 : index
    %71 = vector.load %arg5[%c1_78, %c2_79, %c0_80] : memref<18x18x256xf32, #tpu.memory_space<vmem>>, vector<16x16x256xf32>
    %72 = arith.truncf %71 : vector<16x16x256xf32> to vector<16x16x256xbf16>
    %c2_81 = arith.constant 2 : index
    %c1_82 = arith.constant 1 : index
    %c0_83 = arith.constant 0 : index
    %73 = vector.load %arg5[%c2_81, %c1_82, %c0_83] : memref<18x18x256xf32, #tpu.memory_space<vmem>>, vector<16x16x256xf32>
    %74 = arith.truncf %73 : vector<16x16x256xf32> to vector<16x16x256xbf16>
    %c2_84 = arith.constant 2 : index
    %c2_85 = arith.constant 2 : index
    %c0_86 = arith.constant 0 : index
    %75 = vector.load %arg5[%c2_84, %c2_85, %c0_86] : memref<18x18x256xf32, #tpu.memory_space<vmem>>, vector<16x16x256xf32>
    %76 = arith.truncf %75 : vector<16x16x256xf32> to vector<16x16x256xbf16>
    %77 = tpu.concatenate %70, %72, %74, %76 in 2 : vector<16x16x256xbf16>, vector<16x16x256xbf16>, vector<16x16x256xbf16>, vector<16x16x256xbf16> -> vector<16x16x1024xbf16>
    %78 = vector.shape_cast %77 : vector<16x16x1024xbf16> to vector<256x1024xbf16>
    %c3 = arith.constant 3 : index
    %c0_87 = arith.constant 0 : index
    %c0_88 = arith.constant 0 : index
    %79 = vector.load %arg2[%c3, %c0_87, %c0_88] : memref<4x1024x128xbf16, #tpu.memory_space<vmem>>, vector<1x1024x128xbf16>
    %80 = vector.shape_cast %79 : vector<1x1024x128xbf16> to vector<1024x128xbf16>
    %cst_89 = arith.constant dense<0.000000e+00> : vector<256x128xf32>
    %81 = tpu.matmul %78, %80, %cst_89 {dimension_numbers = #tpu.dot_dimension_numbers<[1], [0], [0], [1], [0, 0, 1, 1], [], []>} : vector<256x1024xbf16>, vector<1024x128xbf16>, vector<256x128xf32> -> vector<256x128xf32>
    %82 = vector.broadcast %5 : vector<1x128xf32> to vector<256x128xf32>
    %83 = arith.addf %81, %82 : vector<256x128xf32>
    %cst_90 = arith.constant 0.000000e+00 : f32
    %84 = vector.broadcast %cst_90 : f32 to vector<256x128xf32>
    %85 = arith.maximumf %83, %84 : vector<256x128xf32>
    %86 = vector.shape_cast %85 : vector<256x128xf32> to vector<16x16x128xf32>
    %c0_91 = arith.constant 0 : index
    %c3_92 = arith.constant 3 : index
    %c0_93 = arith.constant 0 : index
    %c0_94 = arith.constant 0 : index
    %c0_95 = arith.constant 0 : index
    %87 = vector.load %arg4[%c0_91, %c3_92, %c0_93, %c0_94, %c0_95] : memref<1x4x16x16x128xf32, #tpu.memory_space<vmem>>, vector<1x1x16x16x128xf32>
    %88 = vector.shape_cast %87 : vector<1x1x16x16x128xf32> to vector<16x16x128xf32>
    %89 = vector.shape_cast %86 : vector<16x16x128xf32> to vector<1x1x16x16x128xf32>
    tpu.vector_store %arg4[%c0_91, %c3_92, %c0_93, %c0_94, %c0_95], %89 {strides = array<i32>} : memref<1x4x16x16x128xf32, #tpu.memory_space<vmem>>, vector<1x1x16x16x128xf32>,
    return
  }
  func.func @transform_0(%arg0: i32) -> (i32, i32, i32, i32) {
    %c0_i32 = arith.constant 0 : i32
    %c0_i32_0 = arith.constant 0 : i32
    %c0_i32_1 = arith.constant 0 : i32
    %c0_i32_2 = arith.constant 0 : i32
    return %arg0, %c0_i32, %c0_i32_0, %c0_i32_1 : i32, i32, i32, i32
  }
  func.func @transform_1(%arg0: i32) -> (i32, i32, i32) {
    %c0_i32 = arith.constant 0 : i32
    %c0_i32_0 = arith.constant 0 : i32
    %c0_i32_1 = arith.constant 0 : i32
    %c0_i32_2 = arith.constant 0 : i32
    return %c0_i32, %c0_i32_0, %c0_i32_1 : i32, i32, i32
  }
  func.func @transform_2(%arg0: i32) -> (i32, i32) {
    %c0_i32 = arith.constant 0 : i32
    %c0_i32_0 = arith.constant 0 : i32
    %c0_i32_1 = arith.constant 0 : i32
    return %c0_i32, %c0_i32_0 : i32, i32
  }
  func.func @transform_3(%arg0: i32) -> (i32, i32, i32, i32, i32) {
    %c0_i32 = arith.constant 0 : i32
    %c0_i32_0 = arith.constant 0 : i32
    %c0_i32_1 = arith.constant 0 : i32
    %c0_i32_2 = arith.constant 0 : i32
    %c0_i32_3 = arith.constant 0 : i32
    return %arg0, %c0_i32, %c0_i32_0, %c0_i32_1, %c0_i32_2 : i32, i32, i32, i32, i32
  }
}

</mosaic_0001>

<llo_original>
// kernel: up_conv_forward.1
$region0: #{up_conv_forward.1}
  #allocation0 [shape = 'u32[]', space=smem, size = 0x4, offset = 0x4, fixed_abs, tag = 'smem constant byte address 0x4 - core index']
  #allocation1 [shape = 'u32[144,128]{1,0:T(1,128)}', space=vmem, size = 0x12000, scoped, tag = 'internal scratch']
  #allocation2 [shape = 'f32[18,18,256]{2,1,0:T(8,128)}', space=vmem, size = 0x6c000, scoped, tag = 'scratch operand']
  %s0 = inlined_call_operand.vmem [shape: f32[2,16,16,256], index: 0, kind: input, shape index: {}]
  %s1 = inlined_call_operand.vmem [shape: bf16[4,1024,128], index: 1, kind: input, shape index: {}]
  %s2 = inlined_call_operand.vmem [shape: f32[1,128], index: 2, kind: input, shape index: {}]
  %s3 = inlined_call_operand.vmem [shape: f32[2,4,16,16,128], index: 3, kind: output, shape index: {}]
  %s4 = sld [smem:[#allocation0]]
  $region45: #{up_conv_forward.1} parent=0
    _
  %s6 = ssub.s32 1, %s4
  %s7 = scalar_select 0, %s6, %s4
  loop: start=0, step=1, limit=4
  $region2: #{up_conv_forward.1} parent=0 // loop_pre_header
    _
  $region3: #{up_conv_forward.1} parent=0 // loop_header
    %s9 = sphi 0, %s13
    %p10 = scmp.ge.s32.totalorder %s9, 4
    %s19 = sphi 0, %s21
    %s22 = sphi 0, %s19
    %s23 = sphi 0, %s22
    %s39 = sphi 0, %s23
    %s43 = sphi 0, %s43
    %s45 = sphi 0, %s43
    %s46 = sphi 0, %s45
    %s60 = sphi 0, %s46
    %s64 = sphi 0, %s64
    %s66 = sphi 0, %s64
    %s67 = sphi 0, %s66
    %s81 = sphi 0, %s67
    %s87 = sphi 0, %s89
    %s90 = sphi 0, %s87
    %s91 = sphi 0, %s90
    %s107 = sphi 0, %s91
  $region4: #{up_conv_forward.1} parent=0 // loop_header_branch
    %12 = sbr.rel (%p10) target = $region8
  $region5: #{up_conv_forward.1} parent=0 // loop_body
    %s14 = ssub.s32 %s9, 1
    %s15 = ssub.s32 %s9, 2
    %s16 = sadd.s32 %s9, 1
    %s17 = ssub.s32 %s9, %s16
    %p18 = scmp.eq.s32.totalorder %s17, 0
    %s20 = sadd.s32 %s19, 1
    %s21 = scalar_select %p18, %s19, %s20
    %p24 = pneg %p18
    %p25 = scmp.eq.s32.totalorder %s9, 1
    %p26 = por %p24, %p25
    %p27 = scmp.ne.s32.totalorder %s19, %s22
    %p28 = scmp.eq.s32.totalorder %s9, 0
    %p29 = por %p27, %p28
    %p30 = scmp.ne.s32.totalorder %s19, %s22
    %p31 = scmp.eq.s32.totalorder %s14, 1
    %p32 = por %p30, %p31
    %p33 = scmp.ne.s32.totalorder %s22, %s23
    %p34 = scmp.eq.s32.totalorder %s14, 0
    %p35 = por %p33, %p34
    %p36 = scmp.ne.s32.totalorder %s22, %s23
    %p37 = scmp.eq.s32.totalorder %s15, 1
    %p38 = por %p36, %p37
    %p40 = scmp.ne.s32.totalorder %s23, %s39
    %p41 = scmp.eq.s32.totalorder %s15, 0
    %p42 = por %p40, %p41
    %s44 = sadd.s32 %s43, 1
    %p47 = scmp.eq.s32.totalorder %s9, 1
    %p48 = scmp.ne.s32.totalorder %s43, %s45
    %p49 = scmp.eq.s32.totalorder %s9, 0
    %p50 = por %p48, %p49
    %p51 = scmp.ne.s32.totalorder %s43, %s45
    %p52 = scmp.eq.s32.totalorder %s14, 1
    %p53 = por %p51, %p52
    %p54 = scmp.ne.s32.totalorder %s45, %s46
    %p55 = scmp.eq.s32.totalorder %s14, 0
    %p56 = por %p54, %p55
    %p57 = scmp.ne.s32.totalorder %s45, %s46
    %p58 = scmp.eq.s32.totalorder %s15, 1
    %p59 = por %p57, %p58
    %p61 = scmp.ne.s32.totalorder %s46, %s60
    %p62 = scmp.eq.s32.totalorder %s15, 0
    %p63 = por %p61, %p62
    %s65 = sadd.s32 %s64, 1
    %p68 = scmp.eq.s32.totalorder %s9, 1
    %p69 = scmp.ne.s32.totalorder %s64, %s66
    %p70 = scmp.eq.s32.totalorder %s9, 0
    %p71 = por %p69, %p70
    %p72 = scmp.ne.s32.totalorder %s64, %s66
    %p73 = scmp.eq.s32.totalorder %s14, 1
    %p74 = por %p72, %p73
    %p75 = scmp.ne.s32.totalorder %s66, %s67
    %p76 = scmp.eq.s32.totalorder %s14, 0
    %p77 = por %p75, %p76
    %p78 = scmp.ne.s32.totalorder %s66, %s67
    %p79 = scmp.eq.s32.totalorder %s15, 1
    %p80 = por %p78, %p79
    %p82 = scmp.ne.s32.totalorder %s67, %s81
    %p83 = scmp.eq.s32.totalorder %s15, 0
    %p84 = por %p82, %p83
    %s85 = ssub.s32 %s9, %s16
    %p86 = scmp.eq.s32.totalorder %s85, 0
    %s88 = sadd.s32 %s87, 1
    %s89 = scalar_select %p86, %s87, %s88
    %p92 = pneg %p86
    %p93 = scmp.eq.s32.totalorder %s9, 1
    %p94 = por %p92, %p93
    %p95 = scmp.ne.s32.totalorder %s87, %s90
    %p96 = scmp.eq.s32.totalorder %s9, 0
    %p97 = por %p95, %p96
    %p98 = scmp.ne.s32.totalorder %s87, %s90
    %p99 = scmp.eq.s32.totalorder %s14, 1
    %p100 = por %p98, %p99
    %p101 = scmp.ne.s32.totalorder %s90, %s91
    %p102 = scmp.eq.s32.totalorder %s14, 0
    %p103 = por %p101, %p102
    %p104 = scmp.ne.s32.totalorder %s90, %s91
    %p105 = scmp.eq.s32.totalorder %s15, 1
    %p106 = por %p104, %p105
    %p108 = scmp.ne.s32.totalorder %s91, %s107
    %p109 = scmp.eq.s32.totalorder %s15, 0
    %p110 = por %p108, %p109
    %p111 = scmp.le.s32.totalorder 1, %s9
    %p112 = scmp.lt.s32.totalorder %s9, 3
    %p113 = pnand %p111, %p112
    %p114 = pneg %p113
    // Predicated region
    $region9: #{up_conv_forward.1} parent=5 // pred_check
      _
    $region10: #{up_conv_forward.1} parent=5 // pred_check_branch
      %116 = sbr.rel (%p113) target = $region12
    $region11: #{up_conv_forward.1} parent=5 // pred_region
      %s117 = ssub.s32 %s9, 1
      // Predicated region
      $region13: #{up_conv_forward.1} parent=11 // pred_check
        %p118 = pneg %p56
      $region14: #{up_conv_forward.1} parent=11 // pred_check_branch
        %120 = sbr.rel (%p118) target = $region16
      $region15: #{up_conv_forward.1} parent=11 // pred_region
        _
      $region16: #{up_conv_forward.1} parent=11 // pred_fallthru
        _
      // Predicated region
      $region17: #{up_conv_forward.1} parent=11 // pred_check
        %p121 = pneg %p77
      $region18: #{up_conv_forward.1} parent=11 // pred_check_branch
        %123 = sbr.rel (%p121) target = $region20
      $region19: #{up_conv_forward.1} parent=11 // pred_region
        _
      $region20: #{up_conv_forward.1} parent=11 // pred_fallthru
        _
    $region12: #{up_conv_forward.1} parent=5 // pred_fallthru
      _
    %p124 = scmp.lt.s32.totalorder %s9, 2
    // Predicated region
    $region21: #{up_conv_forward.1} parent=5 // pred_check
      %p125 = pneg %p124
    $region22: #{up_conv_forward.1} parent=5 // pred_check_branch
      %127 = sbr.rel (%p125) target = $region24
    $region23: #{up_conv_forward.1} parent=5 // pred_region
      // Predicated region
      $region25: #{up_conv_forward.1} parent=23 // pred_check
        %p128 = pneg %p29
      $region26: #{up_conv_forward.1} parent=23 // pred_check_branch
        %130 = sbr.rel (%p128) target = $region28
      $region27: #{up_conv_forward.1} parent=23 // pred_region
        %p131 = scmp.lt.s32.totalorder %s9, 1
        %s132 = scalar_select %p131, %s9, 1
        %s133 = smul.addr %s132, 64
        %s134 = smul.addr %s133, 8
        %s135 = scalar_lea.vmem %s0, %s134
      $region28: #{up_conv_forward.1} parent=23 // pred_fallthru
        _
    $region24: #{up_conv_forward.1} parent=5 // pred_fallthru
      _
    %p136 = scmp.le.s32.totalorder 1, %s9
    %p137 = scmp.lt.s32.totalorder %s9, 3
    %p138 = pnand %p136, %p137
    %p139 = pneg %p138
    // Predicated region
    $region29: #{up_conv_forward.1} parent=5 // pred_check
      _
    $region30: #{up_conv_forward.1} parent=5 // pred_check_branch
      %141 = sbr.rel (%p138) target = $region32
    $region31: #{up_conv_forward.1} parent=5 // pred_region
      %s142 = ssub.s32 %s9, 1
      %p143 = scmp.lt.s32.totalorder %s14, 1
      %s144 = scalar_select %p143, %s14, 1
      %s145 = smul.addr %s144, 64
      %s146 = smul.addr %s145, 8
      %s147 = scalar_lea.vmem %s0, %s146
      %p148 = pneg %p35
      %p149 = pneg %p32
      %p150 = pneg %p56
      %p151 = pneg %p53
      %p152 = pneg %p77
      %p153 = pneg %p74
      %p154 = pneg %p103
      %p155 = pneg %p100
      %p156 = scmp.lt.s32.totalorder %s14, 1
      %s157 = scalar_select %p156, %s14, 1
      %s158 = smul.addr %s157, 128
      %s159 = smul.addr %s158, 8
      %s160 = scalar_lea.vmem %s3, %s159
      %p161 = scmp.lt.s32.totalorder %s14, 1
      %s162 = scalar_select %p161, %s14, 1
      %s163 = smul.addr %s162, 64
      %s164 = smul.addr %s163, 8
      %s165 = scalar_lea.vmem %s0, %s164
      %p166 = scmp.lt.s32.totalorder %s14, 1
      %s167 = scalar_select %p166, %s14, 1
      %s168 = smul.addr %s167, 128
      %s169 = smul.addr %s168, 8
      %s170 = scalar_lea.vmem %s3, %s169
      %172 = vst [vmem:[#allocation2] sm:$0xff] 0.0
      %173 = vst [vmem:[#allocation2 + $0x8] sm:$0xff] 0.0
      %174 = vst [vmem:[#allocation2 + $0x10] sm:$0xff] 0.0
      %175 = vst [vmem:[#allocation2 + $0x18] sm:$0xff] 0.0
      %176 = vst [vmem:[#allocation2 + $0x20] sm:$0x3] 0.0
      %177 = vst [vmem:[#allocation2 + $0x28] sm:$0x3] 0.0
      %178 = vst [vmem:[#allocation2 + $0x30] sm:$0xff] 0.0
      %179 = vst [vmem:[#allocation2 + $0x38] sm:$0xff] 0.0
      %180 = vst [vmem:[#allocation2 + $0x40] sm:$0xff] 0.0
      %181 = vst [vmem:[#allocation2 + $0x48] sm:$0xff] 0.0
      %182 = vst [vmem:[#allocation2 + $0x50] sm:$0x3] 0.0
      %183 = vst [vmem:[#allocation2 + $0x58] sm:$0x3] 0.0
      %184 = vst [vmem:[#allocation2 + $0x60] sm:$0xff] 0.0
      %185 = vst [vmem:[#allocation2 + $0x68] sm:$0xff] 0.0
      %186 = vst [vmem:[#allocation2 + $0x70] sm:$0xff] 0.0
      %187 = vst [vmem:[#allocation2 + $0x78] sm:$0xff] 0.0
      %188 = vst [vmem:[#allocation2 + $0x80] sm:$0x3] 0.0
      %189 = vst [vmem:[#allocation2 + $0x88] sm:$0x3] 0.0
      %190 = vst [vmem:[#allocation2 + $0x90] sm:$0xff] 0.0
      %191 = vst [vmem:[#allocation2 + $0x98] sm:$0xff] 0.0
      %192 = vst [vmem:[#allocation2 + $0xa0] sm:$0xff] 0.0
      %193 = vst [vmem:[#allocation2 + $0xa8] sm:$0xff] 0.0
      %194 = vst [vmem:[#allocation2 + $0xb0] sm:$0x3] 0.0
      %195 = vst [vmem:[#allocation2 + $0xb8] sm:$0x3] 0.0
      %196 = vst [vmem:[#allocation2 + $0xc0] sm:$0xff] 0.0
      %197 = vst [vmem:[#allocation2 + $0xc8] sm:$0xff] 0.0
      %198 = vst [vmem:[#allocation2 + $0xd0] sm:$0xff] 0.0
      %199 = vst [vmem:[#allocation2 + $0xd8] sm:$0xff] 0.0
      %200 = vst [vmem:[#allocation2 + $0xe0] sm:$0x3] 0.0
      %201 = vst [vmem:[#allocation2 + $0xe8] sm:$0x3] 0.0
      %202 = vst [vmem:[#allocation2 + $0xf0] sm:$0xff] 0.0
      %203 = vst [vmem:[#allocation2 + $0xf8] sm:$0xff] 0.0
      %204 = vst [vmem:[#allocation2 + $0x100] sm:$0xff] 0.0
      %205 = vst [vmem:[#allocation2 + $0x108] sm:$0xff] 0.0
      %206 = vst [vmem:[#allocation2 + $0x110] sm:$0x3] 0.0
      %207 = vst [vmem:[#allocation2 + $0x118] sm:$0x3] 0.0
      %208 = vst [vmem:[#allocation2 + $0x120] sm:$0xff] 0.0
      %209 = vst [vmem:[#allocation2 + $0x128] sm:$0xff] 0.0
      %210 = vst [vmem:[#allocation2 + $0x130] sm:$0xff] 0.0
      %211 = vst [vmem:[#allocation2 + $0x138] sm:$0xff] 0.0
      %212 = vst [vmem:[#allocation2 + $0x140] sm:$0x3] 0.0
      %213 = vst [vmem:[#allocation2 + $0x148] sm:$0x3] 0.0
      %214 = vst [vmem:[#allocation2 + $0x150] sm:$0xff] 0.0
      %215 = vst [vmem:[#allocation2 + $0x158] sm:$0xff] 0.0
      %216 = vst [vmem:[#allocation2 + $0x160] sm:$0xff] 0.0
      %217 = vst [vmem:[#allocation2 + $0x168] sm:$0xff] 0.0
      %218 = vst [vmem:[#allocation2 + $0x170] sm:$0x3] 0.0
      %219 = vst [vmem:[#allocation2 + $0x178] sm:$0x3] 0.0
      %220 = vst [vmem:[#allocation2 + $0x180] sm:$0xff] 0.0
      %221 = vst [vmem:[#allocation2 + $0x188] sm:$0xff] 0.0
      %222 = vst [vmem:[#allocation2 + $0x190] sm:$0xff] 0.0
      %223 = vst [vmem:[#allocation2 + $0x198] sm:$0xff] 0.0
      %224 = vst [vmem:[#allocation2 + $0x1a0] sm:$0x3] 0.0
      %225 = vst [vmem:[#allocation2 + $0x1a8] sm:$0x3] 0.0
      %226 = vst [vmem:[#allocation2 + $0x1b0] sm:$0xff] 0.0
      %227 = vst [vmem:[#allocation2 + $0x1b8] sm:$0xff] 0.0
      %228 = vst [vmem:[#allocation2 + $0x1c0] sm:$0xff] 0.0
      %229 = vst [vmem:[#allocation2 + $0x1c8] sm:$0xff] 0.0
      %230 = vst [vmem:[#allocation2 + $0x1d0] sm:$0x3] 0.0
      %231 = vst [vmem:[#allocation2 + $0x1d8] sm:$0x3] 0.0
      %232 = vst [vmem:[#allocation2 + $0x1e0] sm:$0xff] 0.0
      %233 = vst [vmem:[#allocation2 + $0x1e8] sm:$0xff] 0.0
      %234 = vst [vmem:[#allocation2 + $0x1f0] sm:$0xff] 0.0
      %235 = vst [vmem:[#allocation2 + $0x1f8] sm:$0xff] 0.0
      %236 = vst [vmem:[#allocation2 + $0x200] sm:$0x3] 0.0
      %237 = vst [vmem:[#allocation2 + $0x208] sm:$0x3] 0.0
      %238 = vst [vmem:[#allocation2 + $0x210] sm:$0xff] 0.0
      %239 = vst [vmem:[#allocation2 + $0x218] sm:$0xff] 0.0
      %240 = vst [vmem:[#allocation2 + $0x220] sm:$0xff] 0.0
      %241 = vst [vmem:[#allocation2 + $0x228] sm:$0xff] 0.0
      %242 = vst [vmem:[#allocation2 + $0x230] sm:$0x3] 0.0
      %243 = vst [vmem:[#allocation2 + $0x238] sm:$0x3] 0.0
      %244 = vst [vmem:[#allocation2 + $0x240] sm:$0xff] 0.0
      %245 = vst [vmem:[#allocation2 + $0x248] sm:$0xff] 0.0
      %246 = vst [vmem:[#allocation2 + $0x250] sm:$0xff] 0.0
      %247 = vst [vmem:[#allocation2 + $0x258] sm:$0xff] 0.0
      %248 = vst [vmem:[#allocation2 + $0x260] sm:$0x3] 0.0
      %249 = vst [vmem:[#allocation2 + $0x268] sm:$0x3] 0.0
      %250 = vst [vmem:[#allocation2 + $0x270] sm:$0xff] 0.0
      %251 = vst [vmem:[#allocation2 + $0x278] sm:$0xff] 0.0
      %252 = vst [vmem:[#allocation2 + $0x280] sm:$0xff] 0.0
      %253 = vst [vmem:[#allocation2 + $0x288] sm:$0xff] 0.0
      %254 = vst [vmem:[#allocation2 + $0x290] sm:$0x3] 0.0
      %255 = vst [vmem:[#allocation2 + $0x298] sm:$0x3] 0.0
      %256 = vst [vmem:[#allocation2 + $0x2a0] sm:$0xff] 0.0
      %257 = vst [vmem:[#allocation2 + $0x2a8] sm:$0xff] 0.0
      %258 = vst [vmem:[#allocation2 + $0x2b0] sm:$0xff] 0.0
      %259 = vst [vmem:[#allocation2 + $0x2b8] sm:$0xff] 0.0
      %260 = vst [vmem:[#allocation2 + $0x2c0] sm:$0x3] 0.0
      %261 = vst [vmem:[#allocation2 + $0x2c8] sm:$0x3] 0.0
      %262 = vst [vmem:[#allocation2 + $0x2d0] sm:$0xff] 0.0
      %263 = vst [vmem:[#allocation2 + $0x2d8] sm:$0xff] 0.0
      %264 = vst [vmem:[#allocation2 + $0x2e0] sm:$0xff] 0.0
      %265 = vst [vmem:[#allocation2 + $0x2e8] sm:$0xff] 0.0
      %266 = vst [vmem:[#allocation2 + $0x2f0] sm:$0x3] 0.0
      %267 = vst [vmem:[#allocation2 + $0x2f8] sm:$0x3] 0.0
      %268 = vst [vmem:[#allocation2 + $0x300] sm:$0xff] 0.0
      %269 = vst [vmem:[#allocation2 + $0x308] sm:$0xff] 0.0
      %270 = vst [vmem:[#allocation2 + $0x310] sm:$0xff] 0.0
      %271 = vst [vmem:[#allocation2 + $0x318] sm:$0xff] 0.0
      %272 = vst [vmem:[#allocation2 + $0x320] sm:$0x3] 0.0
      %273 = vst [vmem:[#allocation2 + $0x328] sm:$0x3] 0.0
      %274 = vst [vmem:[#allocation2 + $0x330] sm:$0xff] 0.0
      %275 = vst [vmem:[#allocation2 + $0x338] sm:$0xff] 0.0
      %276 = vst [vmem:[#allocation2 + $0x340] sm:$0xff] 0.0
      %277 = vst [vmem:[#allocation2 + $0x348] sm:$0xff] 0.0
      %278 = vst [vmem:[#allocation2 + $0x350] sm:$0x3] 0.0
      %279 = vst [vmem:[#allocation2 + $0x358] sm:$0x3] 0.0
      %v280 = vld [vmem:[%s165] sm:$0xff]
      %v281 = vld [vmem:[%s165 + $0x8] sm:$0xff]
      %v282 = vld [vmem:[%s165 + $0x10] sm:$0xff]
      %v283 = vld [vmem:[%s165 + $0x18] sm:$0xff]
      %v284 = vld [vmem:[%s165 + $0x20] sm:$0xff]
      %v285 = vld [vmem:[%s165 + $0x28] sm:$0xff]
      %v286 = vld [vmem:[%s165 + $0x30] sm:$0xff]
      %v287 = vld [vmem:[%s165 + $0x38] sm:$0xff]
      %v288 = vld [vmem:[%s165 + $0x40] sm:$0xff]
      %v289 = vld [vmem:[%s165 + $0x48] sm:$0xff]
      %v290 = vld [vmem:[%s165 + $0x50] sm:$0xff]
      %v291 = vld [vmem:[%s165 + $0x58] sm:$0xff]
      %v292 = vld [vmem:[%s165 + $0x60] sm:$0xff]
      %v293 = vld [vmem:[%s165 + $0x68] sm:$0xff]
      %v294 = vld [vmem:[%s165 + $0x70] sm:$0xff]
      %v295 = vld [vmem:[%s165 + $0x78] sm:$0xff]
      %v296 = vld [vmem:[%s165 + $0x80] sm:$0xff]
      %v297 = vld [vmem:[%s165 + $0x88] sm:$0xff]
      %v298 = vld [vmem:[%s165 + $0x90] sm:$0xff]
      %v299 = vld [vmem:[%s165 + $0x98] sm:$0xff]
      %v300 = vld [vmem:[%s165 + $0xa0] sm:$0xff]
      %v301 = vld [vmem:[%s165 + $0xa8] sm:$0xff]
      %v302 = vld [vmem:[%s165 + $0xb0] sm:$0xff]
      %v303 = vld [vmem:[%s165 + $0xb8] sm:$0xff]
      %v304 = vld [vmem:[%s165 + $0xc0] sm:$0xff]
      %v305 = vld [vmem:[%s165 + $0xc8] sm:$0xff]
      %v306 = vld [vmem:[%s165 + $0xd0] sm:$0xff]
      %v307 = vld [vmem:[%s165 + $0xd8] sm:$0xff]
      %v308 = vld [vmem:[%s165 + $0xe0] sm:$0xff]
      %v309 = vld [vmem:[%s165 + $0xe8] sm:$0xff]
      %v310 = vld [vmem:[%s165 + $0xf0] sm:$0xff]
      %v311 = vld [vmem:[%s165 + $0xf8] sm:$0xff]
      %v312 = vld [vmem:[%s165 + $0x100] sm:$0xff]
      %v313 = vld [vmem:[%s165 + $0x108] sm:$0xff]
      %v314 = vld [vmem:[%s165 + $0x110] sm:$0xff]
      %v315 = vld [vmem:[%s165 + $0x118] sm:$0xff]
      %v316 = vld [vmem:[%s165 + $0x120] sm:$0xff]
      %v317 = vld [vmem:[%s165 + $0x128] sm:$0xff]
      %v318 = vld [vmem:[%s165 + $0x130] sm:$0xff]
      %v319 = vld [vmem:[%s165 + $0x138] sm:$0xff]
      %v320 = vld [vmem:[%s165 + $0x140] sm:$0xff]
      %v321 = vld [vmem:[%s165 + $0x148] sm:$0xff]
      %v322 = vld [vmem:[%s165 + $0x150] sm:$0xff]
      %v323 = vld [vmem:[%s165 + $0x158] sm:$0xff]
      %v324 = vld [vmem:[%s165 + $0x160] sm:$0xff]
      %v325 = vld [vmem:[%s165 + $0x168] sm:$0xff]
      %v326 = vld [vmem:[%s165 + $0x170] sm:$0xff]
      %v327 = vld [vmem:[%s165 + $0x178] sm:$0xff]
      %v328 = vld [vmem:[%s165 + $0x180] sm:$0xff]
      %v329 = vld [vmem:[%s165 + $0x188] sm:$0xff]
      %v330 = vld [vmem:[%s165 + $0x190] sm:$0xff]
      %v331 = vld [vmem:[%s165 + $0x198] sm:$0xff]
      %v332 = vld [vmem:[%s165 + $0x1a0] sm:$0xff]
      %v333 = vld [vmem:[%s165 + $0x1a8] sm:$0xff]
      %v334 = vld [vmem:[%s165 + $0x1b0] sm:$0xff]
      %v335 = vld [vmem:[%s165 + $0x1b8] sm:$0xff]
      %v336 = vld [vmem:[%s165 + $0x1c0] sm:$0xff]
      %v337 = vld [vmem:[%s165 + $0x1c8] sm:$0xff]
      %v338 = vld [vmem:[%s165 + $0x1d0] sm:$0xff]
      %v339 = vld [vmem:[%s165 + $0x1d8] sm:$0xff]
      %v340 = vld [vmem:[%s165 + $0x1e0] sm:$0xff]
      %v341 = vld [vmem:[%s165 + $0x1e8] sm:$0xff]
      %v342 = vld [vmem:[%s165 + $0x1f0] sm:$0xff]
      %v343 = vld [vmem:[%s165 + $0x1f8] sm:$0xff]
      %vm408 = vcmask 1040384
      %v409 = vrot.slane %v280, 7
      %v410 = vrot.slane %v281, 7
      %v411 = vrot.slane %v282, 7
      %v412 = vsel %vm408, %v409, %v411
      %v413 = vrot.slane %v283, 7
      %v414 = vsel %vm408, %v410, %v413
      %v415 = vrot.slane %v284, 7
      %v416 = vrot.slane %v285, 7
      %v417 = vrot.slane %v286, 7
      %v418 = vsel %vm408, %v415, %v417
      %v419 = vrot.slane %v287, 7
      %v420 = vsel %vm408, %v416, %v419
      %v421 = vrot.slane %v288, 7
      %v422 = vrot.slane %v289, 7
      %v423 = vrot.slane %v290, 7
      %v424 = vsel %vm408, %v421, %v423
      %v425 = vrot.slane %v291, 7
      %v426 = vsel %vm408, %v422, %v425
      %v427 = vrot.slane %v292, 7
      %v428 = vrot.slane %v293, 7
      %v429 = vrot.slane %v294, 7
      %v430 = vsel %vm408, %v427, %v429
      %v431 = vrot.slane %v295, 7
      %v432 = vsel %vm408, %v428, %v431
      %v433 = vrot.slane %v296, 7
      %v434 = vrot.slane %v297, 7
      %v435 = vrot.slane %v298, 7
      %v436 = vsel %vm408, %v433, %v435
      %v437 = vrot.slane %v299, 7
      %v438 = vsel %vm408, %v434, %v437
      %v439 = vrot.slane %v300, 7
      %v440 = vrot.slane %v301, 7
      %v441 = vrot.slane %v302, 7
      %v442 = vsel %vm408, %v439, %v441
      %v443 = vrot.slane %v303, 7
      %v444 = vsel %vm408, %v440, %v443
      %v445 = vrot.slane %v304, 7
      %v446 = vrot.slane %v305, 7
      %v447 = vrot.slane %v306, 7
      %v448 = vsel %vm408, %v445, %v447
      %v449 = vrot.slane %v307, 7
      %v450 = vsel %vm408, %v446, %v449
      %v451 = vrot.slane %v308, 7
      %v452 = vrot.slane %v309, 7
      %v453 = vrot.slane %v310, 7
      %v454 = vsel %vm408, %v451, %v453
      %v455 = vrot.slane %v311, 7
      %v456 = vsel %vm408, %v452, %v455
      %v457 = vrot.slane %v312, 7
      %v458 = vrot.slane %v313, 7
      %v459 = vrot.slane %v314, 7
      %v460 = vsel %vm408, %v457, %v459
      %v461 = vrot.slane %v315, 7
      %v462 = vsel %vm408, %v458, %v461
      %v463 = vrot.slane %v316, 7
      %v464 = vrot.slane %v317, 7
      %v465 = vrot.slane %v318, 7
      %v466 = vsel %vm408, %v463, %v465
      %v467 = vrot.slane %v319, 7
      %v468 = vsel %vm408, %v464, %v467
      %v469 = vrot.slane %v320, 7
      %v470 = vrot.slane %v321, 7
      %v471 = vrot.slane %v322, 7
      %v472 = vsel %vm408, %v469, %v471
      %v473 = vrot.slane %v323, 7
      %v474 = vsel %vm408, %v470, %v473
      %v475 = vrot.slane %v324, 7
      %v476 = vrot.slane %v325, 7
      %v477 = vrot.slane %v326, 7
      %v478 = vsel %vm408, %v475, %v477
      %v479 = vrot.slane %v327, 7
      %v480 = vsel %vm408, %v476, %v479
      %v481 = vrot.slane %v328, 7
      %v482 = vrot.slane %v329, 7
      %v483 = vrot.slane %v330, 7
      %v484 = vsel %vm408, %v481, %v483
      %v485 = vrot.slane %v331, 7
      %v486 = vsel %vm408, %v482, %v485
      %v487 = vrot.slane %v332, 7
      %v488 = vrot.slane %v333, 7
      %v489 = vrot.slane %v334, 7
      %v490 = vsel %vm408, %v487, %v489
      %v491 = vrot.slane %v335, 7
      %v492 = vsel %vm408, %v488, %v491
      %v493 = vrot.slane %v336, 7
      %v494 = vrot.slane %v337, 7
      %v495 = vrot.slane %v338, 7
      %v496 = vsel %vm408, %v493, %v495
      %v497 = vrot.slane %v339, 7
      %v498 = vsel %vm408, %v494, %v497
      %v499 = vrot.slane %v340, 7
      %v500 = vrot.slane %v341, 7
      %v501 = vrot.slane %v342, 7
      %v502 = vsel %vm408, %v499, %v501
      %v503 = vrot.slane %v343, 7
      %v504 = vsel %vm408, %v500, %v503
      %s601 = scalar_lea.vmem [#allocation2], 48
      %602 = vst [vmem:[%s601] sm:$0xfe] %v409
      %603 = vst [vmem:[%s601 + $0x8] sm:$0xfe] %v410
      %604 = vst [vmem:[%s601 + $0x10] sm:$0xff] %v412
      %605 = vst [vmem:[%s601 + $0x18] sm:$0xff] %v414
      %606 = vst [vmem:[%s601 + $0x20] sm:$0x1] %v411
      %607 = vst [vmem:[%s601 + $0x28] sm:$0x1] %v413
      %608 = vst [vmem:[%s601 + $0x30] sm:$0xfe] %v415
      %609 = vst [vmem:[%s601 + $0x38] sm:$0xfe] %v416
      %610 = vst [vmem:[%s601 + $0x40] sm:$0xff] %v418
      %611 = vst [vmem:[%s601 + $0x48] sm:$0xff] %v420
      %612 = vst [vmem:[%s601 + $0x50] sm:$0x1] %v417
      %613 = vst [vmem:[%s601 + $0x58] sm:$0x1] %v419
      %614 = vst [vmem:[%s601 + $0x60] sm:$0xfe] %v421
      %615 = vst [vmem:[%s601 + $0x68] sm:$0xfe] %v422
      %616 = vst [vmem:[%s601 + $0x70] sm:$0xff] %v424
      %617 = vst [vmem:[%s601 + $0x78] sm:$0xff] %v426
      %618 = vst [vmem:[%s601 + $0x80] sm:$0x1] %v423
      %619 = vst [vmem:[%s601 + $0x88] sm:$0x1] %v425
      %620 = vst [vmem:[%s601 + $0x90] sm:$0xfe] %v427
      %621 = vst [vmem:[%s601 + $0x98] sm:$0xfe] %v428
      %622 = vst [vmem:[%s601 + $0xa0] sm:$0xff] %v430
      %623 = vst [vmem:[%s601 + $0xa8] sm:$0xff] %v432
      %624 = vst [vmem:[%s601 + $0xb0] sm:$0x1] %v429
      %625 = vst [vmem:[%s601 + $0xb8] sm:$0x1] %v431
      %626 = vst [vmem:[%s601 + $0xc0] sm:$0xfe] %v433
      %627 = vst [vmem:[%s601 + $0xc8] sm:$0xfe] %v434
      %628 = vst [vmem:[%s601 + $0xd0] sm:$0xff] %v436
      %629 = vst [vmem:[%s601 + $0xd8] sm:$0xff] %v438
      %630 = vst [vmem:[%s601 + $0xe0] sm:$0x1] %v435
      %631 = vst [vmem:[%s601 + $0xe8] sm:$0x1] %v437
      %632 = vst [vmem:[%s601 + $0xf0] sm:$0xfe] %v439
      %633 = vst [vmem:[%s601 + $0xf8] sm:$0xfe] %v440
      %634 = vst [vmem:[%s601 + $0x100] sm:$0xff] %v442
      %635 = vst [vmem:[%s601 + $0x108] sm:$0xff] %v444
      %636 = vst [vmem:[%s601 + $0x110] sm:$0x1] %v441
      %637 = vst [vmem:[%s601 + $0x118] sm:$0x1] %v443
      %638 = vst [vmem:[%s601 + $0x120] sm:$0xfe] %v445
      %639 = vst [vmem:[%s601 + $0x128] sm:$0xfe] %v446
      %640 = vst [vmem:[%s601 + $0x130] sm:$0xff] %v448
      %641 = vst [vmem:[%s601 + $0x138] sm:$0xff] %v450
      %642 = vst [vmem:[%s601 + $0x140] sm:$0x1] %v447
      %643 = vst [vmem:[%s601 + $0x148] sm:$0x1] %v449
      %644 = vst [vmem:[%s601 + $0x150] sm:$0xfe] %v451
      %645 = vst [vmem:[%s601 + $0x158] sm:$0xfe] %v452
      %646 = vst [vmem:[%s601 + $0x160] sm:$0xff] %v454
      %647 = vst [vmem:[%s601 + $0x168] sm:$0xff] %v456
      %648 = vst [vmem:[%s601 + $0x170] sm:$0x1] %v453
      %649 = vst [vmem:[%s601 + $0x178] sm:$0x1] %v455
      %650 = vst [vmem:[%s601 + $0x180] sm:$0xfe] %v457
      %651 = vst [vmem:[%s601 + $0x188] sm:$0xfe] %v458
      %652 = vst [vmem:[%s601 + $0x190] sm:$0xff] %v460
      %653 = vst [vmem:[%s601 + $0x198] sm:$0xff] %v462
      %654 = vst [vmem:[%s601 + $0x1a0] sm:$0x1] %v459
      %655 = vst [vmem:[%s601 + $0x1a8] sm:$0x1] %v461
      %656 = vst [vmem:[%s601 + $0x1b0] sm:$0xfe] %v463
      %657 = vst [vmem:[%s601 + $0x1b8] sm:$0xfe] %v464
      %658 = vst [vmem:[%s601 + $0x1c0] sm:$0xff] %v466
      %659 = vst [vmem:[%s601 + $0x1c8] sm:$0xff] %v468
      %660 = vst [vmem:[%s601 + $0x1d0] sm:$0x1] %v465
      %661 = vst [vmem:[%s601 + $0x1d8] sm:$0x1] %v467
      %662 = vst [vmem:[%s601 + $0x1e0] sm:$0xfe] %v469
      %663 = vst [vmem:[%s601 + $0x1e8] sm:$0xfe] %v470
      %664 = vst [vmem:[%s601 + $0x1f0] sm:$0xff] %v472
      %665 = vst [vmem:[%s601 + $0x1f8] sm:$0xff] %v474
      %666 = vst [vmem:[%s601 + $0x200] sm:$0x1] %v471
      %667 = vst [vmem:[%s601 + $0x208] sm:$0x1] %v473
      %668 = vst [vmem:[%s601 + $0x210] sm:$0xfe] %v475
      %669 = vst [vmem:[%s601 + $0x218] sm:$0xfe] %v476
      %670 = vst [vmem:[%s601 + $0x220] sm:$0xff] %v478
      %671 = vst [vmem:[%s601 + $0x228] sm:$0xff] %v480
      %672 = vst [vmem:[%s601 + $0x230] sm:$0x1] %v477
      %673 = vst [vmem:[%s601 + $0x238] sm:$0x1] %v479
      %674 = vst [vmem:[%s601 + $0x240] sm:$0xfe] %v481
      %675 = vst [vmem:[%s601 + $0x248] sm:$0xfe] %v482
      %676 = vst [vmem:[%s601 + $0x250] sm:$0xff] %v484
      %677 = vst [vmem:[%s601 + $0x258] sm:$0xff] %v486
      %678 = vst [vmem:[%s601 + $0x260] sm:$0x1] %v483
      %679 = vst [vmem:[%s601 + $0x268] sm:$0x1] %v485
      %680 = vst [vmem:[%s601 + $0x270] sm:$0xfe] %v487
      %681 = vst [vmem:[%s601 + $0x278] sm:$0xfe] %v488
      %682 = vst [vmem:[%s601 + $0x280] sm:$0xff] %v490
      %683 = vst [vmem:[%s601 + $0x288] sm:$0xff] %v492
      %684 = vst [vmem:[%s601 + $0x290] sm:$0x1] %v489
      %685 = vst [vmem:[%s601 + $0x298] sm:$0x1] %v491
      %686 = vst [vmem:[%s601 + $0x2a0] sm:$0xfe] %v493
      %687 = vst [vmem:[%s601 + $0x2a8] sm:$0xfe] %v494
      %688 = vst [vmem:[%s601 + $0x2b0] sm:$0xff] %v496
      %689 = vst [vmem:[%s601 + $0x2b8] sm:$0xff] %v498
      %690 = vst [vmem:[%s601 + $0x2c0] sm:$0x1] %v495
      %691 = vst [vmem:[%s601 + $0x2c8] sm:$0x1] %v497
      %692 = vst [vmem:[%s601 + $0x2d0] sm:$0xfe] %v499
      %693 = vst [vmem:[%s601 + $0x2d8] sm:$0xfe] %v500
      %694 = vst [vmem:[%s601 + $0x2e0] sm:$0xff] %v502
      %695 = vst [vmem:[%s601 + $0x2e8] sm:$0xff] %v504
      %696 = vst [vmem:[%s601 + $0x2f0] sm:$0x1] %v501
      %697 = vst [vmem:[%s601 + $0x2f8] sm:$0x1] %v503
      %v698 = vld [vmem:[%s2] sm:$0x1]
      %v699 = vld [vmem:[#allocation2] sm:$0xff]
      %v700 = vld [vmem:[#allocation2 + $0x8] sm:$0xff]
      %v701 = vld [vmem:[#allocation2 + $0x10] sm:$0xff]
      %v702 = vld [vmem:[#allocation2 + $0x18] sm:$0xff]
      %v703 = vld [vmem:[#allocation2 + $0x30] sm:$0xff]
      %v704 = vld [vmem:[#allocation2 + $0x38] sm:$0xff]
      %v705 = vld [vmem:[#allocation2 + $0x40] sm:$0xff]
      %v706 = vld [vmem:[#allocation2 + $0x48] sm:$0xff]
      %v707 = vld [vmem:[#allocation2 + $0x60] sm:$0xff]
      %v708 = vld [vmem:[#allocation2 + $0x68] sm:$0xff]
      %v709 = vld [vmem:[#allocation2 + $0x70] sm:$0xff]
      %v710 = vld [vmem:[#allocation2 + $0x78] sm:$0xff]
      %v711 = vld [vmem:[#allocation2 + $0x90] sm:$0xff]
      %v712 = vld [vmem:[#allocation2 + $0x98] sm:$0xff]
      %v713 = vld [vmem:[#allocation2 + $0xa0] sm:$0xff]
      %v714 = vld [vmem:[#allocation2 + $0xa8] sm:$0xff]
      %v715 = vld [vmem:[#allocation2 + $0xc0] sm:$0xff]
      %v716 = vld [vmem:[#allocation2 + $0xc8] sm:$0xff]
      %v717 = vld [vmem:[#allocation2 + $0xd0] sm:$0xff]
      %v718 = vld [vmem:[#allocation2 + $0xd8] sm:$0xff]
      %v719 = vld [vmem:[#allocation2 + $0xf0] sm:$0xff]
      %v720 = vld [vmem:[#allocation2 + $0xf8] sm:$0xff]
      %v721 = vld [vmem:[#allocation2 + $0x100] sm:$0xff]
      %v722 = vld [vmem:[#allocation2 + $0x108] sm:$0xff]
      %v723 = vld [vmem:[#allocation2 + $0x120] sm:$0xff]
      %v724 = vld [vmem:[#allocation2 + $0x128] sm:$0xff]
      %v725 = vld [vmem:[#allocation2 + $0x130] sm:$0xff]
      %v726 = vld [vmem:[#allocation2 + $0x138] sm:$0xff]
      %v727 = vld [vmem:[#allocation2 + $0x150] sm:$0xff]
      %v728 = vld [vmem:[#allocation2 + $0x158] sm:$0xff]
      %v729 = vld [vmem:[#allocation2 + $0x160] sm:$0xff]
      %v730 = vld [vmem:[#allocation2 + $0x168] sm:$0xff]
      %v731 = vld [vmem:[#allocation2 + $0x180] sm:$0xff]
      %v732 = vld [vmem:[#allocation2 + $0x188] sm:$0xff]
      %v733 = vld [vmem:[#allocation2 + $0x190] sm:$0xff]
      %v734 = vld [vmem:[#allocation2 + $0x198] sm:$0xff]
      %v735 = vld [vmem:[#allocation2 + $0x1b0] sm:$0xff]
      %v736 = vld [vmem:[#allocation2 + $0x1b8] sm:$0xff]
      %v737 = vld [vmem:[#allocation2 + $0x1c0] sm:$0xff]
      %v738 = vld [vmem:[#allocation2 + $0x1c8] sm:$0xff]
      %v739 = vld [vmem:[#allocation2 + $0x1e0] sm:$0xff]
      %v740 = vld [vmem:[#allocation2 + $0x1e8] sm:$0xff]
      %v741 = vld [vmem:[#allocation2 + $0x1f0] sm:$0xff]
      %v742 = vld [vmem:[#allocation2 + $0x1f8] sm:$0xff]
      %v743 = vld [vmem:[#allocation2 + $0x210] sm:$0xff]
      %v744 = vld [vmem:[#allocation2 + $0x218] sm:$0xff]
      %v745 = vld [vmem:[#allocation2 + $0x220] sm:$0xff]
      %v746 = vld [vmem:[#allocation2 + $0x228] sm:$0xff]
      %v747 = vld [vmem:[#allocation2 + $0x240] sm:$0xff]
      %v748 = vld [vmem:[#allocation2 + $0x248] sm:$0xff]
      %v749 = vld [vmem:[#allocation2 + $0x250] sm:$0xff]
      %v750 = vld [vmem:[#allocation2 + $0x258] sm:$0xff]
      %v751 = vld [vmem:[#allocation2 + $0x270] sm:$0xff]
      %v752 = vld [vmem:[#allocation2 + $0x278] sm:$0xff]
      %v753 = vld [vmem:[#allocation2 + $0x280] sm:$0xff]
      %v754 = vld [vmem:[#allocation2 + $0x288] sm:$0xff]
      %v755 = vld [vmem:[#allocation2 + $0x2a0] sm:$0xff]
      %v756 = vld [vmem:[#allocation2 + $0x2a8] sm:$0xff]
      %v757 = vld [vmem:[#allocation2 + $0x2b0] sm:$0xff]
      %v758 = vld [vmem:[#allocation2 + $0x2b8] sm:$0xff]
      %v759 = vld [vmem:[#allocation2 + $0x2d0] sm:$0xff]
      %v760 = vld [vmem:[#allocation2 + $0x2d8] sm:$0xff]
      %v761 = vld [vmem:[#allocation2 + $0x2e0] sm:$0xff]
      %v762 = vld [vmem:[#allocation2 + $0x2e8] sm:$0xff]
      %v763 = vpack.c.bf16 %v701, %v699
      %v764 = vpack.c.bf16 %v702, %v700
      %v765 = vpack.c.bf16 %v705, %v703
      %v766 = vpack.c.bf16 %v706, %v704
      %v767 = vpack.c.bf16 %v709, %v707
      %v768 = vpack.c.bf16 %v710, %v708
      %v769 = vpack.c.bf16 %v713, %v711
      %v770 = vpack.c.bf16 %v714, %v712
      %v771 = vpack.c.bf16 %v717, %v715
      %v772 = vpack.c.bf16 %v718, %v716
      %v773 = vpack.c.bf16 %v721, %v719
      %v774 = vpack.c.bf16 %v722, %v720
      %v775 = vpack.c.bf16 %v725, %v723
      %v776 = vpack.c.bf16 %v726, %v724
      %v777 = vpack.c.bf16 %v729, %v727
      %v778 = vpack.c.bf16 %v730, %v728
      %v779 = vpack.c.bf16 %v733, %v731
      %v780 = vpack.c.bf16 %v734, %v732
      %v781 = vpack.c.bf16 %v737, %v735
      %v782 = vpack.c.bf16 %v738, %v736
      %v783 = vpack.c.bf16 %v741, %v739
      %v784 = vpack.c.bf16 %v742, %v740
      %v785 = vpack.c.bf16 %v745, %v743
      %v786 = vpack.c.bf16 %v746, %v744
      %v787 = vpack.c.bf16 %v749, %v747
      %v788 = vpack.c.bf16 %v750, %v748
      %v789 = vpack.c.bf16 %v753, %v751
      %v790 = vpack.c.bf16 %v754, %v752
      %v791 = vpack.c.bf16 %v757, %v755
      %v792 = vpack.c.bf16 %v758, %v756
      %v793 = vpack.c.bf16 %v761, %v759
      %v794 = vpack.c.bf16 %v762, %v760
      %v795 = vld [vmem:[#allocation2] sm:$0xfe]
      %v796 = vld [vmem:[#allocation2 + $0x8] sm:$0xfe]
      %v797 = vld [vmem:[#allocation2 + $0x20] sm:$0x1]
      %v798 = vld [vmem:[#allocation2 + $0x28] sm:$0x1]
      %v799 = vld [vmem:[#allocation2 + $0x30] sm:$0xfe]
      %v800 = vld [vmem:[#allocation2 + $0x38] sm:$0xfe]
      %v801 = vld [vmem:[#allocation2 + $0x50] sm:$0x1]
      %v802 = vld [vmem:[#allocation2 + $0x58] sm:$0x1]
      %v803 = vld [vmem:[#allocation2 + $0x60] sm:$0xfe]
      %v804 = vld [vmem:[#allocation2 + $0x68] sm:$0xfe]
      %v805 = vld [vmem:[#allocation2 + $0x80] sm:$0x1]
      %v806 = vld [vmem:[#allocation2 + $0x88] sm:$0x1]
      %v807 = vld [vmem:[#allocation2 + $0x90] sm:$0xfe]
      %v808 = vld [vmem:[#allocation2 + $0x98] sm:$0xfe]
      %v809 = vld [vmem:[#allocation2 + $0xb0] sm:$0x1]
      %v810 = vld [vmem:[#allocation2 + $0xb8] sm:$0x1]
      %v811 = vld [vmem:[#allocation2 + $0xc0] sm:$0xfe]
      %v812 = vld [vmem:[#allocation2 + $0xc8] sm:$0xfe]
      %v813 = vld [vmem:[#allocation2 + $0xe0] sm:$0x1]
      %v814 = vld [vmem:[#allocation2 + $0xe8] sm:$0x1]
      %v815 = vld [vmem:[#allocation2 + $0xf0] sm:$0xfe]
      %v816 = vld [vmem:[#allocation2 + $0xf8] sm:$0xfe]
      %v817 = vld [vmem:[#allocation2 + $0x110] sm:$0x1]
      %v818 = vld [vmem:[#allocation2 + $0x118] sm:$0x1]
      %v819 = vld [vmem:[#allocation2 + $0x120] sm:$0xfe]
      %v820 = vld [vmem:[#allocation2 + $0x128] sm:$0xfe]
      %v821 = vld [vmem:[#allocation2 + $0x140] sm:$0x1]
      %v822 = vld [vmem:[#allocation2 + $0x148] sm:$0x1]
      %v823 = vld [vmem:[#allocation2 + $0x150] sm:$0xfe]
      %v824 = vld [vmem:[#allocation2 + $0x158] sm:$0xfe]
      %v825 = vld [vmem:[#allocation2 + $0x170] sm:$0x1]
      %v826 = vld [vmem:[#allocation2 + $0x178] sm:$0x1]
      %v827 = vld [vmem:[#allocation2 + $0x180] sm:$0xfe]
      %v828 = vld [vmem:[#allocation2 + $0x188] sm:$0xfe]
      %v829 = vld [vmem:[#allocation2 + $0x1a0] sm:$0x1]
      %v830 = vld [vmem:[#allocation2 + $0x1a8] sm:$0x1]
      %v831 = vld [vmem:[#allocation2 + $0x1b0] sm:$0xfe]
      %v832 = vld [vmem:[#allocation2 + $0x1b8] sm:$0xfe]
      %v833 = vld [vmem:[#allocation2 + $0x1d0] sm:$0x1]
      %v834 = vld [vmem:[#allocation2 + $0x1d8] sm:$0x1]
      %v835 = vld [vmem:[#allocation2 + $0x1e0] sm:$0xfe]
      %v836 = vld [vmem:[#allocation2 + $0x1e8] sm:$0xfe]
      %v837 = vld [vmem:[#allocation2 + $0x200] sm:$0x1]
      %v838 = vld [vmem:[#allocation2 + $0x208] sm:$0x1]
      %v839 = vld [vmem:[#allocation2 + $0x210] sm:$0xfe]
      %v840 = vld [vmem:[#allocation2 + $0x218] sm:$0xfe]
      %v841 = vld [vmem:[#allocation2 + $0x230] sm:$0x1]
      %v842 = vld [vmem:[#allocation2 + $0x238] sm:$0x1]
      %v843 = vld [vmem:[#allocation2 + $0x240] sm:$0xfe]
      %v844 = vld [vmem:[#allocation2 + $0x248] sm:$0xfe]
      %v845 = vld [vmem:[#allocation2 + $0x260] sm:$0x1]
      %v846 = vld [vmem:[#allocation2 + $0x268] sm:$0x1]
      %v847 = vld [vmem:[#allocation2 + $0x270] sm:$0xfe]
      %v848 = vld [vmem:[#allocation2 + $0x278] sm:$0xfe]
      %v849 = vld [vmem:[#allocation2 + $0x290] sm:$0x1]
      %v850 = vld [vmem:[#allocation2 + $0x298] sm:$0x1]
      %v851 = vld [vmem:[#allocation2 + $0x2a0] sm:$0xfe]
      %v852 = vld [vmem:[#allocation2 + $0x2a8] sm:$0xfe]
      %v853 = vld [vmem:[#allocation2 + $0x2c0] sm:$0x1]
      %v854 = vld [vmem:[#allocation2 + $0x2c8] sm:$0x1]
      %v855 = vld [vmem:[#allocation2 + $0x2d0] sm:$0xfe]
      %v856 = vld [vmem:[#allocation2 + $0x2d8] sm:$0xfe]
      %v857 = vld [vmem:[#allocation2 + $0x2f0] sm:$0x1]
      %v858 = vld [vmem:[#allocation2 + $0x2f8] sm:$0x1]
      %v859 = vpack.c.bf16 %v701, %v795
      %v860 = vpack.c.bf16 %v702, %v796
      %v861 = vpack.c.bf16 %v797, %v797
      %v862 = vpack.c.bf16 %v798, %v798
      %v863 = vpack.c.bf16 %v705, %v799
      %v864 = vpack.c.bf16 %v706, %v800
      %v865 = vpack.c.bf16 %v801, %v801
      %v866 = vpack.c.bf16 %v802, %v802
      %v867 = vpack.c.bf16 %v709, %v803
      %v868 = vpack.c.bf16 %v710, %v804
      %v869 = vpack.c.bf16 %v805, %v805
      %v870 = vpack.c.bf16 %v806, %v806
      %v871 = vpack.c.bf16 %v713, %v807
      %v872 = vpack.c.bf16 %v714, %v808
      %v873 = vpack.c.bf16 %v809, %v809
      %v874 = vpack.c.bf16 %v810, %v810
      %v875 = vpack.c.bf16 %v717, %v811
      %v876 = vpack.c.bf16 %v718, %v812
      %v877 = vpack.c.bf16 %v813, %v813
      %v878 = vpack.c.bf16 %v814, %v814
      %v879 = vpack.c.bf16 %v721, %v815
      %v880 = vpack.c.bf16 %v722, %v816
      %v881 = vpack.c.bf16 %v817, %v817
      %v882 = vpack.c.bf16 %v818, %v818
      %v883 = vpack.c.bf16 %v725, %v819
      %v884 = vpack.c.bf16 %v726, %v820
      %v885 = vpack.c.bf16 %v821, %v821
      %v886 = vpack.c.bf16 %v822, %v822
      %v887 = vpack.c.bf16 %v729, %v823
      %v888 = vpack.c.bf16 %v730, %v824
      %v889 = vpack.c.bf16 %v825, %v825
      %v890 = vpack.c.bf16 %v826, %v826
      %v891 = vpack.c.bf16 %v733, %v827
      %v892 = vpack.c.bf16 %v734, %v828
      %v893 = vpack.c.bf16 %v829, %v829
      %v894 = vpack.c.bf16 %v830, %v830
      %v895 = vpack.c.bf16 %v737, %v831
      %v896 = vpack.c.bf16 %v738, %v832
      %v897 = vpack.c.bf16 %v833, %v833
      %v898 = vpack.c.bf16 %v834, %v834
      %v899 = vpack.c.bf16 %v741, %v835
      %v900 = vpack.c.bf16 %v742, %v836
      %v901 = vpack.c.bf16 %v837, %v837
      %v902 = vpack.c.bf16 %v838, %v838
      %v903 = vpack.c.bf16 %v745, %v839
      %v904 = vpack.c.bf16 %v746, %v840
      %v905 = vpack.c.bf16 %v841, %v841
      %v906 = vpack.c.bf16 %v842, %v842
      %v907 = vpack.c.bf16 %v749, %v843
      %v908 = vpack.c.bf16 %v750, %v844
      %v909 = vpack.c.bf16 %v845, %v845
      %v910 = vpack.c.bf16 %v846, %v846
      %v911 = vpack.c.bf16 %v753, %v847
      %v912 = vpack.c.bf16 %v754, %v848
      %v913 = vpack.c.bf16 %v849, %v849
      %v914 = vpack.c.bf16 %v850, %v850
      %v915 = vpack.c.bf16 %v757, %v851
      %v916 = vpack.c.bf16 %v758, %v852
      %v917 = vpack.c.bf16 %v853, %v853
      %v918 = vpack.c.bf16 %v854, %v854
      %v919 = vpack.c.bf16 %v761, %v855
      %v920 = vpack.c.bf16 %v762, %v856
      %v921 = vpack.c.bf16 %v857, %v857
      %v922 = vpack.c.bf16 %v858, %v858
      %v923 = vld [vmem:[%s601] sm:$0xff]
      %v924 = vld [vmem:[%s601 + $0x8] sm:$0xff]
      %v925 = vld [vmem:[%s601 + $0x10] sm:$0xff]
      %v926 = vld [vmem:[%s601 + $0x18] sm:$0xff]
      %v927 = vld [vmem:[%s601 + $0x30] sm:$0xff]
      %v928 = vld [vmem:[%s601 + $0x38] sm:$0xff]
      %v929 = vld [vmem:[%s601 + $0x40] sm:$0xff]
      %v930 = vld [vmem:[%s601 + $0x48] sm:$0xff]
      %v931 = vld [vmem:[%s601 + $0x60] sm:$0xff]
      %v932 = vld [vmem:[%s601 + $0x68] sm:$0xff]
      %v933 = vld [vmem:[%s601 + $0x70] sm:$0xff]
      %v934 = vld [vmem:[%s601 + $0x78] sm:$0xff]
      %v935 = vld [vmem:[%s601 + $0x90] sm:$0xff]
      %v936 = vld [vmem:[%s601 + $0x98] sm:$0xff]
      %v937 = vld [vmem:[%s601 + $0xa0] sm:$0xff]
      %v938 = vld [vmem:[%s601 + $0xa8] sm:$0xff]
      %v939 = vld [vmem:[%s601 + $0xc0] sm:$0xff]
      %v940 = vld [vmem:[%s601 + $0xc8] sm:$0xff]
      %v941 = vld [vmem:[%s601 + $0xd0] sm:$0xff]
      %v942 = vld [vmem:[%s601 + $0xd8] sm:$0xff]
      %v943 = vld [vmem:[%s601 + $0xf0] sm:$0xff]
      %v944 = vld [vmem:[%s601 + $0xf8] sm:$0xff]
      %v945 = vld [vmem:[%s601 + $0x100] sm:$0xff]
      %v946 = vld [vmem:[%s601 + $0x108] sm:$0xff]
      %v947 = vld [vmem:[%s601 + $0x120] sm:$0xff]
      %v948 = vld [vmem:[%s601 + $0x128] sm:$0xff]
      %v949 = vld [vmem:[%s601 + $0x130] sm:$0xff]
      %v950 = vld [vmem:[%s601 + $0x138] sm:$0xff]
      %v951 = vld [vmem:[%s601 + $0x150] sm:$0xff]
      %v952 = vld [vmem:[%s601 + $0x158] sm:$0xff]
      %v953 = vld [vmem:[%s601 + $0x160] sm:$0xff]
      %v954 = vld [vmem:[%s601 + $0x168] sm:$0xff]
      %v955 = vld [vmem:[%s601 + $0x180] sm:$0xff]
      %v956 = vld [vmem:[%s601 + $0x188] sm:$0xff]
      %v957 = vld [vmem:[%s601 + $0x190] sm:$0xff]
      %v958 = vld [vmem:[%s601 + $0x198] sm:$0xff]
      %v959 = vld [vmem:[%s601 + $0x1b0] sm:$0xff]
      %v960 = vld [vmem:[%s601 + $0x1b8] sm:$0xff]
      %v961 = vld [vmem:[%s601 + $0x1c0] sm:$0xff]
      %v962 = vld [vmem:[%s601 + $0x1c8] sm:$0xff]
      %v963 = vld [vmem:[%s601 + $0x1e0] sm:$0xff]
      %v964 = vld [vmem:[%s601 + $0x1e8] sm:$0xff]
      %v965 = vld [vmem:[%s601 + $0x1f0] sm:$0xff]
      %v966 = vld [vmem:[%s601 + $0x1f8] sm:$0xff]
      %v967 = vld [vmem:[%s601 + $0x210] sm:$0xff]
      %v968 = vld [vmem:[%s601 + $0x218] sm:$0xff]
      %v969 = vld [vmem:[%s601 + $0x220] sm:$0xff]
      %v970 = vld [vmem:[%s601 + $0x228] sm:$0xff]
      %v971 = vld [vmem:[%s601 + $0x240] sm:$0xff]
      %v972 = vld [vmem:[%s601 + $0x248] sm:$0xff]
      %v973 = vld [vmem:[%s601 + $0x250] sm:$0xff]
      %v974 = vld [vmem:[%s601 + $0x258] sm:$0xff]
      %v975 = vld [vmem:[%s601 + $0x270] sm:$0xff]
      %v976 = vld [vmem:[%s601 + $0x278] sm:$0xff]
      %v977 = vld [vmem:[%s601 + $0x280] sm:$0xff]
      %v978 = vld [vmem:[%s601 + $0x288] sm:$0xff]
      %v979 = vld [vmem:[%s601 + $0x2a0] sm:$0xff]
      %v980 = vld [vmem:[%s601 + $0x2a8] sm:$0xff]
      %v981 = vld [vmem:[%s601 + $0x2b0] sm:$0xff]
      %v982 = vld [vmem:[%s601 + $0x2b8] sm:$0xff]
      %v983 = vld [vmem:[%s601 + $0x2d0] sm:$0xff]
      %v984 = vld [vmem:[%s601 + $0x2d8] sm:$0xff]
      %v985 = vld [vmem:[%s601 + $0x2e0] sm:$0xff]
      %v986 = vld [vmem:[%s601 + $0x2e8] sm:$0xff]
      %v987 = vpack.c.bf16 %v925, %v923
      %v988 = vpack.c.bf16 %v926, %v924
      %v989 = vpack.c.bf16 %v929, %v927
      %v990 = vpack.c.bf16 %v930, %v928
      %v991 = vpack.c.bf16 %v933, %v931
      %v992 = vpack.c.bf16 %v934, %v932
      %v993 = vpack.c.bf16 %v937, %v935
      %v994 = vpack.c.bf16 %v938, %v936
      %v995 = vpack.c.bf16 %v941, %v939
      %v996 = vpack.c.bf16 %v942, %v940
      %v997 = vpack.c.bf16 %v945, %v943
      %v998 = vpack.c.bf16 %v946, %v944
      %v999 = vpack.c.bf16 %v949, %v947
      %v1000 = vpack.c.bf16 %v950, %v948
      %v1001 = vpack.c.bf16 %v953, %v951
      %v1002 = vpack.c.bf16 %v954, %v952
      %v1003 = vpack.c.bf16 %v957, %v955
      %v1004 = vpack.c.bf16 %v958, %v956
      %v1005 = vpack.c.bf16 %v961, %v959
      %v1006 = vpack.c.bf16 %v962, %v960
      %v1007 = vpack.c.bf16 %v965, %v963
      %v1008 = vpack.c.bf16 %v966, %v964
      %v1009 = vpack.c.bf16 %v969, %v967
      %v1010 = vpack.c.bf16 %v970, %v968
      %v1011 = vpack.c.bf16 %v973, %v971
      %v1012 = vpack.c.bf16 %v974, %v972
      %v1013 = vpack.c.bf16 %v977, %v975
      %v1014 = vpack.c.bf16 %v978, %v976
      %v1015 = vpack.c.bf16 %v981, %v979
      %v1016 = vpack.c.bf16 %v982, %v980
      %v1017 = vpack.c.bf16 %v985, %v983
      %v1018 = vpack.c.bf16 %v986, %v984
      %v1019 = vld [vmem:[%s601] sm:$0xfe]
      %v1020 = vld [vmem:[%s601 + $0x8] sm:$0xfe]
      %v1021 = vld [vmem:[%s601 + $0x20] sm:$0x1]
      %v1022 = vld [vmem:[%s601 + $0x28] sm:$0x1]
      %v1023 = vld [vmem:[%s601 + $0x30] sm:$0xfe]
      %v1024 = vld [vmem:[%s601 + $0x38] sm:$0xfe]
      %v1025 = vld [vmem:[%s601 + $0x50] sm:$0x1]
      %v1026 = vld [vmem:[%s601 + $0x58] sm:$0x1]
      %v1027 = vld [vmem:[%s601 + $0x60] sm:$0xfe]
      %v1028 = vld [vmem:[%s601 + $0x68] sm:$0xfe]
      %v1029 = vld [vmem:[%s601 + $0x80] sm:$0x1]
      %v1030 = vld [vmem:[%s601 + $0x88] sm:$0x1]
      %v1031 = vld [vmem:[%s601 + $0x90] sm:$0xfe]
      %v1032 = vld [vmem:[%s601 + $0x98] sm:$0xfe]
      %v1033 = vld [vmem:[%s601 + $0xb0] sm:$0x1]
      %v1034 = vld [vmem:[%s601 + $0xb8] sm:$0x1]
      %v1035 = vld [vmem:[%s601 + $0xc0] sm:$0xfe]
      %v1036 = vld [vmem:[%s601 + $0xc8] sm:$0xfe]
      %v1037 = vld [vmem:[%s601 + $0xe0] sm:$0x1]
      %v1038 = vld [vmem:[%s601 + $0xe8] sm:$0x1]
      %v1039 = vld [vmem:[%s601 + $0xf0] sm:$0xfe]
      %v1040 = vld [vmem:[%s601 + $0xf8] sm:$0xfe]
      %v1041 = vld [vmem:[%s601 + $0x110] sm:$0x1]
      %v1042 = vld [vmem:[%s601 + $0x118] sm:$0x1]
      %v1043 = vld [vmem:[%s601 + $0x120] sm:$0xfe]
      %v1044 = vld [vmem:[%s601 + $0x128] sm:$0xfe]
      %v1045 = vld [vmem:[%s601 + $0x140] sm:$0x1]
      %v1046 = vld [vmem:[%s601 + $0x148] sm:$0x1]
      %v1047 = vld [vmem:[%s601 + $0x150] sm:$0xfe]
      %v1048 = vld [vmem:[%s601 + $0x158] sm:$0xfe]
      %v1049 = vld [vmem:[%s601 + $0x170] sm:$0x1]
      %v1050 = vld [vmem:[%s601 + $0x178] sm:$0x1]
      %v1051 = vld [vmem:[%s601 + $0x180] sm:$0xfe]
      %v1052 = vld [vmem:[%s601 + $0x188] sm:$0xfe]
      %v1053 = vld [vmem:[%s601 + $0x1a0] sm:$0x1]
      %v1054 = vld [vmem:[%s601 + $0x1a8] sm:$0x1]
      %v1055 = vld [vmem:[%s601 + $0x1b0] sm:$0xfe]
      %v1056 = vld [vmem:[%s601 + $0x1b8] sm:$0xfe]
      %v1057 = vld [vmem:[%s601 + $0x1d0] sm:$0x1]
      %v1058 = vld [vmem:[%s601 + $0x1d8] sm:$0x1]
      %v1059 = vld [vmem:[%s601 + $0x1e0] sm:$0xfe]
      %v1060 = vld [vmem:[%s601 + $0x1e8] sm:$0xfe]
      %v1061 = vld [vmem:[%s601 + $0x200] sm:$0x1]
      %v1062 = vld [vmem:[%s601 + $0x208] sm:$0x1]
      %v1063 = vld [vmem:[%s601 + $0x210] sm:$0xfe]
      %v1064 = vld [vmem:[%s601 + $0x218] sm:$0xfe]
      %v1065 = vld [vmem:[%s601 + $0x230] sm:$0x1]
      %v1066 = vld [vmem:[%s601 + $0x238] sm:$0x1]
      %v1067 = vld [vmem:[%s601 + $0x240] sm:$0xfe]
      %v1068 = vld [vmem:[%s601 + $0x248] sm:$0xfe]
      %v1069 = vld [vmem:[%s601 + $0x260] sm:$0x1]
      %v1070 = vld [vmem:[%s601 + $0x268] sm:$0x1]
      %v1071 = vld [vmem:[%s601 + $0x270] sm:$0xfe]
      %v1072 = vld [vmem:[%s601 + $0x278] sm:$0xfe]
      %v1073 = vld [vmem:[%s601 + $0x290] sm:$0x1]
      %v1074 = vld [vmem:[%s601 + $0x298] sm:$0x1]
      %v1075 = vld [vmem:[%s601 + $0x2a0] sm:$0xfe]
      %v1076 = vld [vmem:[%s601 + $0x2a8] sm:$0xfe]
      %v1077 = vld [vmem:[%s601 + $0x2c0] sm:$0x1]
      %v1078 = vld [vmem:[%s601 + $0x2c8] sm:$0x1]
      %v1079 = vld [vmem:[%s601 + $0x2d0] sm:$0xfe]
      %v1080 = vld [vmem:[%s601 + $0x2d8] sm:$0xfe]
      %v1081 = vld [vmem:[%s601 + $0x2f0] sm:$0x1]
      %v1082 = vld [vmem:[%s601 + $0x2f8] sm:$0x1]
      %v1083 = vpack.c.bf16 %v925, %v1019
      %v1084 = vpack.c.bf16 %v926, %v1020
      %v1085 = vpack.c.bf16 %v1021, %v1021
      %v1086 = vpack.c.bf16 %v1022, %v1022
      %v1087 = vpack.c.bf16 %v929, %v1023
      %v1088 = vpack.c.bf16 %v930, %v1024
      %v1089 = vpack.c.bf16 %v1025, %v1025
      %v1090 = vpack.c.bf16 %v1026, %v1026
      %v1091 = vpack.c.bf16 %v933, %v1027
      %v1092 = vpack.c.bf16 %v934, %v1028
      %v1093 = vpack.c.bf16 %v1029, %v1029
      %v1094 = vpack.c.bf16 %v1030, %v1030
      %v1095 = vpack.c.bf16 %v937, %v1031
      %v1096 = vpack.c.bf16 %v938, %v1032
      %v1097 = vpack.c.bf16 %v1033, %v1033
      %v1098 = vpack.c.bf16 %v1034, %v1034
      %v1099 = vpack.c.bf16 %v941, %v1035
      %v1100 = vpack.c.bf16 %v942, %v1036
      %v1101 = vpack.c.bf16 %v1037, %v1037
      %v1102 = vpack.c.bf16 %v1038, %v1038
      %v1103 = vpack.c.bf16 %v945, %v1039
      %v1104 = vpack.c.bf16 %v946, %v1040
      %v1105 = vpack.c.bf16 %v1041, %v1041
      %v1106 = vpack.c.bf16 %v1042, %v1042
      %v1107 = vpack.c.bf16 %v949, %v1043
      %v1108 = vpack.c.bf16 %v950, %v1044
      %v1109 = vpack.c.bf16 %v1045, %v1045
      %v1110 = vpack.c.bf16 %v1046, %v1046
      %v1111 = vpack.c.bf16 %v953, %v1047
      %v1112 = vpack.c.bf16 %v954, %v1048
      %v1113 = vpack.c.bf16 %v1049, %v1049
      %v1114 = vpack.c.bf16 %v1050, %v1050
      %v1115 = vpack.c.bf16 %v957, %v1051
      %v1116 = vpack.c.bf16 %v958, %v1052
      %v1117 = vpack.c.bf16 %v1053, %v1053
      %v1118 = vpack.c.bf16 %v1054, %v1054
      %v1119 = vpack.c.bf16 %v961, %v1055
      %v1120 = vpack.c.bf16 %v962, %v1056
      %v1121 = vpack.c.bf16 %v1057, %v1057
      %v1122 = vpack.c.bf16 %v1058, %v1058
      %v1123 = vpack.c.bf16 %v965, %v1059
      %v1124 = vpack.c.bf16 %v966, %v1060
      %v1125 = vpack.c.bf16 %v1061, %v1061
      %v1126 = vpack.c.bf16 %v1062, %v1062
      %v1127 = vpack.c.bf16 %v969, %v1063
      %v1128 = vpack.c.bf16 %v970, %v1064
      %v1129 = vpack.c.bf16 %v1065, %v1065
      %v1130 = vpack.c.bf16 %v1066, %v1066
      %v1131 = vpack.c.bf16 %v973, %v1067
      %v1132 = vpack.c.bf16 %v974, %v1068
      %v1133 = vpack.c.bf16 %v1069, %v1069
      %v1134 = vpack.c.bf16 %v1070, %v1070
      %v1135 = vpack.c.bf16 %v977, %v1071
      %v1136 = vpack.c.bf16 %v978, %v1072
      %v1137 = vpack.c.bf16 %v1073, %v1073
      %v1138 = vpack.c.bf16 %v1074, %v1074
      %v1139 = vpack.c.bf16 %v981, %v1075
      %v1140 = vpack.c.bf16 %v982, %v1076
      %v1141 = vpack.c.bf16 %v1077, %v1077
      %v1142 = vpack.c.bf16 %v1078, %v1078
      %v1143 = vpack.c.bf16 %v985, %v1079
      %v1144 = vpack.c.bf16 %v986, %v1080
      %v1145 = vpack.c.bf16 %v1081, %v1081
      %v1146 = vpack.c.bf16 %v1082, %v1082
      %vm1147 = vsmask.f32 7424
      %v1149 = vshrl.u32 %v859, 16
      %v1151 = vshll.u32 %v859, 16
      %v1153 = vrot.slane %v1151, 1
      %v1154 = vor.u32 %v1149, %v1153
      %v1156 = vshll.u32 %v861, 16
      %v1158 = vrot.slane %v1156, 1
      %v1159 = vsel %vm1147, %v1154, %v1158
      %v1161 = vshrl.u32 %v860, 16
      %v1163 = vshll.u32 %v860, 16
      %v1165 = vrot.slane %v1163, 1
      %v1166 = vor.u32 %v1161, %v1165
      %v1168 = vshll.u32 %v862, 16
      %v1170 = vrot.slane %v1168, 1
      %v1171 = vsel %vm1147, %v1166, %v1170
      %v1173 = vshrl.u32 %v863, 16
      %v1175 = vshll.u32 %v863, 16
      %v1177 = vrot.slane %v1175, 1
      %v1178 = vor.u32 %v1173, %v1177
      %v1180 = vshll.u32 %v865, 16
      %v1182 = vrot.slane %v1180, 1
      %v1183 = vsel %vm1147, %v1178, %v1182
      %v1185 = vshrl.u32 %v864, 16
      %v1187 = vshll.u32 %v864, 16
      %v1189 = vrot.slane %v1187, 1
      %v1190 = vor.u32 %v1185, %v1189
      %v1192 = vshll.u32 %v866, 16
      %v1194 = vrot.slane %v1192, 1
      %v1195 = vsel %vm1147, %v1190, %v1194
      %v1197 = vshrl.u32 %v867, 16
      %v1199 = vshll.u32 %v867, 16
      %v1201 = vrot.slane %v1199, 1
      %v1202 = vor.u32 %v1197, %v1201
      %v1204 = vshll.u32 %v869, 16
      %v1206 = vrot.slane %v1204, 1
      %v1207 = vsel %vm1147, %v1202, %v1206
      %v1209 = vshrl.u32 %v868, 16
      %v1211 = vshll.u32 %v868, 16
      %v1213 = vrot.slane %v1211, 1
      %v1214 = vor.u32 %v1209, %v1213
      %v1216 = vshll.u32 %v870, 16
      %v1218 = vrot.slane %v1216, 1
      %v1219 = vsel %vm1147, %v1214, %v1218
      %v1221 = vshrl.u32 %v871, 16
      %v1223 = vshll.u32 %v871, 16
      %v1225 = vrot.slane %v1223, 1
      %v1226 = vor.u32 %v1221, %v1225
      %v1228 = vshll.u32 %v873, 16
      %v1230 = vrot.slane %v1228, 1
      %v1231 = vsel %vm1147, %v1226, %v1230
      %v1233 = vshrl.u32 %v872, 16
      %v1235 = vshll.u32 %v872, 16
      %v1237 = vrot.slane %v1235, 1
      %v1238 = vor.u32 %v1233, %v1237
      %v1240 = vshll.u32 %v874, 16
      %v1242 = vrot.slane %v1240, 1
      %v1243 = vsel %vm1147, %v1238, %v1242
      %v1245 = vshrl.u32 %v875, 16
      %v1247 = vshll.u32 %v875, 16
      %v1249 = vrot.slane %v1247, 1
      %v1250 = vor.u32 %v1245, %v1249
      %v1252 = vshll.u32 %v877, 16
      %v1254 = vrot.slane %v1252, 1
      %v1255 = vsel %vm1147, %v1250, %v1254
      %v1257 = vshrl.u32 %v876, 16
      %v1259 = vshll.u32 %v876, 16
      %v1261 = vrot.slane %v1259, 1
      %v1262 = vor.u32 %v1257, %v1261
      %v1264 = vshll.u32 %v878, 16
      %v1266 = vrot.slane %v1264, 1
      %v1267 = vsel %vm1147, %v1262, %v1266
      %v1269 = vshrl.u32 %v879, 16
      %v1271 = vshll.u32 %v879, 16
      %v1273 = vrot.slane %v1271, 1
      %v1274 = vor.u32 %v1269, %v1273
      %v1276 = vshll.u32 %v881, 16
      %v1278 = vrot.slane %v1276, 1
      %v1279 = vsel %vm1147, %v1274, %v1278
      %v1281 = vshrl.u32 %v880, 16
      %v1283 = vshll.u32 %v880, 16
      %v1285 = vrot.slane %v1283, 1
      %v1286 = vor.u32 %v1281, %v1285
      %v1288 = vshll.u32 %v882, 16
      %v1290 = vrot.slane %v1288, 1
      %v1291 = vsel %vm1147, %v1286, %v1290
      %v1293 = vshrl.u32 %v883, 16
      %v1295 = vshll.u32 %v883, 16
      %v1297 = vrot.slane %v1295, 1
      %v1298 = vor.u32 %v1293, %v1297
      %v1300 = vshll.u32 %v885, 16
      %v1302 = vrot.slane %v1300, 1
      %v1303 = vsel %vm1147, %v1298, %v1302
      %v1305 = vshrl.u32 %v884, 16
      %v1307 = vshll.u32 %v884, 16
      %v1309 = vrot.slane %v1307, 1
      %v1310 = vor.u32 %v1305, %v1309
      %v1312 = vshll.u32 %v886, 16
      %v1314 = vrot.slane %v1312, 1
      %v1315 = vsel %vm1147, %v1310, %v1314
      %v1317 = vshrl.u32 %v887, 16
      %v1319 = vshll.u32 %v887, 16
      %v1321 = vrot.slane %v1319, 1
      %v1322 = vor.u32 %v1317, %v1321
      %v1324 = vshll.u32 %v889, 16
      %v1326 = vrot.slane %v1324, 1
      %v1327 = vsel %vm1147, %v1322, %v1326
      %v1329 = vshrl.u32 %v888, 16
      %v1331 = vshll.u32 %v888, 16
      %v1333 = vrot.slane %v1331, 1
      %v1334 = vor.u32 %v1329, %v1333
      %v1336 = vshll.u32 %v890, 16
      %v1338 = vrot.slane %v1336, 1
      %v1339 = vsel %vm1147, %v1334, %v1338
      %v1341 = vshrl.u32 %v891, 16
      %v1343 = vshll.u32 %v891, 16
      %v1345 = vrot.slane %v1343, 1
      %v1346 = vor.u32 %v1341, %v1345
      %v1348 = vshll.u32 %v893, 16
      %v1350 = vrot.slane %v1348, 1
      %v1351 = vsel %vm1147, %v1346, %v1350
      %v1353 = vshrl.u32 %v892, 16
      %v1355 = vshll.u32 %v892, 16
      %v1357 = vrot.slane %v1355, 1
      %v1358 = vor.u32 %v1353, %v1357
      %v1360 = vshll.u32 %v894, 16
      %v1362 = vrot.slane %v1360, 1
      %v1363 = vsel %vm1147, %v1358, %v1362
      %v1365 = vshrl.u32 %v895, 16
      %v1367 = vshll.u32 %v895, 16
      %v1369 = vrot.slane %v1367, 1
      %v1370 = vor.u32 %v1365, %v1369
      %v1372 = vshll.u32 %v897, 16
      %v1374 = vrot.slane %v1372, 1
      %v1375 = vsel %vm1147, %v1370, %v1374
      %v1377 = vshrl.u32 %v896, 16
      %v1379 = vshll.u32 %v896, 16
      %v1381 = vrot.slane %v1379, 1
      %v1382 = vor.u32 %v1377, %v1381
      %v1384 = vshll.u32 %v898, 16
      %v1386 = vrot.slane %v1384, 1
      %v1387 = vsel %vm1147, %v1382, %v1386
      %v1389 = vshrl.u32 %v899, 16
      %v1391 = vshll.u32 %v899, 16
      %v1393 = vrot.slane %v1391, 1
      %v1394 = vor.u32 %v1389, %v1393
      %v1396 = vshll.u32 %v901, 16
      %v1398 = vrot.slane %v1396, 1
      %v1399 = vsel %vm1147, %v1394, %v1398
      %v1401 = vshrl.u32 %v900, 16
      %v1403 = vshll.u32 %v900, 16
      %v1405 = vrot.slane %v1403, 1
      %v1406 = vor.u32 %v1401, %v1405
      %v1408 = vshll.u32 %v902, 16
      %v1410 = vrot.slane %v1408, 1
      %v1411 = vsel %vm1147, %v1406, %v1410
      %v1413 = vshrl.u32 %v903, 16
      %v1415 = vshll.u32 %v903, 16
      %v1417 = vrot.slane %v1415, 1
      %v1418 = vor.u32 %v1413, %v1417
      %v1420 = vshll.u32 %v905, 16
      %v1422 = vrot.slane %v1420, 1
      %v1423 = vsel %vm1147, %v1418, %v1422
      %v1425 = vshrl.u32 %v904, 16
      %v1427 = vshll.u32 %v904, 16
      %v1429 = vrot.slane %v1427, 1
      %v1430 = vor.u32 %v1425, %v1429
      %v1432 = vshll.u32 %v906, 16
      %v1434 = vrot.slane %v1432, 1
      %v1435 = vsel %vm1147, %v1430, %v1434
      %v1437 = vshrl.u32 %v907, 16
      %v1439 = vshll.u32 %v907, 16
      %v1441 = vrot.slane %v1439, 1
      %v1442 = vor.u32 %v1437, %v1441
      %v1444 = vshll.u32 %v909, 16
      %v1446 = vrot.slane %v1444, 1
      %v1447 = vsel %vm1147, %v1442, %v1446
      %v1449 = vshrl.u32 %v908, 16
      %v1451 = vshll.u32 %v908, 16
      %v1453 = vrot.slane %v1451, 1
      %v1454 = vor.u32 %v1449, %v1453
      %v1456 = vshll.u32 %v910, 16
      %v1458 = vrot.slane %v1456, 1
      %v1459 = vsel %vm1147, %v1454, %v1458
      %v1461 = vshrl.u32 %v911, 16
      %v1463 = vshll.u32 %v911, 16
      %v1465 = vrot.slane %v1463, 1
      %v1466 = vor.u32 %v1461, %v1465
      %v1468 = vshll.u32 %v913, 16
      %v1470 = vrot.slane %v1468, 1
      %v1471 = vsel %vm1147, %v1466, %v1470
      %v1473 = vshrl.u32 %v912, 16
      %v1475 = vshll.u32 %v912, 16
      %v1477 = vrot.slane %v1475, 1
      %v1478 = vor.u32 %v1473, %v1477
      %v1480 = vshll.u32 %v914, 16
      %v1482 = vrot.slane %v1480, 1
      %v1483 = vsel %vm1147, %v1478, %v1482
      %v1485 = vshrl.u32 %v915, 16
      %v1487 = vshll.u32 %v915, 16
      %v1489 = vrot.slane %v1487, 1
      %v1490 = vor.u32 %v1485, %v1489
      %v1492 = vshll.u32 %v917, 16
      %v1494 = vrot.slane %v1492, 1
      %v1495 = vsel %vm1147, %v1490, %v1494
      %v1497 = vshrl.u32 %v916, 16
      %v1499 = vshll.u32 %v916, 16
      %v1501 = vrot.slane %v1499, 1
      %v1502 = vor.u32 %v1497, %v1501
      %v1504 = vshll.u32 %v918, 16
      %v1506 = vrot.slane %v1504, 1
      %v1507 = vsel %vm1147, %v1502, %v1506
      %v1509 = vshrl.u32 %v919, 16
      %v1511 = vshll.u32 %v919, 16
      %v1513 = vrot.slane %v1511, 1
      %v1514 = vor.u32 %v1509, %v1513
      %v1516 = vshll.u32 %v921, 16
      %v1518 = vrot.slane %v1516, 1
      %v1519 = vsel %vm1147, %v1514, %v1518
      %v1521 = vshrl.u32 %v920, 16
      %v1523 = vshll.u32 %v920, 16
      %v1525 = vrot.slane %v1523, 1
      %v1526 = vor.u32 %v1521, %v1525
      %v1528 = vshll.u32 %v922, 16
      %v1530 = vrot.slane %v1528, 1
      %v1531 = vsel %vm1147, %v1526, %v1530
      %v1565 = vshrl.u32 %v1083, 16
      %v1567 = vshll.u32 %v1083, 16
      %v1569 = vrot.slane %v1567, 1
      %v1570 = vor.u32 %v1565, %v1569
      %v1572 = vshll.u32 %v1085, 16
      %v1574 = vrot.slane %v1572, 1
      %v1575 = vsel %vm1147, %v1570, %v1574
      %v1577 = vshrl.u32 %v1084, 16
      %v1579 = vshll.u32 %v1084, 16
      %v1581 = vrot.slane %v1579, 1
      %v1582 = vor.u32 %v1577, %v1581
      %v1584 = vshll.u32 %v1086, 16
      %v1586 = vrot.slane %v1584, 1
      %v1587 = vsel %vm1147, %v1582, %v1586
      %v1589 = vshrl.u32 %v1087, 16
      %v1591 = vshll.u32 %v1087, 16
      %v1593 = vrot.slane %v1591, 1
      %v1594 = vor.u32 %v1589, %v1593
      %v1596 = vshll.u32 %v1089, 16
      %v1598 = vrot.slane %v1596, 1
      %v1599 = vsel %vm1147, %v1594, %v1598
      %v1601 = vshrl.u32 %v1088, 16
      %v1603 = vshll.u32 %v1088, 16
      %v1605 = vrot.slane %v1603, 1
      %v1606 = vor.u32 %v1601, %v1605
      %v1608 = vshll.u32 %v1090, 16
      %v1610 = vrot.slane %v1608, 1
      %v1611 = vsel %vm1147, %v1606, %v1610
      %v1613 = vshrl.u32 %v1091, 16
      %v1615 = vshll.u32 %v1091, 16
      %v1617 = vrot.slane %v1615, 1
      %v1618 = vor.u32 %v1613, %v1617
      %v1620 = vshll.u32 %v1093, 16
      %v1622 = vrot.slane %v1620, 1
      %v1623 = vsel %vm1147, %v1618, %v1622
      %v1625 = vshrl.u32 %v1092, 16
      %v1627 = vshll.u32 %v1092, 16
      %v1629 = vrot.slane %v1627, 1
      %v1630 = vor.u32 %v1625, %v1629
      %v1632 = vshll.u32 %v1094, 16
      %v1634 = vrot.slane %v1632, 1
      %v1635 = vsel %vm1147, %v1630, %v1634
      %v1637 = vshrl.u32 %v1095, 16
      %v1639 = vshll.u32 %v1095, 16
      %v1641 = vrot.slane %v1639, 1
      %v1642 = vor.u32 %v1637, %v1641
      %v1644 = vshll.u32 %v1097, 16
      %v1646 = vrot.slane %v1644, 1
      %v1647 = vsel %vm1147, %v1642, %v1646
      %v1649 = vshrl.u32 %v1096, 16
      %v1651 = vshll.u32 %v1096, 16
      %v1653 = vrot.slane %v1651, 1
      %v1654 = vor.u32 %v1649, %v1653
      %v1656 = vshll.u32 %v1098, 16
      %v1658 = vrot.slane %v1656, 1
      %v1659 = vsel %vm1147, %v1654, %v1658
      %v1661 = vshrl.u32 %v1099, 16
      %v1663 = vshll.u32 %v1099, 16
      %v1665 = vrot.slane %v1663, 1
      %v1666 = vor.u32 %v1661, %v1665
      %v1668 = vshll.u32 %v1101, 16
      %v1670 = vrot.slane %v1668, 1
      %v1671 = vsel %vm1147, %v1666, %v1670
      %v1673 = vshrl.u32 %v1100, 16
      %v1675 = vshll.u32 %v1100, 16
      %v1677 = vrot.slane %v1675, 1
      %v1678 = vor.u32 %v1673, %v1677
      %v1680 = vshll.u32 %v1102, 16
      %v1682 = vrot.slane %v1680, 1
      %v1683 = vsel %vm1147, %v1678, %v1682
      %v1685 = vshrl.u32 %v1103, 16
      %v1687 = vshll.u32 %v1103, 16
      %v1689 = vrot.slane %v1687, 1
      %v1690 = vor.u32 %v1685, %v1689
      %v1692 = vshll.u32 %v1105, 16
      %v1694 = vrot.slane %v1692, 1
      %v1695 = vsel %vm1147, %v1690, %v1694
      %v1697 = vshrl.u32 %v1104, 16
      %v1699 = vshll.u32 %v1104, 16
      %v1701 = vrot.slane %v1699, 1
      %v1702 = vor.u32 %v1697, %v1701
      %v1704 = vshll.u32 %v1106, 16
      %v1706 = vrot.slane %v1704, 1
      %v1707 = vsel %vm1147, %v1702, %v1706
      %v1709 = vshrl.u32 %v1107, 16
      %v1711 = vshll.u32 %v1107, 16
      %v1713 = vrot.slane %v1711, 1
      %v1714 = vor.u32 %v1709, %v1713
      %v1716 = vshll.u32 %v1109, 16
      %v1718 = vrot.slane %v1716, 1
      %v1719 = vsel %vm1147, %v1714, %v1718
      %v1721 = vshrl.u32 %v1108, 16
      %v1723 = vshll.u32 %v1108, 16
      %v1725 = vrot.slane %v1723, 1
      %v1726 = vor.u32 %v1721, %v1725
      %v1728 = vshll.u32 %v1110, 16
      %v1730 = vrot.slane %v1728, 1
      %v1731 = vsel %vm1147, %v1726, %v1730
      %v1733 = vshrl.u32 %v1111, 16
      %v1735 = vshll.u32 %v1111, 16
      %v1737 = vrot.slane %v1735, 1
      %v1738 = vor.u32 %v1733, %v1737
      %v1740 = vshll.u32 %v1113, 16
      %v1742 = vrot.slane %v1740, 1
      %v1743 = vsel %vm1147, %v1738, %v1742
      %v1745 = vshrl.u32 %v1112, 16
      %v1747 = vshll.u32 %v1112, 16
      %v1749 = vrot.slane %v1747, 1
      %v1750 = vor.u32 %v1745, %v1749
      %v1752 = vshll.u32 %v1114, 16
      %v1754 = vrot.slane %v1752, 1
      %v1755 = vsel %vm1147, %v1750, %v1754
      %v1757 = vshrl.u32 %v1115, 16
      %v1759 = vshll.u32 %v1115, 16
      %v1761 = vrot.slane %v1759, 1
      %v1762 = vor.u32 %v1757, %v1761
      %v1764 = vshll.u32 %v1117, 16
      %v1766 = vrot.slane %v1764, 1
      %v1767 = vsel %vm1147, %v1762, %v1766
      %v1769 = vshrl.u32 %v1116, 16
      %v1771 = vshll.u32 %v1116, 16
      %v1773 = vrot.slane %v1771, 1
      %v1774 = vor.u32 %v1769, %v1773
      %v1776 = vshll.u32 %v1118, 16
      %v1778 = vrot.slane %v1776, 1
      %v1779 = vsel %vm1147, %v1774, %v1778
      %v1781 = vshrl.u32 %v1119, 16
      %v1783 = vshll.u32 %v1119, 16
      %v1785 = vrot.slane %v1783, 1
      %v1786 = vor.u32 %v1781, %v1785
      %v1788 = vshll.u32 %v1121, 16
      %v1790 = vrot.slane %v1788, 1
      %v1791 = vsel %vm1147, %v1786, %v1790
      %v1793 = vshrl.u32 %v1120, 16
      %v1795 = vshll.u32 %v1120, 16
      %v1797 = vrot.slane %v1795, 1
      %v1798 = vor.u32 %v1793, %v1797
      %v1800 = vshll.u32 %v1122, 16
      %v1802 = vrot.slane %v1800, 1
      %v1803 = vsel %vm1147, %v1798, %v1802
      %v1805 = vshrl.u32 %v1123, 16
      %v1807 = vshll.u32 %v1123, 16
      %v1809 = vrot.slane %v1807, 1
      %v1810 = vor.u32 %v1805, %v1809
      %v1812 = vshll.u32 %v1125, 16
      %v1814 = vrot.slane %v1812, 1
      %v1815 = vsel %vm1147, %v1810, %v1814
      %v1817 = vshrl.u32 %v1124, 16
      %v1819 = vshll.u32 %v1124, 16
      %v1821 = vrot.slane %v1819, 1
      %v1822 = vor.u32 %v1817, %v1821
      %v1824 = vshll.u32 %v1126, 16
      %v1826 = vrot.slane %v1824, 1
      %v1827 = vsel %vm1147, %v1822, %v1826
      %v1829 = vshrl.u32 %v1127, 16
      %v1831 = vshll.u32 %v1127, 16
      %v1833 = vrot.slane %v1831, 1
      %v1834 = vor.u32 %v1829, %v1833
      %v1836 = vshll.u32 %v1129, 16
      %v1838 = vrot.slane %v1836, 1
      %v1839 = vsel %vm1147, %v1834, %v1838
      %v1841 = vshrl.u32 %v1128, 16
      %v1843 = vshll.u32 %v1128, 16
      %v1845 = vrot.slane %v1843, 1
      %v1846 = vor.u32 %v1841, %v1845
      %v1848 = vshll.u32 %v1130, 16
      %v1850 = vrot.slane %v1848, 1
      %v1851 = vsel %vm1147, %v1846, %v1850
      %v1853 = vshrl.u32 %v1131, 16
      %v1855 = vshll.u32 %v1131, 16
      %v1857 = vrot.slane %v1855, 1
      %v1858 = vor.u32 %v1853, %v1857
      %v1860 = vshll.u32 %v1133, 16
      %v1862 = vrot.slane %v1860, 1
      %v1863 = vsel %vm1147, %v1858, %v1862
      %v1865 = vshrl.u32 %v1132, 16
      %v1867 = vshll.u32 %v1132, 16
      %v1869 = vrot.slane %v1867, 1
      %v1870 = vor.u32 %v1865, %v1869
      %v1872 = vshll.u32 %v1134, 16
      %v1874 = vrot.slane %v1872, 1
      %v1875 = vsel %vm1147, %v1870, %v1874
      %v1877 = vshrl.u32 %v1135, 16
      %v1879 = vshll.u32 %v1135, 16
      %v1881 = vrot.slane %v1879, 1
      %v1882 = vor.u32 %v1877, %v1881
      %v1884 = vshll.u32 %v1137, 16
      %v1886 = vrot.slane %v1884, 1
      %v1887 = vsel %vm1147, %v1882, %v1886
      %v1889 = vshrl.u32 %v1136, 16
      %v1891 = vshll.u32 %v1136, 16
      %v1893 = vrot.slane %v1891, 1
      %v1894 = vor.u32 %v1889, %v1893
      %v1896 = vshll.u32 %v1138, 16
      %v1898 = vrot.slane %v1896, 1
      %v1899 = vsel %vm1147, %v1894, %v1898
      %v1901 = vshrl.u32 %v1139, 16
      %v1903 = vshll.u32 %v1139, 16
      %v1905 = vrot.slane %v1903, 1
      %v1906 = vor.u32 %v1901, %v1905
      %v1908 = vshll.u32 %v1141, 16
      %v1910 = vrot.slane %v1908, 1
      %v1911 = vsel %vm1147, %v1906, %v1910
      %v1913 = vshrl.u32 %v1140, 16
      %v1915 = vshll.u32 %v1140, 16
      %v1917 = vrot.slane %v1915, 1
      %v1918 = vor.u32 %v1913, %v1917
      %v1920 = vshll.u32 %v1142, 16
      %v1922 = vrot.slane %v1920, 1
      %v1923 = vsel %vm1147, %v1918, %v1922
      %v1925 = vshrl.u32 %v1143, 16
      %v1927 = vshll.u32 %v1143, 16
      %v1929 = vrot.slane %v1927, 1
      %v1930 = vor.u32 %v1925, %v1929
      %v1932 = vshll.u32 %v1145, 16
      %v1934 = vrot.slane %v1932, 1
      %v1935 = vsel %vm1147, %v1930, %v1934
      %v1937 = vshrl.u32 %v1144, 16
      %v1939 = vshll.u32 %v1144, 16
      %v1941 = vrot.slane %v1939, 1
      %v1942 = vor.u32 %v1937, %v1941
      %v1944 = vshll.u32 %v1146, 16
      %v1946 = vrot.slane %v1944, 1
      %v1947 = vsel %vm1147, %v1942, %v1946
      %v1980 = vld [vmem:[%s1] sm:$0xf]
      %v1981 = vld [vmem:[%s1 + $0x4] sm:$0xf]
      %v1982 = vld [vmem:[%s1 + $0x8] sm:$0xf]
      %v1983 = vld [vmem:[%s1 + $0xc] sm:$0xf]
      %v1984 = vld [vmem:[%s1 + $0x10] sm:$0xf]
      %v1985 = vld [vmem:[%s1 + $0x14] sm:$0xf]
      %v1986 = vld [vmem:[%s1 + $0x18] sm:$0xf]
      %v1987 = vld [vmem:[%s1 + $0x1c] sm:$0xf]
      %v1988 = vld [vmem:[%s1 + $0x20] sm:$0xf]
      %v1989 = vld [vmem:[%s1 + $0x24] sm:$0xf]
      %v1990 = vld [vmem:[%s1 + $0x28] sm:$0xf]
      %v1991 = vld [vmem:[%s1 + $0x2c] sm:$0xf]
      %v1992 = vld [vmem:[%s1 + $0x30] sm:$0xf]
      %v1993 = vld [vmem:[%s1 + $0x34] sm:$0xf]
      %v1994 = vld [vmem:[%s1 + $0x38] sm:$0xf]
      %v1995 = vld [vmem:[%s1 + $0x3c] sm:$0xf]
      %v1996 = vld [vmem:[%s1 + $0x40] sm:$0xf]
      %v1997 = vld [vmem:[%s1 + $0x44] sm:$0xf]
      %v1998 = vld [vmem:[%s1 + $0x48] sm:$0xf]
      %v1999 = vld [vmem:[%s1 + $0x4c] sm:$0xf]
      %v2000 = vld [vmem:[%s1 + $0x50] sm:$0xf]
      %v2001 = vld [vmem:[%s1 + $0x54] sm:$0xf]
      %v2002 = vld [vmem:[%s1 + $0x58] sm:$0xf]
      %v2003 = vld [vmem:[%s1 + $0x5c] sm:$0xf]
      %v2004 = vld [vmem:[%s1 + $0x60] sm:$0xf]
      %v2005 = vld [vmem:[%s1 + $0x64] sm:$0xf]
      %v2006 = vld [vmem:[%s1 + $0x68] sm:$0xf]
      %v2007 = vld [vmem:[%s1 + $0x6c] sm:$0xf]
      %v2008 = vld [vmem:[%s1 + $0x70] sm:$0xf]
      %v2009 = vld [vmem:[%s1 + $0x74] sm:$0xf]
      %v2010 = vld [vmem:[%s1 + $0x78] sm:$0xf]
      %v2011 = vld [vmem:[%s1 + $0x7c] sm:$0xf]
      %v2012 = vld [vmem:[%s1 + $0x80] sm:$0xf]
      %v2013 = vld [vmem:[%s1 + $0x84] sm:$0xf]
      %v2014 = vld [vmem:[%s1 + $0x88] sm:$0xf]
      %v2015 = vld [vmem:[%s1 + $0x8c] sm:$0xf]
      %v2016 = vld [vmem:[%s1 + $0x90] sm:$0xf]
      %v2017 = vld [vmem:[%s1 + $0x94] sm:$0xf]
      %v2018 = vld [vmem:[%s1 + $0x98] sm:$0xf]
      %v2019 = vld [vmem:[%s1 + $0x9c] sm:$0xf]
      %v2020 = vld [vmem:[%s1 + $0xa0] sm:$0xf]
      %v2021 = vld [vmem:[%s1 + $0xa4] sm:$0xf]
      %v2022 = vld [vmem:[%s1 + $0xa8] sm:$0xf]
      %v2023 = vld [vmem:[%s1 + $0xac] sm:$0xf]
      %v2024 = vld [vmem:[%s1 + $0xb0] sm:$0xf]
      %v2025 = vld [vmem:[%s1 + $0xb4] sm:$0xf]
      %v2026 = vld [vmem:[%s1 + $0xb8] sm:$0xf]
      %v2027 = vld [vmem:[%s1 + $0xbc] sm:$0xf]
      %v2028 = vld [vmem:[%s1 + $0xc0] sm:$0xf]
      %v2029 = vld [vmem:[%s1 + $0xc4] sm:$0xf]
      %v2030 = vld [vmem:[%s1 + $0xc8] sm:$0xf]
      %v2031 = vld [vmem:[%s1 + $0xcc] sm:$0xf]
      %v2032 = vld [vmem:[%s1 + $0xd0] sm:$0xf]
      %v2033 = vld [vmem:[%s1 + $0xd4] sm:$0xf]
      %v2034 = vld [vmem:[%s1 + $0xd8] sm:$0xf]
      %v2035 = vld [vmem:[%s1 + $0xdc] sm:$0xf]
      %v2036 = vld [vmem:[%s1 + $0xe0] sm:$0xf]
      %v2037 = vld [vmem:[%s1 + $0xe4] sm:$0xf]
      %v2038 = vld [vmem:[%s1 + $0xe8] sm:$0xf]
      %v2039 = vld [vmem:[%s1 + $0xec] sm:$0xf]
      %v2040 = vld [vmem:[%s1 + $0xf0] sm:$0xf]
      %v2041 = vld [vmem:[%s1 + $0xf4] sm:$0xf]
      %v2042 = vld [vmem:[%s1 + $0xf8] sm:$0xf]
      %v2043 = vld [vmem:[%s1 + $0xfc] sm:$0xf]
      %v2044 = vld [vmem:[%s1 + $0x100] sm:$0xf]
      %v2045 = vld [vmem:[%s1 + $0x104] sm:$0xf]
      %v2046 = vld [vmem:[%s1 + $0x108] sm:$0xf]
      %v2047 = vld [vmem:[%s1 + $0x10c] sm:$0xf]
      %v2048 = vld [vmem:[%s1 + $0x110] sm:$0xf]
      %v2049 = vld [vmem:[%s1 + $0x114] sm:$0xf]
      %v2050 = vld [vmem:[%s1 + $0x118] sm:$0xf]
      %v2051 = vld [vmem:[%s1 + $0x11c] sm:$0xf]
      %v2052 = vld [vmem:[%s1 + $0x120] sm:$0xf]
      %v2053 = vld [vmem:[%s1 + $0x124] sm:$0xf]
      %v2054 = vld [vmem:[%s1 + $0x128] sm:$0xf]
      %v2055 = vld [vmem:[%s1 + $0x12c] sm:$0xf]
      %v2056 = vld [vmem:[%s1 + $0x130] sm:$0xf]
      %v2057 = vld [vmem:[%s1 + $0x134] sm:$0xf]
      %v2058 = vld [vmem:[%s1 + $0x138] sm:$0xf]
      %v2059 = vld [vmem:[%s1 + $0x13c] sm:$0xf]
      %v2060 = vld [vmem:[%s1 + $0x140] sm:$0xf]
      %v2061 = vld [vmem:[%s1 + $0x144] sm:$0xf]
      %v2062 = vld [vmem:[%s1 + $0x148] sm:$0xf]
      %v2063 = vld [vmem:[%s1 + $0x14c] sm:$0xf]
      %v2064 = vld [vmem:[%s1 + $0x150] sm:$0xf]
      %v2065 = vld [vmem:[%s1 + $0x154] sm:$0xf]
      %v2066 = vld [vmem:[%s1 + $0x158] sm:$0xf]
      %v2067 = vld [vmem:[%s1 + $0x15c] sm:$0xf]
      %v2068 = vld [vmem:[%s1 + $0x160] sm:$0xf]
      %v2069 = vld [vmem:[%s1 + $0x164] sm:$0xf]
      %v2070 = vld [vmem:[%s1 + $0x168] sm:$0xf]
      %v2071 = vld [vmem:[%s1 + $0x16c] sm:$0xf]
      %v2072 = vld [vmem:[%s1 + $0x170] sm:$0xf]
      %v2073 = vld [vmem:[%s1 + $0x174] sm:$0xf]
      %v2074 = vld [vmem:[%s1 + $0x178] sm:$0xf]
      %v2075 = vld [vmem:[%s1 + $0x17c] sm:$0xf]
      %v2076 = vld [vmem:[%s1 + $0x180] sm:$0xf]
      %v2077 = vld [vmem:[%s1 + $0x184] sm:$0xf]
      %v2078 = vld [vmem:[%s1 + $0x188] sm:$0xf]
      %v2079 = vld [vmem:[%s1 + $0x18c] sm:$0xf]
      %v2080 = vld [vmem:[%s1 + $0x190] sm:$0xf]
      %v2081 = vld [vmem:[%s1 + $0x194] sm:$0xf]
      %v2082 = vld [vmem:[%s1 + $0x198] sm:$0xf]
      %v2083 = vld [vmem:[%s1 + $0x19c] sm:$0xf]
      %v2084 = vld [vmem:[%s1 + $0x1a0] sm:$0xf]
      %v2085 = vld [vmem:[%s1 + $0x1a4] sm:$0xf]
      %v2086 = vld [vmem:[%s1 + $0x1a8] sm:$0xf]
      %v2087 = vld [vmem:[%s1 + $0x1ac] sm:$0xf]
      %v2088 = vld [vmem:[%s1 + $0x1b0] sm:$0xf]
      %v2089 = vld [vmem:[%s1 + $0x1b4] sm:$0xf]
      %v2090 = vld [vmem:[%s1 + $0x1b8] sm:$0xf]
      %v2091 = vld [vmem:[%s1 + $0x1bc] sm:$0xf]
      %v2092 = vld [vmem:[%s1 + $0x1c0] sm:$0xf]
      %v2093 = vld [vmem:[%s1 + $0x1c4] sm:$0xf]
      %v2094 = vld [vmem:[%s1 + $0x1c8] sm:$0xf]
      %v2095 = vld [vmem:[%s1 + $0x1cc] sm:$0xf]
      %v2096 = vld [vmem:[%s1 + $0x1d0] sm:$0xf]
      %v2097 = vld [vmem:[%s1 + $0x1d4] sm:$0xf]
      %v2098 = vld [vmem:[%s1 + $0x1d8] sm:$0xf]
      %v2099 = vld [vmem:[%s1 + $0x1dc] sm:$0xf]
      %v2100 = vld [vmem:[%s1 + $0x1e0] sm:$0xf]
      %v2101 = vld [vmem:[%s1 + $0x1e4] sm:$0xf]
      %v2102 = vld [vmem:[%s1 + $0x1e8] sm:$0xf]
      %v2103 = vld [vmem:[%s1 + $0x1ec] sm:$0xf]
      %v2104 = vld [vmem:[%s1 + $0x1f0] sm:$0xf]
      %v2105 = vld [vmem:[%s1 + $0x1f4] sm:$0xf]
      %v2106 = vld [vmem:[%s1 + $0x1f8] sm:$0xf]
      %v2107 = vld [vmem:[%s1 + $0x1fc] sm:$0xf]
      %v2109 = vlaneseq
      %v2110 = vshrl.u32 %v2109, 7
      %v2111 = vsub.s32 0, %v2110
      %v2112 = vrot.slane %v698, %v2111
      %v2242 = vunpack.c.l.b16 %v1980
      %v2243 = vunpack.c.l.b16 %v1981
      %v2244 = vunpack.c.l.b16 %v1982
      %v2245 = vunpack.c.l.b16 %v1983
      %v2246 = vunpack.c.l.b16 %v1984
      %v2247 = vunpack.c.l.b16 %v1985
      %v2248 = vunpack.c.l.b16 %v1986
      %v2249 = vunpack.c.l.b16 %v1987
      %v2250 = vunpack.c.l.b16 %v1988
      %v2251 = vunpack.c.l.b16 %v1989
      %v2252 = vunpack.c.l.b16 %v1990
      %v2253 = vunpack.c.l.b16 %v1991
      %v2254 = vunpack.c.l.b16 %v1992
      %v2255 = vunpack.c.l.b16 %v1993
      %v2256 = vunpack.c.l.b16 %v1994
      %v2257 = vunpack.c.l.b16 %v1995
      %v2258 = vunpack.c.l.b16 %v1996
      %v2259 = vunpack.c.l.b16 %v1997
      %v2260 = vunpack.c.l.b16 %v1998
      %v2261 = vunpack.c.l.b16 %v1999
      %v2262 = vunpack.c.l.b16 %v2000
      %v2263 = vunpack.c.l.b16 %v2001
      %v2264 = vunpack.c.l.b16 %v2002
      %v2265 = vunpack.c.l.b16 %v2003
      %v2266 = vunpack.c.l.b16 %v2004
      %v2267 = vunpack.c.l.b16 %v2005
      %v2268 = vunpack.c.l.b16 %v2006
      %v2269 = vunpack.c.l.b16 %v2007
      %v2270 = vunpack.c.l.b16 %v2008
      %v2271 = vunpack.c.l.b16 %v2009
      %v2272 = vunpack.c.l.b16 %v2010
      %v2273 = vunpack.c.l.b16 %v2011
      %v2274 = vunpack.c.l.b16 %v2012
      %v2275 = vunpack.c.l.b16 %v2013
      %v2276 = vunpack.c.l.b16 %v2014
      %v2277 = vunpack.c.l.b16 %v2015
      %v2278 = vunpack.c.l.b16 %v2016
      %v2279 = vunpack.c.l.b16 %v2017
      %v2280 = vunpack.c.l.b16 %v2018
      %v2281 = vunpack.c.l.b16 %v2019
      %v2282 = vunpack.c.l.b16 %v2020
      %v2283 = vunpack.c.l.b16 %v2021
      %v2284 = vunpack.c.l.b16 %v2022
      %v2285 = vunpack.c.l.b16 %v2023
      %v2286 = vunpack.c.l.b16 %v2024
      %v2287 = vunpack.c.l.b16 %v2025
      %v2288 = vunpack.c.l.b16 %v2026
      %v2289 = vunpack.c.l.b16 %v2027
      %v2290 = vunpack.c.l.b16 %v2028
      %v2291 = vunpack.c.l.b16 %v2029
      %v2292 = vunpack.c.l.b16 %v2030
      %v2293 = vunpack.c.l.b16 %v2031
      %v2294 = vunpack.c.l.b16 %v2032
      %v2295 = vunpack.c.l.b16 %v2033
      %v2296 = vunpack.c.l.b16 %v2034
      %v2297 = vunpack.c.l.b16 %v2035
      %v2298 = vunpack.c.l.b16 %v2036
      %v2299 = vunpack.c.l.b16 %v2037
      %v2300 = vunpack.c.l.b16 %v2038
      %v2301 = vunpack.c.l.b16 %v2039
      %v2302 = vunpack.c.l.b16 %v2040
      %v2303 = vunpack.c.l.b16 %v2041
      %v2304 = vunpack.c.l.b16 %v2042
      %v2305 = vunpack.c.l.b16 %v2043
      %v2306 = vunpack.c.l.b16 %v2044
      %v2307 = vunpack.c.l.b16 %v2045
      %v2308 = vunpack.c.l.b16 %v2046
      %v2309 = vunpack.c.l.b16 %v2047
      %v2310 = vunpack.c.l.b16 %v2048
      %v2311 = vunpack.c.l.b16 %v2049
      %v2312 = vunpack.c.l.b16 %v2050
      %v2313 = vunpack.c.l.b16 %v2051
      %v2314 = vunpack.c.l.b16 %v2052
      %v2315 = vunpack.c.l.b16 %v2053
      %v2316 = vunpack.c.l.b16 %v2054
      %v2317 = vunpack.c.l.b16 %v2055
      %v2318 = vunpack.c.l.b16 %v2056
      %v2319 = vunpack.c.l.b16 %v2057
      %v2320 = vunpack.c.l.b16 %v2058
      %v2321 = vunpack.c.l.b16 %v2059
      %v2322 = vunpack.c.l.b16 %v2060
      %v2323 = vunpack.c.l.b16 %v2061
      %v2324 = vunpack.c.l.b16 %v2062
      %v2325 = vunpack.c.l.b16 %v2063
      %v2326 = vunpack.c.l.b16 %v2064
      %v2327 = vunpack.c.l.b16 %v2065
      %v2328 = vunpack.c.l.b16 %v2066
      %v2329 = vunpack.c.l.b16 %v2067
      %v2330 = vunpack.c.l.b16 %v2068
      %v2331 = vunpack.c.l.b16 %v2069
      %v2332 = vunpack.c.l.b16 %v2070
      %v2333 = vunpack.c.l.b16 %v2071
      %v2334 = vunpack.c.l.b16 %v2072
      %v2335 = vunpack.c.l.b16 %v2073
      %v2336 = vunpack.c.l.b16 %v2074
      %v2337 = vunpack.c.l.b16 %v2075
      %v2338 = vunpack.c.l.b16 %v2076
      %v2339 = vunpack.c.l.b16 %v2077
      %v2340 = vunpack.c.l.b16 %v2078
      %v2341 = vunpack.c.l.b16 %v2079
      %v2342 = vunpack.c.l.b16 %v2080
      %v2343 = vunpack.c.l.b16 %v2081
      %v2344 = vunpack.c.l.b16 %v2082
      %v2345 = vunpack.c.l.b16 %v2083
      %v2346 = vunpack.c.l.b16 %v2084
      %v2347 = vunpack.c.l.b16 %v2085
      %v2348 = vunpack.c.l.b16 %v2086
      %v2349 = vunpack.c.l.b16 %v2087
      %v2350 = vunpack.c.l.b16 %v2088
      %v2351 = vunpack.c.l.b16 %v2089
      %v2352 = vunpack.c.l.b16 %v2090
      %v2353 = vunpack.c.l.b16 %v2091
      %v2354 = vunpack.c.l.b16 %v2092
      %v2355 = vunpack.c.l.b16 %v2093
      %v2356 = vunpack.c.l.b16 %v2094
      %v2357 = vunpack.c.l.b16 %v2095
      %v2358 = vunpack.c.l.b16 %v2096
      %v2359 = vunpack.c.l.b16 %v2097
      %v2360 = vunpack.c.l.b16 %v2098
      %v2361 = vunpack.c.l.b16 %v2099
      %v2362 = vunpack.c.l.b16 %v2100
      %v2363 = vunpack.c.l.b16 %v2101
      %v2364 = vunpack.c.l.b16 %v2102
      %v2365 = vunpack.c.l.b16 %v2103
      %v2366 = vunpack.c.l.b16 %v2104
      %v2367 = vunpack.c.l.b16 %v2105
      %v2368 = vunpack.c.l.b16 %v2106
      %v2369 = vunpack.c.l.b16 %v2107
      %v2370 = vpack.c.b16 %v2243, %v2242
      %v2371 = vpack.c.b16 %v2245, %v2244
      %v2372 = vpack.c.b16 %v2247, %v2246
      %v2373 = vpack.c.b16 %v2249, %v2248
      %v2374 = vpack.c.b16 %v2251, %v2250
      %v2375 = vpack.c.b16 %v2253, %v2252
      %v2376 = vpack.c.b16 %v2255, %v2254
      %v2377 = vpack.c.b16 %v2257, %v2256
      %v2378 = vpack.c.b16 %v2259, %v2258
      %v2379 = vpack.c.b16 %v2261, %v2260
      %v2380 = vpack.c.b16 %v2263, %v2262
      %v2381 = vpack.c.b16 %v2265, %v2264
      %v2382 = vpack.c.b16 %v2267, %v2266
      %v2383 = vpack.c.b16 %v2269, %v2268
      %v2384 = vpack.c.b16 %v2271, %v2270
      %v2385 = vpack.c.b16 %v2273, %v2272
      %v2386 = vpack.c.b16 %v2275, %v2274
      %v2387 = vpack.c.b16 %v2277, %v2276
      %v2388 = vpack.c.b16 %v2279, %v2278
      %v2389 = vpack.c.b16 %v2281, %v2280
      %v2390 = vpack.c.b16 %v2283, %v2282
      %v2391 = vpack.c.b16 %v2285, %v2284
      %v2392 = vpack.c.b16 %v2287, %v2286
      %v2393 = vpack.c.b16 %v2289, %v2288
      %v2394 = vpack.c.b16 %v2291, %v2290
      %v2395 = vpack.c.b16 %v2293, %v2292
      %v2396 = vpack.c.b16 %v2295, %v2294
      %v2397 = vpack.c.b16 %v2297, %v2296
      %v2398 = vpack.c.b16 %v2299, %v2298
      %v2399 = vpack.c.b16 %v2301, %v2300
      %v2400 = vpack.c.b16 %v2303, %v2302
      %v2401 = vpack.c.b16 %v2305, %v2304
      %v2402 = vpack.c.b16 %v2307, %v2306
      %v2403 = vpack.c.b16 %v2309, %v2308
      %v2404 = vpack.c.b16 %v2311, %v2310
      %v2405 = vpack.c.b16 %v2313, %v2312
      %v2406 = vpack.c.b16 %v2315, %v2314
      %v2407 = vpack.c.b16 %v2317, %v2316
      %v2408 = vpack.c.b16 %v2319, %v2318
      %v2409 = vpack.c.b16 %v2321, %v2320
      %v2410 = vpack.c.b16 %v2323, %v2322
      %v2411 = vpack.c.b16 %v2325, %v2324
      %v2412 = vpack.c.b16 %v2327, %v2326
      %v2413 = vpack.c.b16 %v2329, %v2328
      %v2414 = vpack.c.b16 %v2331, %v2330
      %v2415 = vpack.c.b16 %v2333, %v2332
      %v2416 = vpack.c.b16 %v2335, %v2334
      %v2417 = vpack.c.b16 %v2337, %v2336
      %v2418 = vpack.c.b16 %v2339, %v2338
      %v2419 = vpack.c.b16 %v2341, %v2340
      %v2420 = vpack.c.b16 %v2343, %v2342
      %v2421 = vpack.c.b16 %v2345, %v2344
      %v2422 = vpack.c.b16 %v2347, %v2346
      %v2423 = vpack.c.b16 %v2349, %v2348
      %v2424 = vpack.c.b16 %v2351, %v2350
      %v2425 = vpack.c.b16 %v2353, %v2352
      %v2426 = vpack.c.b16 %v2355, %v2354
      %v2427 = vpack.c.b16 %v2357, %v2356
      %v2428 = vpack.c.b16 %v2359, %v2358
      %v2429 = vpack.c.b16 %v2361, %v2360
      %v2430 = vpack.c.b16 %v2363, %v2362
      %v2431 = vpack.c.b16 %v2365, %v2364
      %v2432 = vpack.c.b16 %v2367, %v2366
      %v2433 = vpack.c.b16 %v2369, %v2368
      %2498 = vmatprep.subr.bf16.mxu0 0
      %2499 = vmatpush1.bf16.msra.mxu0 %v2377
      %2500 = vmatprep.subr.bf16.mxu0 0
      %2501 = vmatpush1.bf16.msra.mxu0 %v2376
      %2502 = vmatprep.subr.bf16.mxu0 0
      %2503 = vmatpush1.bf16.msra.mxu0 %v2375
      %2504 = vmatprep.subr.bf16.mxu0 0
      %2505 = vmatpush1.bf16.msra.mxu0 %v2374
      %2506 = vmatprep.subr.bf16.mxu0 0
      %2507 = vmatpush1.bf16.msra.mxu0 %v2373
      %2508 = vmatprep.subr.bf16.mxu0 0
      %2509 = vmatpush1.bf16.msra.mxu0 %v2372
      %2510 = vmatprep.subr.bf16.mxu0 0
      %2511 = vmatpush1.bf16.msra.mxu0 %v2371
      %2512 = vmatprep.subr.bf16.mxu0 0
      %2513 = vmatpush1.bf16.msra.mxu0 %v2370
      %2514 = vmatprep.subr.bf16.mxu0 0
      %2515 = vmatpush2.bf16.msra.mxu0 %v2385
      %2516 = vmatprep.subr.bf16.mxu0 0
      %2517 = vmatpush2.bf16.msra.mxu0 %v2384
      %2518 = vmatprep.subr.bf16.mxu0 0
      %2519 = vmatpush2.bf16.msra.mxu0 %v2383
      %2520 = vmatprep.subr.bf16.mxu0 0
      %2521 = vmatpush2.bf16.msra.mxu0 %v2382
      %2522 = vmatprep.subr.bf16.mxu0 0
      %2523 = vmatpush2.bf16.msra.mxu0 %v2381
      %2524 = vmatprep.subr.bf16.mxu0 0
      %2525 = vmatpush2.bf16.msra.mxu0 %v2380
      %2526 = vmatprep.subr.bf16.mxu0 0
      %2527 = vmatpush2.bf16.msra.mxu0 %v2379
      %2528 = vmatprep.subr.bf16.mxu0 0
      %2529 = vmatpush2.bf16.msra.mxu0 %v2378
      %2530 = vmatprep.mubr.bf16.mxu0 %v764
      %2531 = vmatmul.mubr.bf16.gmra.mxu0 %v763
      %v2532 = vpop.f32.mrf.mxu0
      %v2533 = vadd.f32 %v2112, %v2532
      %v2534 = vpop.f32.mrf.mxu0
      %v2535 = vpop.f32.mrf.mxu0
      %v2536 = vadd.f32 %v2112, %v2535
      %v2537 = vpop.f32.mrf.mxu0
      %2538 = vmatprep.mubr.bf16.mxu0 %v766
      %2539 = vmatmul.mubr.bf16.gmra.mxu0 %v765
      %v2540 = vpop.f32.mrf.mxu0
      %v2541 = vadd.f32 %v2112, %v2540
      %v2542 = vpop.f32.mrf.mxu0
      %v2543 = vpop.f32.mrf.mxu0
      %v2544 = vadd.f32 %v2112, %v2543
      %v2545 = vpop.f32.mrf.mxu0
      %2546 = vmatprep.mubr.bf16.mxu0 %v768
      %2547 = vmatmul.mubr.bf16.gmra.mxu0 %v767
      %v2548 = vpop.f32.mrf.mxu0
      %v2549 = vadd.f32 %v2112, %v2548
      %v2550 = vpop.f32.mrf.mxu0
      %v2551 = vpop.f32.mrf.mxu0
      %v2552 = vadd.f32 %v2112, %v2551
      %v2553 = vpop.f32.mrf.mxu0
      %2554 = vmatprep.mubr.bf16.mxu0 %v770
      %2555 = vmatmul.mubr.bf16.gmra.mxu0 %v769
      %v2556 = vpop.f32.mrf.mxu0
      %v2557 = vadd.f32 %v2112, %v2556
      %v2558 = vpop.f32.mrf.mxu0
      %v2559 = vpop.f32.mrf.mxu0
      %v2560 = vadd.f32 %v2112, %v2559
      %v2561 = vpop.f32.mrf.mxu0
      %2562 = vmatprep.mubr.bf16.mxu0 %v772
      %2563 = vmatmul.mubr.bf16.gmra.mxu0 %v771
      %v2564 = vpop.f32.mrf.mxu0
      %v2565 = vadd.f32 %v2112, %v2564
      %v2566 = vpop.f32.mrf.mxu0
      %v2567 = vpop.f32.mrf.mxu0
      %v2568 = vadd.f32 %v2112, %v2567
      %v2569 = vpop.f32.mrf.mxu0
      %2570 = vmatprep.mubr.bf16.mxu0 %v774
      %2571 = vmatmul.mubr.bf16.gmra.mxu0 %v773
      %v2572 = vpop.f32.mrf.mxu0
      %v2573 = vadd.f32 %v2112, %v2572
      %v2574 = vpop.f32.mrf.mxu0
      %v2575 = vpop.f32.mrf.mxu0
      %v2576 = vadd.f32 %v2112, %v2575
      %v2577 = vpop.f32.mrf.mxu0
      %2578 = vmatprep.mubr.bf16.mxu0 %v776
      %2579 = vmatmul.mubr.bf16.gmra.mxu0 %v775
      %v2580 = vpop.f32.mrf.mxu0
      %v2581 = vadd.f32 %v2112, %v2580
      %v2582 = vpop.f32.mrf.mxu0
      %v2583 = vpop.f32.mrf.mxu0
      %v2584 = vadd.f32 %v2112, %v2583
      %v2585 = vpop.f32.mrf.mxu0
      %2586 = vmatprep.mubr.bf16.mxu0 %v778
      %2587 = vmatmul.mubr.bf16.gmra.mxu0 %v777
      %v2588 = vpop.f32.mrf.mxu0
      %v2589 = vadd.f32 %v2112, %v2588
      %v2590 = vpop.f32.mrf.mxu0
      %v2591 = vpop.f32.mrf.mxu0
      %v2592 = vadd.f32 %v2112, %v2591
      %v2593 = vpop.f32.mrf.mxu0
      %2594 = vmatprep.mubr.bf16.mxu0 %v780
      %2595 = vmatmul.mubr.bf16.gmra.mxu0 %v779
      %v2596 = vpop.f32.mrf.mxu0
      %v2597 = vadd.f32 %v2112, %v2596
      %v2598 = vpop.f32.mrf.mxu0
      %v2599 = vpop.f32.mrf.mxu0
      %v2600 = vadd.f32 %v2112, %v2599
      %v2601 = vpop.f32.mrf.mxu0
      %2602 = vmatprep.mubr.bf16.mxu0 %v782
      %2603 = vmatmul.mubr.bf16.gmra.mxu0 %v781
      %v2604 = vpop.f32.mrf.mxu0
      %v2605 = vadd.f32 %v2112, %v2604
      %v2606 = vpop.f32.mrf.mxu0
      %v2607 = vpop.f32.mrf.mxu0
      %v2608 = vadd.f32 %v2112, %v2607
      %v2609 = vpop.f32.mrf.mxu0
      %2610 = vmatprep.mubr.bf16.mxu0 %v784
      %2611 = vmatmul.mubr.bf16.gmra.mxu0 %v783
      %v2612 = vpop.f32.mrf.mxu0
      %v2613 = vadd.f32 %v2112, %v2612
      %v2614 = vpop.f32.mrf.mxu0
      %v2615 = vpop.f32.mrf.mxu0
      %v2616 = vadd.f32 %v2112, %v2615
      %v2617 = vpop.f32.mrf.mxu0
      %2618 = vmatprep.mubr.bf16.mxu0 %v786
      %2619 = vmatmul.mubr.bf16.gmra.mxu0 %v785
      %v2620 = vpop.f32.mrf.mxu0
      %v2621 = vadd.f32 %v2112, %v2620
      %v2622 = vpop.f32.mrf.mxu0
      %v2623 = vpop.f32.mrf.mxu0
      %v2624 = vadd.f32 %v2112, %v2623
      %v2625 = vpop.f32.mrf.mxu0
      %2626 = vmatprep.mubr.bf16.mxu0 %v788
      %2627 = vmatmul.mubr.bf16.gmra.mxu0 %v787
      %v2628 = vpop.f32.mrf.mxu0
      %v2629 = vadd.f32 %v2112, %v2628
      %v2630 = vpop.f32.mrf.mxu0
      %v2631 = vpop.f32.mrf.mxu0
      %v2632 = vadd.f32 %v2112, %v2631
      %v2633 = vpop.f32.mrf.mxu0
      %2634 = vmatprep.mubr.bf16.mxu0 %v790
      %2635 = vmatmul.mubr.bf16.gmra.mxu0 %v789
      %v2636 = vpop.f32.mrf.mxu0
      %v2637 = vadd.f32 %v2112, %v2636
      %v2638 = vpop.f32.mrf.mxu0
      %v2639 = vpop.f32.mrf.mxu0
      %v2640 = vadd.f32 %v2112, %v2639
      %v2641 = vpop.f32.mrf.mxu0
      %2642 = vmatprep.mubr.bf16.mxu0 %v792
      %2643 = vmatmul.mubr.bf16.gmra.mxu0 %v791
      %v2644 = vpop.f32.mrf.mxu0
      %v2645 = vadd.f32 %v2112, %v2644
      %v2646 = vpop.f32.mrf.mxu0
      %v2647 = vpop.f32.mrf.mxu0
      %v2648 = vadd.f32 %v2112, %v2647
      %v2649 = vpop.f32.mrf.mxu0
      %2650 = vmatprep.mubr.bf16.mxu0 %v794
      %2651 = vmatmul.mubr.bf16.gmra.mxu0 %v793
      %v2652 = vpop.f32.mrf.mxu0
      %v2653 = vadd.f32 %v2112, %v2652
      %v2654 = vpop.f32.mrf.mxu0
      %v2655 = vpop.f32.mrf.mxu0
      %v2656 = vadd.f32 %v2112, %v2655
      %v2657 = vpop.f32.mrf.mxu0
      %2658 = vdwg.mxu0
      %2659 = vmatprep.subr.bf16.mxu0 0
      %2660 = vmatpush1.bf16.msra.mxu0 %v2393
      %2661 = vmatprep.subr.bf16.mxu0 0
      %2662 = vmatpush1.bf16.msra.mxu0 %v2392
      %2663 = vmatprep.subr.bf16.mxu0 0
      %2664 = vmatpush1.bf16.msra.mxu0 %v2391
      %2665 = vmatprep.subr.bf16.mxu0 0
      %2666 = vmatpush1.bf16.msra.mxu0 %v2390
      %2667 = vmatprep.subr.bf16.mxu0 0
      %2668 = vmatpush1.bf16.msra.mxu0 %v2389
      %2669 = vmatprep.subr.bf16.mxu0 0
      %2670 = vmatpush1.bf16.msra.mxu0 %v2388
      %2671 = vmatprep.subr.bf16.mxu0 0
      %2672 = vmatpush1.bf16.msra.mxu0 %v2387
      %2673 = vmatprep.subr.bf16.mxu0 0
      %2674 = vmatpush1.bf16.msra.mxu0 %v2386
      %2675 = vmatprep.subr.bf16.mxu0 0
      %2676 = vmatpush2.bf16.msra.mxu0 %v2401
      %2677 = vmatprep.subr.bf16.mxu0 0
      %2678 = vmatpush2.bf16.msra.mxu0 %v2400
      %2679 = vmatprep.subr.bf16.mxu0 0
      %2680 = vmatpush2.bf16.msra.mxu0 %v2399
      %2681 = vmatprep.subr.bf16.mxu0 0
      %2682 = vmatpush2.bf16.msra.mxu0 %v2398
      %2683 = vmatprep.subr.bf16.mxu0 0
      %2684 = vmatpush2.bf16.msra.mxu0 %v2397
      %2685 = vmatprep.subr.bf16.mxu0 0
      %2686 = vmatpush2.bf16.msra.mxu0 %v2396
      %2687 = vmatprep.subr.bf16.mxu0 0
      %2688 = vmatpush2.bf16.msra.mxu0 %v2395
      %2689 = vmatprep.subr.bf16.mxu0 0
      %2690 = vmatpush2.bf16.msra.mxu0 %v2394
      %2691 = vmatprep.mubr.bf16.mxu0 %v1171
      %2692 = vmatmul.mubr.bf16.gmra.mxu0 %v1159
      %v2693 = vpop.f32.mrf.mxu0
      %v2694 = vadd.f32 %v2533, %v2693
      %v2695 = vpop.f32.mrf.mxu0
      %v2696 = vpop.f32.mrf.mxu0
      %v2697 = vadd.f32 %v2536, %v2696
      %v2698 = vpop.f32.mrf.mxu0
      %2699 = vmatprep.mubr.bf16.mxu0 %v1195
      %2700 = vmatmul.mubr.bf16.gmra.mxu0 %v1183
      %v2701 = vpop.f32.mrf.mxu0
      %v2702 = vadd.f32 %v2541, %v2701
      %v2703 = vpop.f32.mrf.mxu0
      %v2704 = vpop.f32.mrf.mxu0
      %v2705 = vadd.f32 %v2544, %v2704
      %v2706 = vpop.f32.mrf.mxu0
      %2707 = vmatprep.mubr.bf16.mxu0 %v1219
      %2708 = vmatmul.mubr.bf16.gmra.mxu0 %v1207
      %v2709 = vpop.f32.mrf.mxu0
      %v2710 = vadd.f32 %v2549, %v2709
      %v2711 = vpop.f32.mrf.mxu0
      %v2712 = vpop.f32.mrf.mxu0
      %v2713 = vadd.f32 %v2552, %v2712
      %v2714 = vpop.f32.mrf.mxu0
      %2715 = vmatprep.mubr.bf16.mxu0 %v1243
      %2716 = vmatmul.mubr.bf16.gmra.mxu0 %v1231
      %v2717 = vpop.f32.mrf.mxu0
      %v2718 = vadd.f32 %v2557, %v2717
      %v2719 = vpop.f32.mrf.mxu0
      %v2720 = vpop.f32.mrf.mxu0
      %v2721 = vadd.f32 %v2560, %v2720
      %v2722 = vpop.f32.mrf.mxu0
      %2723 = vmatprep.mubr.bf16.mxu0 %v1267
      %2724 = vmatmul.mubr.bf16.gmra.mxu0 %v1255
      %v2725 = vpop.f32.mrf.mxu0
      %v2726 = vadd.f32 %v2565, %v2725
      %v2727 = vpop.f32.mrf.mxu0
      %v2728 = vpop.f32.mrf.mxu0
      %v2729 = vadd.f32 %v2568, %v2728
      %v2730 = vpop.f32.mrf.mxu0
      %2731 = vmatprep.mubr.bf16.mxu0 %v1291
      %2732 = vmatmul.mubr.bf16.gmra.mxu0 %v1279
      %v2733 = vpop.f32.mrf.mxu0
      %v2734 = vadd.f32 %v2573, %v2733
      %v2735 = vpop.f32.mrf.mxu0
      %v2736 = vpop.f32.mrf.mxu0
      %v2737 = vadd.f32 %v2576, %v2736
      %v2738 = vpop.f32.mrf.mxu0
      %2739 = vmatprep.mubr.bf16.mxu0 %v1315
      %2740 = vmatmul.mubr.bf16.gmra.mxu0 %v1303
      %v2741 = vpop.f32.mrf.mxu0
      %v2742 = vadd.f32 %v2581, %v2741
      %v2743 = vpop.f32.mrf.mxu0
      %v2744 = vpop.f32.mrf.mxu0
      %v2745 = vadd.f32 %v2584, %v2744
      %v2746 = vpop.f32.mrf.mxu0
      %2747 = vmatprep.mubr.bf16.mxu0 %v1339
      %2748 = vmatmul.mubr.bf16.gmra.mxu0 %v1327
      %v2749 = vpop.f32.mrf.mxu0
      %v2750 = vadd.f32 %v2589, %v2749
      %v2751 = vpop.f32.mrf.mxu0
      %v2752 = vpop.f32.mrf.mxu0
      %v2753 = vadd.f32 %v2592, %v2752
      %v2754 = vpop.f32.mrf.mxu0
      %2755 = vmatprep.mubr.bf16.mxu0 %v1363
      %2756 = vmatmul.mubr.bf16.gmra.mxu0 %v1351
      %v2757 = vpop.f32.mrf.mxu0
      %v2758 = vadd.f32 %v2597, %v2757
      %v2759 = vpop.f32.mrf.mxu0
      %v2760 = vpop.f32.mrf.mxu0
      %v2761 = vadd.f32 %v2600, %v2760
      %v2762 = vpop.f32.mrf.mxu0
      %2763 = vmatprep.mubr.bf16.mxu0 %v1387
      %2764 = vmatmul.mubr.bf16.gmra.mxu0 %v1375
      %v2765 = vpop.f32.mrf.mxu0
      %v2766 = vadd.f32 %v2605, %v2765
      %v2767 = vpop.f32.mrf.mxu0
      %v2768 = vpop.f32.mrf.mxu0
      %v2769 = vadd.f32 %v2608, %v2768
      %v2770 = vpop.f32.mrf.mxu0
      %2771 = vmatprep.mubr.bf16.mxu0 %v1411
      %2772 = vmatmul.mubr.bf16.gmra.mxu0 %v1399
      %v2773 = vpop.f32.mrf.mxu0
      %v2774 = vadd.f32 %v2613, %v2773
      %v2775 = vpop.f32.mrf.mxu0
      %v2776 = vpop.f32.mrf.mxu0
      %v2777 = vadd.f32 %v2616, %v2776
      %v2778 = vpop.f32.mrf.mxu0
      %2779 = vmatprep.mubr.bf16.mxu0 %v1435
      %2780 = vmatmul.mubr.bf16.gmra.mxu0 %v1423
      %v2781 = vpop.f32.mrf.mxu0
      %v2782 = vadd.f32 %v2621, %v2781
      %v2783 = vpop.f32.mrf.mxu0
      %v2784 = vpop.f32.mrf.mxu0
      %v2785 = vadd.f32 %v2624, %v2784
      %v2786 = vpop.f32.mrf.mxu0
      %2787 = vmatprep.mubr.bf16.mxu0 %v1459
      %2788 = vmatmul.mubr.bf16.gmra.mxu0 %v1447
      %v2789 = vpop.f32.mrf.mxu0
      %v2790 = vadd.f32 %v2629, %v2789
      %v2791 = vpop.f32.mrf.mxu0
      %v2792 = vpop.f32.mrf.mxu0
      %v2793 = vadd.f32 %v2632, %v2792
      %v2794 = vpop.f32.mrf.mxu0
      %2795 = vmatprep.mubr.bf16.mxu0 %v1483
      %2796 = vmatmul.mubr.bf16.gmra.mxu0 %v1471
      %v2797 = vpop.f32.mrf.mxu0
      %v2798 = vadd.f32 %v2637, %v2797
      %v2799 = vpop.f32.mrf.mxu0
      %v2800 = vpop.f32.mrf.mxu0
      %v2801 = vadd.f32 %v2640, %v2800
      %v2802 = vpop.f32.mrf.mxu0
      %2803 = vmatprep.mubr.bf16.mxu0 %v1507
      %2804 = vmatmul.mubr.bf16.gmra.mxu0 %v1495
      %v2805 = vpop.f32.mrf.mxu0
      %v2806 = vadd.f32 %v2645, %v2805
      %v2807 = vpop.f32.mrf.mxu0
      %v2808 = vpop.f32.mrf.mxu0
      %v2809 = vadd.f32 %v2648, %v2808
      %v2810 = vpop.f32.mrf.mxu0
      %2811 = vmatprep.mubr.bf16.mxu0 %v1531
      %2812 = vmatmul.mubr.bf16.gmra.mxu0 %v1519
      %v2813 = vpop.f32.mrf.mxu0
      %v2814 = vadd.f32 %v2653, %v2813
      %v2815 = vpop.f32.mrf.mxu0
      %v2816 = vpop.f32.mrf.mxu0
      %v2817 = vadd.f32 %v2656, %v2816
      %v2818 = vpop.f32.mrf.mxu0
      %2819 = vdwg.mxu0
      %2820 = vmatprep.subr.bf16.mxu0 0
      %2821 = vmatpush1.bf16.msra.mxu0 %v2409
      %2822 = vmatprep.subr.bf16.mxu0 0
      %2823 = vmatpush1.bf16.msra.mxu0 %v2408
      %2824 = vmatprep.subr.bf16.mxu0 0
      %2825 = vmatpush1.bf16.msra.mxu0 %v2407
      %2826 = vmatprep.subr.bf16.mxu0 0
      %2827 = vmatpush1.bf16.msra.mxu0 %v2406
      %2828 = vmatprep.subr.bf16.mxu0 0
      %2829 = vmatpush1.bf16.msra.mxu0 %v2405
      %2830 = vmatprep.subr.bf16.mxu0 0
      %2831 = vmatpush1.bf16.msra.mxu0 %v2404
      %2832 = vmatprep.subr.bf16.mxu0 0
      %2833 = vmatpush1.bf16.msra.mxu0 %v2403
      %2834 = vmatprep.subr.bf16.mxu0 0
      %2835 = vmatpush1.bf16.msra.mxu0 %v2402
      %2836 = vmatprep.subr.bf16.mxu0 0
      %2837 = vmatpush2.bf16.msra.mxu0 %v2417
      %2838 = vmatprep.subr.bf16.mxu0 0
      %2839 = vmatpush2.bf16.msra.mxu0 %v2416
      %2840 = vmatprep.subr.bf16.mxu0 0
      %2841 = vmatpush2.bf16.msra.mxu0 %v2415
      %2842 = vmatprep.subr.bf16.mxu0 0
      %2843 = vmatpush2.bf16.msra.mxu0 %v2414
      %2844 = vmatprep.subr.bf16.mxu0 0
      %2845 = vmatpush2.bf16.msra.mxu0 %v2413
      %2846 = vmatprep.subr.bf16.mxu0 0
      %2847 = vmatpush2.bf16.msra.mxu0 %v2412
      %2848 = vmatprep.subr.bf16.mxu0 0
      %2849 = vmatpush2.bf16.msra.mxu0 %v2411
      %2850 = vmatprep.subr.bf16.mxu0 0
      %2851 = vmatpush2.bf16.msra.mxu0 %v2410
      %2852 = vmatprep.mubr.bf16.mxu0 %v988
      %2853 = vmatmul.mubr.bf16.gmra.mxu0 %v987
      %v2854 = vpop.f32.mrf.mxu0
      %v2855 = vadd.f32 %v2694, %v2854
      %v2856 = vpop.f32.mrf.mxu0
      %v2857 = vpop.f32.mrf.mxu0
      %v2858 = vadd.f32 %v2697, %v2857
      %v2859 = vpop.f32.mrf.mxu0
      %2860 = vmatprep.mubr.bf16.mxu0 %v990
      %2861 = vmatmul.mubr.bf16.gmra.mxu0 %v989
      %v2862 = vpop.f32.mrf.mxu0
      %v2863 = vadd.f32 %v2702, %v2862
      %v2864 = vpop.f32.mrf.mxu0
      %v2865 = vpop.f32.mrf.mxu0
      %v2866 = vadd.f32 %v2705, %v2865
      %v2867 = vpop.f32.mrf.mxu0
      %2868 = vmatprep.mubr.bf16.mxu0 %v992
      %2869 = vmatmul.mubr.bf16.gmra.mxu0 %v991
      %v2870 = vpop.f32.mrf.mxu0
      %v2871 = vadd.f32 %v2710, %v2870
      %v2872 = vpop.f32.mrf.mxu0
      %v2873 = vpop.f32.mrf.mxu0
      %v2874 = vadd.f32 %v2713, %v2873
      %v2875 = vpop.f32.mrf.mxu0
      %2876 = vmatprep.mubr.bf16.mxu0 %v994
      %2877 = vmatmul.mubr.bf16.gmra.mxu0 %v993
      %v2878 = vpop.f32.mrf.mxu0
      %v2879 = vadd.f32 %v2718, %v2878
      %v2880 = vpop.f32.mrf.mxu0
      %v2881 = vpop.f32.mrf.mxu0
      %v2882 = vadd.f32 %v2721, %v2881
      %v2883 = vpop.f32.mrf.mxu0
      %2884 = vmatprep.mubr.bf16.mxu0 %v996
      %2885 = vmatmul.mubr.bf16.gmra.mxu0 %v995
      %v2886 = vpop.f32.mrf.mxu0
      %v2887 = vadd.f32 %v2726, %v2886
      %v2888 = vpop.f32.mrf.mxu0
      %v2889 = vpop.f32.mrf.mxu0
      %v2890 = vadd.f32 %v2729, %v2889
      %v2891 = vpop.f32.mrf.mxu0
      %2892 = vmatprep.mubr.bf16.mxu0 %v998
      %2893 = vmatmul.mubr.bf16.gmra.mxu0 %v997
      %v2894 = vpop.f32.mrf.mxu0
      %v2895 = vadd.f32 %v2734, %v2894
      %v2896 = vpop.f32.mrf.mxu0
      %v2897 = vpop.f32.mrf.mxu0
      %v2898 = vadd.f32 %v2737, %v2897
      %v2899 = vpop.f32.mrf.mxu0
      %2900 = vmatprep.mubr.bf16.mxu0 %v1000
      %2901 = vmatmul.mubr.bf16.gmra.mxu0 %v999
      %v2902 = vpop.f32.mrf.mxu0
      %v2903 = vadd.f32 %v2742, %v2902
      %v2904 = vpop.f32.mrf.mxu0
      %v2905 = vpop.f32.mrf.mxu0
      %v2906 = vadd.f32 %v2745, %v2905
      %v2907 = vpop.f32.mrf.mxu0
      %2908 = vmatprep.mubr.bf16.mxu0 %v1002
      %2909 = vmatmul.mubr.bf16.gmra.mxu0 %v1001
      %v2910 = vpop.f32.mrf.mxu0
      %v2911 = vadd.f32 %v2750, %v2910
      %v2912 = vpop.f32.mrf.mxu0
      %v2913 = vpop.f32.mrf.mxu0
      %v2914 = vadd.f32 %v2753, %v2913
      %v2915 = vpop.f32.mrf.mxu0
      %2916 = vmatprep.mubr.bf16.mxu0 %v1004
      %2917 = vmatmul.mubr.bf16.gmra.mxu0 %v1003
      %v2918 = vpop.f32.mrf.mxu0
      %v2919 = vadd.f32 %v2758, %v2918
      %v2920 = vpop.f32.mrf.mxu0
      %v2921 = vpop.f32.mrf.mxu0
      %v2922 = vadd.f32 %v2761, %v2921
      %v2923 = vpop.f32.mrf.mxu0
      %2924 = vmatprep.mubr.bf16.mxu0 %v1006
      %2925 = vmatmul.mubr.bf16.gmra.mxu0 %v1005
      %v2926 = vpop.f32.mrf.mxu0
      %v2927 = vadd.f32 %v2766, %v2926
      %v2928 = vpop.f32.mrf.mxu0
      %v2929 = vpop.f32.mrf.mxu0
      %v2930 = vadd.f32 %v2769, %v2929
      %v2931 = vpop.f32.mrf.mxu0
      %2932 = vmatprep.mubr.bf16.mxu0 %v1008
      %2933 = vmatmul.mubr.bf16.gmra.mxu0 %v1007
      %v2934 = vpop.f32.mrf.mxu0
      %v2935 = vadd.f32 %v2774, %v2934
      %v2936 = vpop.f32.mrf.mxu0
      %v2937 = vpop.f32.mrf.mxu0
      %v2938 = vadd.f32 %v2777, %v2937
      %v2939 = vpop.f32.mrf.mxu0
      %2940 = vmatprep.mubr.bf16.mxu0 %v1010
      %2941 = vmatmul.mubr.bf16.gmra.mxu0 %v1009
      %v2942 = vpop.f32.mrf.mxu0
      %v2943 = vadd.f32 %v2782, %v2942
      %v2944 = vpop.f32.mrf.mxu0
      %v2945 = vpop.f32.mrf.mxu0
      %v2946 = vadd.f32 %v2785, %v2945
      %v2947 = vpop.f32.mrf.mxu0
      %2948 = vmatprep.mubr.bf16.mxu0 %v1012
      %2949 = vmatmul.mubr.bf16.gmra.mxu0 %v1011
      %v2950 = vpop.f32.mrf.mxu0
      %v2951 = vadd.f32 %v2790, %v2950
      %v2952 = vpop.f32.mrf.mxu0
      %v2953 = vpop.f32.mrf.mxu0
      %v2954 = vadd.f32 %v2793, %v2953
      %v2955 = vpop.f32.mrf.mxu0
      %2956 = vmatprep.mubr.bf16.mxu0 %v1014
      %2957 = vmatmul.mubr.bf16.gmra.mxu0 %v1013
      %v2958 = vpop.f32.mrf.mxu0
      %v2959 = vadd.f32 %v2798, %v2958
      %v2960 = vpop.f32.mrf.mxu0
      %v2961 = vpop.f32.mrf.mxu0
      %v2962 = vadd.f32 %v2801, %v2961
      %v2963 = vpop.f32.mrf.mxu0
      %2964 = vmatprep.mubr.bf16.mxu0 %v1016
      %2965 = vmatmul.mubr.bf16.gmra.mxu0 %v1015
      %v2966 = vpop.f32.mrf.mxu0
      %v2967 = vadd.f32 %v2806, %v2966
      %v2968 = vpop.f32.mrf.mxu0
      %v2969 = vpop.f32.mrf.mxu0
      %v2970 = vadd.f32 %v2809, %v2969
      %v2971 = vpop.f32.mrf.mxu0
      %2972 = vmatprep.mubr.bf16.mxu0 %v1018
      %2973 = vmatmul.mubr.bf16.gmra.mxu0 %v1017
      %v2974 = vpop.f32.mrf.mxu0
      %v2975 = vadd.f32 %v2814, %v2974
      %v2976 = vpop.f32.mrf.mxu0
      %v2977 = vpop.f32.mrf.mxu0
      %v2978 = vadd.f32 %v2817, %v2977
      %v2979 = vpop.f32.mrf.mxu0
      %2980 = vdwg.mxu0
      %2981 = vmatprep.subr.bf16.mxu0 0
      %2982 = vmatpush1.bf16.msra.mxu0 %v2425
      %2983 = vmatprep.subr.bf16.mxu0 0
      %2984 = vmatpush1.bf16.msra.mxu0 %v2424
      %2985 = vmatprep.subr.bf16.mxu0 0
      %2986 = vmatpush1.bf16.msra.mxu0 %v2423
      %2987 = vmatprep.subr.bf16.mxu0 0
      %2988 = vmatpush1.bf16.msra.mxu0 %v2422
      %2989 = vmatprep.subr.bf16.mxu0 0
      %2990 = vmatpush1.bf16.msra.mxu0 %v2421
      %2991 = vmatprep.subr.bf16.mxu0 0
      %2992 = vmatpush1.bf16.msra.mxu0 %v2420
      %2993 = vmatprep.subr.bf16.mxu0 0
      %2994 = vmatpush1.bf16.msra.mxu0 %v2419
      %2995 = vmatprep.subr.bf16.mxu0 0
      %2996 = vmatpush1.bf16.msra.mxu0 %v2418
      %2997 = vmatprep.subr.bf16.mxu0 0
      %2998 = vmatpush2.bf16.msra.mxu0 %v2433
      %2999 = vmatprep.subr.bf16.mxu0 0
      %3000 = vmatpush2.bf16.msra.mxu0 %v2432
      %3001 = vmatprep.subr.bf16.mxu0 0
      %3002 = vmatpush2.bf16.msra.mxu0 %v2431
      %3003 = vmatprep.subr.bf16.mxu0 0
      %3004 = vmatpush2.bf16.msra.mxu0 %v2430
      %3005 = vmatprep.subr.bf16.mxu0 0
      %3006 = vmatpush2.bf16.msra.mxu0 %v2429
      %3007 = vmatprep.subr.bf16.mxu0 0
      %3008 = vmatpush2.bf16.msra.mxu0 %v2428
      %3009 = vmatprep.subr.bf16.mxu0 0
      %3010 = vmatpush2.bf16.msra.mxu0 %v2427
      %3011 = vmatprep.subr.bf16.mxu0 0
      %3012 = vmatpush2.bf16.msra.mxu0 %v2426
      %3013 = vmatprep.mubr.bf16.mxu0 %v1587
      %3014 = vmatmul.mubr.bf16.gmra.mxu0 %v1575
      %v3015 = vpop.f32.mrf.mxu0
      %v3016 = vadd.f32 %v2855, %v3015
      %v3017 = vpop.f32.mrf.mxu0
      %v3018 = vpop.f32.mrf.mxu0
      %v3019 = vadd.f32 %v2858, %v3018
      %v3020 = vpop.f32.mrf.mxu0
      %3021 = vmatprep.mubr.bf16.mxu0 %v1611
      %3022 = vmatmul.mubr.bf16.gmra.mxu0 %v1599
      %v3023 = vpop.f32.mrf.mxu0
      %v3024 = vadd.f32 %v2863, %v3023
      %v3025 = vpop.f32.mrf.mxu0
      %v3026 = vpop.f32.mrf.mxu0
      %v3027 = vadd.f32 %v2866, %v3026
      %v3028 = vpop.f32.mrf.mxu0
      %3029 = vmatprep.mubr.bf16.mxu0 %v1635
      %3030 = vmatmul.mubr.bf16.gmra.mxu0 %v1623
      %v3031 = vpop.f32.mrf.mxu0
      %v3032 = vadd.f32 %v2871, %v3031
      %v3033 = vpop.f32.mrf.mxu0
      %v3034 = vpop.f32.mrf.mxu0
      %v3035 = vadd.f32 %v2874, %v3034
      %v3036 = vpop.f32.mrf.mxu0
      %3037 = vmatprep.mubr.bf16.mxu0 %v1659
      %3038 = vmatmul.mubr.bf16.gmra.mxu0 %v1647
      %v3039 = vpop.f32.mrf.mxu0
      %v3040 = vadd.f32 %v2879, %v3039
      %v3041 = vpop.f32.mrf.mxu0
      %v3042 = vpop.f32.mrf.mxu0
      %v3043 = vadd.f32 %v2882, %v3042
      %v3044 = vpop.f32.mrf.mxu0
      %3045 = vmatprep.mubr.bf16.mxu0 %v1683
      %3046 = vmatmul.mubr.bf16.gmra.mxu0 %v1671
      %v3047 = vpop.f32.mrf.mxu0
      %v3048 = vadd.f32 %v2887, %v3047
      %v3049 = vpop.f32.mrf.mxu0
      %v3050 = vpop.f32.mrf.mxu0
      %v3051 = vadd.f32 %v2890, %v3050
      %v3052 = vpop.f32.mrf.mxu0
      %3053 = vmatprep.mubr.bf16.mxu0 %v1707
      %3054 = vmatmul.mubr.bf16.gmra.mxu0 %v1695
      %v3055 = vpop.f32.mrf.mxu0
      %v3056 = vadd.f32 %v2895, %v3055
      %v3057 = vpop.f32.mrf.mxu0
      %v3058 = vpop.f32.mrf.mxu0
      %v3059 = vadd.f32 %v2898, %v3058
      %v3060 = vpop.f32.mrf.mxu0
      %3061 = vmatprep.mubr.bf16.mxu0 %v1731
      %3062 = vmatmul.mubr.bf16.gmra.mxu0 %v1719
      %v3063 = vpop.f32.mrf.mxu0
      %v3064 = vadd.f32 %v2903, %v3063
      %v3065 = vpop.f32.mrf.mxu0
      %v3066 = vpop.f32.mrf.mxu0
      %v3067 = vadd.f32 %v2906, %v3066
      %v3068 = vpop.f32.mrf.mxu0
      %3069 = vmatprep.mubr.bf16.mxu0 %v1755
      %3070 = vmatmul.mubr.bf16.gmra.mxu0 %v1743
      %v3071 = vpop.f32.mrf.mxu0
      %v3072 = vadd.f32 %v2911, %v3071
      %v3073 = vpop.f32.mrf.mxu0
      %v3074 = vpop.f32.mrf.mxu0
      %v3075 = vadd.f32 %v2914, %v3074
      %v3076 = vpop.f32.mrf.mxu0
      %3077 = vmatprep.mubr.bf16.mxu0 %v1779
      %3078 = vmatmul.mubr.bf16.gmra.mxu0 %v1767
      %v3079 = vpop.f32.mrf.mxu0
      %v3080 = vadd.f32 %v2919, %v3079
      %v3081 = vpop.f32.mrf.mxu0
      %v3082 = vpop.f32.mrf.mxu0
      %v3083 = vadd.f32 %v2922, %v3082
      %v3084 = vpop.f32.mrf.mxu0
      %3085 = vmatprep.mubr.bf16.mxu0 %v1803
      %3086 = vmatmul.mubr.bf16.gmra.mxu0 %v1791
      %v3087 = vpop.f32.mrf.mxu0
      %v3088 = vadd.f32 %v2927, %v3087
      %v3089 = vpop.f32.mrf.mxu0
      %v3090 = vpop.f32.mrf.mxu0
      %v3091 = vadd.f32 %v2930, %v3090
      %v3092 = vpop.f32.mrf.mxu0
      %3093 = vmatprep.mubr.bf16.mxu0 %v1827
      %3094 = vmatmul.mubr.bf16.gmra.mxu0 %v1815
      %v3095 = vpop.f32.mrf.mxu0
      %v3096 = vadd.f32 %v2935, %v3095
      %v3097 = vpop.f32.mrf.mxu0
      %v3098 = vpop.f32.mrf.mxu0
      %v3099 = vadd.f32 %v2938, %v3098
      %v3100 = vpop.f32.mrf.mxu0
      %3101 = vmatprep.mubr.bf16.mxu0 %v1851
      %3102 = vmatmul.mubr.bf16.gmra.mxu0 %v1839
      %v3103 = vpop.f32.mrf.mxu0
      %v3104 = vadd.f32 %v2943, %v3103
      %v3105 = vpop.f32.mrf.mxu0
      %v3106 = vpop.f32.mrf.mxu0
      %v3107 = vadd.f32 %v2946, %v3106
      %v3108 = vpop.f32.mrf.mxu0
      %3109 = vmatprep.mubr.bf16.mxu0 %v1875
      %3110 = vmatmul.mubr.bf16.gmra.mxu0 %v1863
      %v3111 = vpop.f32.mrf.mxu0
      %v3112 = vadd.f32 %v2951, %v3111
      %v3113 = vpop.f32.mrf.mxu0
      %v3114 = vpop.f32.mrf.mxu0
      %v3115 = vadd.f32 %v2954, %v3114
      %v3116 = vpop.f32.mrf.mxu0
      %3117 = vmatprep.mubr.bf16.mxu0 %v1899
      %3118 = vmatmul.mubr.bf16.gmra.mxu0 %v1887
      %v3119 = vpop.f32.mrf.mxu0
      %v3120 = vadd.f32 %v2959, %v3119
      %v3121 = vpop.f32.mrf.mxu0
      %v3122 = vpop.f32.mrf.mxu0
      %v3123 = vadd.f32 %v2962, %v3122
      %v3124 = vpop.f32.mrf.mxu0
      %3125 = vmatprep.mubr.bf16.mxu0 %v1923
      %3126 = vmatmul.mubr.bf16.gmra.mxu0 %v1911
      %v3127 = vpop.f32.mrf.mxu0
      %v3128 = vadd.f32 %v2967, %v3127
      %v3129 = vpop.f32.mrf.mxu0
      %v3130 = vpop.f32.mrf.mxu0
      %v3131 = vadd.f32 %v2970, %v3130
      %v3132 = vpop.f32.mrf.mxu0
      %3133 = vmatprep.mubr.bf16.mxu0 %v1947
      %3134 = vmatmul.mubr.bf16.gmra.mxu0 %v1935
      %v3135 = vpop.f32.mrf.mxu0
      %v3136 = vadd.f32 %v2975, %v3135
      %v3137 = vpop.f32.mrf.mxu0
      %v3138 = vpop.f32.mrf.mxu0
      %v3139 = vadd.f32 %v2978, %v3138
      %v3140 = vpop.f32.mrf.mxu0
      %3141 = vdwg.mxu0
      %v3142 = vmax.f32 %v3016, 0.0
      %v3143 = vmax.f32 %v3019, 0.0
      %v3144 = vmax.f32 %v3024, 0.0
      %v3145 = vmax.f32 %v3027, 0.0
      %v3146 = vmax.f32 %v3032, 0.0
      %v3147 = vmax.f32 %v3035, 0.0
      %v3148 = vmax.f32 %v3040, 0.0
      %v3149 = vmax.f32 %v3043, 0.0
      %v3150 = vmax.f32 %v3048, 0.0
      %v3151 = vmax.f32 %v3051, 0.0
      %v3152 = vmax.f32 %v3056, 0.0
      %v3153 = vmax.f32 %v3059, 0.0
      %v3154 = vmax.f32 %v3064, 0.0
      %v3155 = vmax.f32 %v3067, 0.0
      %v3156 = vmax.f32 %v3072, 0.0
      %v3157 = vmax.f32 %v3075, 0.0
      %v3158 = vmax.f32 %v3080, 0.0
      %v3159 = vmax.f32 %v3083, 0.0
      %v3160 = vmax.f32 %v3088, 0.0
      %v3161 = vmax.f32 %v3091, 0.0
      %v3162 = vmax.f32 %v3096, 0.0
      %v3163 = vmax.f32 %v3099, 0.0
      %v3164 = vmax.f32 %v3104, 0.0
      %v3165 = vmax.f32 %v3107, 0.0
      %v3166 = vmax.f32 %v3112, 0.0
      %v3167 = vmax.f32 %v3115, 0.0
      %v3168 = vmax.f32 %v3120, 0.0
      %v3169 = vmax.f32 %v3123, 0.0
      %v3170 = vmax.f32 %v3128, 0.0
      %v3171 = vmax.f32 %v3131, 0.0
      %v3172 = vmax.f32 %v3136, 0.0
      %v3173 = vmax.f32 %v3139, 0.0
      %3174 = vst [vmem:[%s170] sm:$0xff] %v3142
      %3175 = vst [vmem:[%s170 + $0x8] sm:$0xff] %v3143
      %3176 = vst [vmem:[%s170 + $0x10] sm:$0xff] %v3144
      %3177 = vst [vmem:[%s170 + $0x18] sm:$0xff] %v3145
      %3178 = vst [vmem:[%s170 + $0x20] sm:$0xff] %v3146
      %3179 = vst [vmem:[%s170 + $0x28] sm:$0xff] %v3147
      %3180 = vst [vmem:[%s170 + $0x30] sm:$0xff] %v3148
      %3181 = vst [vmem:[%s170 + $0x38] sm:$0xff] %v3149
      %3182 = vst [vmem:[%s170 + $0x40] sm:$0xff] %v3150
      %3183 = vst [vmem:[%s170 + $0x48] sm:$0xff] %v3151
      %3184 = vst [vmem:[%s170 + $0x50] sm:$0xff] %v3152
      %3185 = vst [vmem:[%s170 + $0x58] sm:$0xff] %v3153
      %3186 = vst [vmem:[%s170 + $0x60] sm:$0xff] %v3154
      %3187 = vst [vmem:[%s170 + $0x68] sm:$0xff] %v3155
      %3188 = vst [vmem:[%s170 + $0x70] sm:$0xff] %v3156
      %3189 = vst [vmem:[%s170 + $0x78] sm:$0xff] %v3157
      %3190 = vst [vmem:[%s170 + $0x80] sm:$0xff] %v3158
      %3191 = vst [vmem:[%s170 + $0x88] sm:$0xff] %v3159
      %3192 = vst [vmem:[%s170 + $0x90] sm:$0xff] %v3160
      %3193 = vst [vmem:[%s170 + $0x98] sm:$0xff] %v3161
      %3194 = vst [vmem:[%s170 + $0xa0] sm:$0xff] %v3162
      %3195 = vst [vmem:[%s170 + $0xa8] sm:$0xff] %v3163
      %3196 = vst [vmem:[%s170 + $0xb0] sm:$0xff] %v3164
      %3197 = vst [vmem:[%s170 + $0xb8] sm:$0xff] %v3165
      %3198 = vst [vmem:[%s170 + $0xc0] sm:$0xff] %v3166
      %3199 = vst [vmem:[%s170 + $0xc8] sm:$0xff] %v3167
      %3200 = vst [vmem:[%s170 + $0xd0] sm:$0xff] %v3168
      %3201 = vst [vmem:[%s170 + $0xd8] sm:$0xff] %v3169
      %3202 = vst [vmem:[%s170 + $0xe0] sm:$0xff] %v3170
      %3203 = vst [vmem:[%s170 + $0xe8] sm:$0xff] %v3171
      %3204 = vst [vmem:[%s170 + $0xf0] sm:$0xff] %v3172
      %3205 = vst [vmem:[%s170 + $0xf8] sm:$0xff] %v3173
      %v3206 = vld [vmem:[#allocation2] sm:$0xfe]
      %v3207 = vld [vmem:[#allocation2 + $0x8] sm:$0xfe]
      %v3208 = vld [vmem:[#allocation2 + $0x10] sm:$0xff]
      %v3209 = vld [vmem:[#allocation2 + $0x18] sm:$0xff]
      %v3210 = vld [vmem:[#allocation2 + $0x20] sm:$0x1]
      %v3211 = vld [vmem:[#allocation2 + $0x28] sm:$0x1]
      %v3212 = vld [vmem:[#allocation2 + $0x30] sm:$0xfe]
      %v3213 = vld [vmem:[#allocation2 + $0x38] sm:$0xfe]
      %v3214 = vld [vmem:[#allocation2 + $0x40] sm:$0xff]
      %v3215 = vld [vmem:[#allocation2 + $0x48] sm:$0xff]
      %v3216 = vld [vmem:[#allocation2 + $0x50] sm:$0x1]
      %v3217 = vld [vmem:[#allocation2 + $0x58] sm:$0x1]
      %v3218 = vld [vmem:[#allocation2 + $0x60] sm:$0xfe]
      %v3219 = vld [vmem:[#allocation2 + $0x68] sm:$0xfe]
      %v3220 = vld [vmem:[#allocation2 + $0x70] sm:$0xff]
      %v3221 = vld [vmem:[#allocation2 + $0x78] sm:$0xff]
      %v3222 = vld [vmem:[#allocation2 + $0x80] sm:$0x1]
      %v3223 = vld [vmem:[#allocation2 + $0x88] sm:$0x1]
      %v3224 = vld [vmem:[#allocation2 + $0x90] sm:$0xfe]
      %v3225 = vld [vmem:[#allocation2 + $0x98] sm:$0xfe]
      %v3226 = vld [vmem:[#allocation2 + $0xa0] sm:$0xff]
      %v3227 = vld [vmem:[#allocation2 + $0xa8] sm:$0xff]
      %v3228 = vld [vmem:[#allocation2 + $0xb0] sm:$0x1]
      %v3229 = vld [vmem:[#allocation2 + $0xb8] sm:$0x1]
      %v3230 = vld [vmem:[#allocation2 + $0xc0] sm:$0xfe]
      %v3231 = vld [vmem:[#allocation2 + $0xc8] sm:$0xfe]
      %v3232 = vld [vmem:[#allocation2 + $0xd0] sm:$0xff]
      %v3233 = vld [vmem:[#allocation2 + $0xd8] sm:$0xff]
      %v3234 = vld [vmem:[#allocation2 + $0xe0] sm:$0x1]
      %v3235 = vld [vmem:[#allocation2 + $0xe8] sm:$0x1]
      %v3236 = vld [vmem:[#allocation2 + $0xf0] sm:$0xfe]
      %v3237 = vld [vmem:[#allocation2 + $0xf8] sm:$0xfe]
      %v3238 = vld [vmem:[#allocation2 + $0x100] sm:$0xff]
      %v3239 = vld [vmem:[#allocation2 + $0x108] sm:$0xff]
      %v3240 = vld [vmem:[#allocation2 + $0x110] sm:$0x1]
      %v3241 = vld [vmem:[#allocation2 + $0x118] sm:$0x1]
      %v3242 = vld [vmem:[#allocation2 + $0x120] sm:$0xfe]
      %v3243 = vld [vmem:[#allocation2 + $0x128] sm:$0xfe]
      %v3244 = vld [vmem:[#allocation2 + $0x130] sm:$0xff]
      %v3245 = vld [vmem:[#allocation2 + $0x138] sm:$0xff]
      %v3246 = vld [vmem:[#allocation2 + $0x140] sm:$0x1]
      %v3247 = vld [vmem:[#allocation2 + $0x148] sm:$0x1]
      %v3248 = vld [vmem:[#allocation2 + $0x150] sm:$0xfe]
      %v3249 = vld [vmem:[#allocation2 + $0x158] sm:$0xfe]
      %v3250 = vld [vmem:[#allocation2 + $0x160] sm:$0xff]
      %v3251 = vld [vmem:[#allocation2 + $0x168] sm:$0xff]
      %v3252 = vld [vmem:[#allocation2 + $0x170] sm:$0x1]
      %v3253 = vld [vmem:[#allocation2 + $0x178] sm:$0x1]
      %v3254 = vld [vmem:[#allocation2 + $0x180] sm:$0xfe]
      %v3255 = vld [vmem:[#allocation2 + $0x188] sm:$0xfe]
      %v3256 = vld [vmem:[#allocation2 + $0x190] sm:$0xff]
      %v3257 = vld [vmem:[#allocation2 + $0x198] sm:$0xff]
      %v3258 = vld [vmem:[#allocation2 + $0x1a0] sm:$0x1]
      %v3259 = vld [vmem:[#allocation2 + $0x1a8] sm:$0x1]
      %v3260 = vld [vmem:[#allocation2 + $0x1b0] sm:$0xfe]
      %v3261 = vld [vmem:[#allocation2 + $0x1b8] sm:$0xfe]
      %v3262 = vld [vmem:[#allocation2 + $0x1c0] sm:$0xff]
      %v3263 = vld [vmem:[#allocation2 + $0x1c8] sm:$0xff]
      %v3264 = vld [vmem:[#allocation2 + $0x1d0] sm:$0x1]
      %v3265 = vld [vmem:[#allocation2 + $0x1d8] sm:$0x1]
      %v3266 = vld [vmem:[#allocation2 + $0x1e0] sm:$0xfe]
      %v3267 = vld [vmem:[#allocation2 + $0x1e8] sm:$0xfe]
      %v3268 = vld [vmem:[#allocation2 + $0x1f0] sm:$0xff]
      %v3269 = vld [vmem:[#allocation2 + $0x1f8] sm:$0xff]
      %v3270 = vld [vmem:[#allocation2 + $0x200] sm:$0x1]
      %v3271 = vld [vmem:[#allocation2 + $0x208] sm:$0x1]
      %v3272 = vld [vmem:[#allocation2 + $0x210] sm:$0xfe]
      %v3273 = vld [vmem:[#allocation2 + $0x218] sm:$0xfe]
      %v3274 = vld [vmem:[#allocation2 + $0x220] sm:$0xff]
      %v3275 = vld [vmem:[#allocation2 + $0x228] sm:$0xff]
      %v3276 = vld [vmem:[#allocation2 + $0x230] sm:$0x1]
      %v3277 = vld [vmem:[#allocation2 + $0x238] sm:$0x1]
      %v3278 = vld [vmem:[#allocation2 + $0x240] sm:$0xfe]
      %v3279 = vld [vmem:[#allocation2 + $0x248] sm:$0xfe]
      %v3280 = vld [vmem:[#allocation2 + $0x250] sm:$0xff]
      %v3281 = vld [vmem:[#allocation2 + $0x258] sm:$0xff]
      %v3282 = vld [vmem:[#allocation2 + $0x260] sm:$0x1]
      %v3283 = vld [vmem:[#allocation2 + $0x268] sm:$0x1]
      %v3284 = vld [vmem:[#allocation2 + $0x270] sm:$0xfe]
      %v3285 = vld [vmem:[#allocation2 + $0x278] sm:$0xfe]
      %v3286 = vld [vmem:[#allocation2 + $0x280] sm:$0xff]
      %v3287 = vld [vmem:[#allocation2 + $0x288] sm:$0xff]
      %v3288 = vld [vmem:[#allocation2 + $0x290] sm:$0x1]
      %v3289 = vld [vmem:[#allocation2 + $0x298] sm:$0x1]
      %v3290 = vld [vmem:[#allocation2 + $0x2a0] sm:$0xfe]
      %v3291 = vld [vmem:[#allocation2 + $0x2a8] sm:$0xfe]
      %v3292 = vld [vmem:[#allocation2 + $0x2b0] sm:$0xff]
      %v3293 = vld [vmem:[#allocation2 + $0x2b8] sm:$0xff]
      %v3294 = vld [vmem:[#allocation2 + $0x2c0] sm:$0x1]
      %v3295 = vld [vmem:[#allocation2 + $0x2c8] sm:$0x1]
      %v3296 = vld [vmem:[#allocation2 + $0x2d0] sm:$0xfe]
      %v3297 = vld [vmem:[#allocation2 + $0x2d8] sm:$0xfe]
      %v3298 = vld [vmem:[#allocation2 + $0x2e0] sm:$0xff]
      %v3299 = vld [vmem:[#allocation2 + $0x2e8] sm:$0xff]
      %v3300 = vld [vmem:[#allocation2 + $0x2f0] sm:$0x1]
      %v3301 = vld [vmem:[#allocation2 + $0x2f8] sm:$0x1]
      %v3302 = vpack.c.bf16 %v3208, %v3206
      %v3303 = vpack.c.bf16 %v3209, %v3207
      %v3304 = vpack.c.bf16 %v3210, %v3210
      %v3305 = vpack.c.bf16 %v3211, %v3211
      %v3306 = vpack.c.bf16 %v3214, %v3212
      %v3307 = vpack.c.bf16 %v3215, %v3213
      %v3308 = vpack.c.bf16 %v3216, %v3216
      %v3309 = vpack.c.bf16 %v3217, %v3217
      %v3310 = vpack.c.bf16 %v3220, %v3218
      %v3311 = vpack.c.bf16 %v3221, %v3219
      %v3312 = vpack.c.bf16 %v3222, %v3222
      %v3313 = vpack.c.bf16 %v3223, %v3223
      %v3314 = vpack.c.bf16 %v3226, %v3224
      %v3315 = vpack.c.bf16 %v3227, %v3225
      %v3316 = vpack.c.bf16 %v3228, %v3228
      %v3317 = vpack.c.bf16 %v3229, %v3229
      %v3318 = vpack.c.bf16 %v3232, %v3230
      %v3319 = vpack.c.bf16 %v3233, %v3231
      %v3320 = vpack.c.bf16 %v3234, %v3234
      %v3321 = vpack.c.bf16 %v3235, %v3235
      %v3322 = vpack.c.bf16 %v3238, %v3236
      %v3323 = vpack.c.bf16 %v3239, %v3237
      %v3324 = vpack.c.bf16 %v3240, %v3240
      %v3325 = vpack.c.bf16 %v3241, %v3241
      %v3326 = vpack.c.bf16 %v3244, %v3242
      %v3327 = vpack.c.bf16 %v3245, %v3243
      %v3328 = vpack.c.bf16 %v3246, %v3246
      %v3329 = vpack.c.bf16 %v3247, %v3247
      %v3330 = vpack.c.bf16 %v3250, %v3248
      %v3331 = vpack.c.bf16 %v3251, %v3249
      %v3332 = vpack.c.bf16 %v3252, %v3252
      %v3333 = vpack.c.bf16 %v3253, %v3253
      %v3334 = vpack.c.bf16 %v3256, %v3254
      %v3335 = vpack.c.bf16 %v3257, %v3255
      %v3336 = vpack.c.bf16 %v3258, %v3258
      %v3337 = vpack.c.bf16 %v3259, %v3259
      %v3338 = vpack.c.bf16 %v3262, %v3260
      %v3339 = vpack.c.bf16 %v3263, %v3261
      %v3340 = vpack.c.bf16 %v3264, %v3264
      %v3341 = vpack.c.bf16 %v3265, %v3265
      %v3342 = vpack.c.bf16 %v3268, %v3266
      %v3343 = vpack.c.bf16 %v3269, %v3267
      %v3344 = vpack.c.bf16 %v3270, %v3270
      %v3345 = vpack.c.bf16 %v3271, %v3271
      %v3346 = vpack.c.bf16 %v3274, %v3272
      %v3347 = vpack.c.bf16 %v3275, %v3273
      %v3348 = vpack.c.bf16 %v3276, %v3276
      %v3349 = vpack.c.bf16 %v3277, %v3277
      %v3350 = vpack.c.bf16 %v3280, %v3278
      %v3351 = vpack.c.bf16 %v3281, %v3279
      %v3352 = vpack.c.bf16 %v3282, %v3282
      %v3353 = vpack.c.bf16 %v3283, %v3283
      %v3354 = vpack.c.bf16 %v3286, %v3284
      %v3355 = vpack.c.bf16 %v3287, %v3285
      %v3356 = vpack.c.bf16 %v3288, %v3288
      %v3357 = vpack.c.bf16 %v3289, %v3289
      %v3358 = vpack.c.bf16 %v3292, %v3290
      %v3359 = vpack.c.bf16 %v3293, %v3291
      %v3360 = vpack.c.bf16 %v3294, %v3294
      %v3361 = vpack.c.bf16 %v3295, %v3295
      %v3362 = vpack.c.bf16 %v3298, %v3296
      %v3363 = vpack.c.bf16 %v3299, %v3297
      %v3364 = vpack.c.bf16 %v3300, %v3300
      %v3365 = vpack.c.bf16 %v3301, %v3301
      %v3366 = vld [vmem:[#allocation2] sm:$0xfc]
      %v3367 = vld [vmem:[#allocation2 + $0x8] sm:$0xfc]
      %v3368 = vld [vmem:[#allocation2 + $0x20] sm:$0x3]
      %v3369 = vld [vmem:[#allocation2 + $0x28] sm:$0x3]
      %v3370 = vld [vmem:[#allocation2 + $0x30] sm:$0xfc]
      %v3371 = vld [vmem:[#allocation2 + $0x38] sm:$0xfc]
      %v3372 = vld [vmem:[#allocation2 + $0x50] sm:$0x3]
      %v3373 = vld [vmem:[#allocation2 + $0x58] sm:$0x3]
      %v3374 = vld [vmem:[#allocation2 + $0x60] sm:$0xfc]
      %v3375 = vld [vmem:[#allocation2 + $0x68] sm:$0xfc]
      %v3376 = vld [vmem:[#allocation2 + $0x80] sm:$0x3]
      %v3377 = vld [vmem:[#allocation2 + $0x88] sm:$0x3]
      %v3378 = vld [vmem:[#allocation2 + $0x90] sm:$0xfc]
      %v3379 = vld [vmem:[#allocation2 + $0x98] sm:$0xfc]
      %v3380 = vld [vmem:[#allocation2 + $0xb0] sm:$0x3]
      %v3381 = vld [vmem:[#allocation2 + $0xb8] sm:$0x3]
      %v3382 = vld [vmem:[#allocation2 + $0xc0] sm:$0xfc]
      %v3383 = vld [vmem:[#allocation2 + $0xc8] sm:$0xfc]
      %v3384 = vld [vmem:[#allocation2 + $0xe0] sm:$0x3]
      %v3385 = vld [vmem:[#allocation2 + $0xe8] sm:$0x3]
      %v3386 = vld [vmem:[#allocation2 + $0xf0] sm:$0xfc]
      %v3387 = vld [vmem:[#allocation2 + $0xf8] sm:$0xfc]
      %v3388 = vld [vmem:[#allocation2 + $0x110] sm:$0x3]
      %v3389 = vld [vmem:[#allocation2 + $0x118] sm:$0x3]
      %v3390 = vld [vmem:[#allocation2 + $0x120] sm:$0xfc]
      %v3391 = vld [vmem:[#allocation2 + $0x128] sm:$0xfc]
      %v3392 = vld [vmem:[#allocation2 + $0x140] sm:$0x3]
      %v3393 = vld [vmem:[#allocation2 + $0x148] sm:$0x3]
      %v3394 = vld [vmem:[#allocation2 + $0x150] sm:$0xfc]
      %v3395 = vld [vmem:[#allocation2 + $0x158] sm:$0xfc]
      %v3396 = vld [vmem:[#allocation2 + $0x170] sm:$0x3]
      %v3397 = vld [vmem:[#allocation2 + $0x178] sm:$0x3]
      %v3398 = vld [vmem:[#allocation2 + $0x180] sm:$0xfc]
      %v3399 = vld [vmem:[#allocation2 + $0x188] sm:$0xfc]
      %v3400 = vld [vmem:[#allocation2 + $0x1a0] sm:$0x3]
      %v3401 = vld [vmem:[#allocation2 + $0x1a8] sm:$0x3]
      %v3402 = vld [vmem:[#allocation2 + $0x1b0] sm:$0xfc]
      %v3403 = vld [vmem:[#allocation2 + $0x1b8] sm:$0xfc]
      %v3404 = vld [vmem:[#allocation2 + $0x1d0] sm:$0x3]
      %v3405 = vld [vmem:[#allocation2 + $0x1d8] sm:$0x3]
      %v3406 = vld [vmem:[#allocation2 + $0x1e0] sm:$0xfc]
      %v3407 = vld [vmem:[#allocation2 + $0x1e8] sm:$0xfc]
      %v3408 = vld [vmem:[#allocation2 + $0x200] sm:$0x3]
      %v3409 = vld [vmem:[#allocation2 + $0x208] sm:$0x3]
      %v3410 = vld [vmem:[#allocation2 + $0x210] sm:$0xfc]
      %v3411 = vld [vmem:[#allocation2 + $0x218] sm:$0xfc]
      %v3412 = vld [vmem:[#allocation2 + $0x230] sm:$0x3]
      %v3413 = vld [vmem:[#allocation2 + $0x238] sm:$0x3]
      %v3414 = vld [vmem:[#allocation2 + $0x240] sm:$0xfc]
      %v3415 = vld [vmem:[#allocation2 + $0x248] sm:$0xfc]
      %v3416 = vld [vmem:[#allocation2 + $0x260] sm:$0x3]
      %v3417 = vld [vmem:[#allocation2 + $0x268] sm:$0x3]
      %v3418 = vld [vmem:[#allocation2 + $0x270] sm:$0xfc]
      %v3419 = vld [vmem:[#allocation2 + $0x278] sm:$0xfc]
      %v3420 = vld [vmem:[#allocation2 + $0x290] sm:$0x3]
      %v3421 = vld [vmem:[#allocation2 + $0x298] sm:$0x3]
      %v3422 = vld [vmem:[#allocation2 + $0x2a0] sm:$0xfc]
      %v3423 = vld [vmem:[#allocation2 + $0x2a8] sm:$0xfc]
      %v3424 = vld [vmem:[#allocation2 + $0x2c0] sm:$0x3]
      %v3425 = vld [vmem:[#allocation2 + $0x2c8] sm:$0x3]
      %v3426 = vld [vmem:[#allocation2 + $0x2d0] sm:$0xfc]
      %v3427 = vld [vmem:[#allocation2 + $0x2d8] sm:$0xfc]
      %v3428 = vld [vmem:[#allocation2 + $0x2f0] sm:$0x3]
      %v3429 = vld [vmem:[#allocation2 + $0x2f8] sm:$0x3]
      %v3430 = vpack.c.bf16 %v3208, %v3366
      %v3431 = vpack.c.bf16 %v3209, %v3367
      %v3432 = vpack.c.bf16 %v3368, %v3368
      %v3433 = vpack.c.bf16 %v3369, %v3369
      %v3434 = vpack.c.bf16 %v3214, %v3370
      %v3435 = vpack.c.bf16 %v3215, %v3371
      %v3436 = vpack.c.bf16 %v3372, %v3372
      %v3437 = vpack.c.bf16 %v3373, %v3373
      %v3438 = vpack.c.bf16 %v3220, %v3374
      %v3439 = vpack.c.bf16 %v3221, %v3375
      %v3440 = vpack.c.bf16 %v3376, %v3376
      %v3441 = vpack.c.bf16 %v3377, %v3377
      %v3442 = vpack.c.bf16 %v3226, %v3378
      %v3443 = vpack.c.bf16 %v3227, %v3379
      %v3444 = vpack.c.bf16 %v3380, %v3380
      %v3445 = vpack.c.bf16 %v3381, %v3381
      %v3446 = vpack.c.bf16 %v3232, %v3382
      %v3447 = vpack.c.bf16 %v3233, %v3383
      %v3448 = vpack.c.bf16 %v3384, %v3384
      %v3449 = vpack.c.bf16 %v3385, %v3385
      %v3450 = vpack.c.bf16 %v3238, %v3386
      %v3451 = vpack.c.bf16 %v3239, %v3387
      %v3452 = vpack.c.bf16 %v3388, %v3388
      %v3453 = vpack.c.bf16 %v3389, %v3389
      %v3454 = vpack.c.bf16 %v3244, %v3390
      %v3455 = vpack.c.bf16 %v3245, %v3391
      %v3456 = vpack.c.bf16 %v3392, %v3392
      %v3457 = vpack.c.bf16 %v3393, %v3393
      %v3458 = vpack.c.bf16 %v3250, %v3394
      %v3459 = vpack.c.bf16 %v3251, %v3395
      %v3460 = vpack.c.bf16 %v3396, %v3396
      %v3461 = vpack.c.bf16 %v3397, %v3397
      %v3462 = vpack.c.bf16 %v3256, %v3398
      %v3463 = vpack.c.bf16 %v3257, %v3399
      %v3464 = vpack.c.bf16 %v3400, %v3400
      %v3465 = vpack.c.bf16 %v3401, %v3401
      %v3466 = vpack.c.bf16 %v3262, %v3402
      %v3467 = vpack.c.bf16 %v3263, %v3403
      %v3468 = vpack.c.bf16 %v3404, %v3404
      %v3469 = vpack.c.bf16 %v3405, %v3405
      %v3470 = vpack.c.bf16 %v3268, %v3406
      %v3471 = vpack.c.bf16 %v3269, %v3407
      %v3472 = vpack.c.bf16 %v3408, %v3408
      %v3473 = vpack.c.bf16 %v3409, %v3409
      %v3474 = vpack.c.bf16 %v3274, %v3410
      %v3475 = vpack.c.bf16 %v3275, %v3411
      %v3476 = vpack.c.bf16 %v3412, %v3412
      %v3477 = vpack.c.bf16 %v3413, %v3413
      %v3478 = vpack.c.bf16 %v3280, %v3414
      %v3479 = vpack.c.bf16 %v3281, %v3415
      %v3480 = vpack.c.bf16 %v3416, %v3416
      %v3481 = vpack.c.bf16 %v3417, %v3417
      %v3482 = vpack.c.bf16 %v3286, %v3418
      %v3483 = vpack.c.bf16 %v3287, %v3419
      %v3484 = vpack.c.bf16 %v3420, %v3420
      %v3485 = vpack.c.bf16 %v3421, %v3421
      %v3486 = vpack.c.bf16 %v3292, %v3422
      %v3487 = vpack.c.bf16 %v3293, %v3423
      %v3488 = vpack.c.bf16 %v3424, %v3424
      %v3489 = vpack.c.bf16 %v3425, %v3425
      %v3490 = vpack.c.bf16 %v3298, %v3426
      %v3491 = vpack.c.bf16 %v3299, %v3427
      %v3492 = vpack.c.bf16 %v3428, %v3428
      %v3493 = vpack.c.bf16 %v3429, %v3429
      %v3494 = vld [vmem:[%s601] sm:$0xfe]
      %v3495 = vld [vmem:[%s601 + $0x8] sm:$0xfe]
      %v3496 = vld [vmem:[%s601 + $0x10] sm:$0xff]
      %v3497 = vld [vmem:[%s601 + $0x18] sm:$0xff]
      %v3498 = vld [vmem:[%s601 + $0x20] sm:$0x1]
      %v3499 = vld [vmem:[%s601 + $0x28] sm:$0x1]
      %v3500 = vld [vmem:[%s601 + $0x30] sm:$0xfe]
      %v3501 = vld [vmem:[%s601 + $0x38] sm:$0xfe]
      %v3502 = vld [vmem:[%s601 + $0x40] sm:$0xff]
      %v3503 = vld [vmem:[%s601 + $0x48] sm:$0xff]
      %v3504 = vld [vmem:[%s601 + $0x50] sm:$0x1]
      %v3505 = vld [vmem:[%s601 + $0x58] sm:$0x1]
      %v3506 = vld [vmem:[%s601 + $0x60] sm:$0xfe]
      %v3507 = vld [vmem:[%s601 + $0x68] sm:$0xfe]
      %v3508 = vld [vmem:[%s601 + $0x70] sm:$0xff]
      %v3509 = vld [vmem:[%s601 + $0x78] sm:$0xff]
      %v3510 = vld [vmem:[%s601 + $0x80] sm:$0x1]
      %v3511 = vld [vmem:[%s601 + $0x88] sm:$0x1]
      %v3512 = vld [vmem:[%s601 + $0x90] sm:$0xfe]
      %v3513 = vld [vmem:[%s601 + $0x98] sm:$0xfe]
      %v3514 = vld [vmem:[%s601 + $0xa0] sm:$0xff]
      %v3515 = vld [vmem:[%s601 + $0xa8] sm:$0xff]
      %v3516 = vld [vmem:[%s601 + $0xb0] sm:$0x1]
      %v3517 = vld [vmem:[%s601 + $0xb8] sm:$0x1]
      %v3518 = vld [vmem:[%s601 + $0xc0] sm:$0xfe]
      %v3519 = vld [vmem:[%s601 + $0xc8] sm:$0xfe]
      %v3520 = vld [vmem:[%s601 + $0xd0] sm:$0xff]
      %v3521 = vld [vmem:[%s601 + $0xd8] sm:$0xff]
      %v3522 = vld [vmem:[%s601 + $0xe0] sm:$0x1]
      %v3523 = vld [vmem:[%s601 + $0xe8] sm:$0x1]
      %v3524 = vld [vmem:[%s601 + $0xf0] sm:$0xfe]
      %v3525 = vld [vmem:[%s601 + $0xf8] sm:$0xfe]
      %v3526 = vld [vmem:[%s601 + $0x100] sm:$0xff]
      %v3527 = vld [vmem:[%s601 + $0x108] sm:$0xff]
      %v3528 = vld [vmem:[%s601 + $0x110] sm:$0x1]
      %v3529 = vld [vmem:[%s601 + $0x118] sm:$0x1]
      %v3530 = vld [vmem:[%s601 + $0x120] sm:$0xfe]
      %v3531 = vld [vmem:[%s601 + $0x128] sm:$0xfe]
      %v3532 = vld [vmem:[%s601 + $0x130] sm:$0xff]
      %v3533 = vld [vmem:[%s601 + $0x138] sm:$0xff]
      %v3534 = vld [vmem:[%s601 + $0x140] sm:$0x1]
      %v3535 = vld [vmem:[%s601 + $0x148] sm:$0x1]
      %v3536 = vld [vmem:[%s601 + $0x150] sm:$0xfe]
      %v3537 = vld [vmem:[%s601 + $0x158] sm:$0xfe]
      %v3538 = vld [vmem:[%s601 + $0x160] sm:$0xff]
      %v3539 = vld [vmem:[%s601 + $0x168] sm:$0xff]
      %v3540 = vld [vmem:[%s601 + $0x170] sm:$0x1]
      %v3541 = vld [vmem:[%s601 + $0x178] sm:$0x1]
      %v3542 = vld [vmem:[%s601 + $0x180] sm:$0xfe]
      %v3543 = vld [vmem:[%s601 + $0x188] sm:$0xfe]
      %v3544 = vld [vmem:[%s601 + $0x190] sm:$0xff]
      %v3545 = vld [vmem:[%s601 + $0x198] sm:$0xff]
      %v3546 = vld [vmem:[%s601 + $0x1a0] sm:$0x1]
      %v3547 = vld [vmem:[%s601 + $0x1a8] sm:$0x1]
      %v3548 = vld [vmem:[%s601 + $0x1b0] sm:$0xfe]
      %v3549 = vld [vmem:[%s601 + $0x1b8] sm:$0xfe]
      %v3550 = vld [vmem:[%s601 + $0x1c0] sm:$0xff]
      %v3551 = vld [vmem:[%s601 + $0x1c8] sm:$0xff]
      %v3552 = vld [vmem:[%s601 + $0x1d0] sm:$0x1]
      %v3553 = vld [vmem:[%s601 + $0x1d8] sm:$0x1]
      %v3554 = vld [vmem:[%s601 + $0x1e0] sm:$0xfe]
      %v3555 = vld [vmem:[%s601 + $0x1e8] sm:$0xfe]
      %v3556 = vld [vmem:[%s601 + $0x1f0] sm:$0xff]
      %v3557 = vld [vmem:[%s601 + $0x1f8] sm:$0xff]
      %v3558 = vld [vmem:[%s601 + $0x200] sm:$0x1]
      %v3559 = vld [vmem:[%s601 + $0x208] sm:$0x1]
      %v3560 = vld [vmem:[%s601 + $0x210] sm:$0xfe]
      %v3561 = vld [vmem:[%s601 + $0x218] sm:$0xfe]
      %v3562 = vld [vmem:[%s601 + $0x220] sm:$0xff]
      %v3563 = vld [vmem:[%s601 + $0x228] sm:$0xff]
      %v3564 = vld [vmem:[%s601 + $0x230] sm:$0x1]
      %v3565 = vld [vmem:[%s601 + $0x238] sm:$0x1]
      %v3566 = vld [vmem:[%s601 + $0x240] sm:$0xfe]
      %v3567 = vld [vmem:[%s601 + $0x248] sm:$0xfe]
      %v3568 = vld [vmem:[%s601 + $0x250] sm:$0xff]
      %v3569 = vld [vmem:[%s601 + $0x258] sm:$0xff]
      %v3570 = vld [vmem:[%s601 + $0x260] sm:$0x1]
      %v3571 = vld [vmem:[%s601 + $0x268] sm:$0x1]
      %v3572 = vld [vmem:[%s601 + $0x270] sm:$0xfe]
      %v3573 = vld [vmem:[%s601 + $0x278] sm:$0xfe]
      %v3574 = vld [vmem:[%s601 + $0x280] sm:$0xff]
      %v3575 = vld [vmem:[%s601 + $0x288] sm:$0xff]
      %v3576 = vld [vmem:[%s601 + $0x290] sm:$0x1]
      %v3577 = vld [vmem:[%s601 + $0x298] sm:$0x1]
      %v3578 = vld [vmem:[%s601 + $0x2a0] sm:$0xfe]
      %v3579 = vld [vmem:[%s601 + $0x2a8] sm:$0xfe]
      %v3580 = vld [vmem:[%s601 + $0x2b0] sm:$0xff]
      %v3581 = vld [vmem:[%s601 + $0x2b8] sm:$0xff]
      %v3582 = vld [vmem:[%s601 + $0x2c0] sm:$0x1]
      %v3583 = vld [vmem:[%s601 + $0x2c8] sm:$0x1]
      %v3584 = vld [vmem:[%s601 + $0x2d0] sm:$0xfe]
      %v3585 = vld [vmem:[%s601 + $0x2d8] sm:$0xfe]
      %v3586 = vld [vmem:[%s601 + $0x2e0] sm:$0xff]
      %v3587 = vld [vmem:[%s601 + $0x2e8] sm:$0xff]
      %v3588 = vld [vmem:[%s601 + $0x2f0] sm:$0x1]
      %v3589 = vld [vmem:[%s601 + $0x2f8] sm:$0x1]
      %v3590 = vpack.c.bf16 %v3496, %v3494
      %v3591 = vpack.c.bf16 %v3497, %v3495
      %v3592 = vpack.c.bf16 %v3498, %v3498
      %v3593 = vpack.c.bf16 %v3499, %v3499
      %v3594 = vpack.c.bf16 %v3502, %v3500
      %v3595 = vpack.c.bf16 %v3503, %v3501
      %v3596 = vpack.c.bf16 %v3504, %v3504
      %v3597 = vpack.c.bf16 %v3505, %v3505
      %v3598 = vpack.c.bf16 %v3508, %v3506
      %v3599 = vpack.c.bf16 %v3509, %v3507
      %v3600 = vpack.c.bf16 %v3510, %v3510
      %v3601 = vpack.c.bf16 %v3511, %v3511
      %v3602 = vpack.c.bf16 %v3514, %v3512
      %v3603 = vpack.c.bf16 %v3515, %v3513
      %v3604 = vpack.c.bf16 %v3516, %v3516
      %v3605 = vpack.c.bf16 %v3517, %v3517
      %v3606 = vpack.c.bf16 %v3520, %v3518
      %v3607 = vpack.c.bf16 %v3521, %v3519
      %v3608 = vpack.c.bf16 %v3522, %v3522
      %v3609 = vpack.c.bf16 %v3523, %v3523
      %v3610 = vpack.c.bf16 %v3526, %v3524
      %v3611 = vpack.c.bf16 %v3527, %v3525
      %v3612 = vpack.c.bf16 %v3528, %v3528
      %v3613 = vpack.c.bf16 %v3529, %v3529
      %v3614 = vpack.c.bf16 %v3532, %v3530
      %v3615 = vpack.c.bf16 %v3533, %v3531
      %v3616 = vpack.c.bf16 %v3534, %v3534
      %v3617 = vpack.c.bf16 %v3535, %v3535
      %v3618 = vpack.c.bf16 %v3538, %v3536
      %v3619 = vpack.c.bf16 %v3539, %v3537
      %v3620 = vpack.c.bf16 %v3540, %v3540
      %v3621 = vpack.c.bf16 %v3541, %v3541
      %v3622 = vpack.c.bf16 %v3544, %v3542
      %v3623 = vpack.c.bf16 %v3545, %v3543
      %v3624 = vpack.c.bf16 %v3546, %v3546
      %v3625 = vpack.c.bf16 %v3547, %v3547
      %v3626 = vpack.c.bf16 %v3550, %v3548
      %v3627 = vpack.c.bf16 %v3551, %v3549
      %v3628 = vpack.c.bf16 %v3552, %v3552
      %v3629 = vpack.c.bf16 %v3553, %v3553
      %v3630 = vpack.c.bf16 %v3556, %v3554
      %v3631 = vpack.c.bf16 %v3557, %v3555
      %v3632 = vpack.c.bf16 %v3558, %v3558
      %v3633 = vpack.c.bf16 %v3559, %v3559
      %v3634 = vpack.c.bf16 %v3562, %v3560
      %v3635 = vpack.c.bf16 %v3563, %v3561
      %v3636 = vpack.c.bf16 %v3564, %v3564
      %v3637 = vpack.c.bf16 %v3565, %v3565
      %v3638 = vpack.c.bf16 %v3568, %v3566
      %v3639 = vpack.c.bf16 %v3569, %v3567
      %v3640 = vpack.c.bf16 %v3570, %v3570
      %v3641 = vpack.c.bf16 %v3571, %v3571
      %v3642 = vpack.c.bf16 %v3574, %v3572
      %v3643 = vpack.c.bf16 %v3575, %v3573
      %v3644 = vpack.c.bf16 %v3576, %v3576
      %v3645 = vpack.c.bf16 %v3577, %v3577
      %v3646 = vpack.c.bf16 %v3580, %v3578
      %v3647 = vpack.c.bf16 %v3581, %v3579
      %v3648 = vpack.c.bf16 %v3582, %v3582
      %v3649 = vpack.c.bf16 %v3583, %v3583
      %v3650 = vpack.c.bf16 %v3586, %v3584
      %v3651 = vpack.c.bf16 %v3587, %v3585
      %v3652 = vpack.c.bf16 %v3588, %v3588
      %v3653 = vpack.c.bf16 %v3589, %v3589
      %v3654 = vld [vmem:[%s601] sm:$0xfc]
      %v3655 = vld [vmem:[%s601 + $0x8] sm:$0xfc]
      %v3656 = vld [vmem:[%s601 + $0x20] sm:$0x3]
      %v3657 = vld [vmem:[%s601 + $0x28] sm:$0x3]
      %v3658 = vld [vmem:[%s601 + $0x30] sm:$0xfc]
      %v3659 = vld [vmem:[%s601 + $0x38] sm:$0xfc]
      %v3660 = vld [vmem:[%s601 + $0x50] sm:$0x3]
      %v3661 = vld [vmem:[%s601 + $0x58] sm:$0x3]
      %v3662 = vld [vmem:[%s601 + $0x60] sm:$0xfc]
      %v3663 = vld [vmem:[%s601 + $0x68] sm:$0xfc]
      %v3664 = vld [vmem:[%s601 + $0x80] sm:$0x3]
      %v3665 = vld [vmem:[%s601 + $0x88] sm:$0x3]
      %v3666 = vld [vmem:[%s601 + $0x90] sm:$0xfc]
      %v3667 = vld [vmem:[%s601 + $0x98] sm:$0xfc]
      %v3668 = vld [vmem:[%s601 + $0xb0] sm:$0x3]
      %v3669 = vld [vmem:[%s601 + $0xb8] sm:$0x3]
      %v3670 = vld [vmem:[%s601 + $0xc0] sm:$0xfc]
      %v3671 = vld [vmem:[%s601 + $0xc8] sm:$0xfc]
      %v3672 = vld [vmem:[%s601 + $0xe0] sm:$0x3]
      %v3673 = vld [vmem:[%s601 + $0xe8] sm:$0x3]
      %v3674 = vld [vmem:[%s601 + $0xf0] sm:$0xfc]
      %v3675 = vld [vmem:[%s601 + $0xf8] sm:$0xfc]
      %v3676 = vld [vmem:[%s601 + $0x110] sm:$0x3]
      %v3677 = vld [vmem:[%s601 + $0x118] sm:$0x3]
      %v3678 = vld [vmem:[%s601 + $0x120] sm:$0xfc]
      %v3679 = vld [vmem:[%s601 + $0x128] sm:$0xfc]
      %v3680 = vld [vmem:[%s601 + $0x140] sm:$0x3]
      %v3681 = vld [vmem:[%s601 + $0x148] sm:$0x3]
      %v3682 = vld [vmem:[%s601 + $0x150] sm:$0xfc]
      %v3683 = vld [vmem:[%s601 + $0x158] sm:$0xfc]
      %v3684 = vld [vmem:[%s601 + $0x170] sm:$0x3]
      %v3685 = vld [vmem:[%s601 + $0x178] sm:$0x3]
      %v3686 = vld [vmem:[%s601 + $0x180] sm:$0xfc]
      %v3687 = vld [vmem:[%s601 + $0x188] sm:$0xfc]
      %v3688 = vld [vmem:[%s601 + $0x1a0] sm:$0x3]
      %v3689 = vld [vmem:[%s601 + $0x1a8] sm:$0x3]
      %v3690 = vld [vmem:[%s601 + $0x1b0] sm:$0xfc]
      %v3691 = vld [vmem:[%s601 + $0x1b8] sm:$0xfc]
      %v3692 = vld [vmem:[%s601 + $0x1d0] sm:$0x3]
      %v3693 = vld [vmem:[%s601 + $0x1d8] sm:$0x3]
      %v3694 = vld [vmem:[%s601 + $0x1e0] sm:$0xfc]
      %v3695 = vld [vmem:[%s601 + $0x1e8] sm:$0xfc]
      %v3696 = vld [vmem:[%s601 + $0x200] sm:$0x3]
      %v3697 = vld [vmem:[%s601 + $0x208] sm:$0x3]
      %v3698 = vld [vmem:[%s601 + $0x210] sm:$0xfc]
      %v3699 = vld [vmem:[%s601 + $0x218] sm:$0xfc]
      %v3700 = vld [vmem:[%s601 + $0x230] sm:$0x3]
      %v3701 = vld [vmem:[%s601 + $0x238] sm:$0x3]
      %v3702 = vld [vmem:[%s601 + $0x240] sm:$0xfc]
      %v3703 = vld [vmem:[%s601 + $0x248] sm:$0xfc]
      %v3704 = vld [vmem:[%s601 + $0x260] sm:$0x3]
      %v3705 = vld [vmem:[%s601 + $0x268] sm:$0x3]
      %v3706 = vld [vmem:[%s601 + $0x270] sm:$0xfc]
      %v3707 = vld [vmem:[%s601 + $0x278] sm:$0xfc]
      %v3708 = vld [vmem:[%s601 + $0x290] sm:$0x3]
      %v3709 = vld [vmem:[%s601 + $0x298] sm:$0x3]
      %v3710 = vld [vmem:[%s601 + $0x2a0] sm:$0xfc]
      %v3711 = vld [vmem:[%s601 + $0x2a8] sm:$0xfc]
      %v3712 = vld [vmem:[%s601 + $0x2c0] sm:$0x3]
      %v3713 = vld [vmem:[%s601 + $0x2c8] sm:$0x3]
      %v3714 = vld [vmem:[%s601 + $0x2d0] sm:$0xfc]
      %v3715 = vld [vmem:[%s601 + $0x2d8] sm:$0xfc]
      %v3716 = vld [vmem:[%s601 + $0x2f0] sm:$0x3]
      %v3717 = vld [vmem:[%s601 + $0x2f8] sm:$0x3]
      %v3718 = vpack.c.bf16 %v3496, %v3654
      %v3719 = vpack.c.bf16 %v3497, %v3655
      %v3720 = vpack.c.bf16 %v3656, %v3656
      %v3721 = vpack.c.bf16 %v3657, %v3657
      %v3722 = vpack.c.bf16 %v3502, %v3658
      %v3723 = vpack.c.bf16 %v3503, %v3659
      %v3724 = vpack.c.bf16 %v3660, %v3660
      %v3725 = vpack.c.bf16 %v3661, %v3661
      %v3726 = vpack.c.bf16 %v3508, %v3662
      %v3727 = vpack.c.bf16 %v3509, %v3663
      %v3728 = vpack.c.bf16 %v3664, %v3664
      %v3729 = vpack.c.bf16 %v3665, %v3665
      %v3730 = vpack.c.bf16 %v3514, %v3666
      %v3731 = vpack.c.bf16 %v3515, %v3667
      %v3732 = vpack.c.bf16 %v3668, %v3668
      %v3733 = vpack.c.bf16 %v3669, %v3669
      %v3734 = vpack.c.bf16 %v3520, %v3670
      %v3735 = vpack.c.bf16 %v3521, %v3671
      %v3736 = vpack.c.bf16 %v3672, %v3672
      %v3737 = vpack.c.bf16 %v3673, %v3673
      %v3738 = vpack.c.bf16 %v3526, %v3674
      %v3739 = vpack.c.bf16 %v3527, %v3675
      %v3740 = vpack.c.bf16 %v3676, %v3676
      %v3741 = vpack.c.bf16 %v3677, %v3677
      %v3742 = vpack.c.bf16 %v3532, %v3678
      %v3743 = vpack.c.bf16 %v3533, %v3679
      %v3744 = vpack.c.bf16 %v3680, %v3680
      %v3745 = vpack.c.bf16 %v3681, %v3681
      %v3746 = vpack.c.bf16 %v3538, %v3682
      %v3747 = vpack.c.bf16 %v3539, %v3683
      %v3748 = vpack.c.bf16 %v3684, %v3684
      %v3749 = vpack.c.bf16 %v3685, %v3685
      %v3750 = vpack.c.bf16 %v3544, %v3686
      %v3751 = vpack.c.bf16 %v3545, %v3687
      %v3752 = vpack.c.bf16 %v3688, %v3688
      %v3753 = vpack.c.bf16 %v3689, %v3689
      %v3754 = vpack.c.bf16 %v3550, %v3690
      %v3755 = vpack.c.bf16 %v3551, %v3691
      %v3756 = vpack.c.bf16 %v3692, %v3692
      %v3757 = vpack.c.bf16 %v3693, %v3693
      %v3758 = vpack.c.bf16 %v3556, %v3694
      %v3759 = vpack.c.bf16 %v3557, %v3695
      %v3760 = vpack.c.bf16 %v3696, %v3696
      %v3761 = vpack.c.bf16 %v3697, %v3697
      %v3762 = vpack.c.bf16 %v3562, %v3698
      %v3763 = vpack.c.bf16 %v3563, %v3699
      %v3764 = vpack.c.bf16 %v3700, %v3700
      %v3765 = vpack.c.bf16 %v3701, %v3701
      %v3766 = vpack.c.bf16 %v3568, %v3702
      %v3767 = vpack.c.bf16 %v3569, %v3703
      %v3768 = vpack.c.bf16 %v3704, %v3704
      %v3769 = vpack.c.bf16 %v3705, %v3705
      %v3770 = vpack.c.bf16 %v3574, %v3706
      %v3771 = vpack.c.bf16 %v3575, %v3707
      %v3772 = vpack.c.bf16 %v3708, %v3708
      %v3773 = vpack.c.bf16 %v3709, %v3709
      %v3774 = vpack.c.bf16 %v3580, %v3710
      %v3775 = vpack.c.bf16 %v3581, %v3711
      %v3776 = vpack.c.bf16 %v3712, %v3712
      %v3777 = vpack.c.bf16 %v3713, %v3713
      %v3778 = vpack.c.bf16 %v3586, %v3714
      %v3779 = vpack.c.bf16 %v3587, %v3715
      %v3780 = vpack.c.bf16 %v3716, %v3716
      %v3781 = vpack.c.bf16 %v3717, %v3717
      %v3783 = vshrl.u32 %v3430, 16
      %v3785 = vshll.u32 %v3430, 16
      %v3787 = vrot.slane %v3785, 1
      %v3788 = vor.u32 %v3783, %v3787
      %v3790 = vshll.u32 %v3432, 16
      %v3792 = vrot.slane %v3790, 1
      %v3793 = vsel %vm1147, %v3788, %v3792
      %v3795 = vshrl.u32 %v3431, 16
      %v3797 = vshll.u32 %v3431, 16
      %v3799 = vrot.slane %v3797, 1
      %v3800 = vor.u32 %v3795, %v3799
      %v3802 = vshll.u32 %v3433, 16
      %v3804 = vrot.slane %v3802, 1
      %v3805 = vsel %vm1147, %v3800, %v3804
      %v3806 = vshrl.u32 %v3432, 16
      %v3808 = vshrl.u32 %v3433, 16
      %v3811 = vshrl.u32 %v3434, 16
      %v3813 = vshll.u32 %v3434, 16
      %v3815 = vrot.slane %v3813, 1
      %v3816 = vor.u32 %v3811, %v3815
      %v3818 = vshll.u32 %v3436, 16
      %v3820 = vrot.slane %v3818, 1
      %v3821 = vsel %vm1147, %v3816, %v3820
      %v3823 = vshrl.u32 %v3435, 16
      %v3825 = vshll.u32 %v3435, 16
      %v3827 = vrot.slane %v3825, 1
      %v3828 = vor.u32 %v3823, %v3827
      %v3830 = vshll.u32 %v3437, 16
      %v3832 = vrot.slane %v3830, 1
      %v3833 = vsel %vm1147, %v3828, %v3832
      %v3834 = vshrl.u32 %v3436, 16
      %v3836 = vshrl.u32 %v3437, 16
      %v3839 = vshrl.u32 %v3438, 16
      %v3841 = vshll.u32 %v3438, 16
      %v3843 = vrot.slane %v3841, 1
      %v3844 = vor.u32 %v3839, %v3843
      %v3846 = vshll.u32 %v3440, 16
      %v3848 = vrot.slane %v3846, 1
      %v3849 = vsel %vm1147, %v3844, %v3848
      %v3851 = vshrl.u32 %v3439, 16
      %v3853 = vshll.u32 %v3439, 16
      %v3855 = vrot.slane %v3853, 1
      %v3856 = vor.u32 %v3851, %v3855
      %v3858 = vshll.u32 %v3441, 16
      %v3860 = vrot.slane %v3858, 1
      %v3861 = vsel %vm1147, %v3856, %v3860
      %v3862 = vshrl.u32 %v3440, 16
      %v3864 = vshrl.u32 %v3441, 16
      %v3867 = vshrl.u32 %v3442, 16
      %v3869 = vshll.u32 %v3442, 16
      %v3871 = vrot.slane %v3869, 1
      %v3872 = vor.u32 %v3867, %v3871
      %v3874 = vshll.u32 %v3444, 16
      %v3876 = vrot.slane %v3874, 1
      %v3877 = vsel %vm1147, %v3872, %v3876
      %v3879 = vshrl.u32 %v3443, 16
      %v3881 = vshll.u32 %v3443, 16
      %v3883 = vrot.slane %v3881, 1
      %v3884 = vor.u32 %v3879, %v3883
      %v3886 = vshll.u32 %v3445, 16
      %v3888 = vrot.slane %v3886, 1
      %v3889 = vsel %vm1147, %v3884, %v3888
      %v3890 = vshrl.u32 %v3444, 16
      %v3892 = vshrl.u32 %v3445, 16
      %v3895 = vshrl.u32 %v3446, 16
      %v3897 = vshll.u32 %v3446, 16
      %v3899 = vrot.slane %v3897, 1
      %v3900 = vor.u32 %v3895, %v3899
      %v3902 = vshll.u32 %v3448, 16
      %v3904 = vrot.slane %v3902, 1
      %v3905 = vsel %vm1147, %v3900, %v3904
      %v3907 = vshrl.u32 %v3447, 16
      %v3909 = vshll.u32 %v3447, 16
      %v3911 = vrot.slane %v3909, 1
      %v3912 = vor.u32 %v3907, %v3911
      %v3914 = vshll.u32 %v3449, 16
      %v3916 = vrot.slane %v3914, 1
      %v3917 = vsel %vm1147, %v3912, %v3916
      %v3918 = vshrl.u32 %v3448, 16
      %v3920 = vshrl.u32 %v3449, 16
      %v3923 = vshrl.u32 %v3450, 16
      %v3925 = vshll.u32 %v3450, 16
      %v3927 = vrot.slane %v3925, 1
      %v3928 = vor.u32 %v3923, %v3927
      %v3930 = vshll.u32 %v3452, 16
      %v3932 = vrot.slane %v3930, 1
      %v3933 = vsel %vm1147, %v3928, %v3932
      %v3935 = vshrl.u32 %v3451, 16
      %v3937 = vshll.u32 %v3451, 16
      %v3939 = vrot.slane %v3937, 1
      %v3940 = vor.u32 %v3935, %v3939
      %v3942 = vshll.u32 %v3453, 16
      %v3944 = vrot.slane %v3942, 1
      %v3945 = vsel %vm1147, %v3940, %v3944
      %v3946 = vshrl.u32 %v3452, 16
      %v3948 = vshrl.u32 %v3453, 16
      %v3951 = vshrl.u32 %v3454, 16
      %v3953 = vshll.u32 %v3454, 16
      %v3955 = vrot.slane %v3953, 1
      %v3956 = vor.u32 %v3951, %v3955
      %v3958 = vshll.u32 %v3456, 16
      %v3960 = vrot.slane %v3958, 1
      %v3961 = vsel %vm1147, %v3956, %v3960
      %v3963 = vshrl.u32 %v3455, 16
      %v3965 = vshll.u32 %v3455, 16
      %v3967 = vrot.slane %v3965, 1
      %v3968 = vor.u32 %v3963, %v3967
      %v3970 = vshll.u32 %v3457, 16
      %v3972 = vrot.slane %v3970, 1
      %v3973 = vsel %vm1147, %v3968, %v3972
      %v3974 = vshrl.u32 %v3456, 16
      %v3976 = vshrl.u32 %v3457, 16
      %v3979 = vshrl.u32 %v3458, 16
      %v3981 = vshll.u32 %v3458, 16
      %v3983 = vrot.slane %v3981, 1
      %v3984 = vor.u32 %v3979, %v3983
      %v3986 = vshll.u32 %v3460, 16
      %v3988 = vrot.slane %v3986, 1
      %v3989 = vsel %vm1147, %v3984, %v3988
      %v3991 = vshrl.u32 %v3459, 16
      %v3993 = vshll.u32 %v3459, 16
      %v3995 = vrot.slane %v3993, 1
      %v3996 = vor.u32 %v3991, %v3995
      %v3998 = vshll.u32 %v3461, 16
      %v4000 = vrot.slane %v3998, 1
      %v4001 = vsel %vm1147, %v3996, %v4000
      %v4002 = vshrl.u32 %v3460, 16
      %v4004 = vshrl.u32 %v3461, 16
      %v4007 = vshrl.u32 %v3462, 16
      %v4009 = vshll.u32 %v3462, 16
      %v4011 = vrot.slane %v4009, 1
      %v4012 = vor.u32 %v4007, %v4011
      %v4014 = vshll.u32 %v3464, 16
      %v4016 = vrot.slane %v4014, 1
      %v4017 = vsel %vm1147, %v4012, %v4016
      %v4019 = vshrl.u32 %v3463, 16
      %v4021 = vshll.u32 %v3463, 16
      %v4023 = vrot.slane %v4021, 1
      %v4024 = vor.u32 %v4019, %v4023
      %v4026 = vshll.u32 %v3465, 16
      %v4028 = vrot.slane %v4026, 1
      %v4029 = vsel %vm1147, %v4024, %v4028
      %v4030 = vshrl.u32 %v3464, 16
      %v4032 = vshrl.u32 %v3465, 16
      %v4035 = vshrl.u32 %v3466, 16
      %v4037 = vshll.u32 %v3466, 16
      %v4039 = vrot.slane %v4037, 1
      %v4040 = vor.u32 %v4035, %v4039
      %v4042 = vshll.u32 %v3468, 16
      %v4044 = vrot.slane %v4042, 1
      %v4045 = vsel %vm1147, %v4040, %v4044
      %v4047 = vshrl.u32 %v3467, 16
      %v4049 = vshll.u32 %v3467, 16
      %v4051 = vrot.slane %v4049, 1
      %v4052 = vor.u32 %v4047, %v4051
      %v4054 = vshll.u32 %v3469, 16
      %v4056 = vrot.slane %v4054, 1
      %v4057 = vsel %vm1147, %v4052, %v4056
      %v4058 = vshrl.u32 %v3468, 16
      %v4060 = vshrl.u32 %v3469, 16
      %v4063 = vshrl.u32 %v3470, 16
      %v4065 = vshll.u32 %v3470, 16
      %v4067 = vrot.slane %v4065, 1
      %v4068 = vor.u32 %v4063, %v4067
      %v4070 = vshll.u32 %v3472, 16
      %v4072 = vrot.slane %v4070, 1
      %v4073 = vsel %vm1147, %v4068, %v4072
      %v4075 = vshrl.u32 %v3471, 16
      %v4077 = vshll.u32 %v3471, 16
      %v4079 = vrot.slane %v4077, 1
      %v4080 = vor.u32 %v4075, %v4079
      %v4082 = vshll.u32 %v3473, 16
      %v4084 = vrot.slane %v4082, 1
      %v4085 = vsel %vm1147, %v4080, %v4084
      %v4086 = vshrl.u32 %v3472, 16
      %v4088 = vshrl.u32 %v3473, 16
      %v4091 = vshrl.u32 %v3474, 16
      %v4093 = vshll.u32 %v3474, 16
      %v4095 = vrot.slane %v4093, 1
      %v4096 = vor.u32 %v4091, %v4095
      %v4098 = vshll.u32 %v3476, 16
      %v4100 = vrot.slane %v4098, 1
      %v4101 = vsel %vm1147, %v4096, %v4100
      %v4103 = vshrl.u32 %v3475, 16
      %v4105 = vshll.u32 %v3475, 16
      %v4107 = vrot.slane %v4105, 1
      %v4108 = vor.u32 %v4103, %v4107
      %v4110 = vshll.u32 %v3477, 16
      %v4112 = vrot.slane %v4110, 1
      %v4113 = vsel %vm1147, %v4108, %v4112
      %v4114 = vshrl.u32 %v3476, 16
      %v4116 = vshrl.u32 %v3477, 16
      %v4119 = vshrl.u32 %v3478, 16
      %v4121 = vshll.u32 %v3478, 16
      %v4123 = vrot.slane %v4121, 1
      %v4124 = vor.u32 %v4119, %v4123
      %v4126 = vshll.u32 %v3480, 16
      %v4128 = vrot.slane %v4126, 1
      %v4129 = vsel %vm1147, %v4124, %v4128
      %v4131 = vshrl.u32 %v3479, 16
      %v4133 = vshll.u32 %v3479, 16
      %v4135 = vrot.slane %v4133, 1
      %v4136 = vor.u32 %v4131, %v4135
      %v4138 = vshll.u32 %v3481, 16
      %v4140 = vrot.slane %v4138, 1
      %v4141 = vsel %vm1147, %v4136, %v4140
      %v4142 = vshrl.u32 %v3480, 16
      %v4144 = vshrl.u32 %v3481, 16
      %v4147 = vshrl.u32 %v3482, 16
      %v4149 = vshll.u32 %v3482, 16
      %v4151 = vrot.slane %v4149, 1
      %v4152 = vor.u32 %v4147, %v4151
      %v4154 = vshll.u32 %v3484, 16
      %v4156 = vrot.slane %v4154, 1
      %v4157 = vsel %vm1147, %v4152, %v4156
      %v4159 = vshrl.u32 %v3483, 16
      %v4161 = vshll.u32 %v3483, 16
      %v4163 = vrot.slane %v4161, 1
      %v4164 = vor.u32 %v4159, %v4163
      %v4166 = vshll.u32 %v3485, 16
      %v4168 = vrot.slane %v4166, 1
      %v4169 = vsel %vm1147, %v4164, %v4168
      %v4170 = vshrl.u32 %v3484, 16
      %v4172 = vshrl.u32 %v3485, 16
      %v4175 = vshrl.u32 %v3486, 16
      %v4177 = vshll.u32 %v3486, 16
      %v4179 = vrot.slane %v4177, 1
      %v4180 = vor.u32 %v4175, %v4179
      %v4182 = vshll.u32 %v3488, 16
      %v4184 = vrot.slane %v4182, 1
      %v4185 = vsel %vm1147, %v4180, %v4184
      %v4187 = vshrl.u32 %v3487, 16
      %v4189 = vshll.u32 %v3487, 16
      %v4191 = vrot.slane %v4189, 1
      %v4192 = vor.u32 %v4187, %v4191
      %v4194 = vshll.u32 %v3489, 16
      %v4196 = vrot.slane %v4194, 1
      %v4197 = vsel %vm1147, %v4192, %v4196
      %v4198 = vshrl.u32 %v3488, 16
      %v4200 = vshrl.u32 %v3489, 16
      %v4203 = vshrl.u32 %v3490, 16
      %v4205 = vshll.u32 %v3490, 16
      %v4207 = vrot.slane %v4205, 1
      %v4208 = vor.u32 %v4203, %v4207
      %v4210 = vshll.u32 %v3492, 16
      %v4212 = vrot.slane %v4210, 1
      %v4213 = vsel %vm1147, %v4208, %v4212
      %v4215 = vshrl.u32 %v3491, 16
      %v4217 = vshll.u32 %v3491, 16
      %v4219 = vrot.slane %v4217, 1
      %v4220 = vor.u32 %v4215, %v4219
      %v4222 = vshll.u32 %v3493, 16
      %v4224 = vrot.slane %v4222, 1
      %v4225 = vsel %vm1147, %v4220, %v4224
      %v4226 = vshrl.u32 %v3492, 16
      %v4228 = vshrl.u32 %v3493, 16
      %v4231 = vshrl.u32 %v3718, 16
      %v4233 = vshll.u32 %v3718, 16
      %v4235 = vrot.slane %v4233, 1
      %v4236 = vor.u32 %v4231, %v4235
      %v4238 = vshll.u32 %v3720, 16
      %v4240 = vrot.slane %v4238, 1
      %v4241 = vsel %vm1147, %v4236, %v4240
      %v4243 = vshrl.u32 %v3719, 16
      %v4245 = vshll.u32 %v3719, 16
      %v4247 = vrot.slane %v4245, 1
      %v4248 = vor.u32 %v4243, %v4247
      %v4250 = vshll.u32 %v3721, 16
      %v4252 = vrot.slane %v4250, 1
      %v4253 = vsel %vm1147, %v4248, %v4252
      %v4254 = vshrl.u32 %v3720, 16
      %v4256 = vshrl.u32 %v3721, 16
      %v4259 = vshrl.u32 %v3722, 16
      %v4261 = vshll.u32 %v3722, 16
      %v4263 = vrot.slane %v4261, 1
      %v4264 = vor.u32 %v4259, %v4263
      %v4266 = vshll.u32 %v3724, 16
      %v4268 = vrot.slane %v4266, 1
      %v4269 = vsel %vm1147, %v4264, %v4268
      %v4271 = vshrl.u32 %v3723, 16
      %v4273 = vshll.u32 %v3723, 16
      %v4275 = vrot.slane %v4273, 1
      %v4276 = vor.u32 %v4271, %v4275
      %v4278 = vshll.u32 %v3725, 16
      %v4280 = vrot.slane %v4278, 1
      %v4281 = vsel %vm1147, %v4276, %v4280
      %v4282 = vshrl.u32 %v3724, 16
      %v4284 = vshrl.u32 %v3725, 16
      %v4287 = vshrl.u32 %v3726, 16
      %v4289 = vshll.u32 %v3726, 16
      %v4291 = vrot.slane %v4289, 1
      %v4292 = vor.u32 %v4287, %v4291
      %v4294 = vshll.u32 %v3728, 16
      %v4296 = vrot.slane %v4294, 1
      %v4297 = vsel %vm1147, %v4292, %v4296
      %v4299 = vshrl.u32 %v3727, 16
      %v4301 = vshll.u32 %v3727, 16
      %v4303 = vrot.slane %v4301, 1
      %v4304 = vor.u32 %v4299, %v4303
      %v4306 = vshll.u32 %v3729, 16
      %v4308 = vrot.slane %v4306, 1
      %v4309 = vsel %vm1147, %v4304, %v4308
      %v4310 = vshrl.u32 %v3728, 16
      %v4312 = vshrl.u32 %v3729, 16
      %v4315 = vshrl.u32 %v3730, 16
      %v4317 = vshll.u32 %v3730, 16
      %v4319 = vrot.slane %v4317, 1
      %v4320 = vor.u32 %v4315, %v4319
      %v4322 = vshll.u32 %v3732, 16
      %v4324 = vrot.slane %v4322, 1
      %v4325 = vsel %vm1147, %v4320, %v4324
      %v4327 = vshrl.u32 %v3731, 16
      %v4329 = vshll.u32 %v3731, 16
      %v4331 = vrot.slane %v4329, 1
      %v4332 = vor.u32 %v4327, %v4331
      %v4334 = vshll.u32 %v3733, 16
      %v4336 = vrot.slane %v4334, 1
      %v4337 = vsel %vm1147, %v4332, %v4336
      %v4338 = vshrl.u32 %v3732, 16
      %v4340 = vshrl.u32 %v3733, 16
      %v4343 = vshrl.u32 %v3734, 16
      %v4345 = vshll.u32 %v3734, 16
      %v4347 = vrot.slane %v4345, 1
      %v4348 = vor.u32 %v4343, %v4347
      %v4350 = vshll.u32 %v3736, 16
      %v4352 = vrot.slane %v4350, 1
      %v4353 = vsel %vm1147, %v4348, %v4352
      %v4355 = vshrl.u32 %v3735, 16
      %v4357 = vshll.u32 %v3735, 16
      %v4359 = vrot.slane %v4357, 1
      %v4360 = vor.u32 %v4355, %v4359
      %v4362 = vshll.u32 %v3737, 16
      %v4364 = vrot.slane %v4362, 1
      %v4365 = vsel %vm1147, %v4360, %v4364
      %v4366 = vshrl.u32 %v3736, 16
      %v4368 = vshrl.u32 %v3737, 16
      %v4371 = vshrl.u32 %v3738, 16
      %v4373 = vshll.u32 %v3738, 16
      %v4375 = vrot.slane %v4373, 1
      %v4376 = vor.u32 %v4371, %v4375
      %v4378 = vshll.u32 %v3740, 16
      %v4380 = vrot.slane %v4378, 1
      %v4381 = vsel %vm1147, %v4376, %v4380
      %v4383 = vshrl.u32 %v3739, 16
      %v4385 = vshll.u32 %v3739, 16
      %v4387 = vrot.slane %v4385, 1
      %v4388 = vor.u32 %v4383, %v4387
      %v4390 = vshll.u32 %v3741, 16
      %v4392 = vrot.slane %v4390, 1
      %v4393 = vsel %vm1147, %v4388, %v4392
      %v4394 = vshrl.u32 %v3740, 16
      %v4396 = vshrl.u32 %v3741, 16
      %v4399 = vshrl.u32 %v3742, 16
      %v4401 = vshll.u32 %v3742, 16
      %v4403 = vrot.slane %v4401, 1
      %v4404 = vor.u32 %v4399, %v4403
      %v4406 = vshll.u32 %v3744, 16
      %v4408 = vrot.slane %v4406, 1
      %v4409 = vsel %vm1147, %v4404, %v4408
      %v4411 = vshrl.u32 %v3743, 16
      %v4413 = vshll.u32 %v3743, 16
      %v4415 = vrot.slane %v4413, 1
      %v4416 = vor.u32 %v4411, %v4415
      %v4418 = vshll.u32 %v3745, 16
      %v4420 = vrot.slane %v4418, 1
      %v4421 = vsel %vm1147, %v4416, %v4420
      %v4422 = vshrl.u32 %v3744, 16
      %v4424 = vshrl.u32 %v3745, 16
      %v4427 = vshrl.u32 %v3746, 16
      %v4429 = vshll.u32 %v3746, 16
      %v4431 = vrot.slane %v4429, 1
      %v4432 = vor.u32 %v4427, %v4431
      %v4434 = vshll.u32 %v3748, 16
      %v4436 = vrot.slane %v4434, 1
      %v4437 = vsel %vm1147, %v4432, %v4436
      %v4439 = vshrl.u32 %v3747, 16
      %v4441 = vshll.u32 %v3747, 16
      %v4443 = vrot.slane %v4441, 1
      %v4444 = vor.u32 %v4439, %v4443
      %v4446 = vshll.u32 %v3749, 16
      %v4448 = vrot.slane %v4446, 1
      %v4449 = vsel %vm1147, %v4444, %v4448
      %v4450 = vshrl.u32 %v3748, 16
      %v4452 = vshrl.u32 %v3749, 16
      %v4455 = vshrl.u32 %v3750, 16
      %v4457 = vshll.u32 %v3750, 16
      %v4459 = vrot.slane %v4457, 1
      %v4460 = vor.u32 %v4455, %v4459
      %v4462 = vshll.u32 %v3752, 16
      %v4464 = vrot.slane %v4462, 1
      %v4465 = vsel %vm1147, %v4460, %v4464
      %v4467 = vshrl.u32 %v3751, 16
      %v4469 = vshll.u32 %v3751, 16
      %v4471 = vrot.slane %v4469, 1
      %v4472 = vor.u32 %v4467, %v4471
      %v4474 = vshll.u32 %v3753, 16
      %v4476 = vrot.slane %v4474, 1
      %v4477 = vsel %vm1147, %v4472, %v4476
      %v4478 = vshrl.u32 %v3752, 16
      %v4480 = vshrl.u32 %v3753, 16
      %v4483 = vshrl.u32 %v3754, 16
      %v4485 = vshll.u32 %v3754, 16
      %v4487 = vrot.slane %v4485, 1
      %v4488 = vor.u32 %v4483, %v4487
      %v4490 = vshll.u32 %v3756, 16
      %v4492 = vrot.slane %v4490, 1
      %v4493 = vsel %vm1147, %v4488, %v4492
      %v4495 = vshrl.u32 %v3755, 16
      %v4497 = vshll.u32 %v3755, 16
      %v4499 = vrot.slane %v4497, 1
      %v4500 = vor.u32 %v4495, %v4499
      %v4502 = vshll.u32 %v3757, 16
      %v4504 = vrot.slane %v4502, 1
      %v4505 = vsel %vm1147, %v4500, %v4504
      %v4506 = vshrl.u32 %v3756, 16
      %v4508 = vshrl.u32 %v3757, 16
      %v4511 = vshrl.u32 %v3758, 16
      %v4513 = vshll.u32 %v3758, 16
      %v4515 = vrot.slane %v4513, 1
      %v4516 = vor.u32 %v4511, %v4515
      %v4518 = vshll.u32 %v3760, 16
      %v4520 = vrot.slane %v4518, 1
      %v4521 = vsel %vm1147, %v4516, %v4520
      %v4523 = vshrl.u32 %v3759, 16
      %v4525 = vshll.u32 %v3759, 16
      %v4527 = vrot.slane %v4525, 1
      %v4528 = vor.u32 %v4523, %v4527
      %v4530 = vshll.u32 %v3761, 16
      %v4532 = vrot.slane %v4530, 1
      %v4533 = vsel %vm1147, %v4528, %v4532
      %v4534 = vshrl.u32 %v3760, 16
      %v4536 = vshrl.u32 %v3761, 16
      %v4539 = vshrl.u32 %v3762, 16
      %v4541 = vshll.u32 %v3762, 16
      %v4543 = vrot.slane %v4541, 1
      %v4544 = vor.u32 %v4539, %v4543
      %v4546 = vshll.u32 %v3764, 16
      %v4548 = vrot.slane %v4546, 1
      %v4549 = vsel %vm1147, %v4544, %v4548
      %v4551 = vshrl.u32 %v3763, 16
      %v4553 = vshll.u32 %v3763, 16
      %v4555 = vrot.slane %v4553, 1
      %v4556 = vor.u32 %v4551, %v4555
      %v4558 = vshll.u32 %v3765, 16
      %v4560 = vrot.slane %v4558, 1
      %v4561 = vsel %vm1147, %v4556, %v4560
      %v4562 = vshrl.u32 %v3764, 16
      %v4564 = vshrl.u32 %v3765, 16
      %v4567 = vshrl.u32 %v3766, 16
      %v4569 = vshll.u32 %v3766, 16
      %v4571 = vrot.slane %v4569, 1
      %v4572 = vor.u32 %v4567, %v4571
      %v4574 = vshll.u32 %v3768, 16
      %v4576 = vrot.slane %v4574, 1
      %v4577 = vsel %vm1147, %v4572, %v4576
      %v4579 = vshrl.u32 %v3767, 16
      %v4581 = vshll.u32 %v3767, 16
      %v4583 = vrot.slane %v4581, 1
      %v4584 = vor.u32 %v4579, %v4583
      %v4586 = vshll.u32 %v3769, 16
      %v4588 = vrot.slane %v4586, 1
      %v4589 = vsel %vm1147, %v4584, %v4588
      %v4590 = vshrl.u32 %v3768, 16
      %v4592 = vshrl.u32 %v3769, 16
      %v4595 = vshrl.u32 %v3770, 16
      %v4597 = vshll.u32 %v3770, 16
      %v4599 = vrot.slane %v4597, 1
      %v4600 = vor.u32 %v4595, %v4599
      %v4602 = vshll.u32 %v3772, 16
      %v4604 = vrot.slane %v4602, 1
      %v4605 = vsel %vm1147, %v4600, %v4604
      %v4607 = vshrl.u32 %v3771, 16
      %v4609 = vshll.u32 %v3771, 16
      %v4611 = vrot.slane %v4609, 1
      %v4612 = vor.u32 %v4607, %v4611
      %v4614 = vshll.u32 %v3773, 16
      %v4616 = vrot.slane %v4614, 1
      %v4617 = vsel %vm1147, %v4612, %v4616
      %v4618 = vshrl.u32 %v3772, 16
      %v4620 = vshrl.u32 %v3773, 16
      %v4623 = vshrl.u32 %v3774, 16
      %v4625 = vshll.u32 %v3774, 16
      %v4627 = vrot.slane %v4625, 1
      %v4628 = vor.u32 %v4623, %v4627
      %v4630 = vshll.u32 %v3776, 16
      %v4632 = vrot.slane %v4630, 1
      %v4633 = vsel %vm1147, %v4628, %v4632
      %v4635 = vshrl.u32 %v3775, 16
      %v4637 = vshll.u32 %v3775, 16
      %v4639 = vrot.slane %v4637, 1
      %v4640 = vor.u32 %v4635, %v4639
      %v4642 = vshll.u32 %v3777, 16
      %v4644 = vrot.slane %v4642, 1
      %v4645 = vsel %vm1147, %v4640, %v4644
      %v4646 = vshrl.u32 %v3776, 16
      %v4648 = vshrl.u32 %v3777, 16
      %v4651 = vshrl.u32 %v3778, 16
      %v4653 = vshll.u32 %v3778, 16
      %v4655 = vrot.slane %v4653, 1
      %v4656 = vor.u32 %v4651, %v4655
      %v4658 = vshll.u32 %v3780, 16
      %v4660 = vrot.slane %v4658, 1
      %v4661 = vsel %vm1147, %v4656, %v4660
      %v4663 = vshrl.u32 %v3779, 16
      %v4665 = vshll.u32 %v3779, 16
      %v4667 = vrot.slane %v4665, 1
      %v4668 = vor.u32 %v4663, %v4667
      %v4670 = vshll.u32 %v3781, 16
      %v4672 = vrot.slane %v4670, 1
      %v4673 = vsel %vm1147, %v4668, %v4672
      %v4674 = vshrl.u32 %v3780, 16
      %v4676 = vshrl.u32 %v3781, 16
      %v4679 = vshrl.u32 %v3302, 16
      %v4681 = vshll.u32 %v3302, 16
      %v4683 = vrot.slane %v4681, 1
      %v4684 = vor.u32 %v4679, %v4683
      %v4686 = vshll.u32 %v3304, 16
      %v4688 = vrot.slane %v4686, 1
      %v4689 = vsel %vm1147, %v4684, %v4688
      %v4691 = vshrl.u32 %v3303, 16
      %v4693 = vshll.u32 %v3303, 16
      %v4695 = vrot.slane %v4693, 1
      %v4696 = vor.u32 %v4691, %v4695
      %v4698 = vshll.u32 %v3305, 16
      %v4700 = vrot.slane %v4698, 1
      %v4701 = vsel %vm1147, %v4696, %v4700
      %v4703 = vshrl.u32 %v3793, 16
      %v4705 = vshll.u32 %v3793, 16
      %v4707 = vrot.slane %v4705, 1
      %v4708 = vor.u32 %v4703, %v4707
      %v4710 = vshll.u32 %v3806, 16
      %v4712 = vrot.slane %v4710, 1
      %v4713 = vsel %vm1147, %v4708, %v4712
      %v4715 = vshrl.u32 %v3805, 16
      %v4717 = vshll.u32 %v3805, 16
      %v4719 = vrot.slane %v4717, 1
      %v4720 = vor.u32 %v4715, %v4719
      %v4722 = vshll.u32 %v3808, 16
      %v4724 = vrot.slane %v4722, 1
      %v4725 = vsel %vm1147, %v4720, %v4724
      %v4727 = vshrl.u32 %v3590, 16
      %v4729 = vshll.u32 %v3590, 16
      %v4731 = vrot.slane %v4729, 1
      %v4732 = vor.u32 %v4727, %v4731
      %v4734 = vshll.u32 %v3592, 16
      %v4736 = vrot.slane %v4734, 1
      %v4737 = vsel %vm1147, %v4732, %v4736
      %v4739 = vshrl.u32 %v3591, 16
      %v4741 = vshll.u32 %v3591, 16
      %v4743 = vrot.slane %v4741, 1
      %v4744 = vor.u32 %v4739, %v4743
      %v4746 = vshll.u32 %v3593, 16
      %v4748 = vrot.slane %v4746, 1
      %v4749 = vsel %vm1147, %v4744, %v4748
      %v4751 = vshrl.u32 %v4241, 16
      %v4753 = vshll.u32 %v4241, 16
      %v4755 = vrot.slane %v4753, 1
      %v4756 = vor.u32 %v4751, %v4755
      %v4758 = vshll.u32 %v4254, 16
      %v4760 = vrot.slane %v4758, 1
      %v4761 = vsel %vm1147, %v4756, %v4760
      %v4763 = vshrl.u32 %v4253, 16
      %v4765 = vshll.u32 %v4253, 16
      %v4767 = vrot.slane %v4765, 1
      %v4768 = vor.u32 %v4763, %v4767
      %v4770 = vshll.u32 %v4256, 16
      %v4772 = vrot.slane %v4770, 1
      %v4773 = vsel %vm1147, %v4768, %v4772
      %v4775 = vshrl.u32 %v3306, 16
      %v4777 = vshll.u32 %v3306, 16
      %v4779 = vrot.slane %v4777, 1
      %v4780 = vor.u32 %v4775, %v4779
      %v4782 = vshll.u32 %v3308, 16
      %v4784 = vrot.slane %v4782, 1
      %v4785 = vsel %vm1147, %v4780, %v4784
      %v4787 = vshrl.u32 %v3307, 16
      %v4789 = vshll.u32 %v3307, 16
      %v4791 = vrot.slane %v4789, 1
      %v4792 = vor.u32 %v4787, %v4791
      %v4794 = vshll.u32 %v3309, 16
      %v4796 = vrot.slane %v4794, 1
      %v4797 = vsel %vm1147, %v4792, %v4796
      %v4799 = vshrl.u32 %v3821, 16
      %v4801 = vshll.u32 %v3821, 16
      %v4803 = vrot.slane %v4801, 1
      %v4804 = vor.u32 %v4799, %v4803
      %v4806 = vshll.u32 %v3834, 16
      %v4808 = vrot.slane %v4806, 1
      %v4809 = vsel %vm1147, %v4804, %v4808
      %v4811 = vshrl.u32 %v3833, 16
      %v4813 = vshll.u32 %v3833, 16
      %v4815 = vrot.slane %v4813, 1
      %v4816 = vor.u32 %v4811, %v4815
      %v4818 = vshll.u32 %v3836, 16
      %v4820 = vrot.slane %v4818, 1
      %v4821 = vsel %vm1147, %v4816, %v4820
      %v4823 = vshrl.u32 %v3594, 16
      %v4825 = vshll.u32 %v3594, 16
      %v4827 = vrot.slane %v4825, 1
      %v4828 = vor.u32 %v4823, %v4827
      %v4830 = vshll.u32 %v3596, 16
      %v4832 = vrot.slane %v4830, 1
      %v4833 = vsel %vm1147, %v4828, %v4832
      %v4835 = vshrl.u32 %v3595, 16
      %v4837 = vshll.u32 %v3595, 16
      %v4839 = vrot.slane %v4837, 1
      %v4840 = vor.u32 %v4835, %v4839
      %v4842 = vshll.u32 %v3597, 16
      %v4844 = vrot.slane %v4842, 1
      %v4845 = vsel %vm1147, %v4840, %v4844
      %v4847 = vshrl.u32 %v4269, 16
      %v4849 = vshll.u32 %v4269, 16
      %v4851 = vrot.slane %v4849, 1
      %v4852 = vor.u32 %v4847, %v4851
      %v4854 = vshll.u32 %v4282, 16
      %v4856 = vrot.slane %v4854, 1
      %v4857 = vsel %vm1147, %v4852, %v4856
      %v4859 = vshrl.u32 %v4281, 16
      %v4861 = vshll.u32 %v4281, 16
      %v4863 = vrot.slane %v4861, 1
      %v4864 = vor.u32 %v4859, %v4863
      %v4866 = vshll.u32 %v4284, 16
      %v4868 = vrot.slane %v4866, 1
      %v4869 = vsel %vm1147, %v4864, %v4868
      %v4871 = vshrl.u32 %v3310, 16
      %v4873 = vshll.u32 %v3310, 16
      %v4875 = vrot.slane %v4873, 1
      %v4876 = vor.u32 %v4871, %v4875
      %v4878 = vshll.u32 %v3312, 16
      %v4880 = vrot.slane %v4878, 1
      %v4881 = vsel %vm1147, %v4876, %v4880
      %v4883 = vshrl.u32 %v3311, 16
      %v4885 = vshll.u32 %v3311, 16
      %v4887 = vrot.slane %v4885, 1
      %v4888 = vor.u32 %v4883, %v4887
      %v4890 = vshll.u32 %v3313, 16
      %v4892 = vrot.slane %v4890, 1
      %v4893 = vsel %vm1147, %v4888, %v4892
      %v4895 = vshrl.u32 %v3849, 16
      %v4897 = vshll.u32 %v3849, 16
      %v4899 = vrot.slane %v4897, 1
      %v4900 = vor.u32 %v4895, %v4899
      %v4902 = vshll.u32 %v3862, 16
      %v4904 = vrot.slane %v4902, 1
      %v4905 = vsel %vm1147, %v4900, %v4904
      %v4907 = vshrl.u32 %v3861, 16
      %v4909 = vshll.u32 %v3861, 16
      %v4911 = vrot.slane %v4909, 1
      %v4912 = vor.u32 %v4907, %v4911
      %v4914 = vshll.u32 %v3864, 16
      %v4916 = vrot.slane %v4914, 1
      %v4917 = vsel %vm1147, %v4912, %v4916
      %v4919 = vshrl.u32 %v3598, 16
      %v4921 = vshll.u32 %v3598, 16
      %v4923 = vrot.slane %v4921, 1
      %v4924 = vor.u32 %v4919, %v4923
      %v4926 = vshll.u32 %v3600, 16
      %v4928 = vrot.slane %v4926, 1
      %v4929 = vsel %vm1147, %v4924, %v4928
      %v4931 = vshrl.u32 %v3599, 16
      %v4933 = vshll.u32 %v3599, 16
      %v4935 = vrot.slane %v4933, 1
      %v4936 = vor.u32 %v4931, %v4935
      %v4938 = vshll.u32 %v3601, 16
      %v4940 = vrot.slane %v4938, 1
      %v4941 = vsel %vm1147, %v4936, %v4940
      %v4943 = vshrl.u32 %v4297, 16
      %v4945 = vshll.u32 %v4297, 16
      %v4947 = vrot.slane %v4945, 1
      %v4948 = vor.u32 %v4943, %v4947
      %v4950 = vshll.u32 %v4310, 16
      %v4952 = vrot.slane %v4950, 1
      %v4953 = vsel %vm1147, %v4948, %v4952
      %v4955 = vshrl.u32 %v4309, 16
      %v4957 = vshll.u32 %v4309, 16
      %v4959 = vrot.slane %v4957, 1
      %v4960 = vor.u32 %v4955, %v4959
      %v4962 = vshll.u32 %v4312, 16
      %v4964 = vrot.slane %v4962, 1
      %v4965 = vsel %vm1147, %v4960, %v4964
      %v4967 = vshrl.u32 %v3314, 16
      %v4969 = vshll.u32 %v3314, 16
      %v4971 = vrot.slane %v4969, 1
      %v4972 = vor.u32 %v4967, %v4971
      %v4974 = vshll.u32 %v3316, 16
      %v4976 = vrot.slane %v4974, 1
      %v4977 = vsel %vm1147, %v4972, %v4976
      %v4979 = vshrl.u32 %v3315, 16
      %v4981 = vshll.u32 %v3315, 16
      %v4983 = vrot.slane %v4981, 1
      %v4984 = vor.u32 %v4979, %v4983
      %v4986 = vshll.u32 %v3317, 16
      %v4988 = vrot.slane %v4986, 1
      %v4989 = vsel %vm1147, %v4984, %v4988
      %v4991 = vshrl.u32 %v3877, 16
      %v4993 = vshll.u32 %v3877, 16
      %v4995 = vrot.slane %v4993, 1
      %v4996 = vor.u32 %v4991, %v4995
      %v4998 = vshll.u32 %v3890, 16
      %v5000 = vrot.slane %v4998, 1
      %v5001 = vsel %vm1147, %v4996, %v5000
      %v5003 = vshrl.u32 %v3889, 16
      %v5005 = vshll.u32 %v3889, 16
      %v5007 = vrot.slane %v5005, 1
      %v5008 = vor.u32 %v5003, %v5007
      %v5010 = vshll.u32 %v3892, 16
      %v5012 = vrot.slane %v5010, 1
      %v5013 = vsel %vm1147, %v5008, %v5012
      %v5015 = vshrl.u32 %v3602, 16
      %v5017 = vshll.u32 %v3602, 16
      %v5019 = vrot.slane %v5017, 1
      %v5020 = vor.u32 %v5015, %v5019
      %v5022 = vshll.u32 %v3604, 16
      %v5024 = vrot.slane %v5022, 1
      %v5025 = vsel %vm1147, %v5020, %v5024
      %v5027 = vshrl.u32 %v3603, 16
      %v5029 = vshll.u32 %v3603, 16
      %v5031 = vrot.slane %v5029, 1
      %v5032 = vor.u32 %v5027, %v5031
      %v5034 = vshll.u32 %v3605, 16
      %v5036 = vrot.slane %v5034, 1
      %v5037 = vsel %vm1147, %v5032, %v5036
      %v5039 = vshrl.u32 %v4325, 16
      %v5041 = vshll.u32 %v4325, 16
      %v5043 = vrot.slane %v5041, 1
      %v5044 = vor.u32 %v5039, %v5043
      %v5046 = vshll.u32 %v4338, 16
      %v5048 = vrot.slane %v5046, 1
      %v5049 = vsel %vm1147, %v5044, %v5048
      %v5051 = vshrl.u32 %v4337, 16
      %v5053 = vshll.u32 %v4337, 16
      %v5055 = vrot.slane %v5053, 1
      %v5056 = vor.u32 %v5051, %v5055
      %v5058 = vshll.u32 %v4340, 16
      %v5060 = vrot.slane %v5058, 1
      %v5061 = vsel %vm1147, %v5056, %v5060
      %v5063 = vshrl.u32 %v3318, 16
      %v5065 = vshll.u32 %v3318, 16
      %v5067 = vrot.slane %v5065, 1
      %v5068 = vor.u32 %v5063, %v5067
      %v5070 = vshll.u32 %v3320, 16
      %v5072 = vrot.slane %v5070, 1
      %v5073 = vsel %vm1147, %v5068, %v5072
      %v5075 = vshrl.u32 %v3319, 16
      %v5077 = vshll.u32 %v3319, 16
      %v5079 = vrot.slane %v5077, 1
      %v5080 = vor.u32 %v5075, %v5079
      %v5082 = vshll.u32 %v3321, 16
      %v5084 = vrot.slane %v5082, 1
      %v5085 = vsel %vm1147, %v5080, %v5084
      %v5087 = vshrl.u32 %v3905, 16
      %v5089 = vshll.u32 %v3905, 16
      %v5091 = vrot.slane %v5089, 1
      %v5092 = vor.u32 %v5087, %v5091
      %v5094 = vshll.u32 %v3918, 16
      %v5096 = vrot.slane %v5094, 1
      %v5097 = vsel %vm1147, %v5092, %v5096
      %v5099 = vshrl.u32 %v3917, 16
      %v5101 = vshll.u32 %v3917, 16
      %v5103 = vrot.slane %v5101, 1
      %v5104 = vor.u32 %v5099, %v5103
      %v5106 = vshll.u32 %v3920, 16
      %v5108 = vrot.slane %v5106, 1
      %v5109 = vsel %vm1147, %v5104, %v5108
      %v5111 = vshrl.u32 %v3606, 16
      %v5113 = vshll.u32 %v3606, 16
      %v5115 = vrot.slane %v5113, 1
      %v5116 = vor.u32 %v5111, %v5115
      %v5118 = vshll.u32 %v3608, 16
      %v5120 = vrot.slane %v5118, 1
      %v5121 = vsel %vm1147, %v5116, %v5120
      %v5123 = vshrl.u32 %v3607, 16
      %v5125 = vshll.u32 %v3607, 16
      %v5127 = vrot.slane %v5125, 1
      %v5128 = vor.u32 %v5123, %v5127
      %v5130 = vshll.u32 %v3609, 16
      %v5132 = vrot.slane %v5130, 1
      %v5133 = vsel %vm1147, %v5128, %v5132
      %v5135 = vshrl.u32 %v4353, 16
      %v5137 = vshll.u32 %v4353, 16
      %v5139 = vrot.slane %v5137, 1
      %v5140 = vor.u32 %v5135, %v5139
      %v5142 = vshll.u32 %v4366, 16
      %v5144 = vrot.slane %v5142, 1
      %v5145 = vsel %vm1147, %v5140, %v5144
      %v5147 = vshrl.u32 %v4365, 16
      %v5149 = vshll.u32 %v4365, 16
      %v5151 = vrot.slane %v5149, 1
      %v5152 = vor.u32 %v5147, %v5151
      %v5154 = vshll.u32 %v4368, 16
      %v5156 = vrot.slane %v5154, 1
      %v5157 = vsel %vm1147, %v5152, %v5156
      %v5159 = vshrl.u32 %v3322, 16
      %v5161 = vshll.u32 %v3322, 16
      %v5163 = vrot.slane %v5161, 1
      %v5164 = vor.u32 %v5159, %v5163
      %v5166 = vshll.u32 %v3324, 16
      %v5168 = vrot.slane %v5166, 1
      %v5169 = vsel %vm1147, %v5164, %v5168
      %v5171 = vshrl.u32 %v3323, 16
      %v5173 = vshll.u32 %v3323, 16
      %v5175 = vrot.slane %v5173, 1
      %v5176 = vor.u32 %v5171, %v5175
      %v5178 = vshll.u32 %v3325, 16
      %v5180 = vrot.slane %v5178, 1
      %v5181 = vsel %vm1147, %v5176, %v5180
      %v5183 = vshrl.u32 %v3933, 16
      %v5185 = vshll.u32 %v3933, 16
      %v5187 = vrot.slane %v5185, 1
      %v5188 = vor.u32 %v5183, %v5187
      %v5190 = vshll.u32 %v3946, 16
      %v5192 = vrot.slane %v5190, 1
      %v5193 = vsel %vm1147, %v5188, %v5192
      %v5195 = vshrl.u32 %v3945, 16
      %v5197 = vshll.u32 %v3945, 16
      %v5199 = vrot.slane %v5197, 1
      %v5200 = vor.u32 %v5195, %v5199
      %v5202 = vshll.u32 %v3948, 16
      %v5204 = vrot.slane %v5202, 1
      %v5205 = vsel %vm1147, %v5200, %v5204
      %v5207 = vshrl.u32 %v3610, 16
      %v5209 = vshll.u32 %v3610, 16
      %v5211 = vrot.slane %v5209, 1
      %v5212 = vor.u32 %v5207, %v5211
      %v5214 = vshll.u32 %v3612, 16
      %v5216 = vrot.slane %v5214, 1
      %v5217 = vsel %vm1147, %v5212, %v5216
      %v5219 = vshrl.u32 %v3611, 16
      %v5221 = vshll.u32 %v3611, 16
      %v5223 = vrot.slane %v5221, 1
      %v5224 = vor.u32 %v5219, %v5223
      %v5226 = vshll.u32 %v3613, 16
      %v5228 = vrot.slane %v5226, 1
      %v5229 = vsel %vm1147, %v5224, %v5228
      %v5231 = vshrl.u32 %v4381, 16
      %v5233 = vshll.u32 %v4381, 16
      %v5235 = vrot.slane %v5233, 1
      %v5236 = vor.u32 %v5231, %v5235
      %v5238 = vshll.u32 %v4394, 16
      %v5240 = vrot.slane %v5238, 1
      %v5241 = vsel %vm1147, %v5236, %v5240
      %v5243 = vshrl.u32 %v4393, 16
      %v5245 = vshll.u32 %v4393, 16
      %v5247 = vrot.slane %v5245, 1
      %v5248 = vor.u32 %v5243, %v5247
      %v5250 = vshll.u32 %v4396, 16
      %v5252 = vrot.slane %v5250, 1
      %v5253 = vsel %vm1147, %v5248, %v5252
      %v5255 = vshrl.u32 %v3326, 16
      %v5257 = vshll.u32 %v3326, 16
      %v5259 = vrot.slane %v5257, 1
      %v5260 = vor.u32 %v5255, %v5259
      %v5262 = vshll.u32 %v3328, 16
      %v5264 = vrot.slane %v5262, 1
      %v5265 = vsel %vm1147, %v5260, %v5264
      %v5267 = vshrl.u32 %v3327, 16
      %v5269 = vshll.u32 %v3327, 16
      %v5271 = vrot.slane %v5269, 1
      %v5272 = vor.u32 %v5267, %v5271
      %v5274 = vshll.u32 %v3329, 16
      %v5276 = vrot.slane %v5274, 1
      %v5277 = vsel %vm1147, %v5272, %v5276
      %v5279 = vshrl.u32 %v3961, 16
      %v5281 = vshll.u32 %v3961, 16
      %v5283 = vrot.slane %v5281, 1
      %v5284 = vor.u32 %v5279, %v5283
      %v5286 = vshll.u32 %v3974, 16
      %v5288 = vrot.slane %v5286, 1
      %v5289 = vsel %vm1147, %v5284, %v5288
      %v5291 = vshrl.u32 %v3973, 16
      %v5293 = vshll.u32 %v3973, 16
      %v5295 = vrot.slane %v5293, 1
      %v5296 = vor.u32 %v5291, %v5295
      %v5298 = vshll.u32 %v3976, 16
      %v5300 = vrot.slane %v5298, 1
      %v5301 = vsel %vm1147, %v5296, %v5300
      %v5303 = vshrl.u32 %v3614, 16
      %v5305 = vshll.u32 %v3614, 16
      %v5307 = vrot.slane %v5305, 1
      %v5308 = vor.u32 %v5303, %v5307
      %v5310 = vshll.u32 %v3616, 16
      %v5312 = vrot.slane %v5310, 1
      %v5313 = vsel %vm1147, %v5308, %v5312
      %v5315 = vshrl.u32 %v3615, 16
      %v5317 = vshll.u32 %v3615, 16
      %v5319 = vrot.slane %v5317, 1
      %v5320 = vor.u32 %v5315, %v5319
      %v5322 = vshll.u32 %v3617, 16
      %v5324 = vrot.slane %v5322, 1
      %v5325 = vsel %vm1147, %v5320, %v5324
      %v5327 = vshrl.u32 %v4409, 16
      %v5329 = vshll.u32 %v4409, 16
      %v5331 = vrot.slane %v5329, 1
      %v5332 = vor.u32 %v5327, %v5331
      %v5334 = vshll.u32 %v4422, 16
      %v5336 = vrot.slane %v5334, 1
      %v5337 = vsel %vm1147, %v5332, %v5336
      %v5339 = vshrl.u32 %v4421, 16
      %v5341 = vshll.u32 %v4421, 16
      %v5343 = vrot.slane %v5341, 1
      %v5344 = vor.u32 %v5339, %v5343
      %v5346 = vshll.u32 %v4424, 16
      %v5348 = vrot.slane %v5346, 1
      %v5349 = vsel %vm1147, %v5344, %v5348
      %v5351 = vshrl.u32 %v3330, 16
      %v5353 = vshll.u32 %v3330, 16
      %v5355 = vrot.slane %v5353, 1
      %v5356 = vor.u32 %v5351, %v5355
      %v5358 = vshll.u32 %v3332, 16
      %v5360 = vrot.slane %v5358, 1
      %v5361 = vsel %vm1147, %v5356, %v5360
      %v5363 = vshrl.u32 %v3331, 16
      %v5365 = vshll.u32 %v3331, 16
      %v5367 = vrot.slane %v5365, 1
      %v5368 = vor.u32 %v5363, %v5367
      %v5370 = vshll.u32 %v3333, 16
      %v5372 = vrot.slane %v5370, 1
      %v5373 = vsel %vm1147, %v5368, %v5372
      %v5375 = vshrl.u32 %v3989, 16
      %v5377 = vshll.u32 %v3989, 16
      %v5379 = vrot.slane %v5377, 1
      %v5380 = vor.u32 %v5375, %v5379
      %v5382 = vshll.u32 %v4002, 16
      %v5384 = vrot.slane %v5382, 1
      %v5385 = vsel %vm1147, %v5380, %v5384
      %v5387 = vshrl.u32 %v4001, 16
      %v5389 = vshll.u32 %v4001, 16
      %v5391 = vrot.slane %v5389, 1
      %v5392 = vor.u32 %v5387, %v5391
      %v5394 = vshll.u32 %v4004, 16
      %v5396 = vrot.slane %v5394, 1
      %v5397 = vsel %vm1147, %v5392, %v5396
      %v5399 = vshrl.u32 %v3618, 16
      %v5401 = vshll.u32 %v3618, 16
      %v5403 = vrot.slane %v5401, 1
      %v5404 = vor.u32 %v5399, %v5403
      %v5406 = vshll.u32 %v3620, 16
      %v5408 = vrot.slane %v5406, 1
      %v5409 = vsel %vm1147, %v5404, %v5408
      %v5411 = vshrl.u32 %v3619, 16
      %v5413 = vshll.u32 %v3619, 16
      %v5415 = vrot.slane %v5413, 1
      %v5416 = vor.u32 %v5411, %v5415
      %v5418 = vshll.u32 %v3621, 16
      %v5420 = vrot.slane %v5418, 1
      %v5421 = vsel %vm1147, %v5416, %v5420
      %v5423 = vshrl.u32 %v4437, 16
      %v5425 = vshll.u32 %v4437, 16
      %v5427 = vrot.slane %v5425, 1
      %v5428 = vor.u32 %v5423, %v5427
      %v5430 = vshll.u32 %v4450, 16
      %v5432 = vrot.slane %v5430, 1
      %v5433 = vsel %vm1147, %v5428, %v5432
      %v5435 = vshrl.u32 %v4449, 16
      %v5437 = vshll.u32 %v4449, 16
      %v5439 = vrot.slane %v5437, 1
      %v5440 = vor.u32 %v5435, %v5439
      %v5442 = vshll.u32 %v4452, 16
      %v5444 = vrot.slane %v5442, 1
      %v5445 = vsel %vm1147, %v5440, %v5444
      %v5447 = vshrl.u32 %v3334, 16
      %v5449 = vshll.u32 %v3334, 16
      %v5451 = vrot.slane %v5449, 1
      %v5452 = vor.u32 %v5447, %v5451
      %v5454 = vshll.u32 %v3336, 16
      %v5456 = vrot.slane %v5454, 1
      %v5457 = vsel %vm1147, %v5452, %v5456
      %v5459 = vshrl.u32 %v3335, 16
      %v5461 = vshll.u32 %v3335, 16
      %v5463 = vrot.slane %v5461, 1
      %v5464 = vor.u32 %v5459, %v5463
      %v5466 = vshll.u32 %v3337, 16
      %v5468 = vrot.slane %v5466, 1
      %v5469 = vsel %vm1147, %v5464, %v5468
      %v5471 = vshrl.u32 %v4017, 16
      %v5473 = vshll.u32 %v4017, 16
      %v5475 = vrot.slane %v5473, 1
      %v5476 = vor.u32 %v5471, %v5475
      %v5478 = vshll.u32 %v4030, 16
      %v5480 = vrot.slane %v5478, 1
      %v5481 = vsel %vm1147, %v5476, %v5480
      %v5483 = vshrl.u32 %v4029, 16
      %v5485 = vshll.u32 %v4029, 16
      %v5487 = vrot.slane %v5485, 1
      %v5488 = vor.u32 %v5483, %v5487
      %v5490 = vshll.u32 %v4032, 16
      %v5492 = vrot.slane %v5490, 1
      %v5493 = vsel %vm1147, %v5488, %v5492
      %v5495 = vshrl.u32 %v3622, 16
      %v5497 = vshll.u32 %v3622, 16
      %v5499 = vrot.slane %v5497, 1
      %v5500 = vor.u32 %v5495, %v5499
      %v5502 = vshll.u32 %v3624, 16
      %v5504 = vrot.slane %v5502, 1
      %v5505 = vsel %vm1147, %v5500, %v5504
      %v5507 = vshrl.u32 %v3623, 16
      %v5509 = vshll.u32 %v3623, 16
      %v5511 = vrot.slane %v5509, 1
      %v5512 = vor.u32 %v5507, %v5511
      %v5514 = vshll.u32 %v3625, 16
      %v5516 = vrot.slane %v5514, 1
      %v5517 = vsel %vm1147, %v5512, %v5516
      %v5519 = vshrl.u32 %v4465, 16
      %v5521 = vshll.u32 %v4465, 16
      %v5523 = vrot.slane %v5521, 1
      %v5524 = vor.u32 %v5519, %v5523
      %v5526 = vshll.u32 %v4478, 16
      %v5528 = vrot.slane %v5526, 1
      %v5529 = vsel %vm1147, %v5524, %v5528
      %v5531 = vshrl.u32 %v4477, 16
      %v5533 = vshll.u32 %v4477, 16
      %v5535 = vrot.slane %v5533, 1
      %v5536 = vor.u32 %v5531, %v5535
      %v5538 = vshll.u32 %v4480, 16
      %v5540 = vrot.slane %v5538, 1
      %v5541 = vsel %vm1147, %v5536, %v5540
      %v5543 = vshrl.u32 %v3338, 16
      %v5545 = vshll.u32 %v3338, 16
      %v5547 = vrot.slane %v5545, 1
      %v5548 = vor.u32 %v5543, %v5547
      %v5550 = vshll.u32 %v3340, 16
      %v5552 = vrot.slane %v5550, 1
      %v5553 = vsel %vm1147, %v5548, %v5552
      %v5555 = vshrl.u32 %v3339, 16
      %v5557 = vshll.u32 %v3339, 16
      %v5559 = vrot.slane %v5557, 1
      %v5560 = vor.u32 %v5555, %v5559
      %v5562 = vshll.u32 %v3341, 16
      %v5564 = vrot.slane %v5562, 1
      %v5565 = vsel %vm1147, %v5560, %v5564
      %v5567 = vshrl.u32 %v4045, 16
      %v5569 = vshll.u32 %v4045, 16
      %v5571 = vrot.slane %v5569, 1
      %v5572 = vor.u32 %v5567, %v5571
      %v5574 = vshll.u32 %v4058, 16
      %v5576 = vrot.slane %v5574, 1
      %v5577 = vsel %vm1147, %v5572, %v5576
      %v5579 = vshrl.u32 %v4057, 16
      %v5581 = vshll.u32 %v4057, 16
      %v5583 = vrot.slane %v5581, 1
      %v5584 = vor.u32 %v5579, %v5583
      %v5586 = vshll.u32 %v4060, 16
      %v5588 = vrot.slane %v5586, 1
      %v5589 = vsel %vm1147, %v5584, %v5588
      %v5591 = vshrl.u32 %v3626, 16
      %v5593 = vshll.u32 %v3626, 16
      %v5595 = vrot.slane %v5593, 1
      %v5596 = vor.u32 %v5591, %v5595
      %v5598 = vshll.u32 %v3628, 16
      %v5600 = vrot.slane %v5598, 1
      %v5601 = vsel %vm1147, %v5596, %v5600
      %v5603 = vshrl.u32 %v3627, 16
      %v5605 = vshll.u32 %v3627, 16
      %v5607 = vrot.slane %v5605, 1
      %v5608 = vor.u32 %v5603, %v5607
      %v5610 = vshll.u32 %v3629, 16
      %v5612 = vrot.slane %v5610, 1
      %v5613 = vsel %vm1147, %v5608, %v5612
      %v5615 = vshrl.u32 %v4493, 16
      %v5617 = vshll.u32 %v4493, 16
      %v5619 = vrot.slane %v5617, 1
      %v5620 = vor.u32 %v5615, %v5619
      %v5622 = vshll.u32 %v4506, 16
      %v5624 = vrot.slane %v5622, 1
      %v5625 = vsel %vm1147, %v5620, %v5624
      %v5627 = vshrl.u32 %v4505, 16
      %v5629 = vshll.u32 %v4505, 16
      %v5631 = vrot.slane %v5629, 1
      %v5632 = vor.u32 %v5627, %v5631
      %v5634 = vshll.u32 %v4508, 16
      %v5636 = vrot.slane %v5634, 1
      %v5637 = vsel %vm1147, %v5632, %v5636
      %v5639 = vshrl.u32 %v3342, 16
      %v5641 = vshll.u32 %v3342, 16
      %v5643 = vrot.slane %v5641, 1
      %v5644 = vor.u32 %v5639, %v5643
      %v5646 = vshll.u32 %v3344, 16
      %v5648 = vrot.slane %v5646, 1
      %v5649 = vsel %vm1147, %v5644, %v5648
      %v5651 = vshrl.u32 %v3343, 16
      %v5653 = vshll.u32 %v3343, 16
      %v5655 = vrot.slane %v5653, 1
      %v5656 = vor.u32 %v5651, %v5655
      %v5658 = vshll.u32 %v3345, 16
      %v5660 = vrot.slane %v5658, 1
      %v5661 = vsel %vm1147, %v5656, %v5660
      %v5663 = vshrl.u32 %v4073, 16
      %v5665 = vshll.u32 %v4073, 16
      %v5667 = vrot.slane %v5665, 1
      %v5668 = vor.u32 %v5663, %v5667
      %v5670 = vshll.u32 %v4086, 16
      %v5672 = vrot.slane %v5670, 1
      %v5673 = vsel %vm1147, %v5668, %v5672
      %v5675 = vshrl.u32 %v4085, 16
      %v5677 = vshll.u32 %v4085, 16
      %v5679 = vrot.slane %v5677, 1
      %v5680 = vor.u32 %v5675, %v5679
      %v5682 = vshll.u32 %v4088, 16
      %v5684 = vrot.slane %v5682, 1
      %v5685 = vsel %vm1147, %v5680, %v5684
      %v5687 = vshrl.u32 %v3630, 16
      %v5689 = vshll.u32 %v3630, 16
      %v5691 = vrot.slane %v5689, 1
      %v5692 = vor.u32 %v5687, %v5691
      %v5694 = vshll.u32 %v3632, 16
      %v5696 = vrot.slane %v5694, 1
      %v5697 = vsel %vm1147, %v5692, %v5696
      %v5699 = vshrl.u32 %v3631, 16
      %v5701 = vshll.u32 %v3631, 16
      %v5703 = vrot.slane %v5701, 1
      %v5704 = vor.u32 %v5699, %v5703
      %v5706 = vshll.u32 %v3633, 16
      %v5708 = vrot.slane %v5706, 1
      %v5709 = vsel %vm1147, %v5704, %v5708
      %v5711 = vshrl.u32 %v4521, 16
      %v5713 = vshll.u32 %v4521, 16
      %v5715 = vrot.slane %v5713, 1
      %v5716 = vor.u32 %v5711, %v5715
      %v5718 = vshll.u32 %v4534, 16
      %v5720 = vrot.slane %v5718, 1
      %v5721 = vsel %vm1147, %v5716, %v5720
      %v5723 = vshrl.u32 %v4533, 16
      %v5725 = vshll.u32 %v4533, 16
      %v5727 = vrot.slane %v5725, 1
      %v5728 = vor.u32 %v5723, %v5727
      %v5730 = vshll.u32 %v4536, 16
      %v5732 = vrot.slane %v5730, 1
      %v5733 = vsel %vm1147, %v5728, %v5732
      %v5735 = vshrl.u32 %v3346, 16
      %v5737 = vshll.u32 %v3346, 16
      %v5739 = vrot.slane %v5737, 1
      %v5740 = vor.u32 %v5735, %v5739
      %v5742 = vshll.u32 %v3348, 16
      %v5744 = vrot.slane %v5742, 1
      %v5745 = vsel %vm1147, %v5740, %v5744
      %v5747 = vshrl.u32 %v3347, 16
      %v5749 = vshll.u32 %v3347, 16
      %v5751 = vrot.slane %v5749, 1
      %v5752 = vor.u32 %v5747, %v5751
      %v5754 = vshll.u32 %v3349, 16
      %v5756 = vrot.slane %v5754, 1
      %v5757 = vsel %vm1147, %v5752, %v5756
      %v5759 = vshrl.u32 %v4101, 16
      %v5761 = vshll.u32 %v4101, 16
      %v5763 = vrot.slane %v5761, 1
      %v5764 = vor.u32 %v5759, %v5763
      %v5766 = vshll.u32 %v4114, 16
      %v5768 = vrot.slane %v5766, 1
      %v5769 = vsel %vm1147, %v5764, %v5768
      %v5771 = vshrl.u32 %v4113, 16
      %v5773 = vshll.u32 %v4113, 16
      %v5775 = vrot.slane %v5773, 1
      %v5776 = vor.u32 %v5771, %v5775
      %v5778 = vshll.u32 %v4116, 16
      %v5780 = vrot.slane %v5778, 1
      %v5781 = vsel %vm1147, %v5776, %v5780
      %v5783 = vshrl.u32 %v3634, 16
      %v5785 = vshll.u32 %v3634, 16
      %v5787 = vrot.slane %v5785, 1
      %v5788 = vor.u32 %v5783, %v5787
      %v5790 = vshll.u32 %v3636, 16
      %v5792 = vrot.slane %v5790, 1
      %v5793 = vsel %vm1147, %v5788, %v5792
      %v5795 = vshrl.u32 %v3635, 16
      %v5797 = vshll.u32 %v3635, 16
      %v5799 = vrot.slane %v5797, 1
      %v5800 = vor.u32 %v5795, %v5799
      %v5802 = vshll.u32 %v3637, 16
      %v5804 = vrot.slane %v5802, 1
      %v5805 = vsel %vm1147, %v5800, %v5804
      %v5807 = vshrl.u32 %v4549, 16
      %v5809 = vshll.u32 %v4549, 16
      %v5811 = vrot.slane %v5809, 1
      %v5812 = vor.u32 %v5807, %v5811
      %v5814 = vshll.u32 %v4562, 16
      %v5816 = vrot.slane %v5814, 1
      %v5817 = vsel %vm1147, %v5812, %v5816
      %v5819 = vshrl.u32 %v4561, 16
      %v5821 = vshll.u32 %v4561, 16
      %v5823 = vrot.slane %v5821, 1
      %v5824 = vor.u32 %v5819, %v5823
      %v5826 = vshll.u32 %v4564, 16
      %v5828 = vrot.slane %v5826, 1
      %v5829 = vsel %vm1147, %v5824, %v5828
      %v5831 = vshrl.u32 %v3350, 16
      %v5833 = vshll.u32 %v3350, 16
      %v5835 = vrot.slane %v5833, 1
      %v5836 = vor.u32 %v5831, %v5835
      %v5838 = vshll.u32 %v3352, 16
      %v5840 = vrot.slane %v5838, 1
      %v5841 = vsel %vm1147, %v5836, %v5840
      %v5843 = vshrl.u32 %v3351, 16
      %v5845 = vshll.u32 %v3351, 16
      %v5847 = vrot.slane %v5845, 1
      %v5848 = vor.u32 %v5843, %v5847
      %v5850 = vshll.u32 %v3353, 16
      %v5852 = vrot.slane %v5850, 1
      %v5853 = vsel %vm1147, %v5848, %v5852
      %v5855 = vshrl.u32 %v4129, 16
      %v5857 = vshll.u32 %v4129, 16
      %v5859 = vrot.slane %v5857, 1
      %v5860 = vor.u32 %v5855, %v5859
      %v5862 = vshll.u32 %v4142, 16
      %v5864 = vrot.slane %v5862, 1
      %v5865 = vsel %vm1147, %v5860, %v5864
      %v5867 = vshrl.u32 %v4141, 16
      %v5869 = vshll.u32 %v4141, 16
      %v5871 = vrot.slane %v5869, 1
      %v5872 = vor.u32 %v5867, %v5871
      %v5874 = vshll.u32 %v4144, 16
      %v5876 = vrot.slane %v5874, 1
      %v5877 = vsel %vm1147, %v5872, %v5876
      %v5879 = vshrl.u32 %v3638, 16
      %v5881 = vshll.u32 %v3638, 16
      %v5883 = vrot.slane %v5881, 1
      %v5884 = vor.u32 %v5879, %v5883
      %v5886 = vshll.u32 %v3640, 16
      %v5888 = vrot.slane %v5886, 1
      %v5889 = vsel %vm1147, %v5884, %v5888
      %v5891 = vshrl.u32 %v3639, 16
      %v5893 = vshll.u32 %v3639, 16
      %v5895 = vrot.slane %v5893, 1
      %v5896 = vor.u32 %v5891, %v5895
      %v5898 = vshll.u32 %v3641, 16
      %v5900 = vrot.slane %v5898, 1
      %v5901 = vsel %vm1147, %v5896, %v5900
      %v5903 = vshrl.u32 %v4577, 16
      %v5905 = vshll.u32 %v4577, 16
      %v5907 = vrot.slane %v5905, 1
      %v5908 = vor.u32 %v5903, %v5907
      %v5910 = vshll.u32 %v4590, 16
      %v5912 = vrot.slane %v5910, 1
      %v5913 = vsel %vm1147, %v5908, %v5912
      %v5915 = vshrl.u32 %v4589, 16
      %v5917 = vshll.u32 %v4589, 16
      %v5919 = vrot.slane %v5917, 1
      %v5920 = vor.u32 %v5915, %v5919
      %v5922 = vshll.u32 %v4592, 16
      %v5924 = vrot.slane %v5922, 1
      %v5925 = vsel %vm1147, %v5920, %v5924
      %v5927 = vshrl.u32 %v3354, 16
      %v5929 = vshll.u32 %v3354, 16
      %v5931 = vrot.slane %v5929, 1
      %v5932 = vor.u32 %v5927, %v5931
      %v5934 = vshll.u32 %v3356, 16
      %v5936 = vrot.slane %v5934, 1
      %v5937 = vsel %vm1147, %v5932, %v5936
      %v5939 = vshrl.u32 %v3355, 16
      %v5941 = vshll.u32 %v3355, 16
      %v5943 = vrot.slane %v5941, 1
      %v5944 = vor.u32 %v5939, %v5943
      %v5946 = vshll.u32 %v3357, 16
      %v5948 = vrot.slane %v5946, 1
      %v5949 = vsel %vm1147, %v5944, %v5948
      %v5951 = vshrl.u32 %v4157, 16
      %v5953 = vshll.u32 %v4157, 16
      %v5955 = vrot.slane %v5953, 1
      %v5956 = vor.u32 %v5951, %v5955
      %v5958 = vshll.u32 %v4170, 16
      %v5960 = vrot.slane %v5958, 1
      %v5961 = vsel %vm1147, %v5956, %v5960
      %v5963 = vshrl.u32 %v4169, 16
      %v5965 = vshll.u32 %v4169, 16
      %v5967 = vrot.slane %v5965, 1
      %v5968 = vor.u32 %v5963, %v5967
      %v5970 = vshll.u32 %v4172, 16
      %v5972 = vrot.slane %v5970, 1
      %v5973 = vsel %vm1147, %v5968, %v5972
      %v5975 = vshrl.u32 %v3642, 16
      %v5977 = vshll.u32 %v3642, 16
      %v5979 = vrot.slane %v5977, 1
      %v5980 = vor.u32 %v5975, %v5979
      %v5982 = vshll.u32 %v3644, 16
      %v5984 = vrot.slane %v5982, 1
      %v5985 = vsel %vm1147, %v5980, %v5984
      %v5987 = vshrl.u32 %v3643, 16
      %v5989 = vshll.u32 %v3643, 16
      %v5991 = vrot.slane %v5989, 1
      %v5992 = vor.u32 %v5987, %v5991
      %v5994 = vshll.u32 %v3645, 16
      %v5996 = vrot.slane %v5994, 1
      %v5997 = vsel %vm1147, %v5992, %v5996
      %v5999 = vshrl.u32 %v4605, 16
      %v6001 = vshll.u32 %v4605, 16
      %v6003 = vrot.slane %v6001, 1
      %v6004 = vor.u32 %v5999, %v6003
      %v6006 = vshll.u32 %v4618, 16
      %v6008 = vrot.slane %v6006, 1
      %v6009 = vsel %vm1147, %v6004, %v6008
      %v6011 = vshrl.u32 %v4617, 16
      %v6013 = vshll.u32 %v4617, 16
      %v6015 = vrot.slane %v6013, 1
      %v6016 = vor.u32 %v6011, %v6015
      %v6018 = vshll.u32 %v4620, 16
      %v6020 = vrot.slane %v6018, 1
      %v6021 = vsel %vm1147, %v6016, %v6020
      %v6023 = vshrl.u32 %v3358, 16
      %v6025 = vshll.u32 %v3358, 16
      %v6027 = vrot.slane %v6025, 1
      %v6028 = vor.u32 %v6023, %v6027
      %v6030 = vshll.u32 %v3360, 16
      %v6032 = vrot.slane %v6030, 1
      %v6033 = vsel %vm1147, %v6028, %v6032
      %v6035 = vshrl.u32 %v3359, 16
      %v6037 = vshll.u32 %v3359, 16
      %v6039 = vrot.slane %v6037, 1
      %v6040 = vor.u32 %v6035, %v6039
      %v6042 = vshll.u32 %v3361, 16
      %v6044 = vrot.slane %v6042, 1
      %v6045 = vsel %vm1147, %v6040, %v6044
      %v6047 = vshrl.u32 %v4185, 16
      %v6049 = vshll.u32 %v4185, 16
      %v6051 = vrot.slane %v6049, 1
      %v6052 = vor.u32 %v6047, %v6051
      %v6054 = vshll.u32 %v4198, 16
      %v6056 = vrot.slane %v6054, 1
      %v6057 = vsel %vm1147, %v6052, %v6056
      %v6059 = vshrl.u32 %v4197, 16
      %v6061 = vshll.u32 %v4197, 16
      %v6063 = vrot.slane %v6061, 1
      %v6064 = vor.u32 %v6059, %v6063
      %v6066 = vshll.u32 %v4200, 16
      %v6068 = vrot.slane %v6066, 1
      %v6069 = vsel %vm1147, %v6064, %v6068
      %v6071 = vshrl.u32 %v3646, 16
      %v6073 = vshll.u32 %v3646, 16
      %v6075 = vrot.slane %v6073, 1
      %v6076 = vor.u32 %v6071, %v6075
      %v6078 = vshll.u32 %v3648, 16
      %v6080 = vrot.slane %v6078, 1
      %v6081 = vsel %vm1147, %v6076, %v6080
      %v6083 = vshrl.u32 %v3647, 16
      %v6085 = vshll.u32 %v3647, 16
      %v6087 = vrot.slane %v6085, 1
      %v6088 = vor.u32 %v6083, %v6087
      %v6090 = vshll.u32 %v3649, 16
      %v6092 = vrot.slane %v6090, 1
      %v6093 = vsel %vm1147, %v6088, %v6092
      %v6095 = vshrl.u32 %v4633, 16
      %v6097 = vshll.u32 %v4633, 16
      %v6099 = vrot.slane %v6097, 1
      %v6100 = vor.u32 %v6095, %v6099
      %v6102 = vshll.u32 %v4646, 16
      %v6104 = vrot.slane %v6102, 1
      %v6105 = vsel %vm1147, %v6100, %v6104
      %v6107 = vshrl.u32 %v4645, 16
      %v6109 = vshll.u32 %v4645, 16
      %v6111 = vrot.slane %v6109, 1
      %v6112 = vor.u32 %v6107, %v6111
      %v6114 = vshll.u32 %v4648, 16
      %v6116 = vrot.slane %v6114, 1
      %v6117 = vsel %vm1147, %v6112, %v6116
      %v6119 = vshrl.u32 %v3362, 16
      %v6121 = vshll.u32 %v3362, 16
      %v6123 = vrot.slane %v6121, 1
      %v6124 = vor.u32 %v6119, %v6123
      %v6126 = vshll.u32 %v3364, 16
      %v6128 = vrot.slane %v6126, 1
      %v6129 = vsel %vm1147, %v6124, %v6128
      %v6131 = vshrl.u32 %v3363, 16
      %v6133 = vshll.u32 %v3363, 16
      %v6135 = vrot.slane %v6133, 1
      %v6136 = vor.u32 %v6131, %v6135
      %v6138 = vshll.u32 %v3365, 16
      %v6140 = vrot.slane %v6138, 1
      %v6141 = vsel %vm1147, %v6136, %v6140
      %v6143 = vshrl.u32 %v4213, 16
      %v6145 = vshll.u32 %v4213, 16
      %v6147 = vrot.slane %v6145, 1
      %v6148 = vor.u32 %v6143, %v6147
      %v6150 = vshll.u32 %v4226, 16
      %v6152 = vrot.slane %v6150, 1
      %v6153 = vsel %vm1147, %v6148, %v6152
      %v6155 = vshrl.u32 %v4225, 16
      %v6157 = vshll.u32 %v4225, 16
      %v6159 = vrot.slane %v6157, 1
      %v6160 = vor.u32 %v6155, %v6159
      %v6162 = vshll.u32 %v4228, 16
      %v6164 = vrot.slane %v6162, 1
      %v6165 = vsel %vm1147, %v6160, %v6164
      %v6167 = vshrl.u32 %v3650, 16
      %v6169 = vshll.u32 %v3650, 16
      %v6171 = vrot.slane %v6169, 1
      %v6172 = vor.u32 %v6167, %v6171
      %v6174 = vshll.u32 %v3652, 16
      %v6176 = vrot.slane %v6174, 1
      %v6177 = vsel %vm1147, %v6172, %v6176
      %v6179 = vshrl.u32 %v3651, 16
      %v6181 = vshll.u32 %v3651, 16
      %v6183 = vrot.slane %v6181, 1
      %v6184 = vor.u32 %v6179, %v6183
      %v6186 = vshll.u32 %v3653, 16
      %v6188 = vrot.slane %v6186, 1
      %v6189 = vsel %vm1147, %v6184, %v6188
      %v6191 = vshrl.u32 %v4661, 16
      %v6193 = vshll.u32 %v4661, 16
      %v6195 = vrot.slane %v6193, 1
      %v6196 = vor.u32 %v6191, %v6195
      %v6198 = vshll.u32 %v4674, 16
      %v6200 = vrot.slane %v6198, 1
      %v6201 = vsel %vm1147, %v6196, %v6200
      %v6203 = vshrl.u32 %v4673, 16
      %v6205 = vshll.u32 %v4673, 16
      %v6207 = vrot.slane %v6205, 1
      %v6208 = vor.u32 %v6203, %v6207
      %v6210 = vshll.u32 %v4676, 16
      %v6212 = vrot.slane %v6210, 1
      %v6213 = vsel %vm1147, %v6208, %v6212
      %s6342 = scalar_lea.vmem %s1, 512
      %v6343 = vld [vmem:[%s6342] sm:$0xf]
      %v6344 = vld [vmem:[%s6342 + $0x4] sm:$0xf]
      %v6345 = vld [vmem:[%s6342 + $0x8] sm:$0xf]
      %v6346 = vld [vmem:[%s6342 + $0xc] sm:$0xf]
      %v6347 = vld [vmem:[%s6342 + $0x10] sm:$0xf]
      %v6348 = vld [vmem:[%s6342 + $0x14] sm:$0xf]
      %v6349 = vld [vmem:[%s6342 + $0x18] sm:$0xf]
      %v6350 = vld [vmem:[%s6342 + $0x1c] sm:$0xf]
      %v6351 = vld [vmem:[%s6342 + $0x20] sm:$0xf]
      %v6352 = vld [vmem:[%s6342 + $0x24] sm:$0xf]
      %v6353 = vld [vmem:[%s6342 + $0x28] sm:$0xf]
      %v6354 = vld [vmem:[%s6342 + $0x2c] sm:$0xf]
      %v6355 = vld [vmem:[%s6342 + $0x30] sm:$0xf]
      %v6356 = vld [vmem:[%s6342 + $0x34] sm:$0xf]
      %v6357 = vld [vmem:[%s6342 + $0x38] sm:$0xf]
      %v6358 = vld [vmem:[%s6342 + $0x3c] sm:$0xf]
      %v6359 = vld [vmem:[%s6342 + $0x40] sm:$0xf]
      %v6360 = vld [vmem:[%s6342 + $0x44] sm:$0xf]
      %v6361 = vld [vmem:[%s6342 + $0x48] sm:$0xf]
      %v6362 = vld [vmem:[%s6342 + $0x4c] sm:$0xf]
      %v6363 = vld [vmem:[%s6342 + $0x50] sm:$0xf]
      %v6364 = vld [vmem:[%s6342 + $0x54] sm:$0xf]
      %v6365 = vld [vmem:[%s6342 + $0x58] sm:$0xf]
      %v6366 = vld [vmem:[%s6342 + $0x5c] sm:$0xf]
      %v6367 = vld [vmem:[%s6342 + $0x60] sm:$0xf]
      %v6368 = vld [vmem:[%s6342 + $0x64] sm:$0xf]
      %v6369 = vld [vmem:[%s6342 + $0x68] sm:$0xf]
      %v6370 = vld [vmem:[%s6342 + $0x6c] sm:$0xf]
      %v6371 = vld [vmem:[%s6342 + $0x70] sm:$0xf]
      %v6372 = vld [vmem:[%s6342 + $0x74] sm:$0xf]
      %v6373 = vld [vmem:[%s6342 + $0x78] sm:$0xf]
      %v6374 = vld [vmem:[%s6342 + $0x7c] sm:$0xf]
      %v6375 = vld [vmem:[%s6342 + $0x80] sm:$0xf]
      %v6376 = vld [vmem:[%s6342 + $0x84] sm:$0xf]
      %v6377 = vld [vmem:[%s6342 + $0x88] sm:$0xf]
      %v6378 = vld [vmem:[%s6342 + $0x8c] sm:$0xf]
      %v6379 = vld [vmem:[%s6342 + $0x90] sm:$0xf]
      %v6380 = vld [vmem:[%s6342 + $0x94] sm:$0xf]
      %v6381 = vld [vmem:[%s6342 + $0x98] sm:$0xf]
      %v6382 = vld [vmem:[%s6342 + $0x9c] sm:$0xf]
      %v6383 = vld [vmem:[%s6342 + $0xa0] sm:$0xf]
      %v6384 = vld [vmem:[%s6342 + $0xa4] sm:$0xf]
      %v6385 = vld [vmem:[%s6342 + $0xa8] sm:$0xf]
      %v6386 = vld [vmem:[%s6342 + $0xac] sm:$0xf]
      %v6387 = vld [vmem:[%s6342 + $0xb0] sm:$0xf]
      %v6388 = vld [vmem:[%s6342 + $0xb4] sm:$0xf]
      %v6389 = vld [vmem:[%s6342 + $0xb8] sm:$0xf]
      %v6390 = vld [vmem:[%s6342 + $0xbc] sm:$0xf]
      %v6391 = vld [vmem:[%s6342 + $0xc0] sm:$0xf]
      %v6392 = vld [vmem:[%s6342 + $0xc4] sm:$0xf]
      %v6393 = vld [vmem:[%s6342 + $0xc8] sm:$0xf]
      %v6394 = vld [vmem:[%s6342 + $0xcc] sm:$0xf]
      %v6395 = vld [vmem:[%s6342 + $0xd0] sm:$0xf]
      %v6396 = vld [vmem:[%s6342 + $0xd4] sm:$0xf]
      %v6397 = vld [vmem:[%s6342 + $0xd8] sm:$0xf]
      %v6398 = vld [vmem:[%s6342 + $0xdc] sm:$0xf]
      %v6399 = vld [vmem:[%s6342 + $0xe0] sm:$0xf]
      %v6400 = vld [vmem:[%s6342 + $0xe4] sm:$0xf]
      %v6401 = vld [vmem:[%s6342 + $0xe8] sm:$0xf]
      %v6402 = vld [vmem:[%s6342 + $0xec] sm:$0xf]
      %v6403 = vld [vmem:[%s6342 + $0xf0] sm:$0xf]
      %v6404 = vld [vmem:[%s6342 + $0xf4] sm:$0xf]
      %v6405 = vld [vmem:[%s6342 + $0xf8] sm:$0xf]
      %v6406 = vld [vmem:[%s6342 + $0xfc] sm:$0xf]
      %v6407 = vld [vmem:[%s6342 + $0x100] sm:$0xf]
      %v6408 = vld [vmem:[%s6342 + $0x104] sm:$0xf]
      %v6409 = vld [vmem:[%s6342 + $0x108] sm:$0xf]
      %v6410 = vld [vmem:[%s6342 + $0x10c] sm:$0xf]
      %v6411 = vld [vmem:[%s6342 + $0x110] sm:$0xf]
      %v6412 = vld [vmem:[%s6342 + $0x114] sm:$0xf]
      %v6413 = vld [vmem:[%s6342 + $0x118] sm:$0xf]
      %v6414 = vld [vmem:[%s6342 + $0x11c] sm:$0xf]
      %v6415 = vld [vmem:[%s6342 + $0x120] sm:$0xf]
      %v6416 = vld [vmem:[%s6342 + $0x124] sm:$0xf]
      %v6417 = vld [vmem:[%s6342 + $0x128] sm:$0xf]
      %v6418 = vld [vmem:[%s6342 + $0x12c] sm:$0xf]
      %v6419 = vld [vmem:[%s6342 + $0x130] sm:$0xf]
      %v6420 = vld [vmem:[%s6342 + $0x134] sm:$0xf]
      %v6421 = vld [vmem:[%s6342 + $0x138] sm:$0xf]
      %v6422 = vld [vmem:[%s6342 + $0x13c] sm:$0xf]
      %v6423 = vld [vmem:[%s6342 + $0x140] sm:$0xf]
      %v6424 = vld [vmem:[%s6342 + $0x144] sm:$0xf]
      %v6425 = vld [vmem:[%s6342 + $0x148] sm:$0xf]
      %v6426 = vld [vmem:[%s6342 + $0x14c] sm:$0xf]
      %v6427 = vld [vmem:[%s6342 + $0x150] sm:$0xf]
      %v6428 = vld [vmem:[%s6342 + $0x154] sm:$0xf]
      %v6429 = vld [vmem:[%s6342 + $0x158] sm:$0xf]
      %v6430 = vld [vmem:[%s6342 + $0x15c] sm:$0xf]
      %v6431 = vld [vmem:[%s6342 + $0x160] sm:$0xf]
      %v6432 = vld [vmem:[%s6342 + $0x164] sm:$0xf]
      %v6433 = vld [vmem:[%s6342 + $0x168] sm:$0xf]
      %v6434 = vld [vmem:[%s6342 + $0x16c] sm:$0xf]
      %v6435 = vld [vmem:[%s6342 + $0x170] sm:$0xf]
      %v6436 = vld [vmem:[%s6342 + $0x174] sm:$0xf]
      %v6437 = vld [vmem:[%s6342 + $0x178] sm:$0xf]
      %v6438 = vld [vmem:[%s6342 + $0x17c] sm:$0xf]
      %v6439 = vld [vmem:[%s6342 + $0x180] sm:$0xf]
      %v6440 = vld [vmem:[%s6342 + $0x184] sm:$0xf]
      %v6441 = vld [vmem:[%s6342 + $0x188] sm:$0xf]
      %v6442 = vld [vmem:[%s6342 + $0x18c] sm:$0xf]
      %v6443 = vld [vmem:[%s6342 + $0x190] sm:$0xf]
      %v6444 = vld [vmem:[%s6342 + $0x194] sm:$0xf]
      %v6445 = vld [vmem:[%s6342 + $0x198] sm:$0xf]
      %v6446 = vld [vmem:[%s6342 + $0x19c] sm:$0xf]
      %v6447 = vld [vmem:[%s6342 + $0x1a0] sm:$0xf]
      %v6448 = vld [vmem:[%s6342 + $0x1a4] sm:$0xf]
      %v6449 = vld [vmem:[%s6342 + $0x1a8] sm:$0xf]
      %v6450 = vld [vmem:[%s6342 + $0x1ac] sm:$0xf]
      %v6451 = vld [vmem:[%s6342 + $0x1b0] sm:$0xf]
      %v6452 = vld [vmem:[%s6342 + $0x1b4] sm:$0xf]
      %v6453 = vld [vmem:[%s6342 + $0x1b8] sm:$0xf]
      %v6454 = vld [vmem:[%s6342 + $0x1bc] sm:$0xf]
      %v6455 = vld [vmem:[%s6342 + $0x1c0] sm:$0xf]
      %v6456 = vld [vmem:[%s6342 + $0x1c4] sm:$0xf]
      %v6457 = vld [vmem:[%s6342 + $0x1c8] sm:$0xf]
      %v6458 = vld [vmem:[%s6342 + $0x1cc] sm:$0xf]
      %v6459 = vld [vmem:[%s6342 + $0x1d0] sm:$0xf]
      %v6460 = vld [vmem:[%s6342 + $0x1d4] sm:$0xf]
      %v6461 = vld [vmem:[%s6342 + $0x1d8] sm:$0xf]
      %v6462 = vld [vmem:[%s6342 + $0x1dc] sm:$0xf]
      %v6463 = vld [vmem:[%s6342 + $0x1e0] sm:$0xf]
      %v6464 = vld [vmem:[%s6342 + $0x1e4] sm:$0xf]
      %v6465 = vld [vmem:[%s6342 + $0x1e8] sm:$0xf]
      %v6466 = vld [vmem:[%s6342 + $0x1ec] sm:$0xf]
      %v6467 = vld [vmem:[%s6342 + $0x1f0] sm:$0xf]
      %v6468 = vld [vmem:[%s6342 + $0x1f4] sm:$0xf]
      %v6469 = vld [vmem:[%s6342 + $0x1f8] sm:$0xf]
      %v6470 = vld [vmem:[%s6342 + $0x1fc] sm:$0xf]
      %v6599 = vunpack.c.l.b16 %v6343
      %v6600 = vunpack.c.l.b16 %v6344
      %v6601 = vunpack.c.l.b16 %v6345
      %v6602 = vunpack.c.l.b16 %v6346
      %v6603 = vunpack.c.l.b16 %v6347
      %v6604 = vunpack.c.l.b16 %v6348
      %v6605 = vunpack.c.l.b16 %v6349
      %v6606 = vunpack.c.l.b16 %v6350
      %v6607 = vunpack.c.l.b16 %v6351
      %v6608 = vunpack.c.l.b16 %v6352
      %v6609 = vunpack.c.l.b16 %v6353
      %v6610 = vunpack.c.l.b16 %v6354
      %v6611 = vunpack.c.l.b16 %v6355
      %v6612 = vunpack.c.l.b16 %v6356
      %v6613 = vunpack.c.l.b16 %v6357
      %v6614 = vunpack.c.l.b16 %v6358
      %v6615 = vunpack.c.l.b16 %v6359
      %v6616 = vunpack.c.l.b16 %v6360
      %v6617 = vunpack.c.l.b16 %v6361
      %v6618 = vunpack.c.l.b16 %v6362
      %v6619 = vunpack.c.l.b16 %v6363
      %v6620 = vunpack.c.l.b16 %v6364
      %v6621 = vunpack.c.l.b16 %v6365
      %v6622 = vunpack.c.l.b16 %v6366
      %v6623 = vunpack.c.l.b16 %v6367
      %v6624 = vunpack.c.l.b16 %v6368
      %v6625 = vunpack.c.l.b16 %v6369
      %v6626 = vunpack.c.l.b16 %v6370
      %v6627 = vunpack.c.l.b16 %v6371
      %v6628 = vunpack.c.l.b16 %v6372
      %v6629 = vunpack.c.l.b16 %v6373
      %v6630 = vunpack.c.l.b16 %v6374
      %v6631 = vunpack.c.l.b16 %v6375
      %v6632 = vunpack.c.l.b16 %v6376
      %v6633 = vunpack.c.l.b16 %v6377
      %v6634 = vunpack.c.l.b16 %v6378
      %v6635 = vunpack.c.l.b16 %v6379
      %v6636 = vunpack.c.l.b16 %v6380
      %v6637 = vunpack.c.l.b16 %v6381
      %v6638 = vunpack.c.l.b16 %v6382
      %v6639 = vunpack.c.l.b16 %v6383
      %v6640 = vunpack.c.l.b16 %v6384
      %v6641 = vunpack.c.l.b16 %v6385
      %v6642 = vunpack.c.l.b16 %v6386
      %v6643 = vunpack.c.l.b16 %v6387
      %v6644 = vunpack.c.l.b16 %v6388
      %v6645 = vunpack.c.l.b16 %v6389
      %v6646 = vunpack.c.l.b16 %v6390
      %v6647 = vunpack.c.l.b16 %v6391
      %v6648 = vunpack.c.l.b16 %v6392
      %v6649 = vunpack.c.l.b16 %v6393
      %v6650 = vunpack.c.l.b16 %v6394
      %v6651 = vunpack.c.l.b16 %v6395
      %v6652 = vunpack.c.l.b16 %v6396
      %v6653 = vunpack.c.l.b16 %v6397
      %v6654 = vunpack.c.l.b16 %v6398
      %v6655 = vunpack.c.l.b16 %v6399
      %v6656 = vunpack.c.l.b16 %v6400
      %v6657 = vunpack.c.l.b16 %v6401
      %v6658 = vunpack.c.l.b16 %v6402
      %v6659 = vunpack.c.l.b16 %v6403
      %v6660 = vunpack.c.l.b16 %v6404
      %v6661 = vunpack.c.l.b16 %v6405
      %v6662 = vunpack.c.l.b16 %v6406
      %v6663 = vunpack.c.l.b16 %v6407
      %v6664 = vunpack.c.l.b16 %v6408
      %v6665 = vunpack.c.l.b16 %v6409
      %v6666 = vunpack.c.l.b16 %v6410
      %v6667 = vunpack.c.l.b16 %v6411
      %v6668 = vunpack.c.l.b16 %v6412
      %v6669 = vunpack.c.l.b16 %v6413
      %v6670 = vunpack.c.l.b16 %v6414
      %v6671 = vunpack.c.l.b16 %v6415
      %v6672 = vunpack.c.l.b16 %v6416
      %v6673 = vunpack.c.l.b16 %v6417
      %v6674 = vunpack.c.l.b16 %v6418
      %v6675 = vunpack.c.l.b16 %v6419
      %v6676 = vunpack.c.l.b16 %v6420
      %v6677 = vunpack.c.l.b16 %v6421
      %v6678 = vunpack.c.l.b16 %v6422
      %v6679 = vunpack.c.l.b16 %v6423
      %v6680 = vunpack.c.l.b16 %v6424
      %v6681 = vunpack.c.l.b16 %v6425
      %v6682 = vunpack.c.l.b16 %v6426
      %v6683 = vunpack.c.l.b16 %v6427
      %v6684 = vunpack.c.l.b16 %v6428
      %v6685 = vunpack.c.l.b16 %v6429
      %v6686 = vunpack.c.l.b16 %v6430
      %v6687 = vunpack.c.l.b16 %v6431
      %v6688 = vunpack.c.l.b16 %v6432
      %v6689 = vunpack.c.l.b16 %v6433
      %v6690 = vunpack.c.l.b16 %v6434
      %v6691 = vunpack.c.l.b16 %v6435
      %v6692 = vunpack.c.l.b16 %v6436
      %v6693 = vunpack.c.l.b16 %v6437
      %v6694 = vunpack.c.l.b16 %v6438
      %v6695 = vunpack.c.l.b16 %v6439
      %v6696 = vunpack.c.l.b16 %v6440
      %v6697 = vunpack.c.l.b16 %v6441
      %v6698 = vunpack.c.l.b16 %v6442
      %v6699 = vunpack.c.l.b16 %v6443
      %v6700 = vunpack.c.l.b16 %v6444
      %v6701 = vunpack.c.l.b16 %v6445
      %v6702 = vunpack.c.l.b16 %v6446
      %v6703 = vunpack.c.l.b16 %v6447
      %v6704 = vunpack.c.l.b16 %v6448
      %v6705 = vunpack.c.l.b16 %v6449
      %v6706 = vunpack.c.l.b16 %v6450
      %v6707 = vunpack.c.l.b16 %v6451
      %v6708 = vunpack.c.l.b16 %v6452
      %v6709 = vunpack.c.l.b16 %v6453
      %v6710 = vunpack.c.l.b16 %v6454
      %v6711 = vunpack.c.l.b16 %v6455
      %v6712 = vunpack.c.l.b16 %v6456
      %v6713 = vunpack.c.l.b16 %v6457
      %v6714 = vunpack.c.l.b16 %v6458
      %v6715 = vunpack.c.l.b16 %v6459
      %v6716 = vunpack.c.l.b16 %v6460
      %v6717 = vunpack.c.l.b16 %v6461
      %v6718 = vunpack.c.l.b16 %v6462
      %v6719 = vunpack.c.l.b16 %v6463
      %v6720 = vunpack.c.l.b16 %v6464
      %v6721 = vunpack.c.l.b16 %v6465
      %v6722 = vunpack.c.l.b16 %v6466
      %v6723 = vunpack.c.l.b16 %v6467
      %v6724 = vunpack.c.l.b16 %v6468
      %v6725 = vunpack.c.l.b16 %v6469
      %v6726 = vunpack.c.l.b16 %v6470
      %v6727 = vpack.c.b16 %v6600, %v6599
      %v6728 = vpack.c.b16 %v6602, %v6601
      %v6729 = vpack.c.b16 %v6604, %v6603
      %v6730 = vpack.c.b16 %v6606, %v6605
      %v6731 = vpack.c.b16 %v6608, %v6607
      %v6732 = vpack.c.b16 %v6610, %v6609
      %v6733 = vpack.c.b16 %v6612, %v6611
      %v6734 = vpack.c.b16 %v6614, %v6613
      %v6735 = vpack.c.b16 %v6616, %v6615
      %v6736 = vpack.c.b16 %v6618, %v6617
      %v6737 = vpack.c.b16 %v6620, %v6619
      %v6738 = vpack.c.b16 %v6622, %v6621
      %v6739 = vpack.c.b16 %v6624, %v6623
      %v6740 = vpack.c.b16 %v6626, %v6625
      %v6741 = vpack.c.b16 %v6628, %v6627
      %v6742 = vpack.c.b16 %v6630, %v6629
      %v6743 = vpack.c.b16 %v6632, %v6631
      %v6744 = vpack.c.b16 %v6634, %v6633
      %v6745 = vpack.c.b16 %v6636, %v6635
      %v6746 = vpack.c.b16 %v6638, %v6637
      %v6747 = vpack.c.b16 %v6640, %v6639
      %v6748 = vpack.c.b16 %v6642, %v6641
      %v6749 = vpack.c.b16 %v6644, %v6643
      %v6750 = vpack.c.b16 %v6646, %v6645
      %v6751 = vpack.c.b16 %v6648, %v6647
      %v6752 = vpack.c.b16 %v6650, %v6649
      %v6753 = vpack.c.b16 %v6652, %v6651
      %v6754 = vpack.c.b16 %v6654, %v6653
      %v6755 = vpack.c.b16 %v6656, %v6655
      %v6756 = vpack.c.b16 %v6658, %v6657
      %v6757 = vpack.c.b16 %v6660, %v6659
      %v6758 = vpack.c.b16 %v6662, %v6661
      %v6759 = vpack.c.b16 %v6664, %v6663
      %v6760 = vpack.c.b16 %v6666, %v6665
      %v6761 = vpack.c.b16 %v6668, %v6667
      %v6762 = vpack.c.b16 %v6670, %v6669
      %v6763 = vpack.c.b16 %v6672, %v6671
      %v6764 = vpack.c.b16 %v6674, %v6673
      %v6765 = vpack.c.b16 %v6676, %v6675
      %v6766 = vpack.c.b16 %v6678, %v6677
      %v6767 = vpack.c.b16 %v6680, %v6679
      %v6768 = vpack.c.b16 %v6682, %v6681
      %v6769 = vpack.c.b16 %v6684, %v6683
      %v6770 = vpack.c.b16 %v6686, %v6685
      %v6771 = vpack.c.b16 %v6688, %v6687
      %v6772 = vpack.c.b16 %v6690, %v6689
      %v6773 = vpack.c.b16 %v6692, %v6691
      %v6774 = vpack.c.b16 %v6694, %v6693
      %v6775 = vpack.c.b16 %v6696, %v6695
      %v6776 = vpack.c.b16 %v6698, %v6697
      %v6777 = vpack.c.b16 %v6700, %v6699
      %v6778 = vpack.c.b16 %v6702, %v6701
      %v6779 = vpack.c.b16 %v6704, %v6703
      %v6780 = vpack.c.b16 %v6706, %v6705
      %v6781 = vpack.c.b16 %v6708, %v6707
      %v6782 = vpack.c.b16 %v6710, %v6709
      %v6783 = vpack.c.b16 %v6712, %v6711
      %v6784 = vpack.c.b16 %v6714, %v6713
      %v6785 = vpack.c.b16 %v6716, %v6715
      %v6786 = vpack.c.b16 %v6718, %v6717
      %v6787 = vpack.c.b16 %v6720, %v6719
      %v6788 = vpack.c.b16 %v6722, %v6721
      %v6789 = vpack.c.b16 %v6724, %v6723
      %v6790 = vpack.c.b16 %v6726, %v6725
      %6855 = vmatprep.subr.bf16.mxu0 0
      %6856 = vmatpush1.bf16.msra.mxu0 %v6734
      %6857 = vmatprep.subr.bf16.mxu0 0
      %6858 = vmatpush1.bf16.msra.mxu0 %v6733
      %6859 = vmatprep.subr.bf16.mxu0 0
      %6860 = vmatpush1.bf16.msra.mxu0 %v6732
      %6861 = vmatprep.subr.bf16.mxu0 0
      %6862 = vmatpush1.bf16.msra.mxu0 %v6731
      %6863 = vmatprep.subr.bf16.mxu0 0
      %6864 = vmatpush1.bf16.msra.mxu0 %v6730
      %6865 = vmatprep.subr.bf16.mxu0 0
      %6866 = vmatpush1.bf16.msra.mxu0 %v6729
      %6867 = vmatprep.subr.bf16.mxu0 0
      %6868 = vmatpush1.bf16.msra.mxu0 %v6728
      %6869 = vmatprep.subr.bf16.mxu0 0
      %6870 = vmatpush1.bf16.msra.mxu0 %v6727
      %6871 = vmatprep.subr.bf16.mxu0 0
      %6872 = vmatpush2.bf16.msra.mxu0 %v6742
      %6873 = vmatprep.subr.bf16.mxu0 0
      %6874 = vmatpush2.bf16.msra.mxu0 %v6741
      %6875 = vmatprep.subr.bf16.mxu0 0
      %6876 = vmatpush2.bf16.msra.mxu0 %v6740
      %6877 = vmatprep.subr.bf16.mxu0 0
      %6878 = vmatpush2.bf16.msra.mxu0 %v6739
      %6879 = vmatprep.subr.bf16.mxu0 0
      %6880 = vmatpush2.bf16.msra.mxu0 %v6738
      %6881 = vmatprep.subr.bf16.mxu0 0
      %6882 = vmatpush2.bf16.msra.mxu0 %v6737
      %6883 = vmatprep.subr.bf16.mxu0 0
      %6884 = vmatpush2.bf16.msra.mxu0 %v6736
      %6885 = vmatprep.subr.bf16.mxu0 0
      %6886 = vmatpush2.bf16.msra.mxu0 %v6735
      %6887 = vmatprep.mubr.bf16.mxu0 %v4701
      %6888 = vmatmul.mubr.bf16.gmra.mxu0 %v4689
      %v6889 = vpop.f32.mrf.mxu0
      %v6890 = vadd.f32 %v2112, %v6889
      %v6891 = vpop.f32.mrf.mxu0
      %v6892 = vpop.f32.mrf.mxu0
      %v6893 = vadd.f32 %v2112, %v6892
      %v6894 = vpop.f32.mrf.mxu0
      %6895 = vmatprep.mubr.bf16.mxu0 %v4797
      %6896 = vmatmul.mubr.bf16.gmra.mxu0 %v4785
      %v6897 = vpop.f32.mrf.mxu0
      %v6898 = vadd.f32 %v2112, %v6897
      %v6899 = vpop.f32.mrf.mxu0
      %v6900 = vpop.f32.mrf.mxu0
      %v6901 = vadd.f32 %v2112, %v6900
      %v6902 = vpop.f32.mrf.mxu0
      %6903 = vmatprep.mubr.bf16.mxu0 %v4893
      %6904 = vmatmul.mubr.bf16.gmra.mxu0 %v4881
      %v6905 = vpop.f32.mrf.mxu0
      %v6906 = vadd.f32 %v2112, %v6905
      %v6907 = vpop.f32.mrf.mxu0
      %v6908 = vpop.f32.mrf.mxu0
      %v6909 = vadd.f32 %v2112, %v6908
      %v6910 = vpop.f32.mrf.mxu0
      %6911 = vmatprep.mubr.bf16.mxu0 %v4989
      %6912 = vmatmul.mubr.bf16.gmra.mxu0 %v4977
      %v6913 = vpop.f32.mrf.mxu0
      %v6914 = vadd.f32 %v2112, %v6913
      %v6915 = vpop.f32.mrf.mxu0
      %v6916 = vpop.f32.mrf.mxu0
      %v6917 = vadd.f32 %v2112, %v6916
      %v6918 = vpop.f32.mrf.mxu0
      %6919 = vmatprep.mubr.bf16.mxu0 %v5085
      %6920 = vmatmul.mubr.bf16.gmra.mxu0 %v5073
      %v6921 = vpop.f32.mrf.mxu0
      %v6922 = vadd.f32 %v2112, %v6921
      %v6923 = vpop.f32.mrf.mxu0
      %v6924 = vpop.f32.mrf.mxu0
      %v6925 = vadd.f32 %v2112, %v6924
      %v6926 = vpop.f32.mrf.mxu0
      %6927 = vmatprep.mubr.bf16.mxu0 %v5181
      %6928 = vmatmul.mubr.bf16.gmra.mxu0 %v5169
      %v6929 = vpop.f32.mrf.mxu0
      %v6930 = vadd.f32 %v2112, %v6929
      %v6931 = vpop.f32.mrf.mxu0
      %v6932 = vpop.f32.mrf.mxu0
      %v6933 = vadd.f32 %v2112, %v6932
      %v6934 = vpop.f32.mrf.mxu0
      %6935 = vmatprep.mubr.bf16.mxu0 %v5277
      %6936 = vmatmul.mubr.bf16.gmra.mxu0 %v5265
      %v6937 = vpop.f32.mrf.mxu0
      %v6938 = vadd.f32 %v2112, %v6937
      %v6939 = vpop.f32.mrf.mxu0
      %v6940 = vpop.f32.mrf.mxu0
      %v6941 = vadd.f32 %v2112, %v6940
      %v6942 = vpop.f32.mrf.mxu0
      %6943 = vmatprep.mubr.bf16.mxu0 %v5373
      %6944 = vmatmul.mubr.bf16.gmra.mxu0 %v5361
      %v6945 = vpop.f32.mrf.mxu0
      %v6946 = vadd.f32 %v2112, %v6945
      %v6947 = vpop.f32.mrf.mxu0
      %v6948 = vpop.f32.mrf.mxu0
      %v6949 = vadd.f32 %v2112, %v6948
      %v6950 = vpop.f32.mrf.mxu0
      %6951 = vmatprep.mubr.bf16.mxu0 %v5469
      %6952 = vmatmul.mubr.bf16.gmra.mxu0 %v5457
      %v6953 = vpop.f32.mrf.mxu0
      %v6954 = vadd.f32 %v2112, %v6953
      %v6955 = vpop.f32.mrf.mxu0
      %v6956 = vpop.f32.mrf.mxu0
      %v6957 = vadd.f32 %v2112, %v6956
      %v6958 = vpop.f32.mrf.mxu0
      %6959 = vmatprep.mubr.bf16.mxu0 %v5565
      %6960 = vmatmul.mubr.bf16.gmra.mxu0 %v5553
      %v6961 = vpop.f32.mrf.mxu0
      %v6962 = vadd.f32 %v2112, %v6961
      %v6963 = vpop.f32.mrf.mxu0
      %v6964 = vpop.f32.mrf.mxu0
      %v6965 = vadd.f32 %v2112, %v6964
      %v6966 = vpop.f32.mrf.mxu0
      %6967 = vmatprep.mubr.bf16.mxu0 %v5661
      %6968 = vmatmul.mubr.bf16.gmra.mxu0 %v5649
      %v6969 = vpop.f32.mrf.mxu0
      %v6970 = vadd.f32 %v2112, %v6969
      %v6971 = vpop.f32.mrf.mxu0
      %v6972 = vpop.f32.mrf.mxu0
      %v6973 = vadd.f32 %v2112, %v6972
      %v6974 = vpop.f32.mrf.mxu0
      %6975 = vmatprep.mubr.bf16.mxu0 %v5757
      %6976 = vmatmul.mubr.bf16.gmra.mxu0 %v5745
      %v6977 = vpop.f32.mrf.mxu0
      %v6978 = vadd.f32 %v2112, %v6977
      %v6979 = vpop.f32.mrf.mxu0
      %v6980 = vpop.f32.mrf.mxu0
      %v6981 = vadd.f32 %v2112, %v6980
      %v6982 = vpop.f32.mrf.mxu0
      %6983 = vmatprep.mubr.bf16.mxu0 %v5853
      %6984 = vmatmul.mubr.bf16.gmra.mxu0 %v5841
      %v6985 = vpop.f32.mrf.mxu0
      %v6986 = vadd.f32 %v2112, %v6985
      %v6987 = vpop.f32.mrf.mxu0
      %v6988 = vpop.f32.mrf.mxu0
      %v6989 = vadd.f32 %v2112, %v6988
      %v6990 = vpop.f32.mrf.mxu0
      %6991 = vmatprep.mubr.bf16.mxu0 %v5949
      %6992 = vmatmul.mubr.bf16.gmra.mxu0 %v5937
      %v6993 = vpop.f32.mrf.mxu0
      %v6994 = vadd.f32 %v2112, %v6993
      %v6995 = vpop.f32.mrf.mxu0
      %v6996 = vpop.f32.mrf.mxu0
      %v6997 = vadd.f32 %v2112, %v6996
      %v6998 = vpop.f32.mrf.mxu0
      %6999 = vmatprep.mubr.bf16.mxu0 %v6045
      %7000 = vmatmul.mubr.bf16.gmra.mxu0 %v6033
      %v7001 = vpop.f32.mrf.mxu0
      %v7002 = vadd.f32 %v2112, %v7001
      %v7003 = vpop.f32.mrf.mxu0
      %v7004 = vpop.f32.mrf.mxu0
      %v7005 = vadd.f32 %v2112, %v7004
      %v7006 = vpop.f32.mrf.mxu0
      %7007 = vmatprep.mubr.bf16.mxu0 %v6141
      %7008 = vmatmul.mubr.bf16.gmra.mxu0 %v6129
      %v7009 = vpop.f32.mrf.mxu0
      %v7010 = vadd.f32 %v2112, %v7009
      %v7011 = vpop.f32.mrf.mxu0
      %v7012 = vpop.f32.mrf.mxu0
      %v7013 = vadd.f32 %v2112, %v7012
      %v7014 = vpop.f32.mrf.mxu0
      %7015 = vdwg.mxu0
      %7016 = vmatprep.subr.bf16.mxu0 0
      %7017 = vmatpush1.bf16.msra.mxu0 %v6750
      %7018 = vmatprep.subr.bf16.mxu0 0
      %7019 = vmatpush1.bf16.msra.mxu0 %v6749
      %7020 = vmatprep.subr.bf16.mxu0 0
      %7021 = vmatpush1.bf16.msra.mxu0 %v6748
      %7022 = vmatprep.subr.bf16.mxu0 0
      %7023 = vmatpush1.bf16.msra.mxu0 %v6747
      %7024 = vmatprep.subr.bf16.mxu0 0
      %7025 = vmatpush1.bf16.msra.mxu0 %v6746
      %7026 = vmatprep.subr.bf16.mxu0 0
      %7027 = vmatpush1.bf16.msra.mxu0 %v6745
      %7028 = vmatprep.subr.bf16.mxu0 0
      %7029 = vmatpush1.bf16.msra.mxu0 %v6744
      %7030 = vmatprep.subr.bf16.mxu0 0
      %7031 = vmatpush1.bf16.msra.mxu0 %v6743
      %7032 = vmatprep.subr.bf16.mxu0 0
      %7033 = vmatpush2.bf16.msra.mxu0 %v6758
      %7034 = vmatprep.subr.bf16.mxu0 0
      %7035 = vmatpush2.bf16.msra.mxu0 %v6757
      %7036 = vmatprep.subr.bf16.mxu0 0
      %7037 = vmatpush2.bf16.msra.mxu0 %v6756
      %7038 = vmatprep.subr.bf16.mxu0 0
      %7039 = vmatpush2.bf16.msra.mxu0 %v6755
      %7040 = vmatprep.subr.bf16.mxu0 0
      %7041 = vmatpush2.bf16.msra.mxu0 %v6754
      %7042 = vmatprep.subr.bf16.mxu0 0
      %7043 = vmatpush2.bf16.msra.mxu0 %v6753
      %7044 = vmatprep.subr.bf16.mxu0 0
      %7045 = vmatpush2.bf16.msra.mxu0 %v6752
      %7046 = vmatprep.subr.bf16.mxu0 0
      %7047 = vmatpush2.bf16.msra.mxu0 %v6751
      %7048 = vmatprep.mubr.bf16.mxu0 %v4725
      %7049 = vmatmul.mubr.bf16.gmra.mxu0 %v4713
      %v7050 = vpop.f32.mrf.mxu0
      %v7051 = vadd.f32 %v6890, %v7050
      %v7052 = vpop.f32.mrf.mxu0
      %v7053 = vpop.f32.mrf.mxu0
      %v7054 = vadd.f32 %v6893, %v7053
      %v7055 = vpop.f32.mrf.mxu0
      %7056 = vmatprep.mubr.bf16.mxu0 %v4821
      %7057 = vmatmul.mubr.bf16.gmra.mxu0 %v4809
      %v7058 = vpop.f32.mrf.mxu0
      %v7059 = vadd.f32 %v6898, %v7058
      %v7060 = vpop.f32.mrf.mxu0
      %v7061 = vpop.f32.mrf.mxu0
      %v7062 = vadd.f32 %v6901, %v7061
      %v7063 = vpop.f32.mrf.mxu0
      %7064 = vmatprep.mubr.bf16.mxu0 %v4917
      %7065 = vmatmul.mubr.bf16.gmra.mxu0 %v4905
      %v7066 = vpop.f32.mrf.mxu0
      %v7067 = vadd.f32 %v6906, %v7066
      %v7068 = vpop.f32.mrf.mxu0
      %v7069 = vpop.f32.mrf.mxu0
      %v7070 = vadd.f32 %v6909, %v7069
      %v7071 = vpop.f32.mrf.mxu0
      %7072 = vmatprep.mubr.bf16.mxu0 %v5013
      %7073 = vmatmul.mubr.bf16.gmra.mxu0 %v5001
      %v7074 = vpop.f32.mrf.mxu0
      %v7075 = vadd.f32 %v6914, %v7074
      %v7076 = vpop.f32.mrf.mxu0
      %v7077 = vpop.f32.mrf.mxu0
      %v7078 = vadd.f32 %v6917, %v7077
      %v7079 = vpop.f32.mrf.mxu0
      %7080 = vmatprep.mubr.bf16.mxu0 %v5109
      %7081 = vmatmul.mubr.bf16.gmra.mxu0 %v5097
      %v7082 = vpop.f32.mrf.mxu0
      %v7083 = vadd.f32 %v6922, %v7082
      %v7084 = vpop.f32.mrf.mxu0
      %v7085 = vpop.f32.mrf.mxu0
      %v7086 = vadd.f32 %v6925, %v7085
      %v7087 = vpop.f32.mrf.mxu0
      %7088 = vmatprep.mubr.bf16.mxu0 %v5205
      %7089 = vmatmul.mubr.bf16.gmra.mxu0 %v5193
      %v7090 = vpop.f32.mrf.mxu0
      %v7091 = vadd.f32 %v6930, %v7090
      %v7092 = vpop.f32.mrf.mxu0
      %v7093 = vpop.f32.mrf.mxu0
      %v7094 = vadd.f32 %v6933, %v7093
      %v7095 = vpop.f32.mrf.mxu0
      %7096 = vmatprep.mubr.bf16.mxu0 %v5301
      %7097 = vmatmul.mubr.bf16.gmra.mxu0 %v5289
      %v7098 = vpop.f32.mrf.mxu0
      %v7099 = vadd.f32 %v6938, %v7098
      %v7100 = vpop.f32.mrf.mxu0
      %v7101 = vpop.f32.mrf.mxu0
      %v7102 = vadd.f32 %v6941, %v7101
      %v7103 = vpop.f32.mrf.mxu0
      %7104 = vmatprep.mubr.bf16.mxu0 %v5397
      %7105 = vmatmul.mubr.bf16.gmra.mxu0 %v5385
      %v7106 = vpop.f32.mrf.mxu0
      %v7107 = vadd.f32 %v6946, %v7106
      %v7108 = vpop.f32.mrf.mxu0
      %v7109 = vpop.f32.mrf.mxu0
      %v7110 = vadd.f32 %v6949, %v7109
      %v7111 = vpop.f32.mrf.mxu0
      %7112 = vmatprep.mubr.bf16.mxu0 %v5493
      %7113 = vmatmul.mubr.bf16.gmra.mxu0 %v5481
      %v7114 = vpop.f32.mrf.mxu0
      %v7115 = vadd.f32 %v6954, %v7114
      %v7116 = vpop.f32.mrf.mxu0
      %v7117 = vpop.f32.mrf.mxu0
      %v7118 = vadd.f32 %v6957, %v7117
      %v7119 = vpop.f32.mrf.mxu0
      %7120 = vmatprep.mubr.bf16.mxu0 %v5589
      %7121 = vmatmul.mubr.bf16.gmra.mxu0 %v5577
      %v7122 = vpop.f32.mrf.mxu0
      %v7123 = vadd.f32 %v6962, %v7122
      %v7124 = vpop.f32.mrf.mxu0
      %v7125 = vpop.f32.mrf.mxu0
      %v7126 = vadd.f32 %v6965, %v7125
      %v7127 = vpop.f32.mrf.mxu0
      %7128 = vmatprep.mubr.bf16.mxu0 %v5685
      %7129 = vmatmul.mubr.bf16.gmra.mxu0 %v5673
      %v7130 = vpop.f32.mrf.mxu0
      %v7131 = vadd.f32 %v6970, %v7130
      %v7132 = vpop.f32.mrf.mxu0
      %v7133 = vpop.f32.mrf.mxu0
      %v7134 = vadd.f32 %v6973, %v7133
      %v7135 = vpop.f32.mrf.mxu0
      %7136 = vmatprep.mubr.bf16.mxu0 %v5781
      %7137 = vmatmul.mubr.bf16.gmra.mxu0 %v5769
      %v7138 = vpop.f32.mrf.mxu0
      %v7139 = vadd.f32 %v6978, %v7138
      %v7140 = vpop.f32.mrf.mxu0
      %v7141 = vpop.f32.mrf.mxu0
      %v7142 = vadd.f32 %v6981, %v7141
      %v7143 = vpop.f32.mrf.mxu0
      %7144 = vmatprep.mubr.bf16.mxu0 %v5877
      %7145 = vmatmul.mubr.bf16.gmra.mxu0 %v5865
      %v7146 = vpop.f32.mrf.mxu0
      %v7147 = vadd.f32 %v6986, %v7146
      %v7148 = vpop.f32.mrf.mxu0
      %v7149 = vpop.f32.mrf.mxu0
      %v7150 = vadd.f32 %v6989, %v7149
      %v7151 = vpop.f32.mrf.mxu0
      %7152 = vmatprep.mubr.bf16.mxu0 %v5973
      %7153 = vmatmul.mubr.bf16.gmra.mxu0 %v5961
      %v7154 = vpop.f32.mrf.mxu0
      %v7155 = vadd.f32 %v6994, %v7154
      %v7156 = vpop.f32.mrf.mxu0
      %v7157 = vpop.f32.mrf.mxu0
      %v7158 = vadd.f32 %v6997, %v7157
      %v7159 = vpop.f32.mrf.mxu0
      %7160 = vmatprep.mubr.bf16.mxu0 %v6069
      %7161 = vmatmul.mubr.bf16.gmra.mxu0 %v6057
      %v7162 = vpop.f32.mrf.mxu0
      %v7163 = vadd.f32 %v7002, %v7162
      %v7164 = vpop.f32.mrf.mxu0
      %v7165 = vpop.f32.mrf.mxu0
      %v7166 = vadd.f32 %v7005, %v7165
      %v7167 = vpop.f32.mrf.mxu0
      %7168 = vmatprep.mubr.bf16.mxu0 %v6165
      %7169 = vmatmul.mubr.bf16.gmra.mxu0 %v6153
      %v7170 = vpop.f32.mrf.mxu0
      %v7171 = vadd.f32 %v7010, %v7170
      %v7172 = vpop.f32.mrf.mxu0
      %v7173 = vpop.f32.mrf.mxu0
      %v7174 = vadd.f32 %v7013, %v7173
      %v7175 = vpop.f32.mrf.mxu0
      %7176 = vdwg.mxu0
      %7177 = vmatprep.subr.bf16.mxu0 0
      %7178 = vmatpush1.bf16.msra.mxu0 %v6766
      %7179 = vmatprep.subr.bf16.mxu0 0
      %7180 = vmatpush1.bf16.msra.mxu0 %v6765
      %7181 = vmatprep.subr.bf16.mxu0 0
      %7182 = vmatpush1.bf16.msra.mxu0 %v6764
      %7183 = vmatprep.subr.bf16.mxu0 0
      %7184 = vmatpush1.bf16.msra.mxu0 %v6763
      %7185 = vmatprep.subr.bf16.mxu0 0
      %7186 = vmatpush1.bf16.msra.mxu0 %v6762
      %7187 = vmatprep.subr.bf16.mxu0 0
      %7188 = vmatpush1.bf16.msra.mxu0 %v6761
      %7189 = vmatprep.subr.bf16.mxu0 0
      %7190 = vmatpush1.bf16.msra.mxu0 %v6760
      %7191 = vmatprep.subr.bf16.mxu0 0
      %7192 = vmatpush1.bf16.msra.mxu0 %v6759
      %7193 = vmatprep.subr.bf16.mxu0 0
      %7194 = vmatpush2.bf16.msra.mxu0 %v6774
      %7195 = vmatprep.subr.bf16.mxu0 0
      %7196 = vmatpush2.bf16.msra.mxu0 %v6773
      %7197 = vmatprep.subr.bf16.mxu0 0
      %7198 = vmatpush2.bf16.msra.mxu0 %v6772
      %7199 = vmatprep.subr.bf16.mxu0 0
      %7200 = vmatpush2.bf16.msra.mxu0 %v6771
      %7201 = vmatprep.subr.bf16.mxu0 0
      %7202 = vmatpush2.bf16.msra.mxu0 %v6770
      %7203 = vmatprep.subr.bf16.mxu0 0
      %7204 = vmatpush2.bf16.msra.mxu0 %v6769
      %7205 = vmatprep.subr.bf16.mxu0 0
      %7206 = vmatpush2.bf16.msra.mxu0 %v6768
      %7207 = vmatprep.subr.bf16.mxu0 0
      %7208 = vmatpush2.bf16.msra.mxu0 %v6767
      %7209 = vmatprep.mubr.bf16.mxu0 %v4749
      %7210 = vmatmul.mubr.bf16.gmra.mxu0 %v4737
      %v7211 = vpop.f32.mrf.mxu0
      %v7212 = vadd.f32 %v7051, %v7211
      %v7213 = vpop.f32.mrf.mxu0
      %v7214 = vpop.f32.mrf.mxu0
      %v7215 = vadd.f32 %v7054, %v7214
      %v7216 = vpop.f32.mrf.mxu0
      %7217 = vmatprep.mubr.bf16.mxu0 %v4845
      %7218 = vmatmul.mubr.bf16.gmra.mxu0 %v4833
      %v7219 = vpop.f32.mrf.mxu0
      %v7220 = vadd.f32 %v7059, %v7219
      %v7221 = vpop.f32.mrf.mxu0
      %v7222 = vpop.f32.mrf.mxu0
      %v7223 = vadd.f32 %v7062, %v7222
      %v7224 = vpop.f32.mrf.mxu0
      %7225 = vmatprep.mubr.bf16.mxu0 %v4941
      %7226 = vmatmul.mubr.bf16.gmra.mxu0 %v4929
      %v7227 = vpop.f32.mrf.mxu0
      %v7228 = vadd.f32 %v7067, %v7227
      %v7229 = vpop.f32.mrf.mxu0
      %v7230 = vpop.f32.mrf.mxu0
      %v7231 = vadd.f32 %v7070, %v7230
      %v7232 = vpop.f32.mrf.mxu0
      %7233 = vmatprep.mubr.bf16.mxu0 %v5037
      %7234 = vmatmul.mubr.bf16.gmra.mxu0 %v5025
      %v7235 = vpop.f32.mrf.mxu0
      %v7236 = vadd.f32 %v7075, %v7235
      %v7237 = vpop.f32.mrf.mxu0
      %v7238 = vpop.f32.mrf.mxu0
      %v7239 = vadd.f32 %v7078, %v7238
      %v7240 = vpop.f32.mrf.mxu0
      %7241 = vmatprep.mubr.bf16.mxu0 %v5133
      %7242 = vmatmul.mubr.bf16.gmra.mxu0 %v5121
      %v7243 = vpop.f32.mrf.mxu0
      %v7244 = vadd.f32 %v7083, %v7243
      %v7245 = vpop.f32.mrf.mxu0
      %v7246 = vpop.f32.mrf.mxu0
      %v7247 = vadd.f32 %v7086, %v7246
      %v7248 = vpop.f32.mrf.mxu0
      %7249 = vmatprep.mubr.bf16.mxu0 %v5229
      %7250 = vmatmul.mubr.bf16.gmra.mxu0 %v5217
      %v7251 = vpop.f32.mrf.mxu0
      %v7252 = vadd.f32 %v7091, %v7251
      %v7253 = vpop.f32.mrf.mxu0
      %v7254 = vpop.f32.mrf.mxu0
      %v7255 = vadd.f32 %v7094, %v7254
      %v7256 = vpop.f32.mrf.mxu0
      %7257 = vmatprep.mubr.bf16.mxu0 %v5325
      %7258 = vmatmul.mubr.bf16.gmra.mxu0 %v5313
      %v7259 = vpop.f32.mrf.mxu0
      %v7260 = vadd.f32 %v7099, %v7259
      %v7261 = vpop.f32.mrf.mxu0
      %v7262 = vpop.f32.mrf.mxu0
      %v7263 = vadd.f32 %v7102, %v7262
      %v7264 = vpop.f32.mrf.mxu0
      %7265 = vmatprep.mubr.bf16.mxu0 %v5421
      %7266 = vmatmul.mubr.bf16.gmra.mxu0 %v5409
      %v7267 = vpop.f32.mrf.mxu0
      %v7268 = vadd.f32 %v7107, %v7267
      %v7269 = vpop.f32.mrf.mxu0
      %v7270 = vpop.f32.mrf.mxu0
      %v7271 = vadd.f32 %v7110, %v7270
      %v7272 = vpop.f32.mrf.mxu0
      %7273 = vmatprep.mubr.bf16.mxu0 %v5517
      %7274 = vmatmul.mubr.bf16.gmra.mxu0 %v5505
      %v7275 = vpop.f32.mrf.mxu0
      %v7276 = vadd.f32 %v7115, %v7275
      %v7277 = vpop.f32.mrf.mxu0
      %v7278 = vpop.f32.mrf.mxu0
      %v7279 = vadd.f32 %v7118, %v7278
      %v7280 = vpop.f32.mrf.mxu0
      %7281 = vmatprep.mubr.bf16.mxu0 %v5613
      %7282 = vmatmul.mubr.bf16.gmra.mxu0 %v5601
      %v7283 = vpop.f32.mrf.mxu0
      %v7284 = vadd.f32 %v7123, %v7283
      %v7285 = vpop.f32.mrf.mxu0
      %v7286 = vpop.f32.mrf.mxu0
      %v7287 = vadd.f32 %v7126, %v7286
      %v7288 = vpop.f32.mrf.mxu0
      %7289 = vmatprep.mubr.bf16.mxu0 %v5709
      %7290 = vmatmul.mubr.bf16.gmra.mxu0 %v5697
      %v7291 = vpop.f32.mrf.mxu0
      %v7292 = vadd.f32 %v7131, %v7291
      %v7293 = vpop.f32.mrf.mxu0
      %v7294 = vpop.f32.mrf.mxu0
      %v7295 = vadd.f32 %v7134, %v7294
      %v7296 = vpop.f32.mrf.mxu0
      %7297 = vmatprep.mubr.bf16.mxu0 %v5805
      %7298 = vmatmul.mubr.bf16.gmra.mxu0 %v5793
      %v7299 = vpop.f32.mrf.mxu0
      %v7300 = vadd.f32 %v7139, %v7299
      %v7301 = vpop.f32.mrf.mxu0
      %v7302 = vpop.f32.mrf.mxu0
      %v7303 = vadd.f32 %v7142, %v7302
      %v7304 = vpop.f32.mrf.mxu0
      %7305 = vmatprep.mubr.bf16.mxu0 %v5901
      %7306 = vmatmul.mubr.bf16.gmra.mxu0 %v5889
      %v7307 = vpop.f32.mrf.mxu0
      %v7308 = vadd.f32 %v7147, %v7307
      %v7309 = vpop.f32.mrf.mxu0
      %v7310 = vpop.f32.mrf.mxu0
      %v7311 = vadd.f32 %v7150, %v7310
      %v7312 = vpop.f32.mrf.mxu0
      %7313 = vmatprep.mubr.bf16.mxu0 %v5997
      %7314 = vmatmul.mubr.bf16.gmra.mxu0 %v5985
      %v7315 = vpop.f32.mrf.mxu0
      %v7316 = vadd.f32 %v7155, %v7315
      %v7317 = vpop.f32.mrf.mxu0
      %v7318 = vpop.f32.mrf.mxu0
      %v7319 = vadd.f32 %v7158, %v7318
      %v7320 = vpop.f32.mrf.mxu0
      %7321 = vmatprep.mubr.bf16.mxu0 %v6093
      %7322 = vmatmul.mubr.bf16.gmra.mxu0 %v6081
      %v7323 = vpop.f32.mrf.mxu0
      %v7324 = vadd.f32 %v7163, %v7323
      %v7325 = vpop.f32.mrf.mxu0
      %v7326 = vpop.f32.mrf.mxu0
      %v7327 = vadd.f32 %v7166, %v7326
      %v7328 = vpop.f32.mrf.mxu0
      %7329 = vmatprep.mubr.bf16.mxu0 %v6189
      %7330 = vmatmul.mubr.bf16.gmra.mxu0 %v6177
      %v7331 = vpop.f32.mrf.mxu0
      %v7332 = vadd.f32 %v7171, %v7331
      %v7333 = vpop.f32.mrf.mxu0
      %v7334 = vpop.f32.mrf.mxu0
      %v7335 = vadd.f32 %v7174, %v7334
      %v7336 = vpop.f32.mrf.mxu0
      %7337 = vdwg.mxu0
      %7338 = vmatprep.subr.bf16.mxu0 0
      %7339 = vmatpush1.bf16.msra.mxu0 %v6782
      %7340 = vmatprep.subr.bf16.mxu0 0
      %7341 = vmatpush1.bf16.msra.mxu0 %v6781
      %7342 = vmatprep.subr.bf16.mxu0 0
      %7343 = vmatpush1.bf16.msra.mxu0 %v6780
      %7344 = vmatprep.subr.bf16.mxu0 0
      %7345 = vmatpush1.bf16.msra.mxu0 %v6779
      %7346 = vmatprep.subr.bf16.mxu0 0
      %7347 = vmatpush1.bf16.msra.mxu0 %v6778
      %7348 = vmatprep.subr.bf16.mxu0 0
      %7349 = vmatpush1.bf16.msra.mxu0 %v6777
      %7350 = vmatprep.subr.bf16.mxu0 0
      %7351 = vmatpush1.bf16.msra.mxu0 %v6776
      %7352 = vmatprep.subr.bf16.mxu0 0
      %7353 = vmatpush1.bf16.msra.mxu0 %v6775
      %7354 = vmatprep.subr.bf16.mxu0 0
      %7355 = vmatpush2.bf16.msra.mxu0 %v6790
      %7356 = vmatprep.subr.bf16.mxu0 0
      %7357 = vmatpush2.bf16.msra.mxu0 %v6789
      %7358 = vmatprep.subr.bf16.mxu0 0
      %7359 = vmatpush2.bf16.msra.mxu0 %v6788
      %7360 = vmatprep.subr.bf16.mxu0 0
      %7361 = vmatpush2.bf16.msra.mxu0 %v6787
      %7362 = vmatprep.subr.bf16.mxu0 0
      %7363 = vmatpush2.bf16.msra.mxu0 %v6786
      %7364 = vmatprep.subr.bf16.mxu0 0
      %7365 = vmatpush2.bf16.msra.mxu0 %v6785
      %7366 = vmatprep.subr.bf16.mxu0 0
      %7367 = vmatpush2.bf16.msra.mxu0 %v6784
      %7368 = vmatprep.subr.bf16.mxu0 0
      %7369 = vmatpush2.bf16.msra.mxu0 %v6783
      %7370 = vmatprep.mubr.bf16.mxu0 %v4773
      %7371 = vmatmul.mubr.bf16.gmra.mxu0 %v4761
      %v7372 = vpop.f32.mrf.mxu0
      %v7373 = vadd.f32 %v7212, %v7372
      %v7374 = vpop.f32.mrf.mxu0
      %v7375 = vpop.f32.mrf.mxu0
      %v7376 = vadd.f32 %v7215, %v7375
      %v7377 = vpop.f32.mrf.mxu0
      %7378 = vmatprep.mubr.bf16.mxu0 %v4869
      %7379 = vmatmul.mubr.bf16.gmra.mxu0 %v4857
      %v7380 = vpop.f32.mrf.mxu0
      %v7381 = vadd.f32 %v7220, %v7380
      %v7382 = vpop.f32.mrf.mxu0
      %v7383 = vpop.f32.mrf.mxu0
      %v7384 = vadd.f32 %v7223, %v7383
      %v7385 = vpop.f32.mrf.mxu0
      %7386 = vmatprep.mubr.bf16.mxu0 %v4965
      %7387 = vmatmul.mubr.bf16.gmra.mxu0 %v4953
      %v7388 = vpop.f32.mrf.mxu0
      %v7389 = vadd.f32 %v7228, %v7388
      %v7390 = vpop.f32.mrf.mxu0
      %v7391 = vpop.f32.mrf.mxu0
      %v7392 = vadd.f32 %v7231, %v7391
      %v7393 = vpop.f32.mrf.mxu0
      %7394 = vmatprep.mubr.bf16.mxu0 %v5061
      %7395 = vmatmul.mubr.bf16.gmra.mxu0 %v5049
      %v7396 = vpop.f32.mrf.mxu0
      %v7397 = vadd.f32 %v7236, %v7396
      %v7398 = vpop.f32.mrf.mxu0
      %v7399 = vpop.f32.mrf.mxu0
      %v7400 = vadd.f32 %v7239, %v7399
      %v7401 = vpop.f32.mrf.mxu0
      %7402 = vmatprep.mubr.bf16.mxu0 %v5157
      %7403 = vmatmul.mubr.bf16.gmra.mxu0 %v5145
      %v7404 = vpop.f32.mrf.mxu0
      %v7405 = vadd.f32 %v7244, %v7404
      %v7406 = vpop.f32.mrf.mxu0
      %v7407 = vpop.f32.mrf.mxu0
      %v7408 = vadd.f32 %v7247, %v7407
      %v7409 = vpop.f32.mrf.mxu0
      %7410 = vmatprep.mubr.bf16.mxu0 %v5253
      %7411 = vmatmul.mubr.bf16.gmra.mxu0 %v5241
      %v7412 = vpop.f32.mrf.mxu0
      %v7413 = vadd.f32 %v7252, %v7412
      %v7414 = vpop.f32.mrf.mxu0
      %v7415 = vpop.f32.mrf.mxu0
      %v7416 = vadd.f32 %v7255, %v7415
      %v7417 = vpop.f32.mrf.mxu0
      %7418 = vmatprep.mubr.bf16.mxu0 %v5349
      %7419 = vmatmul.mubr.bf16.gmra.mxu0 %v5337
      %v7420 = vpop.f32.mrf.mxu0
      %v7421 = vadd.f32 %v7260, %v7420
      %v7422 = vpop.f32.mrf.mxu0
      %v7423 = vpop.f32.mrf.mxu0
      %v7424 = vadd.f32 %v7263, %v7423
      %v7425 = vpop.f32.mrf.mxu0
      %7426 = vmatprep.mubr.bf16.mxu0 %v5445
      %7427 = vmatmul.mubr.bf16.gmra.mxu0 %v5433
      %v7428 = vpop.f32.mrf.mxu0
      %v7429 = vadd.f32 %v7268, %v7428
      %v7430 = vpop.f32.mrf.mxu0
      %v7431 = vpop.f32.mrf.mxu0
      %v7432 = vadd.f32 %v7271, %v7431
      %v7433 = vpop.f32.mrf.mxu0
      %7434 = vmatprep.mubr.bf16.mxu0 %v5541
      %7435 = vmatmul.mubr.bf16.gmra.mxu0 %v5529
      %v7436 = vpop.f32.mrf.mxu0
      %v7437 = vadd.f32 %v7276, %v7436
      %v7438 = vpop.f32.mrf.mxu0
      %v7439 = vpop.f32.mrf.mxu0
      %v7440 = vadd.f32 %v7279, %v7439
      %v7441 = vpop.f32.mrf.mxu0
      %7442 = vmatprep.mubr.bf16.mxu0 %v5637
      %7443 = vmatmul.mubr.bf16.gmra.mxu0 %v5625
      %v7444 = vpop.f32.mrf.mxu0
      %v7445 = vadd.f32 %v7284, %v7444
      %v7446 = vpop.f32.mrf.mxu0
      %v7447 = vpop.f32.mrf.mxu0
      %v7448 = vadd.f32 %v7287, %v7447
      %v7449 = vpop.f32.mrf.mxu0
      %7450 = vmatprep.mubr.bf16.mxu0 %v5733
      %7451 = vmatmul.mubr.bf16.gmra.mxu0 %v5721
      %v7452 = vpop.f32.mrf.mxu0
      %v7453 = vadd.f32 %v7292, %v7452
      %v7454 = vpop.f32.mrf.mxu0
      %v7455 = vpop.f32.mrf.mxu0
      %v7456 = vadd.f32 %v7295, %v7455
      %v7457 = vpop.f32.mrf.mxu0
      %7458 = vmatprep.mubr.bf16.mxu0 %v5829
      %7459 = vmatmul.mubr.bf16.gmra.mxu0 %v5817
      %v7460 = vpop.f32.mrf.mxu0
      %v7461 = vadd.f32 %v7300, %v7460
      %v7462 = vpop.f32.mrf.mxu0
      %v7463 = vpop.f32.mrf.mxu0
      %v7464 = vadd.f32 %v7303, %v7463
      %v7465 = vpop.f32.mrf.mxu0
      %7466 = vmatprep.mubr.bf16.mxu0 %v5925
      %7467 = vmatmul.mubr.bf16.gmra.mxu0 %v5913
      %v7468 = vpop.f32.mrf.mxu0
      %v7469 = vadd.f32 %v7308, %v7468
      %v7470 = vpop.f32.mrf.mxu0
      %v7471 = vpop.f32.mrf.mxu0
      %v7472 = vadd.f32 %v7311, %v7471
      %v7473 = vpop.f32.mrf.mxu0
      %7474 = vmatprep.mubr.bf16.mxu0 %v6021
      %7475 = vmatmul.mubr.bf16.gmra.mxu0 %v6009
      %v7476 = vpop.f32.mrf.mxu0
      %v7477 = vadd.f32 %v7316, %v7476
      %v7478 = vpop.f32.mrf.mxu0
      %v7479 = vpop.f32.mrf.mxu0
      %v7480 = vadd.f32 %v7319, %v7479
      %v7481 = vpop.f32.mrf.mxu0
      %7482 = vmatprep.mubr.bf16.mxu0 %v6117
      %7483 = vmatmul.mubr.bf16.gmra.mxu0 %v6105
      %v7484 = vpop.f32.mrf.mxu0
      %v7485 = vadd.f32 %v7324, %v7484
      %v7486 = vpop.f32.mrf.mxu0
      %v7487 = vpop.f32.mrf.mxu0
      %v7488 = vadd.f32 %v7327, %v7487
      %v7489 = vpop.f32.mrf.mxu0
      %7490 = vmatprep.mubr.bf16.mxu0 %v6213
      %7491 = vmatmul.mubr.bf16.gmra.mxu0 %v6201
      %v7492 = vpop.f32.mrf.mxu0
      %v7493 = vadd.f32 %v7332, %v7492
      %v7494 = vpop.f32.mrf.mxu0
      %v7495 = vpop.f32.mrf.mxu0
      %v7496 = vadd.f32 %v7335, %v7495
      %v7497 = vpop.f32.mrf.mxu0
      %7498 = vdwg.mxu0
      %v7499 = vmax.f32 %v7373, 0.0
      %v7500 = vmax.f32 %v7376, 0.0
      %v7501 = vmax.f32 %v7381, 0.0
      %v7502 = vmax.f32 %v7384, 0.0
      %v7503 = vmax.f32 %v7389, 0.0
      %v7504 = vmax.f32 %v7392, 0.0
      %v7505 = vmax.f32 %v7397, 0.0
      %v7506 = vmax.f32 %v7400, 0.0
      %v7507 = vmax.f32 %v7405, 0.0
      %v7508 = vmax.f32 %v7408, 0.0
      %v7509 = vmax.f32 %v7413, 0.0
      %v7510 = vmax.f32 %v7416, 0.0
      %v7511 = vmax.f32 %v7421, 0.0
      %v7512 = vmax.f32 %v7424, 0.0
      %v7513 = vmax.f32 %v7429, 0.0
      %v7514 = vmax.f32 %v7432, 0.0
      %v7515 = vmax.f32 %v7437, 0.0
      %v7516 = vmax.f32 %v7440, 0.0
      %v7517 = vmax.f32 %v7445, 0.0
      %v7518 = vmax.f32 %v7448, 0.0
      %v7519 = vmax.f32 %v7453, 0.0
      %v7520 = vmax.f32 %v7456, 0.0
      %v7521 = vmax.f32 %v7461, 0.0
      %v7522 = vmax.f32 %v7464, 0.0
      %v7523 = vmax.f32 %v7469, 0.0
      %v7524 = vmax.f32 %v7472, 0.0
      %v7525 = vmax.f32 %v7477, 0.0
      %v7526 = vmax.f32 %v7480, 0.0
      %v7527 = vmax.f32 %v7485, 0.0
      %v7528 = vmax.f32 %v7488, 0.0
      %v7529 = vmax.f32 %v7493, 0.0
      %v7530 = vmax.f32 %v7496, 0.0
      %s7531 = scalar_lea.vmem %s170, 256
      %7532 = vst [vmem:[%s7531] sm:$0xff] %v7499
      %7533 = vst [vmem:[%s7531 + $0x8] sm:$0xff] %v7500
      %7534 = vst [vmem:[%s7531 + $0x10] sm:$0xff] %v7501
      %7535 = vst [vmem:[%s7531 + $0x18] sm:$0xff] %v7502
      %7536 = vst [vmem:[%s7531 + $0x20] sm:$0xff] %v7503
      %7537 = vst [vmem:[%s7531 + $0x28] sm:$0xff] %v7504
      %7538 = vst [vmem:[%s7531 + $0x30] sm:$0xff] %v7505
      %7539 = vst [vmem:[%s7531 + $0x38] sm:$0xff] %v7506
      %7540 = vst [vmem:[%s7531 + $0x40] sm:$0xff] %v7507
      %7541 = vst [vmem:[%s7531 + $0x48] sm:$0xff] %v7508
      %7542 = vst [vmem:[%s7531 + $0x50] sm:$0xff] %v7509
      %7543 = vst [vmem:[%s7531 + $0x58] sm:$0xff] %v7510
      %7544 = vst [vmem:[%s7531 + $0x60] sm:$0xff] %v7511
      %7545 = vst [vmem:[%s7531 + $0x68] sm:$0xff] %v7512
      %7546 = vst [vmem:[%s7531 + $0x70] sm:$0xff] %v7513
      %7547 = vst [vmem:[%s7531 + $0x78] sm:$0xff] %v7514
      %7548 = vst [vmem:[%s7531 + $0x80] sm:$0xff] %v7515
      %7549 = vst [vmem:[%s7531 + $0x88] sm:$0xff] %v7516
      %7550 = vst [vmem:[%s7531 + $0x90] sm:$0xff] %v7517
      %7551 = vst [vmem:[%s7531 + $0x98] sm:$0xff] %v7518
      %7552 = vst [vmem:[%s7531 + $0xa0] sm:$0xff] %v7519
      %7553 = vst [vmem:[%s7531 + $0xa8] sm:$0xff] %v7520
      %7554 = vst [vmem:[%s7531 + $0xb0] sm:$0xff] %v7521
      %7555 = vst [vmem:[%s7531 + $0xb8] sm:$0xff] %v7522
      %7556 = vst [vmem:[%s7531 + $0xc0] sm:$0xff] %v7523
      %7557 = vst [vmem:[%s7531 + $0xc8] sm:$0xff] %v7524
      %7558 = vst [vmem:[%s7531 + $0xd0] sm:$0xff] %v7525
      %7559 = vst [vmem:[%s7531 + $0xd8] sm:$0xff] %v7526
      %7560 = vst [vmem:[%s7531 + $0xe0] sm:$0xff] %v7527
      %7561 = vst [vmem:[%s7531 + $0xe8] sm:$0xff] %v7528
      %7562 = vst [vmem:[%s7531 + $0xf0] sm:$0xff] %v7529
      %7563 = vst [vmem:[%s7531 + $0xf8] sm:$0xff] %v7530
      %v7564 = vld [vmem:[%s601] sm:$0xff]
      %v7565 = vld [vmem:[%s601 + $0x8] sm:$0xff]
      %v7566 = vld [vmem:[%s601 + $0x10] sm:$0xff]
      %v7567 = vld [vmem:[%s601 + $0x18] sm:$0xff]
      %v7568 = vld [vmem:[%s601 + $0x30] sm:$0xff]
      %v7569 = vld [vmem:[%s601 + $0x38] sm:$0xff]
      %v7570 = vld [vmem:[%s601 + $0x40] sm:$0xff]
      %v7571 = vld [vmem:[%s601 + $0x48] sm:$0xff]
      %v7572 = vld [vmem:[%s601 + $0x60] sm:$0xff]
      %v7573 = vld [vmem:[%s601 + $0x68] sm:$0xff]
      %v7574 = vld [vmem:[%s601 + $0x70] sm:$0xff]
      %v7575 = vld [vmem:[%s601 + $0x78] sm:$0xff]
      %v7576 = vld [vmem:[%s601 + $0x90] sm:$0xff]
      %v7577 = vld [vmem:[%s601 + $0x98] sm:$0xff]
      %v7578 = vld [vmem:[%s601 + $0xa0] sm:$0xff]
      %v7579 = vld [vmem:[%s601 + $0xa8] sm:$0xff]
      %v7580 = vld [vmem:[%s601 + $0xc0] sm:$0xff]
      %v7581 = vld [vmem:[%s601 + $0xc8] sm:$0xff]
      %v7582 = vld [vmem:[%s601 + $0xd0] sm:$0xff]
      %v7583 = vld [vmem:[%s601 + $0xd8] sm:$0xff]
      %v7584 = vld [vmem:[%s601 + $0xf0] sm:$0xff]
      %v7585 = vld [vmem:[%s601 + $0xf8] sm:$0xff]
      %v7586 = vld [vmem:[%s601 + $0x100] sm:$0xff]
      %v7587 = vld [vmem:[%s601 + $0x108] sm:$0xff]
      %v7588 = vld [vmem:[%s601 + $0x120] sm:$0xff]
      %v7589 = vld [vmem:[%s601 + $0x128] sm:$0xff]
      %v7590 = vld [vmem:[%s601 + $0x130] sm:$0xff]
      %v7591 = vld [vmem:[%s601 + $0x138] sm:$0xff]
      %v7592 = vld [vmem:[%s601 + $0x150] sm:$0xff]
      %v7593 = vld [vmem:[%s601 + $0x158] sm:$0xff]
      %v7594 = vld [vmem:[%s601 + $0x160] sm:$0xff]
      %v7595 = vld [vmem:[%s601 + $0x168] sm:$0xff]
      %v7596 = vld [vmem:[%s601 + $0x180] sm:$0xff]
      %v7597 = vld [vmem:[%s601 + $0x188] sm:$0xff]
      %v7598 = vld [vmem:[%s601 + $0x190] sm:$0xff]
      %v7599 = vld [vmem:[%s601 + $0x198] sm:$0xff]
      %v7600 = vld [vmem:[%s601 + $0x1b0] sm:$0xff]
      %v7601 = vld [vmem:[%s601 + $0x1b8] sm:$0xff]
      %v7602 = vld [vmem:[%s601 + $0x1c0] sm:$0xff]
      %v7603 = vld [vmem:[%s601 + $0x1c8] sm:$0xff]
      %v7604 = vld [vmem:[%s601 + $0x1e0] sm:$0xff]
      %v7605 = vld [vmem:[%s601 + $0x1e8] sm:$0xff]
      %v7606 = vld [vmem:[%s601 + $0x1f0] sm:$0xff]
      %v7607 = vld [vmem:[%s601 + $0x1f8] sm:$0xff]
      %v7608 = vld [vmem:[%s601 + $0x210] sm:$0xff]
      %v7609 = vld [vmem:[%s601 + $0x218] sm:$0xff]
      %v7610 = vld [vmem:[%s601 + $0x220] sm:$0xff]
      %v7611 = vld [vmem:[%s601 + $0x228] sm:$0xff]
      %v7612 = vld [vmem:[%s601 + $0x240] sm:$0xff]
      %v7613 = vld [vmem:[%s601 + $0x248] sm:$0xff]
      %v7614 = vld [vmem:[%s601 + $0x250] sm:$0xff]
      %v7615 = vld [vmem:[%s601 + $0x258] sm:$0xff]
      %v7616 = vld [vmem:[%s601 + $0x270] sm:$0xff]
      %v7617 = vld [vmem:[%s601 + $0x278] sm:$0xff]
      %v7618 = vld [vmem:[%s601 + $0x280] sm:$0xff]
      %v7619 = vld [vmem:[%s601 + $0x288] sm:$0xff]
      %v7620 = vld [vmem:[%s601 + $0x2a0] sm:$0xff]
      %v7621 = vld [vmem:[%s601 + $0x2a8] sm:$0xff]
      %v7622 = vld [vmem:[%s601 + $0x2b0] sm:$0xff]
      %v7623 = vld [vmem:[%s601 + $0x2b8] sm:$0xff]
      %v7624 = vld [vmem:[%s601 + $0x2d0] sm:$0xff]
      %v7625 = vld [vmem:[%s601 + $0x2d8] sm:$0xff]
      %v7626 = vld [vmem:[%s601 + $0x2e0] sm:$0xff]
      %v7627 = vld [vmem:[%s601 + $0x2e8] sm:$0xff]
      %v7628 = vpack.c.bf16 %v7566, %v7564
      %v7629 = vpack.c.bf16 %v7567, %v7565
      %v7630 = vpack.c.bf16 %v7570, %v7568
      %v7631 = vpack.c.bf16 %v7571, %v7569
      %v7632 = vpack.c.bf16 %v7574, %v7572
      %v7633 = vpack.c.bf16 %v7575, %v7573
      %v7634 = vpack.c.bf16 %v7578, %v7576
      %v7635 = vpack.c.bf16 %v7579, %v7577
      %v7636 = vpack.c.bf16 %v7582, %v7580
      %v7637 = vpack.c.bf16 %v7583, %v7581
      %v7638 = vpack.c.bf16 %v7586, %v7584
      %v7639 = vpack.c.bf16 %v7587, %v7585
      %v7640 = vpack.c.bf16 %v7590, %v7588
      %v7641 = vpack.c.bf16 %v7591, %v7589
      %v7642 = vpack.c.bf16 %v7594, %v7592
      %v7643 = vpack.c.bf16 %v7595, %v7593
      %v7644 = vpack.c.bf16 %v7598, %v7596
      %v7645 = vpack.c.bf16 %v7599, %v7597
      %v7646 = vpack.c.bf16 %v7602, %v7600
      %v7647 = vpack.c.bf16 %v7603, %v7601
      %v7648 = vpack.c.bf16 %v7606, %v7604
      %v7649 = vpack.c.bf16 %v7607, %v7605
      %v7650 = vpack.c.bf16 %v7610, %v7608
      %v7651 = vpack.c.bf16 %v7611, %v7609
      %v7652 = vpack.c.bf16 %v7614, %v7612
      %v7653 = vpack.c.bf16 %v7615, %v7613
      %v7654 = vpack.c.bf16 %v7618, %v7616
      %v7655 = vpack.c.bf16 %v7619, %v7617
      %v7656 = vpack.c.bf16 %v7622, %v7620
      %v7657 = vpack.c.bf16 %v7623, %v7621
      %v7658 = vpack.c.bf16 %v7626, %v7624
      %v7659 = vpack.c.bf16 %v7627, %v7625
      %v7660 = vld [vmem:[%s601] sm:$0xfe]
      %v7661 = vld [vmem:[%s601 + $0x8] sm:$0xfe]
      %v7662 = vld [vmem:[%s601 + $0x20] sm:$0x1]
      %v7663 = vld [vmem:[%s601 + $0x28] sm:$0x1]
      %v7664 = vld [vmem:[%s601 + $0x30] sm:$0xfe]
      %v7665 = vld [vmem:[%s601 + $0x38] sm:$0xfe]
      %v7666 = vld [vmem:[%s601 + $0x50] sm:$0x1]
      %v7667 = vld [vmem:[%s601 + $0x58] sm:$0x1]
      %v7668 = vld [vmem:[%s601 + $0x60] sm:$0xfe]
      %v7669 = vld [vmem:[%s601 + $0x68] sm:$0xfe]
      %v7670 = vld [vmem:[%s601 + $0x80] sm:$0x1]
      %v7671 = vld [vmem:[%s601 + $0x88] sm:$0x1]
      %v7672 = vld [vmem:[%s601 + $0x90] sm:$0xfe]
      %v7673 = vld [vmem:[%s601 + $0x98] sm:$0xfe]
      %v7674 = vld [vmem:[%s601 + $0xb0] sm:$0x1]
      %v7675 = vld [vmem:[%s601 + $0xb8] sm:$0x1]
      %v7676 = vld [vmem:[%s601 + $0xc0] sm:$0xfe]
      %v7677 = vld [vmem:[%s601 + $0xc8] sm:$0xfe]
      %v7678 = vld [vmem:[%s601 + $0xe0] sm:$0x1]
      %v7679 = vld [vmem:[%s601 + $0xe8] sm:$0x1]
      %v7680 = vld [vmem:[%s601 + $0xf0] sm:$0xfe]
      %v7681 = vld [vmem:[%s601 + $0xf8] sm:$0xfe]
      %v7682 = vld [vmem:[%s601 + $0x110] sm:$0x1]
      %v7683 = vld [vmem:[%s601 + $0x118] sm:$0x1]
      %v7684 = vld [vmem:[%s601 + $0x120] sm:$0xfe]
      %v7685 = vld [vmem:[%s601 + $0x128] sm:$0xfe]
      %v7686 = vld [vmem:[%s601 + $0x140] sm:$0x1]
      %v7687 = vld [vmem:[%s601 + $0x148] sm:$0x1]
      %v7688 = vld [vmem:[%s601 + $0x150] sm:$0xfe]
      %v7689 = vld [vmem:[%s601 + $0x158] sm:$0xfe]
      %v7690 = vld [vmem:[%s601 + $0x170] sm:$0x1]
      %v7691 = vld [vmem:[%s601 + $0x178] sm:$0x1]
      %v7692 = vld [vmem:[%s601 + $0x180] sm:$0xfe]
      %v7693 = vld [vmem:[%s601 + $0x188] sm:$0xfe]
      %v7694 = vld [vmem:[%s601 + $0x1a0] sm:$0x1]
      %v7695 = vld [vmem:[%s601 + $0x1a8] sm:$0x1]
      %v7696 = vld [vmem:[%s601 + $0x1b0] sm:$0xfe]
      %v7697 = vld [vmem:[%s601 + $0x1b8] sm:$0xfe]
      %v7698 = vld [vmem:[%s601 + $0x1d0] sm:$0x1]
      %v7699 = vld [vmem:[%s601 + $0x1d8] sm:$0x1]
      %v7700 = vld [vmem:[%s601 + $0x1e0] sm:$0xfe]
      %v7701 = vld [vmem:[%s601 + $0x1e8] sm:$0xfe]
      %v7702 = vld [vmem:[%s601 + $0x200] sm:$0x1]
      %v7703 = vld [vmem:[%s601 + $0x208] sm:$0x1]
      %v7704 = vld [vmem:[%s601 + $0x210] sm:$0xfe]
      %v7705 = vld [vmem:[%s601 + $0x218] sm:$0xfe]
      %v7706 = vld [vmem:[%s601 + $0x230] sm:$0x1]
      %v7707 = vld [vmem:[%s601 + $0x238] sm:$0x1]
      %v7708 = vld [vmem:[%s601 + $0x240] sm:$0xfe]
      %v7709 = vld [vmem:[%s601 + $0x248] sm:$0xfe]
      %v7710 = vld [vmem:[%s601 + $0x260] sm:$0x1]
      %v7711 = vld [vmem:[%s601 + $0x268] sm:$0x1]
      %v7712 = vld [vmem:[%s601 + $0x270] sm:$0xfe]
      %v7713 = vld [vmem:[%s601 + $0x278] sm:$0xfe]
      %v7714 = vld [vmem:[%s601 + $0x290] sm:$0x1]
      %v7715 = vld [vmem:[%s601 + $0x298] sm:$0x1]
      %v7716 = vld [vmem:[%s601 + $0x2a0] sm:$0xfe]
      %v7717 = vld [vmem:[%s601 + $0x2a8] sm:$0xfe]
      %v7718 = vld [vmem:[%s601 + $0x2c0] sm:$0x1]
      %v7719 = vld [vmem:[%s601 + $0x2c8] sm:$0x1]
      %v7720 = vld [vmem:[%s601 + $0x2d0] sm:$0xfe]
      %v7721 = vld [vmem:[%s601 + $0x2d8] sm:$0xfe]
      %v7722 = vld [vmem:[%s601 + $0x2f0] sm:$0x1]
      %v7723 = vld [vmem:[%s601 + $0x2f8] sm:$0x1]
      %v7724 = vpack.c.bf16 %v7566, %v7660
      %v7725 = vpack.c.bf16 %v7567, %v7661
      %v7726 = vpack.c.bf16 %v7662, %v7662
      %v7727 = vpack.c.bf16 %v7663, %v7663
      %v7728 = vpack.c.bf16 %v7570, %v7664
      %v7729 = vpack.c.bf16 %v7571, %v7665
      %v7730 = vpack.c.bf16 %v7666, %v7666
      %v7731 = vpack.c.bf16 %v7667, %v7667
      %v7732 = vpack.c.bf16 %v7574, %v7668
      %v7733 = vpack.c.bf16 %v7575, %v7669
      %v7734 = vpack.c.bf16 %v7670, %v7670
      %v7735 = vpack.c.bf16 %v7671, %v7671
      %v7736 = vpack.c.bf16 %v7578, %v7672
      %v7737 = vpack.c.bf16 %v7579, %v7673
      %v7738 = vpack.c.bf16 %v7674, %v7674
      %v7739 = vpack.c.bf16 %v7675, %v7675
      %v7740 = vpack.c.bf16 %v7582, %v7676
      %v7741 = vpack.c.bf16 %v7583, %v7677
      %v7742 = vpack.c.bf16 %v7678, %v7678
      %v7743 = vpack.c.bf16 %v7679, %v7679
      %v7744 = vpack.c.bf16 %v7586, %v7680
      %v7745 = vpack.c.bf16 %v7587, %v7681
      %v7746 = vpack.c.bf16 %v7682, %v7682
      %v7747 = vpack.c.bf16 %v7683, %v7683
      %v7748 = vpack.c.bf16 %v7590, %v7684
      %v7749 = vpack.c.bf16 %v7591, %v7685
      %v7750 = vpack.c.bf16 %v7686, %v7686
      %v7751 = vpack.c.bf16 %v7687, %v7687
      %v7752 = vpack.c.bf16 %v7594, %v7688
      %v7753 = vpack.c.bf16 %v7595, %v7689
      %v7754 = vpack.c.bf16 %v7690, %v7690
      %v7755 = vpack.c.bf16 %v7691, %v7691
      %v7756 = vpack.c.bf16 %v7598, %v7692
      %v7757 = vpack.c.bf16 %v7599, %v7693
      %v7758 = vpack.c.bf16 %v7694, %v7694
      %v7759 = vpack.c.bf16 %v7695, %v7695
      %v7760 = vpack.c.bf16 %v7602, %v7696
      %v7761 = vpack.c.bf16 %v7603, %v7697
      %v7762 = vpack.c.bf16 %v7698, %v7698
      %v7763 = vpack.c.bf16 %v7699, %v7699
      %v7764 = vpack.c.bf16 %v7606, %v7700
      %v7765 = vpack.c.bf16 %v7607, %v7701
      %v7766 = vpack.c.bf16 %v7702, %v7702
      %v7767 = vpack.c.bf16 %v7703, %v7703
      %v7768 = vpack.c.bf16 %v7610, %v7704
      %v7769 = vpack.c.bf16 %v7611, %v7705
      %v7770 = vpack.c.bf16 %v7706, %v7706
      %v7771 = vpack.c.bf16 %v7707, %v7707
      %v7772 = vpack.c.bf16 %v7614, %v7708
      %v7773 = vpack.c.bf16 %v7615, %v7709
      %v7774 = vpack.c.bf16 %v7710, %v7710
      %v7775 = vpack.c.bf16 %v7711, %v7711
      %v7776 = vpack.c.bf16 %v7618, %v7712
      %v7777 = vpack.c.bf16 %v7619, %v7713
      %v7778 = vpack.c.bf16 %v7714, %v7714
      %v7779 = vpack.c.bf16 %v7715, %v7715
      %v7780 = vpack.c.bf16 %v7622, %v7716
      %v7781 = vpack.c.bf16 %v7623, %v7717
      %v7782 = vpack.c.bf16 %v7718, %v7718
      %v7783 = vpack.c.bf16 %v7719, %v7719
      %v7784 = vpack.c.bf16 %v7626, %v7720
      %v7785 = vpack.c.bf16 %v7627, %v7721
      %v7786 = vpack.c.bf16 %v7722, %v7722
      %v7787 = vpack.c.bf16 %v7723, %v7723
      %s7788 = scalar_lea.vmem [#allocation2], 96
      %v7789 = vld [vmem:[%s7788] sm:$0xff]
      %v7790 = vld [vmem:[%s7788 + $0x8] sm:$0xff]
      %v7791 = vld [vmem:[%s7788 + $0x10] sm:$0xff]
      %v7792 = vld [vmem:[%s7788 + $0x18] sm:$0xff]
      %v7793 = vld [vmem:[%s7788 + $0x30] sm:$0xff]
      %v7794 = vld [vmem:[%s7788 + $0x38] sm:$0xff]
      %v7795 = vld [vmem:[%s7788 + $0x40] sm:$0xff]
      %v7796 = vld [vmem:[%s7788 + $0x48] sm:$0xff]
      %v7797 = vld [vmem:[%s7788 + $0x60] sm:$0xff]
      %v7798 = vld [vmem:[%s7788 + $0x68] sm:$0xff]
      %v7799 = vld [vmem:[%s7788 + $0x70] sm:$0xff]
      %v7800 = vld [vmem:[%s7788 + $0x78] sm:$0xff]
      %v7801 = vld [vmem:[%s7788 + $0x90] sm:$0xff]
      %v7802 = vld [vmem:[%s7788 + $0x98] sm:$0xff]
      %v7803 = vld [vmem:[%s7788 + $0xa0] sm:$0xff]
      %v7804 = vld [vmem:[%s7788 + $0xa8] sm:$0xff]
      %v7805 = vld [vmem:[%s7788 + $0xc0] sm:$0xff]
      %v7806 = vld [vmem:[%s7788 + $0xc8] sm:$0xff]
      %v7807 = vld [vmem:[%s7788 + $0xd0] sm:$0xff]
      %v7808 = vld [vmem:[%s7788 + $0xd8] sm:$0xff]
      %v7809 = vld [vmem:[%s7788 + $0xf0] sm:$0xff]
      %v7810 = vld [vmem:[%s7788 + $0xf8] sm:$0xff]
      %v7811 = vld [vmem:[%s7788 + $0x100] sm:$0xff]
      %v7812 = vld [vmem:[%s7788 + $0x108] sm:$0xff]
      %v7813 = vld [vmem:[%s7788 + $0x120] sm:$0xff]
      %v7814 = vld [vmem:[%s7788 + $0x128] sm:$0xff]
      %v7815 = vld [vmem:[%s7788 + $0x130] sm:$0xff]
      %v7816 = vld [vmem:[%s7788 + $0x138] sm:$0xff]
      %v7817 = vld [vmem:[%s7788 + $0x150] sm:$0xff]
      %v7818 = vld [vmem:[%s7788 + $0x158] sm:$0xff]
      %v7819 = vld [vmem:[%s7788 + $0x160] sm:$0xff]
      %v7820 = vld [vmem:[%s7788 + $0x168] sm:$0xff]
      %v7821 = vld [vmem:[%s7788 + $0x180] sm:$0xff]
      %v7822 = vld [vmem:[%s7788 + $0x188] sm:$0xff]
      %v7823 = vld [vmem:[%s7788 + $0x190] sm:$0xff]
      %v7824 = vld [vmem:[%s7788 + $0x198] sm:$0xff]
      %v7825 = vld [vmem:[%s7788 + $0x1b0] sm:$0xff]
      %v7826 = vld [vmem:[%s7788 + $0x1b8] sm:$0xff]
      %v7827 = vld [vmem:[%s7788 + $0x1c0] sm:$0xff]
      %v7828 = vld [vmem:[%s7788 + $0x1c8] sm:$0xff]
      %v7829 = vld [vmem:[%s7788 + $0x1e0] sm:$0xff]
      %v7830 = vld [vmem:[%s7788 + $0x1e8] sm:$0xff]
      %v7831 = vld [vmem:[%s7788 + $0x1f0] sm:$0xff]
      %v7832 = vld [vmem:[%s7788 + $0x1f8] sm:$0xff]
      %v7833 = vld [vmem:[%s7788 + $0x210] sm:$0xff]
      %v7834 = vld [vmem:[%s7788 + $0x218] sm:$0xff]
      %v7835 = vld [vmem:[%s7788 + $0x220] sm:$0xff]
      %v7836 = vld [vmem:[%s7788 + $0x228] sm:$0xff]
      %v7837 = vld [vmem:[%s7788 + $0x240] sm:$0xff]
      %v7838 = vld [vmem:[%s7788 + $0x248] sm:$0xff]
      %v7839 = vld [vmem:[%s7788 + $0x250] sm:$0xff]
      %v7840 = vld [vmem:[%s7788 + $0x258] sm:$0xff]
      %v7841 = vld [vmem:[%s7788 + $0x270] sm:$0xff]
      %v7842 = vld [vmem:[%s7788 + $0x278] sm:$0xff]
      %v7843 = vld [vmem:[%s7788 + $0x280] sm:$0xff]
      %v7844 = vld [vmem:[%s7788 + $0x288] sm:$0xff]
      %v7845 = vld [vmem:[%s7788 + $0x2a0] sm:$0xff]
      %v7846 = vld [vmem:[%s7788 + $0x2a8] sm:$0xff]
      %v7847 = vld [vmem:[%s7788 + $0x2b0] sm:$0xff]
      %v7848 = vld [vmem:[%s7788 + $0x2b8] sm:$0xff]
      %v7849 = vld [vmem:[%s7788 + $0x2d0] sm:$0xff]
      %v7850 = vld [vmem:[%s7788 + $0x2d8] sm:$0xff]
      %v7851 = vld [vmem:[%s7788 + $0x2e0] sm:$0xff]
      %v7852 = vld [vmem:[%s7788 + $0x2e8] sm:$0xff]
      %v7853 = vpack.c.bf16 %v7791, %v7789
      %v7854 = vpack.c.bf16 %v7792, %v7790
      %v7855 = vpack.c.bf16 %v7795, %v7793
      %v7856 = vpack.c.bf16 %v7796, %v7794
      %v7857 = vpack.c.bf16 %v7799, %v7797
      %v7858 = vpack.c.bf16 %v7800, %v7798
      %v7859 = vpack.c.bf16 %v7803, %v7801
      %v7860 = vpack.c.bf16 %v7804, %v7802
      %v7861 = vpack.c.bf16 %v7807, %v7805
      %v7862 = vpack.c.bf16 %v7808, %v7806
      %v7863 = vpack.c.bf16 %v7811, %v7809
      %v7864 = vpack.c.bf16 %v7812, %v7810
      %v7865 = vpack.c.bf16 %v7815, %v7813
      %v7866 = vpack.c.bf16 %v7816, %v7814
      %v7867 = vpack.c.bf16 %v7819, %v7817
      %v7868 = vpack.c.bf16 %v7820, %v7818
      %v7869 = vpack.c.bf16 %v7823, %v7821
      %v7870 = vpack.c.bf16 %v7824, %v7822
      %v7871 = vpack.c.bf16 %v7827, %v7825
      %v7872 = vpack.c.bf16 %v7828, %v7826
      %v7873 = vpack.c.bf16 %v7831, %v7829
      %v7874 = vpack.c.bf16 %v7832, %v7830
      %v7875 = vpack.c.bf16 %v7835, %v7833
      %v7876 = vpack.c.bf16 %v7836, %v7834
      %v7877 = vpack.c.bf16 %v7839, %v7837
      %v7878 = vpack.c.bf16 %v7840, %v7838
      %v7879 = vpack.c.bf16 %v7843, %v7841
      %v7880 = vpack.c.bf16 %v7844, %v7842
      %v7881 = vpack.c.bf16 %v7847, %v7845
      %v7882 = vpack.c.bf16 %v7848, %v7846
      %v7883 = vpack.c.bf16 %v7851, %v7849
      %v7884 = vpack.c.bf16 %v7852, %v7850
      %v7885 = vld [vmem:[%s7788] sm:$0xfe]
      %v7886 = vld [vmem:[%s7788 + $0x8] sm:$0xfe]
      %v7887 = vld [vmem:[%s7788 + $0x20] sm:$0x1]
      %v7888 = vld [vmem:[%s7788 + $0x28] sm:$0x1]
      %v7889 = vld [vmem:[%s7788 + $0x30] sm:$0xfe]
      %v7890 = vld [vmem:[%s7788 + $0x38] sm:$0xfe]
      %v7891 = vld [vmem:[%s7788 + $0x50] sm:$0x1]
      %v7892 = vld [vmem:[%s7788 + $0x58] sm:$0x1]
      %v7893 = vld [vmem:[%s7788 + $0x60] sm:$0xfe]
      %v7894 = vld [vmem:[%s7788 + $0x68] sm:$0xfe]
      %v7895 = vld [vmem:[%s7788 + $0x80] sm:$0x1]
      %v7896 = vld [vmem:[%s7788 + $0x88] sm:$0x1]
      %v7897 = vld [vmem:[%s7788 + $0x90] sm:$0xfe]
      %v7898 = vld [vmem:[%s7788 + $0x98] sm:$0xfe]
      %v7899 = vld [vmem:[%s7788 + $0xb0] sm:$0x1]
      %v7900 = vld [vmem:[%s7788 + $0xb8] sm:$0x1]
      %v7901 = vld [vmem:[%s7788 + $0xc0] sm:$0xfe]
      %v7902 = vld [vmem:[%s7788 + $0xc8] sm:$0xfe]
      %v7903 = vld [vmem:[%s7788 + $0xe0] sm:$0x1]
      %v7904 = vld [vmem:[%s7788 + $0xe8] sm:$0x1]
      %v7905 = vld [vmem:[%s7788 + $0xf0] sm:$0xfe]
      %v7906 = vld [vmem:[%s7788 + $0xf8] sm:$0xfe]
      %v7907 = vld [vmem:[%s7788 + $0x110] sm:$0x1]
      %v7908 = vld [vmem:[%s7788 + $0x118] sm:$0x1]
      %v7909 = vld [vmem:[%s7788 + $0x120] sm:$0xfe]
      %v7910 = vld [vmem:[%s7788 + $0x128] sm:$0xfe]
      %v7911 = vld [vmem:[%s7788 + $0x140] sm:$0x1]
      %v7912 = vld [vmem:[%s7788 + $0x148] sm:$0x1]
      %v7913 = vld [vmem:[%s7788 + $0x150] sm:$0xfe]
      %v7914 = vld [vmem:[%s7788 + $0x158] sm:$0xfe]
      %v7915 = vld [vmem:[%s7788 + $0x170] sm:$0x1]
      %v7916 = vld [vmem:[%s7788 + $0x178] sm:$0x1]
      %v7917 = vld [vmem:[%s7788 + $0x180] sm:$0xfe]
      %v7918 = vld [vmem:[%s7788 + $0x188] sm:$0xfe]
      %v7919 = vld [vmem:[%s7788 + $0x1a0] sm:$0x1]
      %v7920 = vld [vmem:[%s7788 + $0x1a8] sm:$0x1]
      %v7921 = vld [vmem:[%s7788 + $0x1b0] sm:$0xfe]
      %v7922 = vld [vmem:[%s7788 + $0x1b8] sm:$0xfe]
      %v7923 = vld [vmem:[%s7788 + $0x1d0] sm:$0x1]
      %v7924 = vld [vmem:[%s7788 + $0x1d8] sm:$0x1]
      %v7925 = vld [vmem:[%s7788 + $0x1e0] sm:$0xfe]
      %v7926 = vld [vmem:[%s7788 + $0x1e8] sm:$0xfe]
      %v7927 = vld [vmem:[%s7788 + $0x200] sm:$0x1]
      %v7928 = vld [vmem:[%s7788 + $0x208] sm:$0x1]
      %v7929 = vld [vmem:[%s7788 + $0x210] sm:$0xfe]
      %v7930 = vld [vmem:[%s7788 + $0x218] sm:$0xfe]
      %v7931 = vld [vmem:[%s7788 + $0x230] sm:$0x1]
      %v7932 = vld [vmem:[%s7788 + $0x238] sm:$0x1]
      %v7933 = vld [vmem:[%s7788 + $0x240] sm:$0xfe]
      %v7934 = vld [vmem:[%s7788 + $0x248] sm:$0xfe]
      %v7935 = vld [vmem:[%s7788 + $0x260] sm:$0x1]
      %v7936 = vld [vmem:[%s7788 + $0x268] sm:$0x1]
      %v7937 = vld [vmem:[%s7788 + $0x270] sm:$0xfe]
      %v7938 = vld [vmem:[%s7788 + $0x278] sm:$0xfe]
      %v7939 = vld [vmem:[%s7788 + $0x290] sm:$0x1]
      %v7940 = vld [vmem:[%s7788 + $0x298] sm:$0x1]
      %v7941 = vld [vmem:[%s7788 + $0x2a0] sm:$0xfe]
      %v7942 = vld [vmem:[%s7788 + $0x2a8] sm:$0xfe]
      %v7943 = vld [vmem:[%s7788 + $0x2c0] sm:$0x1]
      %v7944 = vld [vmem:[%s7788 + $0x2c8] sm:$0x1]
      %v7945 = vld [vmem:[%s7788 + $0x2d0] sm:$0xfe]
      %v7946 = vld [vmem:[%s7788 + $0x2d8] sm:$0xfe]
      %v7947 = vld [vmem:[%s7788 + $0x2f0] sm:$0x1]
      %v7948 = vld [vmem:[%s7788 + $0x2f8] sm:$0x1]
      %v7949 = vpack.c.bf16 %v7791, %v7885
      %v7950 = vpack.c.bf16 %v7792, %v7886
      %v7951 = vpack.c.bf16 %v7887, %v7887
      %v7952 = vpack.c.bf16 %v7888, %v7888
      %v7953 = vpack.c.bf16 %v7795, %v7889
      %v7954 = vpack.c.bf16 %v7796, %v7890
      %v7955 = vpack.c.bf16 %v7891, %v7891
      %v7956 = vpack.c.bf16 %v7892, %v7892
      %v7957 = vpack.c.bf16 %v7799, %v7893
      %v7958 = vpack.c.bf16 %v7800, %v7894
      %v7959 = vpack.c.bf16 %v7895, %v7895
      %v7960 = vpack.c.bf16 %v7896, %v7896
      %v7961 = vpack.c.bf16 %v7803, %v7897
      %v7962 = vpack.c.bf16 %v7804, %v7898
      %v7963 = vpack.c.bf16 %v7899, %v7899
      %v7964 = vpack.c.bf16 %v7900, %v7900
      %v7965 = vpack.c.bf16 %v7807, %v7901
      %v7966 = vpack.c.bf16 %v7808, %v7902
      %v7967 = vpack.c.bf16 %v7903, %v7903
      %v7968 = vpack.c.bf16 %v7904, %v7904
      %v7969 = vpack.c.bf16 %v7811, %v7905
      %v7970 = vpack.c.bf16 %v7812, %v7906
      %v7971 = vpack.c.bf16 %v7907, %v7907
      %v7972 = vpack.c.bf16 %v7908, %v7908
      %v7973 = vpack.c.bf16 %v7815, %v7909
      %v7974 = vpack.c.bf16 %v7816, %v7910
      %v7975 = vpack.c.bf16 %v7911, %v7911
      %v7976 = vpack.c.bf16 %v7912, %v7912
      %v7977 = vpack.c.bf16 %v7819, %v7913
      %v7978 = vpack.c.bf16 %v7820, %v7914
      %v7979 = vpack.c.bf16 %v7915, %v7915
      %v7980 = vpack.c.bf16 %v7916, %v7916
      %v7981 = vpack.c.bf16 %v7823, %v7917
      %v7982 = vpack.c.bf16 %v7824, %v7918
      %v7983 = vpack.c.bf16 %v7919, %v7919
      %v7984 = vpack.c.bf16 %v7920, %v7920
      %v7985 = vpack.c.bf16 %v7827, %v7921
      %v7986 = vpack.c.bf16 %v7828, %v7922
      %v7987 = vpack.c.bf16 %v7923, %v7923
      %v7988 = vpack.c.bf16 %v7924, %v7924
      %v7989 = vpack.c.bf16 %v7831, %v7925
      %v7990 = vpack.c.bf16 %v7832, %v7926
      %v7991 = vpack.c.bf16 %v7927, %v7927
      %v7992 = vpack.c.bf16 %v7928, %v7928
      %v7993 = vpack.c.bf16 %v7835, %v7929
      %v7994 = vpack.c.bf16 %v7836, %v7930
      %v7995 = vpack.c.bf16 %v7931, %v7931
      %v7996 = vpack.c.bf16 %v7932, %v7932
      %v7997 = vpack.c.bf16 %v7839, %v7933
      %v7998 = vpack.c.bf16 %v7840, %v7934
      %v7999 = vpack.c.bf16 %v7935, %v7935
      %v8000 = vpack.c.bf16 %v7936, %v7936
      %v8001 = vpack.c.bf16 %v7843, %v7937
      %v8002 = vpack.c.bf16 %v7844, %v7938
      %v8003 = vpack.c.bf16 %v7939, %v7939
      %v8004 = vpack.c.bf16 %v7940, %v7940
      %v8005 = vpack.c.bf16 %v7847, %v7941
      %v8006 = vpack.c.bf16 %v7848, %v7942
      %v8007 = vpack.c.bf16 %v7943, %v7943
      %v8008 = vpack.c.bf16 %v7944, %v7944
      %v8009 = vpack.c.bf16 %v7851, %v7945
      %v8010 = vpack.c.bf16 %v7852, %v7946
      %v8011 = vpack.c.bf16 %v7947, %v7947
      %v8012 = vpack.c.bf16 %v7948, %v7948
      %v8014 = vshrl.u32 %v7724, 16
      %v8016 = vshll.u32 %v7724, 16
      %v8018 = vrot.slane %v8016, 1
      %v8019 = vor.u32 %v8014, %v8018
      %v8021 = vshll.u32 %v7726, 16
      %v8023 = vrot.slane %v8021, 1
      %v8024 = vsel %vm1147, %v8019, %v8023
      %v8026 = vshrl.u32 %v7725, 16
      %v8028 = vshll.u32 %v7725, 16
      %v8030 = vrot.slane %v8028, 1
      %v8031 = vor.u32 %v8026, %v8030
      %v8033 = vshll.u32 %v7727, 16
      %v8035 = vrot.slane %v8033, 1
      %v8036 = vsel %vm1147, %v8031, %v8035
      %v8038 = vshrl.u32 %v7728, 16
      %v8040 = vshll.u32 %v7728, 16
      %v8042 = vrot.slane %v8040, 1
      %v8043 = vor.u32 %v8038, %v8042
      %v8045 = vshll.u32 %v7730, 16
      %v8047 = vrot.slane %v8045, 1
      %v8048 = vsel %vm1147, %v8043, %v8047
      %v8050 = vshrl.u32 %v7729, 16
      %v8052 = vshll.u32 %v7729, 16
      %v8054 = vrot.slane %v8052, 1
      %v8055 = vor.u32 %v8050, %v8054
      %v8057 = vshll.u32 %v7731, 16
      %v8059 = vrot.slane %v8057, 1
      %v8060 = vsel %vm1147, %v8055, %v8059
      %v8062 = vshrl.u32 %v7732, 16
      %v8064 = vshll.u32 %v7732, 16
      %v8066 = vrot.slane %v8064, 1
      %v8067 = vor.u32 %v8062, %v8066
      %v8069 = vshll.u32 %v7734, 16
      %v8071 = vrot.slane %v8069, 1
      %v8072 = vsel %vm1147, %v8067, %v8071
      %v8074 = vshrl.u32 %v7733, 16
      %v8076 = vshll.u32 %v7733, 16
      %v8078 = vrot.slane %v8076, 1
      %v8079 = vor.u32 %v8074, %v8078
      %v8081 = vshll.u32 %v7735, 16
      %v8083 = vrot.slane %v8081, 1
      %v8084 = vsel %vm1147, %v8079, %v8083
      %v8086 = vshrl.u32 %v7736, 16
      %v8088 = vshll.u32 %v7736, 16
      %v8090 = vrot.slane %v8088, 1
      %v8091 = vor.u32 %v8086, %v8090
      %v8093 = vshll.u32 %v7738, 16
      %v8095 = vrot.slane %v8093, 1
      %v8096 = vsel %vm1147, %v8091, %v8095
      %v8098 = vshrl.u32 %v7737, 16
      %v8100 = vshll.u32 %v7737, 16
      %v8102 = vrot.slane %v8100, 1
      %v8103 = vor.u32 %v8098, %v8102
      %v8105 = vshll.u32 %v7739, 16
      %v8107 = vrot.slane %v8105, 1
      %v8108 = vsel %vm1147, %v8103, %v8107
      %v8110 = vshrl.u32 %v7740, 16
      %v8112 = vshll.u32 %v7740, 16
      %v8114 = vrot.slane %v8112, 1
      %v8115 = vor.u32 %v8110, %v8114
      %v8117 = vshll.u32 %v7742, 16
      %v8119 = vrot.slane %v8117, 1
      %v8120 = vsel %vm1147, %v8115, %v8119
      %v8122 = vshrl.u32 %v7741, 16
      %v8124 = vshll.u32 %v7741, 16
      %v8126 = vrot.slane %v8124, 1
      %v8127 = vor.u32 %v8122, %v8126
      %v8129 = vshll.u32 %v7743, 16
      %v8131 = vrot.slane %v8129, 1
      %v8132 = vsel %vm1147, %v8127, %v8131
      %v8134 = vshrl.u32 %v7744, 16
      %v8136 = vshll.u32 %v7744, 16
      %v8138 = vrot.slane %v8136, 1
      %v8139 = vor.u32 %v8134, %v8138
      %v8141 = vshll.u32 %v7746, 16
      %v8143 = vrot.slane %v8141, 1
      %v8144 = vsel %vm1147, %v8139, %v8143
      %v8146 = vshrl.u32 %v7745, 16
      %v8148 = vshll.u32 %v7745, 16
      %v8150 = vrot.slane %v8148, 1
      %v8151 = vor.u32 %v8146, %v8150
      %v8153 = vshll.u32 %v7747, 16
      %v8155 = vrot.slane %v8153, 1
      %v8156 = vsel %vm1147, %v8151, %v8155
      %v8158 = vshrl.u32 %v7748, 16
      %v8160 = vshll.u32 %v7748, 16
      %v8162 = vrot.slane %v8160, 1
      %v8163 = vor.u32 %v8158, %v8162
      %v8165 = vshll.u32 %v7750, 16
      %v8167 = vrot.slane %v8165, 1
      %v8168 = vsel %vm1147, %v8163, %v8167
      %v8170 = vshrl.u32 %v7749, 16
      %v8172 = vshll.u32 %v7749, 16
      %v8174 = vrot.slane %v8172, 1
      %v8175 = vor.u32 %v8170, %v8174
      %v8177 = vshll.u32 %v7751, 16
      %v8179 = vrot.slane %v8177, 1
      %v8180 = vsel %vm1147, %v8175, %v8179
      %v8182 = vshrl.u32 %v7752, 16
      %v8184 = vshll.u32 %v7752, 16
      %v8186 = vrot.slane %v8184, 1
      %v8187 = vor.u32 %v8182, %v8186
      %v8189 = vshll.u32 %v7754, 16
      %v8191 = vrot.slane %v8189, 1
      %v8192 = vsel %vm1147, %v8187, %v8191
      %v8194 = vshrl.u32 %v7753, 16
      %v8196 = vshll.u32 %v7753, 16
      %v8198 = vrot.slane %v8196, 1
      %v8199 = vor.u32 %v8194, %v8198
      %v8201 = vshll.u32 %v7755, 16
      %v8203 = vrot.slane %v8201, 1
      %v8204 = vsel %vm1147, %v8199, %v8203
      %v8206 = vshrl.u32 %v7756, 16
      %v8208 = vshll.u32 %v7756, 16
      %v8210 = vrot.slane %v8208, 1
      %v8211 = vor.u32 %v8206, %v8210
      %v8213 = vshll.u32 %v7758, 16
      %v8215 = vrot.slane %v8213, 1
      %v8216 = vsel %vm1147, %v8211, %v8215
      %v8218 = vshrl.u32 %v7757, 16
      %v8220 = vshll.u32 %v7757, 16
      %v8222 = vrot.slane %v8220, 1
      %v8223 = vor.u32 %v8218, %v8222
      %v8225 = vshll.u32 %v7759, 16
      %v8227 = vrot.slane %v8225, 1
      %v8228 = vsel %vm1147, %v8223, %v8227
      %v8230 = vshrl.u32 %v7760, 16
      %v8232 = vshll.u32 %v7760, 16
      %v8234 = vrot.slane %v8232, 1
      %v8235 = vor.u32 %v8230, %v8234
      %v8237 = vshll.u32 %v7762, 16
      %v8239 = vrot.slane %v8237, 1
      %v8240 = vsel %vm1147, %v8235, %v8239
      %v8242 = vshrl.u32 %v7761, 16
      %v8244 = vshll.u32 %v7761, 16
      %v8246 = vrot.slane %v8244, 1
      %v8247 = vor.u32 %v8242, %v8246
      %v8249 = vshll.u32 %v7763, 16
      %v8251 = vrot.slane %v8249, 1
      %v8252 = vsel %vm1147, %v8247, %v8251
      %v8254 = vshrl.u32 %v7764, 16
      %v8256 = vshll.u32 %v7764, 16
      %v8258 = vrot.slane %v8256, 1
      %v8259 = vor.u32 %v8254, %v8258
      %v8261 = vshll.u32 %v7766, 16
      %v8263 = vrot.slane %v8261, 1
      %v8264 = vsel %vm1147, %v8259, %v8263
      %v8266 = vshrl.u32 %v7765, 16
      %v8268 = vshll.u32 %v7765, 16
      %v8270 = vrot.slane %v8268, 1
      %v8271 = vor.u32 %v8266, %v8270
      %v8273 = vshll.u32 %v7767, 16
      %v8275 = vrot.slane %v8273, 1
      %v8276 = vsel %vm1147, %v8271, %v8275
      %v8278 = vshrl.u32 %v7768, 16
      %v8280 = vshll.u32 %v7768, 16
      %v8282 = vrot.slane %v8280, 1
      %v8283 = vor.u32 %v8278, %v8282
      %v8285 = vshll.u32 %v7770, 16
      %v8287 = vrot.slane %v8285, 1
      %v8288 = vsel %vm1147, %v8283, %v8287
      %v8290 = vshrl.u32 %v7769, 16
      %v8292 = vshll.u32 %v7769, 16
      %v8294 = vrot.slane %v8292, 1
      %v8295 = vor.u32 %v8290, %v8294
      %v8297 = vshll.u32 %v7771, 16
      %v8299 = vrot.slane %v8297, 1
      %v8300 = vsel %vm1147, %v8295, %v8299
      %v8302 = vshrl.u32 %v7772, 16
      %v8304 = vshll.u32 %v7772, 16
      %v8306 = vrot.slane %v8304, 1
      %v8307 = vor.u32 %v8302, %v8306
      %v8309 = vshll.u32 %v7774, 16
      %v8311 = vrot.slane %v8309, 1
      %v8312 = vsel %vm1147, %v8307, %v8311
      %v8314 = vshrl.u32 %v7773, 16
      %v8316 = vshll.u32 %v7773, 16
      %v8318 = vrot.slane %v8316, 1
      %v8319 = vor.u32 %v8314, %v8318
      %v8321 = vshll.u32 %v7775, 16
      %v8323 = vrot.slane %v8321, 1
      %v8324 = vsel %vm1147, %v8319, %v8323
      %v8326 = vshrl.u32 %v7776, 16
      %v8328 = vshll.u32 %v7776, 16
      %v8330 = vrot.slane %v8328, 1
      %v8331 = vor.u32 %v8326, %v8330
      %v8333 = vshll.u32 %v7778, 16
      %v8335 = vrot.slane %v8333, 1
      %v8336 = vsel %vm1147, %v8331, %v8335
      %v8338 = vshrl.u32 %v7777, 16
      %v8340 = vshll.u32 %v7777, 16
      %v8342 = vrot.slane %v8340, 1
      %v8343 = vor.u32 %v8338, %v8342
      %v8345 = vshll.u32 %v7779, 16
      %v8347 = vrot.slane %v8345, 1
      %v8348 = vsel %vm1147, %v8343, %v8347
      %v8350 = vshrl.u32 %v7780, 16
      %v8352 = vshll.u32 %v7780, 16
      %v8354 = vrot.slane %v8352, 1
      %v8355 = vor.u32 %v8350, %v8354
      %v8357 = vshll.u32 %v7782, 16
      %v8359 = vrot.slane %v8357, 1
      %v8360 = vsel %vm1147, %v8355, %v8359
      %v8362 = vshrl.u32 %v7781, 16
      %v8364 = vshll.u32 %v7781, 16
      %v8366 = vrot.slane %v8364, 1
      %v8367 = vor.u32 %v8362, %v8366
      %v8369 = vshll.u32 %v7783, 16
      %v8371 = vrot.slane %v8369, 1
      %v8372 = vsel %vm1147, %v8367, %v8371
      %v8374 = vshrl.u32 %v7784, 16
      %v8376 = vshll.u32 %v7784, 16
      %v8378 = vrot.slane %v8376, 1
      %v8379 = vor.u32 %v8374, %v8378
      %v8381 = vshll.u32 %v7786, 16
      %v8383 = vrot.slane %v8381, 1
      %v8384 = vsel %vm1147, %v8379, %v8383
      %v8386 = vshrl.u32 %v7785, 16
      %v8388 = vshll.u32 %v7785, 16
      %v8390 = vrot.slane %v8388, 1
      %v8391 = vor.u32 %v8386, %v8390
      %v8393 = vshll.u32 %v7787, 16
      %v8395 = vrot.slane %v8393, 1
      %v8396 = vsel %vm1147, %v8391, %v8395
      %v8430 = vshrl.u32 %v7949, 16
      %v8432 = vshll.u32 %v7949, 16
      %v8434 = vrot.slane %v8432, 1
      %v8435 = vor.u32 %v8430, %v8434
      %v8437 = vshll.u32 %v7951, 16
      %v8439 = vrot.slane %v8437, 1
      %v8440 = vsel %vm1147, %v8435, %v8439
      %v8442 = vshrl.u32 %v7950, 16
      %v8444 = vshll.u32 %v7950, 16
      %v8446 = vrot.slane %v8444, 1
      %v8447 = vor.u32 %v8442, %v8446
      %v8449 = vshll.u32 %v7952, 16
      %v8451 = vrot.slane %v8449, 1
      %v8452 = vsel %vm1147, %v8447, %v8451
      %v8454 = vshrl.u32 %v7953, 16
      %v8456 = vshll.u32 %v7953, 16
      %v8458 = vrot.slane %v8456, 1
      %v8459 = vor.u32 %v8454, %v8458
      %v8461 = vshll.u32 %v7955, 16
      %v8463 = vrot.slane %v8461, 1
      %v8464 = vsel %vm1147, %v8459, %v8463
      %v8466 = vshrl.u32 %v7954, 16
      %v8468 = vshll.u32 %v7954, 16
      %v8470 = vrot.slane %v8468, 1
      %v8471 = vor.u32 %v8466, %v8470
      %v8473 = vshll.u32 %v7956, 16
      %v8475 = vrot.slane %v8473, 1
      %v8476 = vsel %vm1147, %v8471, %v8475
      %v8478 = vshrl.u32 %v7957, 16
      %v8480 = vshll.u32 %v7957, 16
      %v8482 = vrot.slane %v8480, 1
      %v8483 = vor.u32 %v8478, %v8482
      %v8485 = vshll.u32 %v7959, 16
      %v8487 = vrot.slane %v8485, 1
      %v8488 = vsel %vm1147, %v8483, %v8487
      %v8490 = vshrl.u32 %v7958, 16
      %v8492 = vshll.u32 %v7958, 16
      %v8494 = vrot.slane %v8492, 1
      %v8495 = vor.u32 %v8490, %v8494
      %v8497 = vshll.u32 %v7960, 16
      %v8499 = vrot.slane %v8497, 1
      %v8500 = vsel %vm1147, %v8495, %v8499
      %v8502 = vshrl.u32 %v7961, 16
      %v8504 = vshll.u32 %v7961, 16
      %v8506 = vrot.slane %v8504, 1
      %v8507 = vor.u32 %v8502, %v8506
      %v8509 = vshll.u32 %v7963, 16
      %v8511 = vrot.slane %v8509, 1
      %v8512 = vsel %vm1147, %v8507, %v8511
      %v8514 = vshrl.u32 %v7962, 16
      %v8516 = vshll.u32 %v7962, 16
      %v8518 = vrot.slane %v8516, 1
      %v8519 = vor.u32 %v8514, %v8518
      %v8521 = vshll.u32 %v7964, 16
      %v8523 = vrot.slane %v8521, 1
      %v8524 = vsel %vm1147, %v8519, %v8523
      %v8526 = vshrl.u32 %v7965, 16
      %v8528 = vshll.u32 %v7965, 16
      %v8530 = vrot.slane %v8528, 1
      %v8531 = vor.u32 %v8526, %v8530
      %v8533 = vshll.u32 %v7967, 16
      %v8535 = vrot.slane %v8533, 1
      %v8536 = vsel %vm1147, %v8531, %v8535
      %v8538 = vshrl.u32 %v7966, 16
      %v8540 = vshll.u32 %v7966, 16
      %v8542 = vrot.slane %v8540, 1
      %v8543 = vor.u32 %v8538, %v8542
      %v8545 = vshll.u32 %v7968, 16
      %v8547 = vrot.slane %v8545, 1
      %v8548 = vsel %vm1147, %v8543, %v8547
      %v8550 = vshrl.u32 %v7969, 16
      %v8552 = vshll.u32 %v7969, 16
      %v8554 = vrot.slane %v8552, 1
      %v8555 = vor.u32 %v8550, %v8554
      %v8557 = vshll.u32 %v7971, 16
      %v8559 = vrot.slane %v8557, 1
      %v8560 = vsel %vm1147, %v8555, %v8559
      %v8562 = vshrl.u32 %v7970, 16
      %v8564 = vshll.u32 %v7970, 16
      %v8566 = vrot.slane %v8564, 1
      %v8567 = vor.u32 %v8562, %v8566
      %v8569 = vshll.u32 %v7972, 16
      %v8571 = vrot.slane %v8569, 1
      %v8572 = vsel %vm1147, %v8567, %v8571
      %v8574 = vshrl.u32 %v7973, 16
      %v8576 = vshll.u32 %v7973, 16
      %v8578 = vrot.slane %v8576, 1
      %v8579 = vor.u32 %v8574, %v8578
      %v8581 = vshll.u32 %v7975, 16
      %v8583 = vrot.slane %v8581, 1
      %v8584 = vsel %vm1147, %v8579, %v8583
      %v8586 = vshrl.u32 %v7974, 16
      %v8588 = vshll.u32 %v7974, 16
      %v8590 = vrot.slane %v8588, 1
      %v8591 = vor.u32 %v8586, %v8590
      %v8593 = vshll.u32 %v7976, 16
      %v8595 = vrot.slane %v8593, 1
      %v8596 = vsel %vm1147, %v8591, %v8595
      %v8598 = vshrl.u32 %v7977, 16
      %v8600 = vshll.u32 %v7977, 16
      %v8602 = vrot.slane %v8600, 1
      %v8603 = vor.u32 %v8598, %v8602
      %v8605 = vshll.u32 %v7979, 16
      %v8607 = vrot.slane %v8605, 1
      %v8608 = vsel %vm1147, %v8603, %v8607
      %v8610 = vshrl.u32 %v7978, 16
      %v8612 = vshll.u32 %v7978, 16
      %v8614 = vrot.slane %v8612, 1
      %v8615 = vor.u32 %v8610, %v8614
      %v8617 = vshll.u32 %v7980, 16
      %v8619 = vrot.slane %v8617, 1
      %v8620 = vsel %vm1147, %v8615, %v8619
      %v8622 = vshrl.u32 %v7981, 16
      %v8624 = vshll.u32 %v7981, 16
      %v8626 = vrot.slane %v8624, 1
      %v8627 = vor.u32 %v8622, %v8626
      %v8629 = vshll.u32 %v7983, 16
      %v8631 = vrot.slane %v8629, 1
      %v8632 = vsel %vm1147, %v8627, %v8631
      %v8634 = vshrl.u32 %v7982, 16
      %v8636 = vshll.u32 %v7982, 16
      %v8638 = vrot.slane %v8636, 1
      %v8639 = vor.u32 %v8634, %v8638
      %v8641 = vshll.u32 %v7984, 16
      %v8643 = vrot.slane %v8641, 1
      %v8644 = vsel %vm1147, %v8639, %v8643
      %v8646 = vshrl.u32 %v7985, 16
      %v8648 = vshll.u32 %v7985, 16
      %v8650 = vrot.slane %v8648, 1
      %v8651 = vor.u32 %v8646, %v8650
      %v8653 = vshll.u32 %v7987, 16
      %v8655 = vrot.slane %v8653, 1
      %v8656 = vsel %vm1147, %v8651, %v8655
      %v8658 = vshrl.u32 %v7986, 16
      %v8660 = vshll.u32 %v7986, 16
      %v8662 = vrot.slane %v8660, 1
      %v8663 = vor.u32 %v8658, %v8662
      %v8665 = vshll.u32 %v7988, 16
      %v8667 = vrot.slane %v8665, 1
      %v8668 = vsel %vm1147, %v8663, %v8667
      %v8670 = vshrl.u32 %v7989, 16
      %v8672 = vshll.u32 %v7989, 16
      %v8674 = vrot.slane %v8672, 1
      %v8675 = vor.u32 %v8670, %v8674
      %v8677 = vshll.u32 %v7991, 16
      %v8679 = vrot.slane %v8677, 1
      %v8680 = vsel %vm1147, %v8675, %v8679
      %v8682 = vshrl.u32 %v7990, 16
      %v8684 = vshll.u32 %v7990, 16
      %v8686 = vrot.slane %v8684, 1
      %v8687 = vor.u32 %v8682, %v8686
      %v8689 = vshll.u32 %v7992, 16
      %v8691 = vrot.slane %v8689, 1
      %v8692 = vsel %vm1147, %v8687, %v8691
      %v8694 = vshrl.u32 %v7993, 16
      %v8696 = vshll.u32 %v7993, 16
      %v8698 = vrot.slane %v8696, 1
      %v8699 = vor.u32 %v8694, %v8698
      %v8701 = vshll.u32 %v7995, 16
      %v8703 = vrot.slane %v8701, 1
      %v8704 = vsel %vm1147, %v8699, %v8703
      %v8706 = vshrl.u32 %v7994, 16
      %v8708 = vshll.u32 %v7994, 16
      %v8710 = vrot.slane %v8708, 1
      %v8711 = vor.u32 %v8706, %v8710
      %v8713 = vshll.u32 %v7996, 16
      %v8715 = vrot.slane %v8713, 1
      %v8716 = vsel %vm1147, %v8711, %v8715
      %v8718 = vshrl.u32 %v7997, 16
      %v8720 = vshll.u32 %v7997, 16
      %v8722 = vrot.slane %v8720, 1
      %v8723 = vor.u32 %v8718, %v8722
      %v8725 = vshll.u32 %v7999, 16
      %v8727 = vrot.slane %v8725, 1
      %v8728 = vsel %vm1147, %v8723, %v8727
      %v8730 = vshrl.u32 %v7998, 16
      %v8732 = vshll.u32 %v7998, 16
      %v8734 = vrot.slane %v8732, 1
      %v8735 = vor.u32 %v8730, %v8734
      %v8737 = vshll.u32 %v8000, 16
      %v8739 = vrot.slane %v8737, 1
      %v8740 = vsel %vm1147, %v8735, %v8739
      %v8742 = vshrl.u32 %v8001, 16
      %v8744 = vshll.u32 %v8001, 16
      %v8746 = vrot.slane %v8744, 1
      %v8747 = vor.u32 %v8742, %v8746
      %v8749 = vshll.u32 %v8003, 16
      %v8751 = vrot.slane %v8749, 1
      %v8752 = vsel %vm1147, %v8747, %v8751
      %v8754 = vshrl.u32 %v8002, 16
      %v8756 = vshll.u32 %v8002, 16
      %v8758 = vrot.slane %v8756, 1
      %v8759 = vor.u32 %v8754, %v8758
      %v8761 = vshll.u32 %v8004, 16
      %v8763 = vrot.slane %v8761, 1
      %v8764 = vsel %vm1147, %v8759, %v8763
      %v8766 = vshrl.u32 %v8005, 16
      %v8768 = vshll.u32 %v8005, 16
      %v8770 = vrot.slane %v8768, 1
      %v8771 = vor.u32 %v8766, %v8770
      %v8773 = vshll.u32 %v8007, 16
      %v8775 = vrot.slane %v8773, 1
      %v8776 = vsel %vm1147, %v8771, %v8775
      %v8778 = vshrl.u32 %v8006, 16
      %v8780 = vshll.u32 %v8006, 16
      %v8782 = vrot.slane %v8780, 1
      %v8783 = vor.u32 %v8778, %v8782
      %v8785 = vshll.u32 %v8008, 16
      %v8787 = vrot.slane %v8785, 1
      %v8788 = vsel %vm1147, %v8783, %v8787
      %v8790 = vshrl.u32 %v8009, 16
      %v8792 = vshll.u32 %v8009, 16
      %v8794 = vrot.slane %v8792, 1
      %v8795 = vor.u32 %v8790, %v8794
      %v8797 = vshll.u32 %v8011, 16
      %v8799 = vrot.slane %v8797, 1
      %v8800 = vsel %vm1147, %v8795, %v8799
      %v8802 = vshrl.u32 %v8010, 16
      %v8804 = vshll.u32 %v8010, 16
      %v8806 = vrot.slane %v8804, 1
      %v8807 = vor.u32 %v8802, %v8806
      %v8809 = vshll.u32 %v8012, 16
      %v8811 = vrot.slane %v8809, 1
      %v8812 = vsel %vm1147, %v8807, %v8811
      %s8845 = scalar_lea.vmem %s1, 1024
      %v8846 = vld [vmem:[%s8845] sm:$0xf]
      %v8847 = vld [vmem:[%s8845 + $0x4] sm:$0xf]
      %v8848 = vld [vmem:[%s8845 + $0x8] sm:$0xf]
      %v8849 = vld [vmem:[%s8845 + $0xc] sm:$0xf]
      %v8850 = vld [vmem:[%s8845 + $0x10] sm:$0xf]
      %v8851 = vld [vmem:[%s8845 + $0x14] sm:$0xf]
      %v8852 = vld [vmem:[%s8845 + $0x18] sm:$0xf]
      %v8853 = vld [vmem:[%s8845 + $0x1c] sm:$0xf]
      %v8854 = vld [vmem:[%s8845 + $0x20] sm:$0xf]
      %v8855 = vld [vmem:[%s8845 + $0x24] sm:$0xf]
      %v8856 = vld [vmem:[%s8845 + $0x28] sm:$0xf]
      %v8857 = vld [vmem:[%s8845 + $0x2c] sm:$0xf]
      %v8858 = vld [vmem:[%s8845 + $0x30] sm:$0xf]
      %v8859 = vld [vmem:[%s8845 + $0x34] sm:$0xf]
      %v8860 = vld [vmem:[%s8845 + $0x38] sm:$0xf]
      %v8861 = vld [vmem:[%s8845 + $0x3c] sm:$0xf]
      %v8862 = vld [vmem:[%s8845 + $0x40] sm:$0xf]
      %v8863 = vld [vmem:[%s8845 + $0x44] sm:$0xf]
      %v8864 = vld [vmem:[%s8845 + $0x48] sm:$0xf]
      %v8865 = vld [vmem:[%s8845 + $0x4c] sm:$0xf]
      %v8866 = vld [vmem:[%s8845 + $0x50] sm:$0xf]
      %v8867 = vld [vmem:[%s8845 + $0x54] sm:$0xf]
      %v8868 = vld [vmem:[%s8845 + $0x58] sm:$0xf]
      %v8869 = vld [vmem:[%s8845 + $0x5c] sm:$0xf]
      %v8870 = vld [vmem:[%s8845 + $0x60] sm:$0xf]
      %v8871 = vld [vmem:[%s8845 + $0x64] sm:$0xf]
      %v8872 = vld [vmem:[%s8845 + $0x68] sm:$0xf]
      %v8873 = vld [vmem:[%s8845 + $0x6c] sm:$0xf]
      %v8874 = vld [vmem:[%s8845 + $0x70] sm:$0xf]
      %v8875 = vld [vmem:[%s8845 + $0x74] sm:$0xf]
      %v8876 = vld [vmem:[%s8845 + $0x78] sm:$0xf]
      %v8877 = vld [vmem:[%s8845 + $0x7c] sm:$0xf]
      %v8878 = vld [vmem:[%s8845 + $0x80] sm:$0xf]
      %v8879 = vld [vmem:[%s8845 + $0x84] sm:$0xf]
      %v8880 = vld [vmem:[%s8845 + $0x88] sm:$0xf]
      %v8881 = vld [vmem:[%s8845 + $0x8c] sm:$0xf]
      %v8882 = vld [vmem:[%s8845 + $0x90] sm:$0xf]
      %v8883 = vld [vmem:[%s8845 + $0x94] sm:$0xf]
      %v8884 = vld [vmem:[%s8845 + $0x98] sm:$0xf]
      %v8885 = vld [vmem:[%s8845 + $0x9c] sm:$0xf]
      %v8886 = vld [vmem:[%s8845 + $0xa0] sm:$0xf]
      %v8887 = vld [vmem:[%s8845 + $0xa4] sm:$0xf]
      %v8888 = vld [vmem:[%s8845 + $0xa8] sm:$0xf]
      %v8889 = vld [vmem:[%s8845 + $0xac] sm:$0xf]
      %v8890 = vld [vmem:[%s8845 + $0xb0] sm:$0xf]
      %v8891 = vld [vmem:[%s8845 + $0xb4] sm:$0xf]
      %v8892 = vld [vmem:[%s8845 + $0xb8] sm:$0xf]
      %v8893 = vld [vmem:[%s8845 + $0xbc] sm:$0xf]
      %v8894 = vld [vmem:[%s8845 + $0xc0] sm:$0xf]
      %v8895 = vld [vmem:[%s8845 + $0xc4] sm:$0xf]
      %v8896 = vld [vmem:[%s8845 + $0xc8] sm:$0xf]
      %v8897 = vld [vmem:[%s8845 + $0xcc] sm:$0xf]
      %v8898 = vld [vmem:[%s8845 + $0xd0] sm:$0xf]
      %v8899 = vld [vmem:[%s8845 + $0xd4] sm:$0xf]
      %v8900 = vld [vmem:[%s8845 + $0xd8] sm:$0xf]
      %v8901 = vld [vmem:[%s8845 + $0xdc] sm:$0xf]
      %v8902 = vld [vmem:[%s8845 + $0xe0] sm:$0xf]
      %v8903 = vld [vmem:[%s8845 + $0xe4] sm:$0xf]
      %v8904 = vld [vmem:[%s8845 + $0xe8] sm:$0xf]
      %v8905 = vld [vmem:[%s8845 + $0xec] sm:$0xf]
      %v8906 = vld [vmem:[%s8845 + $0xf0] sm:$0xf]
      %v8907 = vld [vmem:[%s8845 + $0xf4] sm:$0xf]
      %v8908 = vld [vmem:[%s8845 + $0xf8] sm:$0xf]
      %v8909 = vld [vmem:[%s8845 + $0xfc] sm:$0xf]
      %v8910 = vld [vmem:[%s8845 + $0x100] sm:$0xf]
      %v8911 = vld [vmem:[%s8845 + $0x104] sm:$0xf]
      %v8912 = vld [vmem:[%s8845 + $0x108] sm:$0xf]
      %v8913 = vld [vmem:[%s8845 + $0x10c] sm:$0xf]
      %v8914 = vld [vmem:[%s8845 + $0x110] sm:$0xf]
      %v8915 = vld [vmem:[%s8845 + $0x114] sm:$0xf]
      %v8916 = vld [vmem:[%s8845 + $0x118] sm:$0xf]
      %v8917 = vld [vmem:[%s8845 + $0x11c] sm:$0xf]
      %v8918 = vld [vmem:[%s8845 + $0x120] sm:$0xf]
      %v8919 = vld [vmem:[%s8845 + $0x124] sm:$0xf]
      %v8920 = vld [vmem:[%s8845 + $0x128] sm:$0xf]
      %v8921 = vld [vmem:[%s8845 + $0x12c] sm:$0xf]
      %v8922 = vld [vmem:[%s8845 + $0x130] sm:$0xf]
      %v8923 = vld [vmem:[%s8845 + $0x134] sm:$0xf]
      %v8924 = vld [vmem:[%s8845 + $0x138] sm:$0xf]
      %v8925 = vld [vmem:[%s8845 + $0x13c] sm:$0xf]
      %v8926 = vld [vmem:[%s8845 + $0x140] sm:$0xf]
      %v8927 = vld [vmem:[%s8845 + $0x144] sm:$0xf]
      %v8928 = vld [vmem:[%s8845 + $0x148] sm:$0xf]
      %v8929 = vld [vmem:[%s8845 + $0x14c] sm:$0xf]
      %v8930 = vld [vmem:[%s8845 + $0x150] sm:$0xf]
      %v8931 = vld [vmem:[%s8845 + $0x154] sm:$0xf]
      %v8932 = vld [vmem:[%s8845 + $0x158] sm:$0xf]
      %v8933 = vld [vmem:[%s8845 + $0x15c] sm:$0xf]
      %v8934 = vld [vmem:[%s8845 + $0x160] sm:$0xf]
      %v8935 = vld [vmem:[%s8845 + $0x164] sm:$0xf]
      %v8936 = vld [vmem:[%s8845 + $0x168] sm:$0xf]
      %v8937 = vld [vmem:[%s8845 + $0x16c] sm:$0xf]
      %v8938 = vld [vmem:[%s8845 + $0x170] sm:$0xf]
      %v8939 = vld [vmem:[%s8845 + $0x174] sm:$0xf]
      %v8940 = vld [vmem:[%s8845 + $0x178] sm:$0xf]
      %v8941 = vld [vmem:[%s8845 + $0x17c] sm:$0xf]
      %v8942 = vld [vmem:[%s8845 + $0x180] sm:$0xf]
      %v8943 = vld [vmem:[%s8845 + $0x184] sm:$0xf]
      %v8944 = vld [vmem:[%s8845 + $0x188] sm:$0xf]
      %v8945 = vld [vmem:[%s8845 + $0x18c] sm:$0xf]
      %v8946 = vld [vmem:[%s8845 + $0x190] sm:$0xf]
      %v8947 = vld [vmem:[%s8845 + $0x194] sm:$0xf]
      %v8948 = vld [vmem:[%s8845 + $0x198] sm:$0xf]
      %v8949 = vld [vmem:[%s8845 + $0x19c] sm:$0xf]
      %v8950 = vld [vmem:[%s8845 + $0x1a0] sm:$0xf]
      %v8951 = vld [vmem:[%s8845 + $0x1a4] sm:$0xf]
      %v8952 = vld [vmem:[%s8845 + $0x1a8] sm:$0xf]
      %v8953 = vld [vmem:[%s8845 + $0x1ac] sm:$0xf]
      %v8954 = vld [vmem:[%s8845 + $0x1b0] sm:$0xf]
      %v8955 = vld [vmem:[%s8845 + $0x1b4] sm:$0xf]
      %v8956 = vld [vmem:[%s8845 + $0x1b8] sm:$0xf]
      %v8957 = vld [vmem:[%s8845 + $0x1bc] sm:$0xf]
      %v8958 = vld [vmem:[%s8845 + $0x1c0] sm:$0xf]
      %v8959 = vld [vmem:[%s8845 + $0x1c4] sm:$0xf]
      %v8960 = vld [vmem:[%s8845 + $0x1c8] sm:$0xf]
      %v8961 = vld [vmem:[%s8845 + $0x1cc] sm:$0xf]
      %v8962 = vld [vmem:[%s8845 + $0x1d0] sm:$0xf]
      %v8963 = vld [vmem:[%s8845 + $0x1d4] sm:$0xf]
      %v8964 = vld [vmem:[%s8845 + $0x1d8] sm:$0xf]
      %v8965 = vld [vmem:[%s8845 + $0x1dc] sm:$0xf]
      %v8966 = vld [vmem:[%s8845 + $0x1e0] sm:$0xf]
      %v8967 = vld [vmem:[%s8845 + $0x1e4] sm:$0xf]
      %v8968 = vld [vmem:[%s8845 + $0x1e8] sm:$0xf]
      %v8969 = vld [vmem:[%s8845 + $0x1ec] sm:$0xf]
      %v8970 = vld [vmem:[%s8845 + $0x1f0] sm:$0xf]
      %v8971 = vld [vmem:[%s8845 + $0x1f4] sm:$0xf]
      %v8972 = vld [vmem:[%s8845 + $0x1f8] sm:$0xf]
      %v8973 = vld [vmem:[%s8845 + $0x1fc] sm:$0xf]
      %v9102 = vunpack.c.l.b16 %v8846
      %v9103 = vunpack.c.l.b16 %v8847
      %v9104 = vunpack.c.l.b16 %v8848
      %v9105 = vunpack.c.l.b16 %v8849
      %v9106 = vunpack.c.l.b16 %v8850
      %v9107 = vunpack.c.l.b16 %v8851
      %v9108 = vunpack.c.l.b16 %v8852
      %v9109 = vunpack.c.l.b16 %v8853
      %v9110 = vunpack.c.l.b16 %v8854
      %v9111 = vunpack.c.l.b16 %v8855
      %v9112 = vunpack.c.l.b16 %v8856
      %v9113 = vunpack.c.l.b16 %v8857
      %v9114 = vunpack.c.l.b16 %v8858
      %v9115 = vunpack.c.l.b16 %v8859
      %v9116 = vunpack.c.l.b16 %v8860
      %v9117 = vunpack.c.l.b16 %v8861
      %v9118 = vunpack.c.l.b16 %v8862
      %v9119 = vunpack.c.l.b16 %v8863
      %v9120 = vunpack.c.l.b16 %v8864
      %v9121 = vunpack.c.l.b16 %v8865
      %v9122 = vunpack.c.l.b16 %v8866
      %v9123 = vunpack.c.l.b16 %v8867
      %v9124 = vunpack.c.l.b16 %v8868
      %v9125 = vunpack.c.l.b16 %v8869
      %v9126 = vunpack.c.l.b16 %v8870
      %v9127 = vunpack.c.l.b16 %v8871
      %v9128 = vunpack.c.l.b16 %v8872
      %v9129 = vunpack.c.l.b16 %v8873
      %v9130 = vunpack.c.l.b16 %v8874
      %v9131 = vunpack.c.l.b16 %v8875
      %v9132 = vunpack.c.l.b16 %v8876
      %v9133 = vunpack.c.l.b16 %v8877
      %v9134 = vunpack.c.l.b16 %v8878
      %v9135 = vunpack.c.l.b16 %v8879
      %v9136 = vunpack.c.l.b16 %v8880
      %v9137 = vunpack.c.l.b16 %v8881
      %v9138 = vunpack.c.l.b16 %v8882
      %v9139 = vunpack.c.l.b16 %v8883
      %v9140 = vunpack.c.l.b16 %v8884
      %v9141 = vunpack.c.l.b16 %v8885
      %v9142 = vunpack.c.l.b16 %v8886
      %v9143 = vunpack.c.l.b16 %v8887
      %v9144 = vunpack.c.l.b16 %v8888
      %v9145 = vunpack.c.l.b16 %v8889
      %v9146 = vunpack.c.l.b16 %v8890
      %v9147 = vunpack.c.l.b16 %v8891
      %v9148 = vunpack.c.l.b16 %v8892
      %v9149 = vunpack.c.l.b16 %v8893
      %v9150 = vunpack.c.l.b16 %v8894
      %v9151 = vunpack.c.l.b16 %v8895
      %v9152 = vunpack.c.l.b16 %v8896
      %v9153 = vunpack.c.l.b16 %v8897
      %v9154 = vunpack.c.l.b16 %v8898
      %v9155 = vunpack.c.l.b16 %v8899
      %v9156 = vunpack.c.l.b16 %v8900
      %v9157 = vunpack.c.l.b16 %v8901
      %v9158 = vunpack.c.l.b16 %v8902
      %v9159 = vunpack.c.l.b16 %v8903
      %v9160 = vunpack.c.l.b16 %v8904
      %v9161 = vunpack.c.l.b16 %v8905
      %v9162 = vunpack.c.l.b16 %v8906
      %v9163 = vunpack.c.l.b16 %v8907
      %v9164 = vunpack.c.l.b16 %v8908
      %v9165 = vunpack.c.l.b16 %v8909
      %v9166 = vunpack.c.l.b16 %v8910
      %v9167 = vunpack.c.l.b16 %v8911
      %v9168 = vunpack.c.l.b16 %v8912
      %v9169 = vunpack.c.l.b16 %v8913
      %v9170 = vunpack.c.l.b16 %v8914
      %v9171 = vunpack.c.l.b16 %v8915
      %v9172 = vunpack.c.l.b16 %v8916
      %v9173 = vunpack.c.l.b16 %v8917
      %v9174 = vunpack.c.l.b16 %v8918
      %v9175 = vunpack.c.l.b16 %v8919
      %v9176 = vunpack.c.l.b16 %v8920
      %v9177 = vunpack.c.l.b16 %v8921
      %v9178 = vunpack.c.l.b16 %v8922
      %v9179 = vunpack.c.l.b16 %v8923
      %v9180 = vunpack.c.l.b16 %v8924
      %v9181 = vunpack.c.l.b16 %v8925
      %v9182 = vunpack.c.l.b16 %v8926
      %v9183 = vunpack.c.l.b16 %v8927
      %v9184 = vunpack.c.l.b16 %v8928
      %v9185 = vunpack.c.l.b16 %v8929
      %v9186 = vunpack.c.l.b16 %v8930
      %v9187 = vunpack.c.l.b16 %v8931
      %v9188 = vunpack.c.l.b16 %v8932
      %v9189 = vunpack.c.l.b16 %v8933
      %v9190 = vunpack.c.l.b16 %v8934
      %v9191 = vunpack.c.l.b16 %v8935
      %v9192 = vunpack.c.l.b16 %v8936
      %v9193 = vunpack.c.l.b16 %v8937
      %v9194 = vunpack.c.l.b16 %v8938
      %v9195 = vunpack.c.l.b16 %v8939
      %v9196 = vunpack.c.l.b16 %v8940
      %v9197 = vunpack.c.l.b16 %v8941
      %v9198 = vunpack.c.l.b16 %v8942
      %v9199 = vunpack.c.l.b16 %v8943
      %v9200 = vunpack.c.l.b16 %v8944
      %v9201 = vunpack.c.l.b16 %v8945
      %v9202 = vunpack.c.l.b16 %v8946
      %v9203 = vunpack.c.l.b16 %v8947
      %v9204 = vunpack.c.l.b16 %v8948
      %v9205 = vunpack.c.l.b16 %v8949
      %v9206 = vunpack.c.l.b16 %v8950
      %v9207 = vunpack.c.l.b16 %v8951
      %v9208 = vunpack.c.l.b16 %v8952
      %v9209 = vunpack.c.l.b16 %v8953
      %v9210 = vunpack.c.l.b16 %v8954
      %v9211 = vunpack.c.l.b16 %v8955
      %v9212 = vunpack.c.l.b16 %v8956
      %v9213 = vunpack.c.l.b16 %v8957
      %v9214 = vunpack.c.l.b16 %v8958
      %v9215 = vunpack.c.l.b16 %v8959
      %v9216 = vunpack.c.l.b16 %v8960
      %v9217 = vunpack.c.l.b16 %v8961
      %v9218 = vunpack.c.l.b16 %v8962
      %v9219 = vunpack.c.l.b16 %v8963
      %v9220 = vunpack.c.l.b16 %v8964
      %v9221 = vunpack.c.l.b16 %v8965
      %v9222 = vunpack.c.l.b16 %v8966
      %v9223 = vunpack.c.l.b16 %v8967
      %v9224 = vunpack.c.l.b16 %v8968
      %v9225 = vunpack.c.l.b16 %v8969
      %v9226 = vunpack.c.l.b16 %v8970
      %v9227 = vunpack.c.l.b16 %v8971
      %v9228 = vunpack.c.l.b16 %v8972
      %v9229 = vunpack.c.l.b16 %v8973
      %v9230 = vpack.c.b16 %v9103, %v9102
      %v9231 = vpack.c.b16 %v9105, %v9104
      %v9232 = vpack.c.b16 %v9107, %v9106
      %v9233 = vpack.c.b16 %v9109, %v9108
      %v9234 = vpack.c.b16 %v9111, %v9110
      %v9235 = vpack.c.b16 %v9113, %v9112
      %v9236 = vpack.c.b16 %v9115, %v9114
      %v9237 = vpack.c.b16 %v9117, %v9116
      %v9238 = vpack.c.b16 %v9119, %v9118
      %v9239 = vpack.c.b16 %v9121, %v9120
      %v9240 = vpack.c.b16 %v9123, %v9122
      %v9241 = vpack.c.b16 %v9125, %v9124
      %v9242 = vpack.c.b16 %v9127, %v9126
      %v9243 = vpack.c.b16 %v9129, %v9128
      %v9244 = vpack.c.b16 %v9131, %v9130
      %v9245 = vpack.c.b16 %v9133, %v9132
      %v9246 = vpack.c.b16 %v9135, %v9134
      %v9247 = vpack.c.b16 %v9137, %v9136
      %v9248 = vpack.c.b16 %v9139, %v9138
      %v9249 = vpack.c.b16 %v9141, %v9140
      %v9250 = vpack.c.b16 %v9143, %v9142
      %v9251 = vpack.c.b16 %v9145, %v9144
      %v9252 = vpack.c.b16 %v9147, %v9146
      %v9253 = vpack.c.b16 %v9149, %v9148
      %v9254 = vpack.c.b16 %v9151, %v9150
      %v9255 = vpack.c.b16 %v9153, %v9152
      %v9256 = vpack.c.b16 %v9155, %v9154
      %v9257 = vpack.c.b16 %v9157, %v9156
      %v9258 = vpack.c.b16 %v9159, %v9158
      %v9259 = vpack.c.b16 %v9161, %v9160
      %v9260 = vpack.c.b16 %v9163, %v9162
      %v9261 = vpack.c.b16 %v9165, %v9164
      %v9262 = vpack.c.b16 %v9167, %v9166
      %v9263 = vpack.c.b16 %v9169, %v9168
      %v9264 = vpack.c.b16 %v9171, %v9170
      %v9265 = vpack.c.b16 %v9173, %v9172
      %v9266 = vpack.c.b16 %v9175, %v9174
      %v9267 = vpack.c.b16 %v9177, %v9176
      %v9268 = vpack.c.b16 %v9179, %v9178
      %v9269 = vpack.c.b16 %v9181, %v9180
      %v9270 = vpack.c.b16 %v9183, %v9182
      %v9271 = vpack.c.b16 %v9185, %v9184
      %v9272 = vpack.c.b16 %v9187, %v9186
      %v9273 = vpack.c.b16 %v9189, %v9188
      %v9274 = vpack.c.b16 %v9191, %v9190
      %v9275 = vpack.c.b16 %v9193, %v9192
      %v9276 = vpack.c.b16 %v9195, %v9194
      %v9277 = vpack.c.b16 %v9197, %v9196
      %v9278 = vpack.c.b16 %v9199, %v9198
      %v9279 = vpack.c.b16 %v9201, %v9200
      %v9280 = vpack.c.b16 %v9203, %v9202
      %v9281 = vpack.c.b16 %v9205, %v9204
      %v9282 = vpack.c.b16 %v9207, %v9206
      %v9283 = vpack.c.b16 %v9209, %v9208
      %v9284 = vpack.c.b16 %v9211, %v9210
      %v9285 = vpack.c.b16 %v9213, %v9212
      %v9286 = vpack.c.b16 %v9215, %v9214
      %v9287 = vpack.c.b16 %v9217, %v9216
      %v9288 = vpack.c.b16 %v9219, %v9218
      %v9289 = vpack.c.b16 %v9221, %v9220
      %v9290 = vpack.c.b16 %v9223, %v9222
      %v9291 = vpack.c.b16 %v9225, %v9224
      %v9292 = vpack.c.b16 %v9227, %v9226
      %v9293 = vpack.c.b16 %v9229, %v9228
      %9358 = vmatprep.subr.bf16.mxu0 0
      %9359 = vmatpush1.bf16.msra.mxu0 %v9237
      %9360 = vmatprep.subr.bf16.mxu0 0
      %9361 = vmatpush1.bf16.msra.mxu0 %v9236
      %9362 = vmatprep.subr.bf16.mxu0 0
      %9363 = vmatpush1.bf16.msra.mxu0 %v9235
      %9364 = vmatprep.subr.bf16.mxu0 0
      %9365 = vmatpush1.bf16.msra.mxu0 %v9234
      %9366 = vmatprep.subr.bf16.mxu0 0
      %9367 = vmatpush1.bf16.msra.mxu0 %v9233
      %9368 = vmatprep.subr.bf16.mxu0 0
      %9369 = vmatpush1.bf16.msra.mxu0 %v9232
      %9370 = vmatprep.subr.bf16.mxu0 0
      %9371 = vmatpush1.bf16.msra.mxu0 %v9231
      %9372 = vmatprep.subr.bf16.mxu0 0
      %9373 = vmatpush1.bf16.msra.mxu0 %v9230
      %9374 = vmatprep.subr.bf16.mxu0 0
      %9375 = vmatpush2.bf16.msra.mxu0 %v9245
      %9376 = vmatprep.subr.bf16.mxu0 0
      %9377 = vmatpush2.bf16.msra.mxu0 %v9244
      %9378 = vmatprep.subr.bf16.mxu0 0
      %9379 = vmatpush2.bf16.msra.mxu0 %v9243
      %9380 = vmatprep.subr.bf16.mxu0 0
      %9381 = vmatpush2.bf16.msra.mxu0 %v9242
      %9382 = vmatprep.subr.bf16.mxu0 0
      %9383 = vmatpush2.bf16.msra.mxu0 %v9241
      %9384 = vmatprep.subr.bf16.mxu0 0
      %9385 = vmatpush2.bf16.msra.mxu0 %v9240
      %9386 = vmatprep.subr.bf16.mxu0 0
      %9387 = vmatpush2.bf16.msra.mxu0 %v9239
      %9388 = vmatprep.subr.bf16.mxu0 0
      %9389 = vmatpush2.bf16.msra.mxu0 %v9238
      %9390 = vmatprep.mubr.bf16.mxu0 %v7629
      %9391 = vmatmul.mubr.bf16.gmra.mxu0 %v7628
      %v9392 = vpop.f32.mrf.mxu0
      %v9393 = vadd.f32 %v2112, %v9392
      %v9394 = vpop.f32.mrf.mxu0
      %v9395 = vpop.f32.mrf.mxu0
      %v9396 = vadd.f32 %v2112, %v9395
      %v9397 = vpop.f32.mrf.mxu0
      %9398 = vmatprep.mubr.bf16.mxu0 %v7631
      %9399 = vmatmul.mubr.bf16.gmra.mxu0 %v7630
      %v9400 = vpop.f32.mrf.mxu0
      %v9401 = vadd.f32 %v2112, %v9400
      %v9402 = vpop.f32.mrf.mxu0
      %v9403 = vpop.f32.mrf.mxu0
      %v9404 = vadd.f32 %v2112, %v9403
      %v9405 = vpop.f32.mrf.mxu0
      %9406 = vmatprep.mubr.bf16.mxu0 %v7633
      %9407 = vmatmul.mubr.bf16.gmra.mxu0 %v7632
      %v9408 = vpop.f32.mrf.mxu0
      %v9409 = vadd.f32 %v2112, %v9408
      %v9410 = vpop.f32.mrf.mxu0
      %v9411 = vpop.f32.mrf.mxu0
      %v9412 = vadd.f32 %v2112, %v9411
      %v9413 = vpop.f32.mrf.mxu0
      %9414 = vmatprep.mubr.bf16.mxu0 %v7635
      %9415 = vmatmul.mubr.bf16.gmra.mxu0 %v7634
      %v9416 = vpop.f32.mrf.mxu0
      %v9417 = vadd.f32 %v2112, %v9416
      %v9418 = vpop.f32.mrf.mxu0
      %v9419 = vpop.f32.mrf.mxu0
      %v9420 = vadd.f32 %v2112, %v9419
      %v9421 = vpop.f32.mrf.mxu0
      %9422 = vmatprep.mubr.bf16.mxu0 %v7637
      %9423 = vmatmul.mubr.bf16.gmra.mxu0 %v7636
      %v9424 = vpop.f32.mrf.mxu0
      %v9425 = vadd.f32 %v2112, %v9424
      %v9426 = vpop.f32.mrf.mxu0
      %v9427 = vpop.f32.mrf.mxu0
      %v9428 = vadd.f32 %v2112, %v9427
      %v9429 = vpop.f32.mrf.mxu0
      %9430 = vmatprep.mubr.bf16.mxu0 %v7639
      %9431 = vmatmul.mubr.bf16.gmra.mxu0 %v7638
      %v9432 = vpop.f32.mrf.mxu0
      %v9433 = vadd.f32 %v2112, %v9432
      %v9434 = vpop.f32.mrf.mxu0
      %v9435 = vpop.f32.mrf.mxu0
      %v9436 = vadd.f32 %v2112, %v9435
      %v9437 = vpop.f32.mrf.mxu0
      %9438 = vmatprep.mubr.bf16.mxu0 %v7641
      %9439 = vmatmul.mubr.bf16.gmra.mxu0 %v7640
      %v9440 = vpop.f32.mrf.mxu0
      %v9441 = vadd.f32 %v2112, %v9440
      %v9442 = vpop.f32.mrf.mxu0
      %v9443 = vpop.f32.mrf.mxu0
      %v9444 = vadd.f32 %v2112, %v9443
      %v9445 = vpop.f32.mrf.mxu0
      %9446 = vmatprep.mubr.bf16.mxu0 %v7643
      %9447 = vmatmul.mubr.bf16.gmra.mxu0 %v7642
      %v9448 = vpop.f32.mrf.mxu0
      %v9449 = vadd.f32 %v2112, %v9448
      %v9450 = vpop.f32.mrf.mxu0
      %v9451 = vpop.f32.mrf.mxu0
      %v9452 = vadd.f32 %v2112, %v9451
      %v9453 = vpop.f32.mrf.mxu0
      %9454 = vmatprep.mubr.bf16.mxu0 %v7645
      %9455 = vmatmul.mubr.bf16.gmra.mxu0 %v7644
      %v9456 = vpop.f32.mrf.mxu0
      %v9457 = vadd.f32 %v2112, %v9456
      %v9458 = vpop.f32.mrf.mxu0
      %v9459 = vpop.f32.mrf.mxu0
      %v9460 = vadd.f32 %v2112, %v9459
      %v9461 = vpop.f32.mrf.mxu0
      %9462 = vmatprep.mubr.bf16.mxu0 %v7647
      %9463 = vmatmul.mubr.bf16.gmra.mxu0 %v7646
      %v9464 = vpop.f32.mrf.mxu0
      %v9465 = vadd.f32 %v2112, %v9464
      %v9466 = vpop.f32.mrf.mxu0
      %v9467 = vpop.f32.mrf.mxu0
      %v9468 = vadd.f32 %v2112, %v9467
      %v9469 = vpop.f32.mrf.mxu0
      %9470 = vmatprep.mubr.bf16.mxu0 %v7649
      %9471 = vmatmul.mubr.bf16.gmra.mxu0 %v7648
      %v9472 = vpop.f32.mrf.mxu0
      %v9473 = vadd.f32 %v2112, %v9472
      %v9474 = vpop.f32.mrf.mxu0
      %v9475 = vpop.f32.mrf.mxu0
      %v9476 = vadd.f32 %v2112, %v9475
      %v9477 = vpop.f32.mrf.mxu0
      %9478 = vmatprep.mubr.bf16.mxu0 %v7651
      %9479 = vmatmul.mubr.bf16.gmra.mxu0 %v7650
      %v9480 = vpop.f32.mrf.mxu0
      %v9481 = vadd.f32 %v2112, %v9480
      %v9482 = vpop.f32.mrf.mxu0
      %v9483 = vpop.f32.mrf.mxu0
      %v9484 = vadd.f32 %v2112, %v9483
      %v9485 = vpop.f32.mrf.mxu0
      %9486 = vmatprep.mubr.bf16.mxu0 %v7653
      %9487 = vmatmul.mubr.bf16.gmra.mxu0 %v7652
      %v9488 = vpop.f32.mrf.mxu0
      %v9489 = vadd.f32 %v2112, %v9488
      %v9490 = vpop.f32.mrf.mxu0
      %v9491 = vpop.f32.mrf.mxu0
      %v9492 = vadd.f32 %v2112, %v9491
      %v9493 = vpop.f32.mrf.mxu0
      %9494 = vmatprep.mubr.bf16.mxu0 %v7655
      %9495 = vmatmul.mubr.bf16.gmra.mxu0 %v7654
      %v9496 = vpop.f32.mrf.mxu0
      %v9497 = vadd.f32 %v2112, %v9496
      %v9498 = vpop.f32.mrf.mxu0
      %v9499 = vpop.f32.mrf.mxu0
      %v9500 = vadd.f32 %v2112, %v9499
      %v9501 = vpop.f32.mrf.mxu0
      %9502 = vmatprep.mubr.bf16.mxu0 %v7657
      %9503 = vmatmul.mubr.bf16.gmra.mxu0 %v7656
      %v9504 = vpop.f32.mrf.mxu0
      %v9505 = vadd.f32 %v2112, %v9504
      %v9506 = vpop.f32.mrf.mxu0
      %v9507 = vpop.f32.mrf.mxu0
      %v9508 = vadd.f32 %v2112, %v9507
      %v9509 = vpop.f32.mrf.mxu0
      %9510 = vmatprep.mubr.bf16.mxu0 %v7659
      %9511 = vmatmul.mubr.bf16.gmra.mxu0 %v7658
      %v9512 = vpop.f32.mrf.mxu0
      %v9513 = vadd.f32 %v2112, %v9512
      %v9514 = vpop.f32.mrf.mxu0
      %v9515 = vpop.f32.mrf.mxu0
      %v9516 = vadd.f32 %v2112, %v9515
      %v9517 = vpop.f32.mrf.mxu0
      %9518 = vdwg.mxu0
      %9519 = vmatprep.subr.bf16.mxu0 0
      %9520 = vmatpush1.bf16.msra.mxu0 %v9253
      %9521 = vmatprep.subr.bf16.mxu0 0
      %9522 = vmatpush1.bf16.msra.mxu0 %v9252
      %9523 = vmatprep.subr.bf16.mxu0 0
      %9524 = vmatpush1.bf16.msra.mxu0 %v9251
      %9525 = vmatprep.subr.bf16.mxu0 0
      %9526 = vmatpush1.bf16.msra.mxu0 %v9250
      %9527 = vmatprep.subr.bf16.mxu0 0
      %9528 = vmatpush1.bf16.msra.mxu0 %v9249
      %9529 = vmatprep.subr.bf16.mxu0 0
      %9530 = vmatpush1.bf16.msra.mxu0 %v9248
      %9531 = vmatprep.subr.bf16.mxu0 0
      %9532 = vmatpush1.bf16.msra.mxu0 %v9247
      %9533 = vmatprep.subr.bf16.mxu0 0
      %9534 = vmatpush1.bf16.msra.mxu0 %v9246
      %9535 = vmatprep.subr.bf16.mxu0 0
      %9536 = vmatpush2.bf16.msra.mxu0 %v9261
      %9537 = vmatprep.subr.bf16.mxu0 0
      %9538 = vmatpush2.bf16.msra.mxu0 %v9260
      %9539 = vmatprep.subr.bf16.mxu0 0
      %9540 = vmatpush2.bf16.msra.mxu0 %v9259
      %9541 = vmatprep.subr.bf16.mxu0 0
      %9542 = vmatpush2.bf16.msra.mxu0 %v9258
      %9543 = vmatprep.subr.bf16.mxu0 0
      %9544 = vmatpush2.bf16.msra.mxu0 %v9257
      %9545 = vmatprep.subr.bf16.mxu0 0
      %9546 = vmatpush2.bf16.msra.mxu0 %v9256
      %9547 = vmatprep.subr.bf16.mxu0 0
      %9548 = vmatpush2.bf16.msra.mxu0 %v9255
      %9549 = vmatprep.subr.bf16.mxu0 0
      %9550 = vmatpush2.bf16.msra.mxu0 %v9254
      %9551 = vmatprep.mubr.bf16.mxu0 %v8036
      %9552 = vmatmul.mubr.bf16.gmra.mxu0 %v8024
      %v9553 = vpop.f32.mrf.mxu0
      %v9554 = vadd.f32 %v9393, %v9553
      %v9555 = vpop.f32.mrf.mxu0
      %v9556 = vpop.f32.mrf.mxu0
      %v9557 = vadd.f32 %v9396, %v9556
      %v9558 = vpop.f32.mrf.mxu0
      %9559 = vmatprep.mubr.bf16.mxu0 %v8060
      %9560 = vmatmul.mubr.bf16.gmra.mxu0 %v8048
      %v9561 = vpop.f32.mrf.mxu0
      %v9562 = vadd.f32 %v9401, %v9561
      %v9563 = vpop.f32.mrf.mxu0
      %v9564 = vpop.f32.mrf.mxu0
      %v9565 = vadd.f32 %v9404, %v9564
      %v9566 = vpop.f32.mrf.mxu0
      %9567 = vmatprep.mubr.bf16.mxu0 %v8084
      %9568 = vmatmul.mubr.bf16.gmra.mxu0 %v8072
      %v9569 = vpop.f32.mrf.mxu0
      %v9570 = vadd.f32 %v9409, %v9569
      %v9571 = vpop.f32.mrf.mxu0
      %v9572 = vpop.f32.mrf.mxu0
      %v9573 = vadd.f32 %v9412, %v9572
      %v9574 = vpop.f32.mrf.mxu0
      %9575 = vmatprep.mubr.bf16.mxu0 %v8108
      %9576 = vmatmul.mubr.bf16.gmra.mxu0 %v8096
      %v9577 = vpop.f32.mrf.mxu0
      %v9578 = vadd.f32 %v9417, %v9577
      %v9579 = vpop.f32.mrf.mxu0
      %v9580 = vpop.f32.mrf.mxu0
      %v9581 = vadd.f32 %v9420, %v9580
      %v9582 = vpop.f32.mrf.mxu0
      %9583 = vmatprep.mubr.bf16.mxu0 %v8132
      %9584 = vmatmul.mubr.bf16.gmra.mxu0 %v8120
      %v9585 = vpop.f32.mrf.mxu0
      %v9586 = vadd.f32 %v9425, %v9585
      %v9587 = vpop.f32.mrf.mxu0
      %v9588 = vpop.f32.mrf.mxu0
      %v9589 = vadd.f32 %v9428, %v9588
      %v9590 = vpop.f32.mrf.mxu0
      %9591 = vmatprep.mubr.bf16.mxu0 %v8156
      %9592 = vmatmul.mubr.bf16.gmra.mxu0 %v8144
      %v9593 = vpop.f32.mrf.mxu0
      %v9594 = vadd.f32 %v9433, %v9593
      %v9595 = vpop.f32.mrf.mxu0
      %v9596 = vpop.f32.mrf.mxu0
      %v9597 = vadd.f32 %v9436, %v9596
      %v9598 = vpop.f32.mrf.mxu0
      %9599 = vmatprep.mubr.bf16.mxu0 %v8180
      %9600 = vmatmul.mubr.bf16.gmra.mxu0 %v8168
      %v9601 = vpop.f32.mrf.mxu0
      %v9602 = vadd.f32 %v9441, %v9601
      %v9603 = vpop.f32.mrf.mxu0
      %v9604 = vpop.f32.mrf.mxu0
      %v9605 = vadd.f32 %v9444, %v9604
      %v9606 = vpop.f32.mrf.mxu0
      %9607 = vmatprep.mubr.bf16.mxu0 %v8204
      %9608 = vmatmul.mubr.bf16.gmra.mxu0 %v8192
      %v9609 = vpop.f32.mrf.mxu0
      %v9610 = vadd.f32 %v9449, %v9609
      %v9611 = vpop.f32.mrf.mxu0
      %v9612 = vpop.f32.mrf.mxu0
      %v9613 = vadd.f32 %v9452, %v9612
      %v9614 = vpop.f32.mrf.mxu0
      %9615 = vmatprep.mubr.bf16.mxu0 %v8228
      %9616 = vmatmul.mubr.bf16.gmra.mxu0 %v8216
      %v9617 = vpop.f32.mrf.mxu0
      %v9618 = vadd.f32 %v9457, %v9617
      %v9619 = vpop.f32.mrf.mxu0
      %v9620 = vpop.f32.mrf.mxu0
      %v9621 = vadd.f32 %v9460, %v9620
      %v9622 = vpop.f32.mrf.mxu0
      %9623 = vmatprep.mubr.bf16.mxu0 %v8252
      %9624 = vmatmul.mubr.bf16.gmra.mxu0 %v8240
      %v9625 = vpop.f32.mrf.mxu0
      %v9626 = vadd.f32 %v9465, %v9625
      %v9627 = vpop.f32.mrf.mxu0
      %v9628 = vpop.f32.mrf.mxu0
      %v9629 = vadd.f32 %v9468, %v9628
      %v9630 = vpop.f32.mrf.mxu0
      %9631 = vmatprep.mubr.bf16.mxu0 %v8276
      %9632 = vmatmul.mubr.bf16.gmra.mxu0 %v8264
      %v9633 = vpop.f32.mrf.mxu0
      %v9634 = vadd.f32 %v9473, %v9633
      %v9635 = vpop.f32.mrf.mxu0
      %v9636 = vpop.f32.mrf.mxu0
      %v9637 = vadd.f32 %v9476, %v9636
      %v9638 = vpop.f32.mrf.mxu0
      %9639 = vmatprep.mubr.bf16.mxu0 %v8300
      %9640 = vmatmul.mubr.bf16.gmra.mxu0 %v8288
      %v9641 = vpop.f32.mrf.mxu0
      %v9642 = vadd.f32 %v9481, %v9641
      %v9643 = vpop.f32.mrf.mxu0
      %v9644 = vpop.f32.mrf.mxu0
      %v9645 = vadd.f32 %v9484, %v9644
      %v9646 = vpop.f32.mrf.mxu0
      %9647 = vmatprep.mubr.bf16.mxu0 %v8324
      %9648 = vmatmul.mubr.bf16.gmra.mxu0 %v8312
      %v9649 = vpop.f32.mrf.mxu0
      %v9650 = vadd.f32 %v9489, %v9649
      %v9651 = vpop.f32.mrf.mxu0
      %v9652 = vpop.f32.mrf.mxu0
      %v9653 = vadd.f32 %v9492, %v9652
      %v9654 = vpop.f32.mrf.mxu0
      %9655 = vmatprep.mubr.bf16.mxu0 %v8348
      %9656 = vmatmul.mubr.bf16.gmra.mxu0 %v8336
      %v9657 = vpop.f32.mrf.mxu0
      %v9658 = vadd.f32 %v9497, %v9657
      %v9659 = vpop.f32.mrf.mxu0
      %v9660 = vpop.f32.mrf.mxu0
      %v9661 = vadd.f32 %v9500, %v9660
      %v9662 = vpop.f32.mrf.mxu0
      %9663 = vmatprep.mubr.bf16.mxu0 %v8372
      %9664 = vmatmul.mubr.bf16.gmra.mxu0 %v8360
      %v9665 = vpop.f32.mrf.mxu0
      %v9666 = vadd.f32 %v9505, %v9665
      %v9667 = vpop.f32.mrf.mxu0
      %v9668 = vpop.f32.mrf.mxu0
      %v9669 = vadd.f32 %v9508, %v9668
      %v9670 = vpop.f32.mrf.mxu0
      %9671 = vmatprep.mubr.bf16.mxu0 %v8396
      %9672 = vmatmul.mubr.bf16.gmra.mxu0 %v8384
      %v9673 = vpop.f32.mrf.mxu0
      %v9674 = vadd.f32 %v9513, %v9673
      %v9675 = vpop.f32.mrf.mxu0
      %v9676 = vpop.f32.mrf.mxu0
      %v9677 = vadd.f32 %v9516, %v9676
      %v9678 = vpop.f32.mrf.mxu0
      %9679 = vdwg.mxu0
      %9680 = vmatprep.subr.bf16.mxu0 0
      %9681 = vmatpush1.bf16.msra.mxu0 %v9269
      %9682 = vmatprep.subr.bf16.mxu0 0
      %9683 = vmatpush1.bf16.msra.mxu0 %v9268
      %9684 = vmatprep.subr.bf16.mxu0 0
      %9685 = vmatpush1.bf16.msra.mxu0 %v9267
      %9686 = vmatprep.subr.bf16.mxu0 0
      %9687 = vmatpush1.bf16.msra.mxu0 %v9266
      %9688 = vmatprep.subr.bf16.mxu0 0
      %9689 = vmatpush1.bf16.msra.mxu0 %v9265
      %9690 = vmatprep.subr.bf16.mxu0 0
      %9691 = vmatpush1.bf16.msra.mxu0 %v9264
      %9692 = vmatprep.subr.bf16.mxu0 0
      %9693 = vmatpush1.bf16.msra.mxu0 %v9263
      %9694 = vmatprep.subr.bf16.mxu0 0
      %9695 = vmatpush1.bf16.msra.mxu0 %v9262
      %9696 = vmatprep.subr.bf16.mxu0 0
      %9697 = vmatpush2.bf16.msra.mxu0 %v9277
      %9698 = vmatprep.subr.bf16.mxu0 0
      %9699 = vmatpush2.bf16.msra.mxu0 %v9276
      %9700 = vmatprep.subr.bf16.mxu0 0
      %9701 = vmatpush2.bf16.msra.mxu0 %v9275
      %9702 = vmatprep.subr.bf16.mxu0 0
      %9703 = vmatpush2.bf16.msra.mxu0 %v9274
      %9704 = vmatprep.subr.bf16.mxu0 0
      %9705 = vmatpush2.bf16.msra.mxu0 %v9273
      %9706 = vmatprep.subr.bf16.mxu0 0
      %9707 = vmatpush2.bf16.msra.mxu0 %v9272
      %9708 = vmatprep.subr.bf16.mxu0 0
      %9709 = vmatpush2.bf16.msra.mxu0 %v9271
      %9710 = vmatprep.subr.bf16.mxu0 0
      %9711 = vmatpush2.bf16.msra.mxu0 %v9270
      %9712 = vmatprep.mubr.bf16.mxu0 %v7854
      %9713 = vmatmul.mubr.bf16.gmra.mxu0 %v7853
      %v9714 = vpop.f32.mrf.mxu0
      %v9715 = vadd.f32 %v9554, %v9714
      %v9716 = vpop.f32.mrf.mxu0
      %v9717 = vpop.f32.mrf.mxu0
      %v9718 = vadd.f32 %v9557, %v9717
      %v9719 = vpop.f32.mrf.mxu0
      %9720 = vmatprep.mubr.bf16.mxu0 %v7856
      %9721 = vmatmul.mubr.bf16.gmra.mxu0 %v7855
      %v9722 = vpop.f32.mrf.mxu0
      %v9723 = vadd.f32 %v9562, %v9722
      %v9724 = vpop.f32.mrf.mxu0
      %v9725 = vpop.f32.mrf.mxu0
      %v9726 = vadd.f32 %v9565, %v9725
      %v9727 = vpop.f32.mrf.mxu0
      %9728 = vmatprep.mubr.bf16.mxu0 %v7858
      %9729 = vmatmul.mubr.bf16.gmra.mxu0 %v7857
      %v9730 = vpop.f32.mrf.mxu0
      %v9731 = vadd.f32 %v9570, %v9730
      %v9732 = vpop.f32.mrf.mxu0
      %v9733 = vpop.f32.mrf.mxu0
      %v9734 = vadd.f32 %v9573, %v9733
      %v9735 = vpop.f32.mrf.mxu0
      %9736 = vmatprep.mubr.bf16.mxu0 %v7860
      %9737 = vmatmul.mubr.bf16.gmra.mxu0 %v7859
      %v9738 = vpop.f32.mrf.mxu0
      %v9739 = vadd.f32 %v9578, %v9738
      %v9740 = vpop.f32.mrf.mxu0
      %v9741 = vpop.f32.mrf.mxu0
      %v9742 = vadd.f32 %v9581, %v9741
      %v9743 = vpop.f32.mrf.mxu0
      %9744 = vmatprep.mubr.bf16.mxu0 %v7862
      %9745 = vmatmul.mubr.bf16.gmra.mxu0 %v7861
      %v9746 = vpop.f32.mrf.mxu0
      %v9747 = vadd.f32 %v9586, %v9746
      %v9748 = vpop.f32.mrf.mxu0
      %v9749 = vpop.f32.mrf.mxu0
      %v9750 = vadd.f32 %v9589, %v9749
      %v9751 = vpop.f32.mrf.mxu0
      %9752 = vmatprep.mubr.bf16.mxu0 %v7864
      %9753 = vmatmul.mubr.bf16.gmra.mxu0 %v7863
      %v9754 = vpop.f32.mrf.mxu0
      %v9755 = vadd.f32 %v9594, %v9754
      %v9756 = vpop.f32.mrf.mxu0
      %v9757 = vpop.f32.mrf.mxu0
      %v9758 = vadd.f32 %v9597, %v9757
      %v9759 = vpop.f32.mrf.mxu0
      %9760 = vmatprep.mubr.bf16.mxu0 %v7866
      %9761 = vmatmul.mubr.bf16.gmra.mxu0 %v7865
      %v9762 = vpop.f32.mrf.mxu0
      %v9763 = vadd.f32 %v9602, %v9762
      %v9764 = vpop.f32.mrf.mxu0
      %v9765 = vpop.f32.mrf.mxu0
      %v9766 = vadd.f32 %v9605, %v9765
      %v9767 = vpop.f32.mrf.mxu0
      %9768 = vmatprep.mubr.bf16.mxu0 %v7868
      %9769 = vmatmul.mubr.bf16.gmra.mxu0 %v7867
      %v9770 = vpop.f32.mrf.mxu0
      %v9771 = vadd.f32 %v9610, %v9770
      %v9772 = vpop.f32.mrf.mxu0
      %v9773 = vpop.f32.mrf.mxu0
      %v9774 = vadd.f32 %v9613, %v9773
      %v9775 = vpop.f32.mrf.mxu0
      %9776 = vmatprep.mubr.bf16.mxu0 %v7870
      %9777 = vmatmul.mubr.bf16.gmra.mxu0 %v7869
      %v9778 = vpop.f32.mrf.mxu0
      %v9779 = vadd.f32 %v9618, %v9778
      %v9780 = vpop.f32.mrf.mxu0
      %v9781 = vpop.f32.mrf.mxu0
      %v9782 = vadd.f32 %v9621, %v9781
      %v9783 = vpop.f32.mrf.mxu0
      %9784 = vmatprep.mubr.bf16.mxu0 %v7872
      %9785 = vmatmul.mubr.bf16.gmra.mxu0 %v7871
      %v9786 = vpop.f32.mrf.mxu0
      %v9787 = vadd.f32 %v9626, %v9786
      %v9788 = vpop.f32.mrf.mxu0
      %v9789 = vpop.f32.mrf.mxu0
      %v9790 = vadd.f32 %v9629, %v9789
      %v9791 = vpop.f32.mrf.mxu0
      %9792 = vmatprep.mubr.bf16.mxu0 %v7874
      %9793 = vmatmul.mubr.bf16.gmra.mxu0 %v7873
      %v9794 = vpop.f32.mrf.mxu0
      %v9795 = vadd.f32 %v9634, %v9794
      %v9796 = vpop.f32.mrf.mxu0
      %v9797 = vpop.f32.mrf.mxu0
      %v9798 = vadd.f32 %v9637, %v9797
      %v9799 = vpop.f32.mrf.mxu0
      %9800 = vmatprep.mubr.bf16.mxu0 %v7876
      %9801 = vmatmul.mubr.bf16.gmra.mxu0 %v7875
      %v9802 = vpop.f32.mrf.mxu0
      %v9803 = vadd.f32 %v9642, %v9802
      %v9804 = vpop.f32.mrf.mxu0
      %v9805 = vpop.f32.mrf.mxu0
      %v9806 = vadd.f32 %v9645, %v9805
      %v9807 = vpop.f32.mrf.mxu0
      %9808 = vmatprep.mubr.bf16.mxu0 %v7878
      %9809 = vmatmul.mubr.bf16.gmra.mxu0 %v7877
      %v9810 = vpop.f32.mrf.mxu0
      %v9811 = vadd.f32 %v9650, %v9810
      %v9812 = vpop.f32.mrf.mxu0
      %v9813 = vpop.f32.mrf.mxu0
      %v9814 = vadd.f32 %v9653, %v9813
      %v9815 = vpop.f32.mrf.mxu0
      %9816 = vmatprep.mubr.bf16.mxu0 %v7880
      %9817 = vmatmul.mubr.bf16.gmra.mxu0 %v7879
      %v9818 = vpop.f32.mrf.mxu0
      %v9819 = vadd.f32 %v9658, %v9818
      %v9820 = vpop.f32.mrf.mxu0
      %v9821 = vpop.f32.mrf.mxu0
      %v9822 = vadd.f32 %v9661, %v9821
      %v9823 = vpop.f32.mrf.mxu0
      %9824 = vmatprep.mubr.bf16.mxu0 %v7882
      %9825 = vmatmul.mubr.bf16.gmra.mxu0 %v7881
      %v9826 = vpop.f32.mrf.mxu0
      %v9827 = vadd.f32 %v9666, %v9826
      %v9828 = vpop.f32.mrf.mxu0
      %v9829 = vpop.f32.mrf.mxu0
      %v9830 = vadd.f32 %v9669, %v9829
      %v9831 = vpop.f32.mrf.mxu0
      %9832 = vmatprep.mubr.bf16.mxu0 %v7884
      %9833 = vmatmul.mubr.bf16.gmra.mxu0 %v7883
      %v9834 = vpop.f32.mrf.mxu0
      %v9835 = vadd.f32 %v9674, %v9834
      %v9836 = vpop.f32.mrf.mxu0
      %v9837 = vpop.f32.mrf.mxu0
      %v9838 = vadd.f32 %v9677, %v9837
      %v9839 = vpop.f32.mrf.mxu0
      %9840 = vdwg.mxu0
      %9841 = vmatprep.subr.bf16.mxu0 0
      %9842 = vmatpush1.bf16.msra.mxu0 %v9285
      %9843 = vmatprep.subr.bf16.mxu0 0
      %9844 = vmatpush1.bf16.msra.mxu0 %v9284
      %9845 = vmatprep.subr.bf16.mxu0 0
      %9846 = vmatpush1.bf16.msra.mxu0 %v9283
      %9847 = vmatprep.subr.bf16.mxu0 0
      %9848 = vmatpush1.bf16.msra.mxu0 %v9282
      %9849 = vmatprep.subr.bf16.mxu0 0
      %9850 = vmatpush1.bf16.msra.mxu0 %v9281
      %9851 = vmatprep.subr.bf16.mxu0 0
      %9852 = vmatpush1.bf16.msra.mxu0 %v9280
      %9853 = vmatprep.subr.bf16.mxu0 0
      %9854 = vmatpush1.bf16.msra.mxu0 %v9279
      %9855 = vmatprep.subr.bf16.mxu0 0
      %9856 = vmatpush1.bf16.msra.mxu0 %v9278
      %9857 = vmatprep.subr.bf16.mxu0 0
      %9858 = vmatpush2.bf16.msra.mxu0 %v9293
      %9859 = vmatprep.subr.bf16.mxu0 0
      %9860 = vmatpush2.bf16.msra.mxu0 %v9292
      %9861 = vmatprep.subr.bf16.mxu0 0
      %9862 = vmatpush2.bf16.msra.mxu0 %v9291
      %9863 = vmatprep.subr.bf16.mxu0 0
      %9864 = vmatpush2.bf16.msra.mxu0 %v9290
      %9865 = vmatprep.subr.bf16.mxu0 0
      %9866 = vmatpush2.bf16.msra.mxu0 %v9289
      %9867 = vmatprep.subr.bf16.mxu0 0
      %9868 = vmatpush2.bf16.msra.mxu0 %v9288
      %9869 = vmatprep.subr.bf16.mxu0 0
      %9870 = vmatpush2.bf16.msra.mxu0 %v9287
      %9871 = vmatprep.subr.bf16.mxu0 0
      %9872 = vmatpush2.bf16.msra.mxu0 %v9286
      %9873 = vmatprep.mubr.bf16.mxu0 %v8452
      %9874 = vmatmul.mubr.bf16.gmra.mxu0 %v8440
      %v9875 = vpop.f32.mrf.mxu0
      %v9876 = vadd.f32 %v9715, %v9875
      %v9877 = vpop.f32.mrf.mxu0
      %v9878 = vpop.f32.mrf.mxu0
      %v9879 = vadd.f32 %v9718, %v9878
      %v9880 = vpop.f32.mrf.mxu0
      %9881 = vmatprep.mubr.bf16.mxu0 %v8476
      %9882 = vmatmul.mubr.bf16.gmra.mxu0 %v8464
      %v9883 = vpop.f32.mrf.mxu0
      %v9884 = vadd.f32 %v9723, %v9883
      %v9885 = vpop.f32.mrf.mxu0
      %v9886 = vpop.f32.mrf.mxu0
      %v9887 = vadd.f32 %v9726, %v9886
      %v9888 = vpop.f32.mrf.mxu0
      %9889 = vmatprep.mubr.bf16.mxu0 %v8500
      %9890 = vmatmul.mubr.bf16.gmra.mxu0 %v8488
      %v9891 = vpop.f32.mrf.mxu0
      %v9892 = vadd.f32 %v9731, %v9891
      %v9893 = vpop.f32.mrf.mxu0
      %v9894 = vpop.f32.mrf.mxu0
      %v9895 = vadd.f32 %v9734, %v9894
      %v9896 = vpop.f32.mrf.mxu0
      %9897 = vmatprep.mubr.bf16.mxu0 %v8524
      %9898 = vmatmul.mubr.bf16.gmra.mxu0 %v8512
      %v9899 = vpop.f32.mrf.mxu0
      %v9900 = vadd.f32 %v9739, %v9899
      %v9901 = vpop.f32.mrf.mxu0
      %v9902 = vpop.f32.mrf.mxu0
      %v9903 = vadd.f32 %v9742, %v9902
      %v9904 = vpop.f32.mrf.mxu0
      %9905 = vmatprep.mubr.bf16.mxu0 %v8548
      %9906 = vmatmul.mubr.bf16.gmra.mxu0 %v8536
      %v9907 = vpop.f32.mrf.mxu0
      %v9908 = vadd.f32 %v9747, %v9907
      %v9909 = vpop.f32.mrf.mxu0
      %v9910 = vpop.f32.mrf.mxu0
      %v9911 = vadd.f32 %v9750, %v9910
      %v9912 = vpop.f32.mrf.mxu0
      %9913 = vmatprep.mubr.bf16.mxu0 %v8572
      %9914 = vmatmul.mubr.bf16.gmra.mxu0 %v8560
      %v9915 = vpop.f32.mrf.mxu0
      %v9916 = vadd.f32 %v9755, %v9915
      %v9917 = vpop.f32.mrf.mxu0
      %v9918 = vpop.f32.mrf.mxu0
      %v9919 = vadd.f32 %v9758, %v9918
      %v9920 = vpop.f32.mrf.mxu0
      %9921 = vmatprep.mubr.bf16.mxu0 %v8596
      %9922 = vmatmul.mubr.bf16.gmra.mxu0 %v8584
      %v9923 = vpop.f32.mrf.mxu0
      %v9924 = vadd.f32 %v9763, %v9923
      %v9925 = vpop.f32.mrf.mxu0
      %v9926 = vpop.f32.mrf.mxu0
      %v9927 = vadd.f32 %v9766, %v9926
      %v9928 = vpop.f32.mrf.mxu0
      %9929 = vmatprep.mubr.bf16.mxu0 %v8620
      %9930 = vmatmul.mubr.bf16.gmra.mxu0 %v8608
      %v9931 = vpop.f32.mrf.mxu0
      %v9932 = vadd.f32 %v9771, %v9931
      %v9933 = vpop.f32.mrf.mxu0
      %v9934 = vpop.f32.mrf.mxu0
      %v9935 = vadd.f32 %v9774, %v9934
      %v9936 = vpop.f32.mrf.mxu0
      %9937 = vmatprep.mubr.bf16.mxu0 %v8644
      %9938 = vmatmul.mubr.bf16.gmra.mxu0 %v8632
      %v9939 = vpop.f32.mrf.mxu0
      %v9940 = vadd.f32 %v9779, %v9939
      %v9941 = vpop.f32.mrf.mxu0
      %v9942 = vpop.f32.mrf.mxu0
      %v9943 = vadd.f32 %v9782, %v9942
      %v9944 = vpop.f32.mrf.mxu0
      %9945 = vmatprep.mubr.bf16.mxu0 %v8668
      %9946 = vmatmul.mubr.bf16.gmra.mxu0 %v8656
      %v9947 = vpop.f32.mrf.mxu0
      %v9948 = vadd.f32 %v9787, %v9947
      %v9949 = vpop.f32.mrf.mxu0
      %v9950 = vpop.f32.mrf.mxu0
      %v9951 = vadd.f32 %v9790, %v9950
      %v9952 = vpop.f32.mrf.mxu0
      %9953 = vmatprep.mubr.bf16.mxu0 %v8692
      %9954 = vmatmul.mubr.bf16.gmra.mxu0 %v8680
      %v9955 = vpop.f32.mrf.mxu0
      %v9956 = vadd.f32 %v9795, %v9955
      %v9957 = vpop.f32.mrf.mxu0
      %v9958 = vpop.f32.mrf.mxu0
      %v9959 = vadd.f32 %v9798, %v9958
      %v9960 = vpop.f32.mrf.mxu0
      %9961 = vmatprep.mubr.bf16.mxu0 %v8716
      %9962 = vmatmul.mubr.bf16.gmra.mxu0 %v8704
      %v9963 = vpop.f32.mrf.mxu0
      %v9964 = vadd.f32 %v9803, %v9963
      %v9965 = vpop.f32.mrf.mxu0
      %v9966 = vpop.f32.mrf.mxu0
      %v9967 = vadd.f32 %v9806, %v9966
      %v9968 = vpop.f32.mrf.mxu0
      %9969 = vmatprep.mubr.bf16.mxu0 %v8740
      %9970 = vmatmul.mubr.bf16.gmra.mxu0 %v8728
      %v9971 = vpop.f32.mrf.mxu0
      %v9972 = vadd.f32 %v9811, %v9971
      %v9973 = vpop.f32.mrf.mxu0
      %v9974 = vpop.f32.mrf.mxu0
      %v9975 = vadd.f32 %v9814, %v9974
      %v9976 = vpop.f32.mrf.mxu0
      %9977 = vmatprep.mubr.bf16.mxu0 %v8764
      %9978 = vmatmul.mubr.bf16.gmra.mxu0 %v8752
      %v9979 = vpop.f32.mrf.mxu0
      %v9980 = vadd.f32 %v9819, %v9979
      %v9981 = vpop.f32.mrf.mxu0
      %v9982 = vpop.f32.mrf.mxu0
      %v9983 = vadd.f32 %v9822, %v9982
      %v9984 = vpop.f32.mrf.mxu0
      %9985 = vmatprep.mubr.bf16.mxu0 %v8788
      %9986 = vmatmul.mubr.bf16.gmra.mxu0 %v8776
      %v9987 = vpop.f32.mrf.mxu0
      %v9988 = vadd.f32 %v9827, %v9987
      %v9989 = vpop.f32.mrf.mxu0
      %v9990 = vpop.f32.mrf.mxu0
      %v9991 = vadd.f32 %v9830, %v9990
      %v9992 = vpop.f32.mrf.mxu0
      %9993 = vmatprep.mubr.bf16.mxu0 %v8812
      %9994 = vmatmul.mubr.bf16.gmra.mxu0 %v8800
      %v9995 = vpop.f32.mrf.mxu0
      %v9996 = vadd.f32 %v9835, %v9995
      %v9997 = vpop.f32.mrf.mxu0
      %v9998 = vpop.f32.mrf.mxu0
      %v9999 = vadd.f32 %v9838, %v9998
      %v10000 = vpop.f32.mrf.mxu0
      %10001 = vdwg.mxu0
      %v10002 = vmax.f32 %v9876, 0.0
      %v10003 = vmax.f32 %v9879, 0.0
      %v10004 = vmax.f32 %v9884, 0.0
      %v10005 = vmax.f32 %v9887, 0.0
      %v10006 = vmax.f32 %v9892, 0.0
      %v10007 = vmax.f32 %v9895, 0.0
      %v10008 = vmax.f32 %v9900, 0.0
      %v10009 = vmax.f32 %v9903, 0.0
      %v10010 = vmax.f32 %v9908, 0.0
      %v10011 = vmax.f32 %v9911, 0.0
      %v10012 = vmax.f32 %v9916, 0.0
      %v10013 = vmax.f32 %v9919, 0.0
      %v10014 = vmax.f32 %v9924, 0.0
      %v10015 = vmax.f32 %v9927, 0.0
      %v10016 = vmax.f32 %v9932, 0.0
      %v10017 = vmax.f32 %v9935, 0.0
      %v10018 = vmax.f32 %v9940, 0.0
      %v10019 = vmax.f32 %v9943, 0.0
      %v10020 = vmax.f32 %v9948, 0.0
      %v10021 = vmax.f32 %v9951, 0.0
      %v10022 = vmax.f32 %v9956, 0.0
      %v10023 = vmax.f32 %v9959, 0.0
      %v10024 = vmax.f32 %v9964, 0.0
      %v10025 = vmax.f32 %v9967, 0.0
      %v10026 = vmax.f32 %v9972, 0.0
      %v10027 = vmax.f32 %v9975, 0.0
      %v10028 = vmax.f32 %v9980, 0.0
      %v10029 = vmax.f32 %v9983, 0.0
      %v10030 = vmax.f32 %v9988, 0.0
      %v10031 = vmax.f32 %v9991, 0.0
      %v10032 = vmax.f32 %v9996, 0.0
      %v10033 = vmax.f32 %v9999, 0.0
      %s10034 = scalar_lea.vmem %s170, 512
      %10035 = vst [vmem:[%s10034] sm:$0xff] %v10002
      %10036 = vst [vmem:[%s10034 + $0x8] sm:$0xff] %v10003
      %10037 = vst [vmem:[%s10034 + $0x10] sm:$0xff] %v10004
      %10038 = vst [vmem:[%s10034 + $0x18] sm:$0xff] %v10005
      %10039 = vst [vmem:[%s10034 + $0x20] sm:$0xff] %v10006
      %10040 = vst [vmem:[%s10034 + $0x28] sm:$0xff] %v10007
      %10041 = vst [vmem:[%s10034 + $0x30] sm:$0xff] %v10008
      %10042 = vst [vmem:[%s10034 + $0x38] sm:$0xff] %v10009
      %10043 = vst [vmem:[%s10034 + $0x40] sm:$0xff] %v10010
      %10044 = vst [vmem:[%s10034 + $0x48] sm:$0xff] %v10011
      %10045 = vst [vmem:[%s10034 + $0x50] sm:$0xff] %v10012
      %10046 = vst [vmem:[%s10034 + $0x58] sm:$0xff] %v10013
      %10047 = vst [vmem:[%s10034 + $0x60] sm:$0xff] %v10014
      %10048 = vst [vmem:[%s10034 + $0x68] sm:$0xff] %v10015
      %10049 = vst [vmem:[%s10034 + $0x70] sm:$0xff] %v10016
      %10050 = vst [vmem:[%s10034 + $0x78] sm:$0xff] %v10017
      %10051 = vst [vmem:[%s10034 + $0x80] sm:$0xff] %v10018
      %10052 = vst [vmem:[%s10034 + $0x88] sm:$0xff] %v10019
      %10053 = vst [vmem:[%s10034 + $0x90] sm:$0xff] %v10020
      %10054 = vst [vmem:[%s10034 + $0x98] sm:$0xff] %v10021
      %10055 = vst [vmem:[%s10034 + $0xa0] sm:$0xff] %v10022
      %10056 = vst [vmem:[%s10034 + $0xa8] sm:$0xff] %v10023
      %10057 = vst [vmem:[%s10034 + $0xb0] sm:$0xff] %v10024
      %10058 = vst [vmem:[%s10034 + $0xb8] sm:$0xff] %v10025
      %10059 = vst [vmem:[%s10034 + $0xc0] sm:$0xff] %v10026
      %10060 = vst [vmem:[%s10034 + $0xc8] sm:$0xff] %v10027
      %10061 = vst [vmem:[%s10034 + $0xd0] sm:$0xff] %v10028
      %10062 = vst [vmem:[%s10034 + $0xd8] sm:$0xff] %v10029
      %10063 = vst [vmem:[%s10034 + $0xe0] sm:$0xff] %v10030
      %10064 = vst [vmem:[%s10034 + $0xe8] sm:$0xff] %v10031
      %10065 = vst [vmem:[%s10034 + $0xf0] sm:$0xff] %v10032
      %10066 = vst [vmem:[%s10034 + $0xf8] sm:$0xff] %v10033
      %v10067 = vld [vmem:[%s601] sm:$0xfe]
      %v10068 = vld [vmem:[%s601 + $0x8] sm:$0xfe]
      %v10069 = vld [vmem:[%s601 + $0x10] sm:$0xff]
      %v10070 = vld [vmem:[%s601 + $0x18] sm:$0xff]
      %v10071 = vld [vmem:[%s601 + $0x20] sm:$0x1]
      %v10072 = vld [vmem:[%s601 + $0x28] sm:$0x1]
      %v10073 = vld [vmem:[%s601 + $0x30] sm:$0xfe]
      %v10074 = vld [vmem:[%s601 + $0x38] sm:$0xfe]
      %v10075 = vld [vmem:[%s601 + $0x40] sm:$0xff]
      %v10076 = vld [vmem:[%s601 + $0x48] sm:$0xff]
      %v10077 = vld [vmem:[%s601 + $0x50] sm:$0x1]
      %v10078 = vld [vmem:[%s601 + $0x58] sm:$0x1]
      %v10079 = vld [vmem:[%s601 + $0x60] sm:$0xfe]
      %v10080 = vld [vmem:[%s601 + $0x68] sm:$0xfe]
      %v10081 = vld [vmem:[%s601 + $0x70] sm:$0xff]
      %v10082 = vld [vmem:[%s601 + $0x78] sm:$0xff]
      %v10083 = vld [vmem:[%s601 + $0x80] sm:$0x1]
      %v10084 = vld [vmem:[%s601 + $0x88] sm:$0x1]
      %v10085 = vld [vmem:[%s601 + $0x90] sm:$0xfe]
      %v10086 = vld [vmem:[%s601 + $0x98] sm:$0xfe]
      %v10087 = vld [vmem:[%s601 + $0xa0] sm:$0xff]
      %v10088 = vld [vmem:[%s601 + $0xa8] sm:$0xff]
      %v10089 = vld [vmem:[%s601 + $0xb0] sm:$0x1]
      %v10090 = vld [vmem:[%s601 + $0xb8] sm:$0x1]
      %v10091 = vld [vmem:[%s601 + $0xc0] sm:$0xfe]
      %v10092 = vld [vmem:[%s601 + $0xc8] sm:$0xfe]
      %v10093 = vld [vmem:[%s601 + $0xd0] sm:$0xff]
      %v10094 = vld [vmem:[%s601 + $0xd8] sm:$0xff]
      %v10095 = vld [vmem:[%s601 + $0xe0] sm:$0x1]
      %v10096 = vld [vmem:[%s601 + $0xe8] sm:$0x1]
      %v10097 = vld [vmem:[%s601 + $0xf0] sm:$0xfe]
      %v10098 = vld [vmem:[%s601 + $0xf8] sm:$0xfe]
      %v10099 = vld [vmem:[%s601 + $0x100] sm:$0xff]
      %v10100 = vld [vmem:[%s601 + $0x108] sm:$0xff]
      %v10101 = vld [vmem:[%s601 + $0x110] sm:$0x1]
      %v10102 = vld [vmem:[%s601 + $0x118] sm:$0x1]
      %v10103 = vld [vmem:[%s601 + $0x120] sm:$0xfe]
      %v10104 = vld [vmem:[%s601 + $0x128] sm:$0xfe]
      %v10105 = vld [vmem:[%s601 + $0x130] sm:$0xff]
      %v10106 = vld [vmem:[%s601 + $0x138] sm:$0xff]
      %v10107 = vld [vmem:[%s601 + $0x140] sm:$0x1]
      %v10108 = vld [vmem:[%s601 + $0x148] sm:$0x1]
      %v10109 = vld [vmem:[%s601 + $0x150] sm:$0xfe]
      %v10110 = vld [vmem:[%s601 + $0x158] sm:$0xfe]
      %v10111 = vld [vmem:[%s601 + $0x160] sm:$0xff]
      %v10112 = vld [vmem:[%s601 + $0x168] sm:$0xff]
      %v10113 = vld [vmem:[%s601 + $0x170] sm:$0x1]
      %v10114 = vld [vmem:[%s601 + $0x178] sm:$0x1]
      %v10115 = vld [vmem:[%s601 + $0x180] sm:$0xfe]
      %v10116 = vld [vmem:[%s601 + $0x188] sm:$0xfe]
      %v10117 = vld [vmem:[%s601 + $0x190] sm:$0xff]
      %v10118 = vld [vmem:[%s601 + $0x198] sm:$0xff]
      %v10119 = vld [vmem:[%s601 + $0x1a0] sm:$0x1]
      %v10120 = vld [vmem:[%s601 + $0x1a8] sm:$0x1]
      %v10121 = vld [vmem:[%s601 + $0x1b0] sm:$0xfe]
      %v10122 = vld [vmem:[%s601 + $0x1b8] sm:$0xfe]
      %v10123 = vld [vmem:[%s601 + $0x1c0] sm:$0xff]
      %v10124 = vld [vmem:[%s601 + $0x1c8] sm:$0xff]
      %v10125 = vld [vmem:[%s601 + $0x1d0] sm:$0x1]
      %v10126 = vld [vmem:[%s601 + $0x1d8] sm:$0x1]
      %v10127 = vld [vmem:[%s601 + $0x1e0] sm:$0xfe]
      %v10128 = vld [vmem:[%s601 + $0x1e8] sm:$0xfe]
      %v10129 = vld [vmem:[%s601 + $0x1f0] sm:$0xff]
      %v10130 = vld [vmem:[%s601 + $0x1f8] sm:$0xff]
      %v10131 = vld [vmem:[%s601 + $0x200] sm:$0x1]
      %v10132 = vld [vmem:[%s601 + $0x208] sm:$0x1]
      %v10133 = vld [vmem:[%s601 + $0x210] sm:$0xfe]
      %v10134 = vld [vmem:[%s601 + $0x218] sm:$0xfe]
      %v10135 = vld [vmem:[%s601 + $0x220] sm:$0xff]
      %v10136 = vld [vmem:[%s601 + $0x228] sm:$0xff]
      %v10137 = vld [vmem:[%s601 + $0x230] sm:$0x1]
      %v10138 = vld [vmem:[%s601 + $0x238] sm:$0x1]
      %v10139 = vld [vmem:[%s601 + $0x240] sm:$0xfe]
      %v10140 = vld [vmem:[%s601 + $0x248] sm:$0xfe]
      %v10141 = vld [vmem:[%s601 + $0x250] sm:$0xff]
      %v10142 = vld [vmem:[%s601 + $0x258] sm:$0xff]
      %v10143 = vld [vmem:[%s601 + $0x260] sm:$0x1]
      %v10144 = vld [vmem:[%s601 + $0x268] sm:$0x1]
      %v10145 = vld [vmem:[%s601 + $0x270] sm:$0xfe]
      %v10146 = vld [vmem:[%s601 + $0x278] sm:$0xfe]
      %v10147 = vld [vmem:[%s601 + $0x280] sm:$0xff]
      %v10148 = vld [vmem:[%s601 + $0x288] sm:$0xff]
      %v10149 = vld [vmem:[%s601 + $0x290] sm:$0x1]
      %v10150 = vld [vmem:[%s601 + $0x298] sm:$0x1]
      %v10151 = vld [vmem:[%s601 + $0x2a0] sm:$0xfe]
      %v10152 = vld [vmem:[%s601 + $0x2a8] sm:$0xfe]
      %v10153 = vld [vmem:[%s601 + $0x2b0] sm:$0xff]
      %v10154 = vld [vmem:[%s601 + $0x2b8] sm:$0xff]
      %v10155 = vld [vmem:[%s601 + $0x2c0] sm:$0x1]
      %v10156 = vld [vmem:[%s601 + $0x2c8] sm:$0x1]
      %v10157 = vld [vmem:[%s601 + $0x2d0] sm:$0xfe]
      %v10158 = vld [vmem:[%s601 + $0x2d8] sm:$0xfe]
      %v10159 = vld [vmem:[%s601 + $0x2e0] sm:$0xff]
      %v10160 = vld [vmem:[%s601 + $0x2e8] sm:$0xff]
      %v10161 = vld [vmem:[%s601 + $0x2f0] sm:$0x1]
      %v10162 = vld [vmem:[%s601 + $0x2f8] sm:$0x1]
      %v10163 = vpack.c.bf16 %v10069, %v10067
      %v10164 = vpack.c.bf16 %v10070, %v10068
      %v10165 = vpack.c.bf16 %v10071, %v10071
      %v10166 = vpack.c.bf16 %v10072, %v10072
      %v10167 = vpack.c.bf16 %v10075, %v10073
      %v10168 = vpack.c.bf16 %v10076, %v10074
      %v10169 = vpack.c.bf16 %v10077, %v10077
      %v10170 = vpack.c.bf16 %v10078, %v10078
      %v10171 = vpack.c.bf16 %v10081, %v10079
      %v10172 = vpack.c.bf16 %v10082, %v10080
      %v10173 = vpack.c.bf16 %v10083, %v10083
      %v10174 = vpack.c.bf16 %v10084, %v10084
      %v10175 = vpack.c.bf16 %v10087, %v10085
      %v10176 = vpack.c.bf16 %v10088, %v10086
      %v10177 = vpack.c.bf16 %v10089, %v10089
      %v10178 = vpack.c.bf16 %v10090, %v10090
      %v10179 = vpack.c.bf16 %v10093, %v10091
      %v10180 = vpack.c.bf16 %v10094, %v10092
      %v10181 = vpack.c.bf16 %v10095, %v10095
      %v10182 = vpack.c.bf16 %v10096, %v10096
      %v10183 = vpack.c.bf16 %v10099, %v10097
      %v10184 = vpack.c.bf16 %v10100, %v10098
      %v10185 = vpack.c.bf16 %v10101, %v10101
      %v10186 = vpack.c.bf16 %v10102, %v10102
      %v10187 = vpack.c.bf16 %v10105, %v10103
      %v10188 = vpack.c.bf16 %v10106, %v10104
      %v10189 = vpack.c.bf16 %v10107, %v10107
      %v10190 = vpack.c.bf16 %v10108, %v10108
      %v10191 = vpack.c.bf16 %v10111, %v10109
      %v10192 = vpack.c.bf16 %v10112, %v10110
      %v10193 = vpack.c.bf16 %v10113, %v10113
      %v10194 = vpack.c.bf16 %v10114, %v10114
      %v10195 = vpack.c.bf16 %v10117, %v10115
      %v10196 = vpack.c.bf16 %v10118, %v10116
      %v10197 = vpack.c.bf16 %v10119, %v10119
      %v10198 = vpack.c.bf16 %v10120, %v10120
      %v10199 = vpack.c.bf16 %v10123, %v10121
      %v10200 = vpack.c.bf16 %v10124, %v10122
      %v10201 = vpack.c.bf16 %v10125, %v10125
      %v10202 = vpack.c.bf16 %v10126, %v10126
      %v10203 = vpack.c.bf16 %v10129, %v10127
      %v10204 = vpack.c.bf16 %v10130, %v10128
      %v10205 = vpack.c.bf16 %v10131, %v10131
      %v10206 = vpack.c.bf16 %v10132, %v10132
      %v10207 = vpack.c.bf16 %v10135, %v10133
      %v10208 = vpack.c.bf16 %v10136, %v10134
      %v10209 = vpack.c.bf16 %v10137, %v10137
      %v10210 = vpack.c.bf16 %v10138, %v10138
      %v10211 = vpack.c.bf16 %v10141, %v10139
      %v10212 = vpack.c.bf16 %v10142, %v10140
      %v10213 = vpack.c.bf16 %v10143, %v10143
      %v10214 = vpack.c.bf16 %v10144, %v10144
      %v10215 = vpack.c.bf16 %v10147, %v10145
      %v10216 = vpack.c.bf16 %v10148, %v10146
      %v10217 = vpack.c.bf16 %v10149, %v10149
      %v10218 = vpack.c.bf16 %v10150, %v10150
      %v10219 = vpack.c.bf16 %v10153, %v10151
      %v10220 = vpack.c.bf16 %v10154, %v10152
      %v10221 = vpack.c.bf16 %v10155, %v10155
      %v10222 = vpack.c.bf16 %v10156, %v10156
      %v10223 = vpack.c.bf16 %v10159, %v10157
      %v10224 = vpack.c.bf16 %v10160, %v10158
      %v10225 = vpack.c.bf16 %v10161, %v10161
      %v10226 = vpack.c.bf16 %v10162, %v10162
      %v10227 = vld [vmem:[%s601] sm:$0xfc]
      %v10228 = vld [vmem:[%s601 + $0x8] sm:$0xfc]
      %v10229 = vld [vmem:[%s601 + $0x20] sm:$0x3]
      %v10230 = vld [vmem:[%s601 + $0x28] sm:$0x3]
      %v10231 = vld [vmem:[%s601 + $0x30] sm:$0xfc]
      %v10232 = vld [vmem:[%s601 + $0x38] sm:$0xfc]
      %v10233 = vld [vmem:[%s601 + $0x50] sm:$0x3]
      %v10234 = vld [vmem:[%s601 + $0x58] sm:$0x3]
      %v10235 = vld [vmem:[%s601 + $0x60] sm:$0xfc]
      %v10236 = vld [vmem:[%s601 + $0x68] sm:$0xfc]
      %v10237 = vld [vmem:[%s601 + $0x80] sm:$0x3]
      %v10238 = vld [vmem:[%s601 + $0x88] sm:$0x3]
      %v10239 = vld [vmem:[%s601 + $0x90] sm:$0xfc]
      %v10240 = vld [vmem:[%s601 + $0x98] sm:$0xfc]
      %v10241 = vld [vmem:[%s601 + $0xb0] sm:$0x3]
      %v10242 = vld [vmem:[%s601 + $0xb8] sm:$0x3]
      %v10243 = vld [vmem:[%s601 + $0xc0] sm:$0xfc]
      %v10244 = vld [vmem:[%s601 + $0xc8] sm:$0xfc]
      %v10245 = vld [vmem:[%s601 + $0xe0] sm:$0x3]
      %v10246 = vld [vmem:[%s601 + $0xe8] sm:$0x3]
      %v10247 = vld [vmem:[%s601 + $0xf0] sm:$0xfc]
      %v10248 = vld [vmem:[%s601 + $0xf8] sm:$0xfc]
      %v10249 = vld [vmem:[%s601 + $0x110] sm:$0x3]
      %v10250 = vld [vmem:[%s601 + $0x118] sm:$0x3]
      %v10251 = vld [vmem:[%s601 + $0x120] sm:$0xfc]
      %v10252 = vld [vmem:[%s601 + $0x128] sm:$0xfc]
      %v10253 = vld [vmem:[%s601 + $0x140] sm:$0x3]
      %v10254 = vld [vmem:[%s601 + $0x148] sm:$0x3]
      %v10255 = vld [vmem:[%s601 + $0x150] sm:$0xfc]
      %v10256 = vld [vmem:[%s601 + $0x158] sm:$0xfc]
      %v10257 = vld [vmem:[%s601 + $0x170] sm:$0x3]
      %v10258 = vld [vmem:[%s601 + $0x178] sm:$0x3]
      %v10259 = vld [vmem:[%s601 + $0x180] sm:$0xfc]
      %v10260 = vld [vmem:[%s601 + $0x188] sm:$0xfc]
      %v10261 = vld [vmem:[%s601 + $0x1a0] sm:$0x3]
      %v10262 = vld [vmem:[%s601 + $0x1a8] sm:$0x3]
      %v10263 = vld [vmem:[%s601 + $0x1b0] sm:$0xfc]
      %v10264 = vld [vmem:[%s601 + $0x1b8] sm:$0xfc]
      %v10265 = vld [vmem:[%s601 + $0x1d0] sm:$0x3]
      %v10266 = vld [vmem:[%s601 + $0x1d8] sm:$0x3]
      %v10267 = vld [vmem:[%s601 + $0x1e0] sm:$0xfc]
      %v10268 = vld [vmem:[%s601 + $0x1e8] sm:$0xfc]
      %v10269 = vld [vmem:[%s601 + $0x200] sm:$0x3]
      %v10270 = vld [vmem:[%s601 + $0x208] sm:$0x3]
      %v10271 = vld [vmem:[%s601 + $0x210] sm:$0xfc]
      %v10272 = vld [vmem:[%s601 + $0x218] sm:$0xfc]
      %v10273 = vld [vmem:[%s601 + $0x230] sm:$0x3]
      %v10274 = vld [vmem:[%s601 + $0x238] sm:$0x3]
      %v10275 = vld [vmem:[%s601 + $0x240] sm:$0xfc]
      %v10276 = vld [vmem:[%s601 + $0x248] sm:$0xfc]
      %v10277 = vld [vmem:[%s601 + $0x260] sm:$0x3]
      %v10278 = vld [vmem:[%s601 + $0x268] sm:$0x3]
      %v10279 = vld [vmem:[%s601 + $0x270] sm:$0xfc]
      %v10280 = vld [vmem:[%s601 + $0x278] sm:$0xfc]
      %v10281 = vld [vmem:[%s601 + $0x290] sm:$0x3]
      %v10282 = vld [vmem:[%s601 + $0x298] sm:$0x3]
      %v10283 = vld [vmem:[%s601 + $0x2a0] sm:$0xfc]
      %v10284 = vld [vmem:[%s601 + $0x2a8] sm:$0xfc]
      %v10285 = vld [vmem:[%s601 + $0x2c0] sm:$0x3]
      %v10286 = vld [vmem:[%s601 + $0x2c8] sm:$0x3]
      %v10287 = vld [vmem:[%s601 + $0x2d0] sm:$0xfc]
      %v10288 = vld [vmem:[%s601 + $0x2d8] sm:$0xfc]
      %v10289 = vld [vmem:[%s601 + $0x2f0] sm:$0x3]
      %v10290 = vld [vmem:[%s601 + $0x2f8] sm:$0x3]
      %v10291 = vpack.c.bf16 %v10069, %v10227
      %v10292 = vpack.c.bf16 %v10070, %v10228
      %v10293 = vpack.c.bf16 %v10229, %v10229
      %v10294 = vpack.c.bf16 %v10230, %v10230
      %v10295 = vpack.c.bf16 %v10075, %v10231
      %v10296 = vpack.c.bf16 %v10076, %v10232
      %v10297 = vpack.c.bf16 %v10233, %v10233
      %v10298 = vpack.c.bf16 %v10234, %v10234
      %v10299 = vpack.c.bf16 %v10081, %v10235
      %v10300 = vpack.c.bf16 %v10082, %v10236
      %v10301 = vpack.c.bf16 %v10237, %v10237
      %v10302 = vpack.c.bf16 %v10238, %v10238
      %v10303 = vpack.c.bf16 %v10087, %v10239
      %v10304 = vpack.c.bf16 %v10088, %v10240
      %v10305 = vpack.c.bf16 %v10241, %v10241
      %v10306 = vpack.c.bf16 %v10242, %v10242
      %v10307 = vpack.c.bf16 %v10093, %v10243
      %v10308 = vpack.c.bf16 %v10094, %v10244
      %v10309 = vpack.c.bf16 %v10245, %v10245
      %v10310 = vpack.c.bf16 %v10246, %v10246
      %v10311 = vpack.c.bf16 %v10099, %v10247
      %v10312 = vpack.c.bf16 %v10100, %v10248
      %v10313 = vpack.c.bf16 %v10249, %v10249
      %v10314 = vpack.c.bf16 %v10250, %v10250
      %v10315 = vpack.c.bf16 %v10105, %v10251
      %v10316 = vpack.c.bf16 %v10106, %v10252
      %v10317 = vpack.c.bf16 %v10253, %v10253
      %v10318 = vpack.c.bf16 %v10254, %v10254
      %v10319 = vpack.c.bf16 %v10111, %v10255
      %v10320 = vpack.c.bf16 %v10112, %v10256
      %v10321 = vpack.c.bf16 %v10257, %v10257
      %v10322 = vpack.c.bf16 %v10258, %v10258
      %v10323 = vpack.c.bf16 %v10117, %v10259
      %v10324 = vpack.c.bf16 %v10118, %v10260
      %v10325 = vpack.c.bf16 %v10261, %v10261
      %v10326 = vpack.c.bf16 %v10262, %v10262
      %v10327 = vpack.c.bf16 %v10123, %v10263
      %v10328 = vpack.c.bf16 %v10124, %v10264
      %v10329 = vpack.c.bf16 %v10265, %v10265
      %v10330 = vpack.c.bf16 %v10266, %v10266
      %v10331 = vpack.c.bf16 %v10129, %v10267
      %v10332 = vpack.c.bf16 %v10130, %v10268
      %v10333 = vpack.c.bf16 %v10269, %v10269
      %v10334 = vpack.c.bf16 %v10270, %v10270
      %v10335 = vpack.c.bf16 %v10135, %v10271
      %v10336 = vpack.c.bf16 %v10136, %v10272
      %v10337 = vpack.c.bf16 %v10273, %v10273
      %v10338 = vpack.c.bf16 %v10274, %v10274
      %v10339 = vpack.c.bf16 %v10141, %v10275
      %v10340 = vpack.c.bf16 %v10142, %v10276
      %v10341 = vpack.c.bf16 %v10277, %v10277
      %v10342 = vpack.c.bf16 %v10278, %v10278
      %v10343 = vpack.c.bf16 %v10147, %v10279
      %v10344 = vpack.c.bf16 %v10148, %v10280
      %v10345 = vpack.c.bf16 %v10281, %v10281
      %v10346 = vpack.c.bf16 %v10282, %v10282
      %v10347 = vpack.c.bf16 %v10153, %v10283
      %v10348 = vpack.c.bf16 %v10154, %v10284
      %v10349 = vpack.c.bf16 %v10285, %v10285
      %v10350 = vpack.c.bf16 %v10286, %v10286
      %v10351 = vpack.c.bf16 %v10159, %v10287
      %v10352 = vpack.c.bf16 %v10160, %v10288
      %v10353 = vpack.c.bf16 %v10289, %v10289
      %v10354 = vpack.c.bf16 %v10290, %v10290
      %v10355 = vld [vmem:[%s7788] sm:$0xfe]
      %v10356 = vld [vmem:[%s7788 + $0x8] sm:$0xfe]
      %v10357 = vld [vmem:[%s7788 + $0x10] sm:$0xff]
      %v10358 = vld [vmem:[%s7788 + $0x18] sm:$0xff]
      %v10359 = vld [vmem:[%s7788 + $0x20] sm:$0x1]
      %v10360 = vld [vmem:[%s7788 + $0x28] sm:$0x1]
      %v10361 = vld [vmem:[%s7788 + $0x30] sm:$0xfe]
      %v10362 = vld [vmem:[%s7788 + $0x38] sm:$0xfe]
      %v10363 = vld [vmem:[%s7788 + $0x40] sm:$0xff]
      %v10364 = vld [vmem:[%s7788 + $0x48] sm:$0xff]
      %v10365 = vld [vmem:[%s7788 + $0x50] sm:$0x1]
      %v10366 = vld [vmem:[%s7788 + $0x58] sm:$0x1]
      %v10367 = vld [vmem:[%s7788 + $0x60] sm:$0xfe]
      %v10368 = vld [vmem:[%s7788 + $0x68] sm:$0xfe]
      %v10369 = vld [vmem:[%s7788 + $0x70] sm:$0xff]
      %v10370 = vld [vmem:[%s7788 + $0x78] sm:$0xff]
      %v10371 = vld [vmem:[%s7788 + $0x80] sm:$0x1]
      %v10372 = vld [vmem:[%s7788 + $0x88] sm:$0x1]
      %v10373 = vld [vmem:[%s7788 + $0x90] sm:$0xfe]
      %v10374 = vld [vmem:[%s7788 + $0x98] sm:$0xfe]
      %v10375 = vld [vmem:[%s7788 + $0xa0] sm:$0xff]
      %v10376 = vld [vmem:[%s7788 + $0xa8] sm:$0xff]
      %v10377 = vld [vmem:[%s7788 + $0xb0] sm:$0x1]
      %v10378 = vld [vmem:[%s7788 + $0xb8] sm:$0x1]
      %v10379 = vld [vmem:[%s7788 + $0xc0] sm:$0xfe]
      %v10380 = vld [vmem:[%s7788 + $0xc8] sm:$0xfe]
      %v10381 = vld [vmem:[%s7788 + $0xd0] sm:$0xff]
      %v10382 = vld [vmem:[%s7788 + $0xd8] sm:$0xff]
      %v10383 = vld [vmem:[%s7788 + $0xe0] sm:$0x1]
      %v10384 = vld [vmem:[%s7788 + $0xe8] sm:$0x1]
      %v10385 = vld [vmem:[%s7788 + $0xf0] sm:$0xfe]
      %v10386 = vld [vmem:[%s7788 + $0xf8] sm:$0xfe]
      %v10387 = vld [vmem:[%s7788 + $0x100] sm:$0xff]
      %v10388 = vld [vmem:[%s7788 + $0x108] sm:$0xff]
      %v10389 = vld [vmem:[%s7788 + $0x110] sm:$0x1]
      %v10390 = vld [vmem:[%s7788 + $0x118] sm:$0x1]
      %v10391 = vld [vmem:[%s7788 + $0x120] sm:$0xfe]
      %v10392 = vld [vmem:[%s7788 + $0x128] sm:$0xfe]
      %v10393 = vld [vmem:[%s7788 + $0x130] sm:$0xff]
      %v10394 = vld [vmem:[%s7788 + $0x138] sm:$0xff]
      %v10395 = vld [vmem:[%s7788 + $0x140] sm:$0x1]
      %v10396 = vld [vmem:[%s7788 + $0x148] sm:$0x1]
      %v10397 = vld [vmem:[%s7788 + $0x150] sm:$0xfe]
      %v10398 = vld [vmem:[%s7788 + $0x158] sm:$0xfe]
      %v10399 = vld [vmem:[%s7788 + $0x160] sm:$0xff]
      %v10400 = vld [vmem:[%s7788 + $0x168] sm:$0xff]
      %v10401 = vld [vmem:[%s7788 + $0x170] sm:$0x1]
      %v10402 = vld [vmem:[%s7788 + $0x178] sm:$0x1]
      %v10403 = vld [vmem:[%s7788 + $0x180] sm:$0xfe]
      %v10404 = vld [vmem:[%s7788 + $0x188] sm:$0xfe]
      %v10405 = vld [vmem:[%s7788 + $0x190] sm:$0xff]
      %v10406 = vld [vmem:[%s7788 + $0x198] sm:$0xff]
      %v10407 = vld [vmem:[%s7788 + $0x1a0] sm:$0x1]
      %v10408 = vld [vmem:[%s7788 + $0x1a8] sm:$0x1]
      %v10409 = vld [vmem:[%s7788 + $0x1b0] sm:$0xfe]
      %v10410 = vld [vmem:[%s7788 + $0x1b8] sm:$0xfe]
      %v10411 = vld [vmem:[%s7788 + $0x1c0] sm:$0xff]
      %v10412 = vld [vmem:[%s7788 + $0x1c8] sm:$0xff]
      %v10413 = vld [vmem:[%s7788 + $0x1d0] sm:$0x1]
      %v10414 = vld [vmem:[%s7788 + $0x1d8] sm:$0x1]
      %v10415 = vld [vmem:[%s7788 + $0x1e0] sm:$0xfe]
      %v10416 = vld [vmem:[%s7788 + $0x1e8] sm:$0xfe]
      %v10417 = vld [vmem:[%s7788 + $0x1f0] sm:$0xff]
      %v10418 = vld [vmem:[%s7788 + $0x1f8] sm:$0xff]
      %v10419 = vld [vmem:[%s7788 + $0x200] sm:$0x1]
      %v10420 = vld [vmem:[%s7788 + $0x208] sm:$0x1]
      %v10421 = vld [vmem:[%s7788 + $0x210] sm:$0xfe]
      %v10422 = vld [vmem:[%s7788 + $0x218] sm:$0xfe]
      %v10423 = vld [vmem:[%s7788 + $0x220] sm:$0xff]
      %v10424 = vld [vmem:[%s7788 + $0x228] sm:$0xff]
      %v10425 = vld [vmem:[%s7788 + $0x230] sm:$0x1]
      %v10426 = vld [vmem:[%s7788 + $0x238] sm:$0x1]
      %v10427 = vld [vmem:[%s7788 + $0x240] sm:$0xfe]
      %v10428 = vld [vmem:[%s7788 + $0x248] sm:$0xfe]
      %v10429 = vld [vmem:[%s7788 + $0x250] sm:$0xff]
      %v10430 = vld [vmem:[%s7788 + $0x258] sm:$0xff]
      %v10431 = vld [vmem:[%s7788 + $0x260] sm:$0x1]
      %v10432 = vld [vmem:[%s7788 + $0x268] sm:$0x1]
      %v10433 = vld [vmem:[%s7788 + $0x270] sm:$0xfe]
      %v10434 = vld [vmem:[%s7788 + $0x278] sm:$0xfe]
      %v10435 = vld [vmem:[%s7788 + $0x280] sm:$0xff]
      %v10436 = vld [vmem:[%s7788 + $0x288] sm:$0xff]
      %v10437 = vld [vmem:[%s7788 + $0x290] sm:$0x1]
      %v10438 = vld [vmem:[%s7788 + $0x298] sm:$0x1]
      %v10439 = vld [vmem:[%s7788 + $0x2a0] sm:$0xfe]
      %v10440 = vld [vmem:[%s7788 + $0x2a8] sm:$0xfe]
      %v10441 = vld [vmem:[%s7788 + $0x2b0] sm:$0xff]
      %v10442 = vld [vmem:[%s7788 + $0x2b8] sm:$0xff]
      %v10443 = vld [vmem:[%s7788 + $0x2c0] sm:$0x1]
      %v10444 = vld [vmem:[%s7788 + $0x2c8] sm:$0x1]
      %v10445 = vld [vmem:[%s7788 + $0x2d0] sm:$0xfe]
      %v10446 = vld [vmem:[%s7788 + $0x2d8] sm:$0xfe]
      %v10447 = vld [vmem:[%s7788 + $0x2e0] sm:$0xff]
      %v10448 = vld [vmem:[%s7788 + $0x2e8] sm:$0xff]
      %v10449 = vld [vmem:[%s7788 + $0x2f0] sm:$0x1]
      %v10450 = vld [vmem:[%s7788 + $0x2f8] sm:$0x1]
      %v10451 = vpack.c.bf16 %v10357, %v10355
      %v10452 = vpack.c.bf16 %v10358, %v10356
      %v10453 = vpack.c.bf16 %v10359, %v10359
      %v10454 = vpack.c.bf16 %v10360, %v10360
      %v10455 = vpack.c.bf16 %v10363, %v10361
      %v10456 = vpack.c.bf16 %v10364, %v10362
      %v10457 = vpack.c.bf16 %v10365, %v10365
      %v10458 = vpack.c.bf16 %v10366, %v10366
      %v10459 = vpack.c.bf16 %v10369, %v10367
      %v10460 = vpack.c.bf16 %v10370, %v10368
      %v10461 = vpack.c.bf16 %v10371, %v10371
      %v10462 = vpack.c.bf16 %v10372, %v10372
      %v10463 = vpack.c.bf16 %v10375, %v10373
      %v10464 = vpack.c.bf16 %v10376, %v10374
      %v10465 = vpack.c.bf16 %v10377, %v10377
      %v10466 = vpack.c.bf16 %v10378, %v10378
      %v10467 = vpack.c.bf16 %v10381, %v10379
      %v10468 = vpack.c.bf16 %v10382, %v10380
      %v10469 = vpack.c.bf16 %v10383, %v10383
      %v10470 = vpack.c.bf16 %v10384, %v10384
      %v10471 = vpack.c.bf16 %v10387, %v10385
      %v10472 = vpack.c.bf16 %v10388, %v10386
      %v10473 = vpack.c.bf16 %v10389, %v10389
      %v10474 = vpack.c.bf16 %v10390, %v10390
      %v10475 = vpack.c.bf16 %v10393, %v10391
      %v10476 = vpack.c.bf16 %v10394, %v10392
      %v10477 = vpack.c.bf16 %v10395, %v10395
      %v10478 = vpack.c.bf16 %v10396, %v10396
      %v10479 = vpack.c.bf16 %v10399, %v10397
      %v10480 = vpack.c.bf16 %v10400, %v10398
      %v10481 = vpack.c.bf16 %v10401, %v10401
      %v10482 = vpack.c.bf16 %v10402, %v10402
      %v10483 = vpack.c.bf16 %v10405, %v10403
      %v10484 = vpack.c.bf16 %v10406, %v10404
      %v10485 = vpack.c.bf16 %v10407, %v10407
      %v10486 = vpack.c.bf16 %v10408, %v10408
      %v10487 = vpack.c.bf16 %v10411, %v10409
      %v10488 = vpack.c.bf16 %v10412, %v10410
      %v10489 = vpack.c.bf16 %v10413, %v10413
      %v10490 = vpack.c.bf16 %v10414, %v10414
      %v10491 = vpack.c.bf16 %v10417, %v10415
      %v10492 = vpack.c.bf16 %v10418, %v10416
      %v10493 = vpack.c.bf16 %v10419, %v10419
      %v10494 = vpack.c.bf16 %v10420, %v10420
      %v10495 = vpack.c.bf16 %v10423, %v10421
      %v10496 = vpack.c.bf16 %v10424, %v10422
      %v10497 = vpack.c.bf16 %v10425, %v10425
      %v10498 = vpack.c.bf16 %v10426, %v10426
      %v10499 = vpack.c.bf16 %v10429, %v10427
      %v10500 = vpack.c.bf16 %v10430, %v10428
      %v10501 = vpack.c.bf16 %v10431, %v10431
      %v10502 = vpack.c.bf16 %v10432, %v10432
      %v10503 = vpack.c.bf16 %v10435, %v10433
      %v10504 = vpack.c.bf16 %v10436, %v10434
      %v10505 = vpack.c.bf16 %v10437, %v10437
      %v10506 = vpack.c.bf16 %v10438, %v10438
      %v10507 = vpack.c.bf16 %v10441, %v10439
      %v10508 = vpack.c.bf16 %v10442, %v10440
      %v10509 = vpack.c.bf16 %v10443, %v10443
      %v10510 = vpack.c.bf16 %v10444, %v10444
      %v10511 = vpack.c.bf16 %v10447, %v10445
      %v10512 = vpack.c.bf16 %v10448, %v10446
      %v10513 = vpack.c.bf16 %v10449, %v10449
      %v10514 = vpack.c.bf16 %v10450, %v10450
      %v10515 = vld [vmem:[%s7788] sm:$0xfc]
      %v10516 = vld [vmem:[%s7788 + $0x8] sm:$0xfc]
      %v10517 = vld [vmem:[%s7788 + $0x20] sm:$0x3]
      %v10518 = vld [vmem:[%s7788 + $0x28] sm:$0x3]
      %v10519 = vld [vmem:[%s7788 + $0x30] sm:$0xfc]
      %v10520 = vld [vmem:[%s7788 + $0x38] sm:$0xfc]
      %v10521 = vld [vmem:[%s7788 + $0x50] sm:$0x3]
      %v10522 = vld [vmem:[%s7788 + $0x58] sm:$0x3]
      %v10523 = vld [vmem:[%s7788 + $0x60] sm:$0xfc]
      %v10524 = vld [vmem:[%s7788 + $0x68] sm:$0xfc]
      %v10525 = vld [vmem:[%s7788 + $0x80] sm:$0x3]
      %v10526 = vld [vmem:[%s7788 + $0x88] sm:$0x3]
      %v10527 = vld [vmem:[%s7788 + $0x90] sm:$0xfc]
      %v10528 = vld [vmem:[%s7788 + $0x98] sm:$0xfc]
      %v10529 = vld [vmem:[%s7788 + $0xb0] sm:$0x3]
      %v10530 = vld [vmem:[%s7788 + $0xb8] sm:$0x3]
      %v10531 = vld [vmem:[%s7788 + $0xc0] sm:$0xfc]
      %v10532 = vld [vmem:[%s7788 + $0xc8] sm:$0xfc]
      %v10533 = vld [vmem:[%s7788 + $0xe0] sm:$0x3]
      %v10534 = vld [vmem:[%s7788 + $0xe8] sm:$0x3]
      %v10535 = vld [vmem:[%s7788 + $0xf0] sm:$0xfc]
      %v10536 = vld [vmem:[%s7788 + $0xf8] sm:$0xfc]
      %v10537 = vld [vmem:[%s7788 + $0x110] sm:$0x3]
      %v10538 = vld [vmem:[%s7788 + $0x118] sm:$0x3]
      %v10539 = vld [vmem:[%s7788 + $0x120] sm:$0xfc]
      %v10540 = vld [vmem:[%s7788 + $0x128] sm:$0xfc]
      %v10541 = vld [vmem:[%s7788 + $0x140] sm:$0x3]
      %v10542 = vld [vmem:[%s7788 + $0x148] sm:$0x3]
      %v10543 = vld [vmem:[%s7788 + $0x150] sm:$0xfc]
      %v10544 = vld [vmem:[%s7788 + $0x158] sm:$0xfc]
      %v10545 = vld [vmem:[%s7788 + $0x170] sm:$0x3]
      %v10546 = vld [vmem:[%s7788 + $0x178] sm:$0x3]
      %v10547 = vld [vmem:[%s7788 + $0x180] sm:$0xfc]
      %v10548 = vld [vmem:[%s7788 + $0x188] sm:$0xfc]
      %v10549 = vld [vmem:[%s7788 + $0x1a0] sm:$0x3]
      %v10550 = vld [vmem:[%s7788 + $0x1a8] sm:$0x3]
      %v10551 = vld [vmem:[%s7788 + $0x1b0] sm:$0xfc]
      %v10552 = vld [vmem:[%s7788 + $0x1b8] sm:$0xfc]
      %v10553 = vld [vmem:[%s7788 + $0x1d0] sm:$0x3]
      %v10554 = vld [vmem:[%s7788 + $0x1d8] sm:$0x3]
      %v10555 = vld [vmem:[%s7788 + $0x1e0] sm:$0xfc]
      %v10556 = vld [vmem:[%s7788 + $0x1e8] sm:$0xfc]
      %v10557 = vld [vmem:[%s7788 + $0x200] sm:$0x3]
      %v10558 = vld [vmem:[%s7788 + $0x208] sm:$0x3]
      %v10559 = vld [vmem:[%s7788 + $0x210] sm:$0xfc]
      %v10560 = vld [vmem:[%s7788 + $0x218] sm:$0xfc]
      %v10561 = vld [vmem:[%s7788 + $0x230] sm:$0x3]
      %v10562 = vld [vmem:[%s7788 + $0x238] sm:$0x3]
      %v10563 = vld [vmem:[%s7788 + $0x240] sm:$0xfc]
      %v10564 = vld [vmem:[%s7788 + $0x248] sm:$0xfc]
      %v10565 = vld [vmem:[%s7788 + $0x260] sm:$0x3]
      %v10566 = vld [vmem:[%s7788 + $0x268] sm:$0x3]
      %v10567 = vld [vmem:[%s7788 + $0x270] sm:$0xfc]
      %v10568 = vld [vmem:[%s7788 + $0x278] sm:$0xfc]
      %v10569 = vld [vmem:[%s7788 + $0x290] sm:$0x3]
      %v10570 = vld [vmem:[%s7788 + $0x298] sm:$0x3]
      %v10571 = vld [vmem:[%s7788 + $0x2a0] sm:$0xfc]
      %v10572 = vld [vmem:[%s7788 + $0x2a8] sm:$0xfc]
      %v10573 = vld [vmem:[%s7788 + $0x2c0] sm:$0x3]
      %v10574 = vld [vmem:[%s7788 + $0x2c8] sm:$0x3]
      %v10575 = vld [vmem:[%s7788 + $0x2d0] sm:$0xfc]
      %v10576 = vld [vmem:[%s7788 + $0x2d8] sm:$0xfc]
      %v10577 = vld [vmem:[%s7788 + $0x2f0] sm:$0x3]
      %v10578 = vld [vmem:[%s7788 + $0x2f8] sm:$0x3]
      %v10579 = vpack.c.bf16 %v10357, %v10515
      %v10580 = vpack.c.bf16 %v10358, %v10516
      %v10581 = vpack.c.bf16 %v10517, %v10517
      %v10582 = vpack.c.bf16 %v10518, %v10518
      %v10583 = vpack.c.bf16 %v10363, %v10519
      %v10584 = vpack.c.bf16 %v10364, %v10520
      %v10585 = vpack.c.bf16 %v10521, %v10521
      %v10586 = vpack.c.bf16 %v10522, %v10522
      %v10587 = vpack.c.bf16 %v10369, %v10523
      %v10588 = vpack.c.bf16 %v10370, %v10524
      %v10589 = vpack.c.bf16 %v10525, %v10525
      %v10590 = vpack.c.bf16 %v10526, %v10526
      %v10591 = vpack.c.bf16 %v10375, %v10527
      %v10592 = vpack.c.bf16 %v10376, %v10528
      %v10593 = vpack.c.bf16 %v10529, %v10529
      %v10594 = vpack.c.bf16 %v10530, %v10530
      %v10595 = vpack.c.bf16 %v10381, %v10531
      %v10596 = vpack.c.bf16 %v10382, %v10532
      %v10597 = vpack.c.bf16 %v10533, %v10533
      %v10598 = vpack.c.bf16 %v10534, %v10534
      %v10599 = vpack.c.bf16 %v10387, %v10535
      %v10600 = vpack.c.bf16 %v10388, %v10536
      %v10601 = vpack.c.bf16 %v10537, %v10537
      %v10602 = vpack.c.bf16 %v10538, %v10538
      %v10603 = vpack.c.bf16 %v10393, %v10539
      %v10604 = vpack.c.bf16 %v10394, %v10540
      %v10605 = vpack.c.bf16 %v10541, %v10541
      %v10606 = vpack.c.bf16 %v10542, %v10542
      %v10607 = vpack.c.bf16 %v10399, %v10543
      %v10608 = vpack.c.bf16 %v10400, %v10544
      %v10609 = vpack.c.bf16 %v10545, %v10545
      %v10610 = vpack.c.bf16 %v10546, %v10546
      %v10611 = vpack.c.bf16 %v10405, %v10547
      %v10612 = vpack.c.bf16 %v10406, %v10548
      %v10613 = vpack.c.bf16 %v10549, %v10549
      %v10614 = vpack.c.bf16 %v10550, %v10550
      %v10615 = vpack.c.bf16 %v10411, %v10551
      %v10616 = vpack.c.bf16 %v10412, %v10552
      %v10617 = vpack.c.bf16 %v10553, %v10553
      %v10618 = vpack.c.bf16 %v10554, %v10554
      %v10619 = vpack.c.bf16 %v10417, %v10555
      %v10620 = vpack.c.bf16 %v10418, %v10556
      %v10621 = vpack.c.bf16 %v10557, %v10557
      %v10622 = vpack.c.bf16 %v10558, %v10558
      %v10623 = vpack.c.bf16 %v10423, %v10559
      %v10624 = vpack.c.bf16 %v10424, %v10560
      %v10625 = vpack.c.bf16 %v10561, %v10561
      %v10626 = vpack.c.bf16 %v10562, %v10562
      %v10627 = vpack.c.bf16 %v10429, %v10563
      %v10628 = vpack.c.bf16 %v10430, %v10564
      %v10629 = vpack.c.bf16 %v10565, %v10565
      %v10630 = vpack.c.bf16 %v10566, %v10566
      %v10631 = vpack.c.bf16 %v10435, %v10567
      %v10632 = vpack.c.bf16 %v10436, %v10568
      %v10633 = vpack.c.bf16 %v10569, %v10569
      %v10634 = vpack.c.bf16 %v10570, %v10570
      %v10635 = vpack.c.bf16 %v10441, %v10571
      %v10636 = vpack.c.bf16 %v10442, %v10572
      %v10637 = vpack.c.bf16 %v10573, %v10573
      %v10638 = vpack.c.bf16 %v10574, %v10574
      %v10639 = vpack.c.bf16 %v10447, %v10575
      %v10640 = vpack.c.bf16 %v10448, %v10576
      %v10641 = vpack.c.bf16 %v10577, %v10577
      %v10642 = vpack.c.bf16 %v10578, %v10578
      %v10644 = vshrl.u32 %v10291, 16
      %v10646 = vshll.u32 %v10291, 16
      %v10648 = vrot.slane %v10646, 1
      %v10649 = vor.u32 %v10644, %v10648
      %v10651 = vshll.u32 %v10293, 16
      %v10653 = vrot.slane %v10651, 1
      %v10654 = vsel %vm1147, %v10649, %v10653
      %v10656 = vshrl.u32 %v10292, 16
      %v10658 = vshll.u32 %v10292, 16
      %v10660 = vrot.slane %v10658, 1
      %v10661 = vor.u32 %v10656, %v10660
      %v10663 = vshll.u32 %v10294, 16
      %v10665 = vrot.slane %v10663, 1
      %v10666 = vsel %vm1147, %v10661, %v10665
      %v10667 = vshrl.u32 %v10293, 16
      %v10669 = vshrl.u32 %v10294, 16
      %v10672 = vshrl.u32 %v10295, 16
      %v10674 = vshll.u32 %v10295, 16
      %v10676 = vrot.slane %v10674, 1
      %v10677 = vor.u32 %v10672, %v10676
      %v10679 = vshll.u32 %v10297, 16
      %v10681 = vrot.slane %v10679, 1
      %v10682 = vsel %vm1147, %v10677, %v10681
      %v10684 = vshrl.u32 %v10296, 16
      %v10686 = vshll.u32 %v10296, 16
      %v10688 = vrot.slane %v10686, 1
      %v10689 = vor.u32 %v10684, %v10688
      %v10691 = vshll.u32 %v10298, 16
      %v10693 = vrot.slane %v10691, 1
      %v10694 = vsel %vm1147, %v10689, %v10693
      %v10695 = vshrl.u32 %v10297, 16
      %v10697 = vshrl.u32 %v10298, 16
      %v10700 = vshrl.u32 %v10299, 16
      %v10702 = vshll.u32 %v10299, 16
      %v10704 = vrot.slane %v10702, 1
      %v10705 = vor.u32 %v10700, %v10704
      %v10707 = vshll.u32 %v10301, 16
      %v10709 = vrot.slane %v10707, 1
      %v10710 = vsel %vm1147, %v10705, %v10709
      %v10712 = vshrl.u32 %v10300, 16
      %v10714 = vshll.u32 %v10300, 16
      %v10716 = vrot.slane %v10714, 1
      %v10717 = vor.u32 %v10712, %v10716
      %v10719 = vshll.u32 %v10302, 16
      %v10721 = vrot.slane %v10719, 1
      %v10722 = vsel %vm1147, %v10717, %v10721
      %v10723 = vshrl.u32 %v10301, 16
      %v10725 = vshrl.u32 %v10302, 16
      %v10728 = vshrl.u32 %v10303, 16
      %v10730 = vshll.u32 %v10303, 16
      %v10732 = vrot.slane %v10730, 1
      %v10733 = vor.u32 %v10728, %v10732
      %v10735 = vshll.u32 %v10305, 16
      %v10737 = vrot.slane %v10735, 1
      %v10738 = vsel %vm1147, %v10733, %v10737
      %v10740 = vshrl.u32 %v10304, 16
      %v10742 = vshll.u32 %v10304, 16
      %v10744 = vrot.slane %v10742, 1
      %v10745 = vor.u32 %v10740, %v10744
      %v10747 = vshll.u32 %v10306, 16
      %v10749 = vrot.slane %v10747, 1
      %v10750 = vsel %vm1147, %v10745, %v10749
      %v10751 = vshrl.u32 %v10305, 16
      %v10753 = vshrl.u32 %v10306, 16
      %v10756 = vshrl.u32 %v10307, 16
      %v10758 = vshll.u32 %v10307, 16
      %v10760 = vrot.slane %v10758, 1
      %v10761 = vor.u32 %v10756, %v10760
      %v10763 = vshll.u32 %v10309, 16
      %v10765 = vrot.slane %v10763, 1
      %v10766 = vsel %vm1147, %v10761, %v10765
      %v10768 = vshrl.u32 %v10308, 16
      %v10770 = vshll.u32 %v10308, 16
      %v10772 = vrot.slane %v10770, 1
      %v10773 = vor.u32 %v10768, %v10772
      %v10775 = vshll.u32 %v10310, 16
      %v10777 = vrot.slane %v10775, 1
      %v10778 = vsel %vm1147, %v10773, %v10777
      %v10779 = vshrl.u32 %v10309, 16
      %v10781 = vshrl.u32 %v10310, 16
      %v10784 = vshrl.u32 %v10311, 16
      %v10786 = vshll.u32 %v10311, 16
      %v10788 = vrot.slane %v10786, 1
      %v10789 = vor.u32 %v10784, %v10788
      %v10791 = vshll.u32 %v10313, 16
      %v10793 = vrot.slane %v10791, 1
      %v10794 = vsel %vm1147, %v10789, %v10793
      %v10796 = vshrl.u32 %v10312, 16
      %v10798 = vshll.u32 %v10312, 16
      %v10800 = vrot.slane %v10798, 1
      %v10801 = vor.u32 %v10796, %v10800
      %v10803 = vshll.u32 %v10314, 16
      %v10805 = vrot.slane %v10803, 1
      %v10806 = vsel %vm1147, %v10801, %v10805
      %v10807 = vshrl.u32 %v10313, 16
      %v10809 = vshrl.u32 %v10314, 16
      %v10812 = vshrl.u32 %v10315, 16
      %v10814 = vshll.u32 %v10315, 16
      %v10816 = vrot.slane %v10814, 1
      %v10817 = vor.u32 %v10812, %v10816
      %v10819 = vshll.u32 %v10317, 16
      %v10821 = vrot.slane %v10819, 1
      %v10822 = vsel %vm1147, %v10817, %v10821
      %v10824 = vshrl.u32 %v10316, 16
      %v10826 = vshll.u32 %v10316, 16
      %v10828 = vrot.slane %v10826, 1
      %v10829 = vor.u32 %v10824, %v10828
      %v10831 = vshll.u32 %v10318, 16
      %v10833 = vrot.slane %v10831, 1
      %v10834 = vsel %vm1147, %v10829, %v10833
      %v10835 = vshrl.u32 %v10317, 16
      %v10837 = vshrl.u32 %v10318, 16
      %v10840 = vshrl.u32 %v10319, 16
      %v10842 = vshll.u32 %v10319, 16
      %v10844 = vrot.slane %v10842, 1
      %v10845 = vor.u32 %v10840, %v10844
      %v10847 = vshll.u32 %v10321, 16
      %v10849 = vrot.slane %v10847, 1
      %v10850 = vsel %vm1147, %v10845, %v10849
      %v10852 = vshrl.u32 %v10320, 16
      %v10854 = vshll.u32 %v10320, 16
      %v10856 = vrot.slane %v10854, 1
      %v10857 = vor.u32 %v10852, %v10856
      %v10859 = vshll.u32 %v10322, 16
      %v10861 = vrot.slane %v10859, 1
      %v10862 = vsel %vm1147, %v10857, %v10861
      %v10863 = vshrl.u32 %v10321, 16
      %v10865 = vshrl.u32 %v10322, 16
      %v10868 = vshrl.u32 %v10323, 16
      %v10870 = vshll.u32 %v10323, 16
      %v10872 = vrot.slane %v10870, 1
      %v10873 = vor.u32 %v10868, %v10872
      %v10875 = vshll.u32 %v10325, 16
      %v10877 = vrot.slane %v10875, 1
      %v10878 = vsel %vm1147, %v10873, %v10877
      %v10880 = vshrl.u32 %v10324, 16
      %v10882 = vshll.u32 %v10324, 16
      %v10884 = vrot.slane %v10882, 1
      %v10885 = vor.u32 %v10880, %v10884
      %v10887 = vshll.u32 %v10326, 16
      %v10889 = vrot.slane %v10887, 1
      %v10890 = vsel %vm1147, %v10885, %v10889
      %v10891 = vshrl.u32 %v10325, 16
      %v10893 = vshrl.u32 %v10326, 16
      %v10896 = vshrl.u32 %v10327, 16
      %v10898 = vshll.u32 %v10327, 16
      %v10900 = vrot.slane %v10898, 1
      %v10901 = vor.u32 %v10896, %v10900
      %v10903 = vshll.u32 %v10329, 16
      %v10905 = vrot.slane %v10903, 1
      %v10906 = vsel %vm1147, %v10901, %v10905
      %v10908 = vshrl.u32 %v10328, 16
      %v10910 = vshll.u32 %v10328, 16
      %v10912 = vrot.slane %v10910, 1
      %v10913 = vor.u32 %v10908, %v10912
      %v10915 = vshll.u32 %v10330, 16
      %v10917 = vrot.slane %v10915, 1
      %v10918 = vsel %vm1147, %v10913, %v10917
      %v10919 = vshrl.u32 %v10329, 16
      %v10921 = vshrl.u32 %v10330, 16
      %v10924 = vshrl.u32 %v10331, 16
      %v10926 = vshll.u32 %v10331, 16
      %v10928 = vrot.slane %v10926, 1
      %v10929 = vor.u32 %v10924, %v10928
      %v10931 = vshll.u32 %v10333, 16
      %v10933 = vrot.slane %v10931, 1
      %v10934 = vsel %vm1147, %v10929, %v10933
      %v10936 = vshrl.u32 %v10332, 16
      %v10938 = vshll.u32 %v10332, 16
      %v10940 = vrot.slane %v10938, 1
      %v10941 = vor.u32 %v10936, %v10940
      %v10943 = vshll.u32 %v10334, 16
      %v10945 = vrot.slane %v10943, 1
      %v10946 = vsel %vm1147, %v10941, %v10945
      %v10947 = vshrl.u32 %v10333, 16
      %v10949 = vshrl.u32 %v10334, 16
      %v10952 = vshrl.u32 %v10335, 16
      %v10954 = vshll.u32 %v10335, 16
      %v10956 = vrot.slane %v10954, 1
      %v10957 = vor.u32 %v10952, %v10956
      %v10959 = vshll.u32 %v10337, 16
      %v10961 = vrot.slane %v10959, 1
      %v10962 = vsel %vm1147, %v10957, %v10961
      %v10964 = vshrl.u32 %v10336, 16
      %v10966 = vshll.u32 %v10336, 16
      %v10968 = vrot.slane %v10966, 1
      %v10969 = vor.u32 %v10964, %v10968
      %v10971 = vshll.u32 %v10338, 16
      %v10973 = vrot.slane %v10971, 1
      %v10974 = vsel %vm1147, %v10969, %v10973
      %v10975 = vshrl.u32 %v10337, 16
      %v10977 = vshrl.u32 %v10338, 16
      %v10980 = vshrl.u32 %v10339, 16
      %v10982 = vshll.u32 %v10339, 16
      %v10984 = vrot.slane %v10982, 1
      %v10985 = vor.u32 %v10980, %v10984
      %v10987 = vshll.u32 %v10341, 16
      %v10989 = vrot.slane %v10987, 1
      %v10990 = vsel %vm1147, %v10985, %v10989
      %v10992 = vshrl.u32 %v10340, 16
      %v10994 = vshll.u32 %v10340, 16
      %v10996 = vrot.slane %v10994, 1
      %v10997 = vor.u32 %v10992, %v10996
      %v10999 = vshll.u32 %v10342, 16
      %v11001 = vrot.slane %v10999, 1
      %v11002 = vsel %vm1147, %v10997, %v11001
      %v11003 = vshrl.u32 %v10341, 16
      %v11005 = vshrl.u32 %v10342, 16
      %v11008 = vshrl.u32 %v10343, 16
      %v11010 = vshll.u32 %v10343, 16
      %v11012 = vrot.slane %v11010, 1
      %v11013 = vor.u32 %v11008, %v11012
      %v11015 = vshll.u32 %v10345, 16
      %v11017 = vrot.slane %v11015, 1
      %v11018 = vsel %vm1147, %v11013, %v11017
      %v11020 = vshrl.u32 %v10344, 16
      %v11022 = vshll.u32 %v10344, 16
      %v11024 = vrot.slane %v11022, 1
      %v11025 = vor.u32 %v11020, %v11024
      %v11027 = vshll.u32 %v10346, 16
      %v11029 = vrot.slane %v11027, 1
      %v11030 = vsel %vm1147, %v11025, %v11029
      %v11031 = vshrl.u32 %v10345, 16
      %v11033 = vshrl.u32 %v10346, 16
      %v11036 = vshrl.u32 %v10347, 16
      %v11038 = vshll.u32 %v10347, 16
      %v11040 = vrot.slane %v11038, 1
      %v11041 = vor.u32 %v11036, %v11040
      %v11043 = vshll.u32 %v10349, 16
      %v11045 = vrot.slane %v11043, 1
      %v11046 = vsel %vm1147, %v11041, %v11045
      %v11048 = vshrl.u32 %v10348, 16
      %v11050 = vshll.u32 %v10348, 16
      %v11052 = vrot.slane %v11050, 1
      %v11053 = vor.u32 %v11048, %v11052
      %v11055 = vshll.u32 %v10350, 16
      %v11057 = vrot.slane %v11055, 1
      %v11058 = vsel %vm1147, %v11053, %v11057
      %v11059 = vshrl.u32 %v10349, 16
      %v11061 = vshrl.u32 %v10350, 16
      %v11064 = vshrl.u32 %v10351, 16
      %v11066 = vshll.u32 %v10351, 16
      %v11068 = vrot.slane %v11066, 1
      %v11069 = vor.u32 %v11064, %v11068
      %v11071 = vshll.u32 %v10353, 16
      %v11073 = vrot.slane %v11071, 1
      %v11074 = vsel %vm1147, %v11069, %v11073
      %v11076 = vshrl.u32 %v10352, 16
      %v11078 = vshll.u32 %v10352, 16
      %v11080 = vrot.slane %v11078, 1
      %v11081 = vor.u32 %v11076, %v11080
      %v11083 = vshll.u32 %v10354, 16
      %v11085 = vrot.slane %v11083, 1
      %v11086 = vsel %vm1147, %v11081, %v11085
      %v11087 = vshrl.u32 %v10353, 16
      %v11089 = vshrl.u32 %v10354, 16
      %v11092 = vshrl.u32 %v10579, 16
      %v11094 = vshll.u32 %v10579, 16
      %v11096 = vrot.slane %v11094, 1
      %v11097 = vor.u32 %v11092, %v11096
      %v11099 = vshll.u32 %v10581, 16
      %v11101 = vrot.slane %v11099, 1
      %v11102 = vsel %vm1147, %v11097, %v11101
      %v11104 = vshrl.u32 %v10580, 16
      %v11106 = vshll.u32 %v10580, 16
      %v11108 = vrot.slane %v11106, 1
      %v11109 = vor.u32 %v11104, %v11108
      %v11111 = vshll.u32 %v10582, 16
      %v11113 = vrot.slane %v11111, 1
      %v11114 = vsel %vm1147, %v11109, %v11113
      %v11115 = vshrl.u32 %v10581, 16
      %v11117 = vshrl.u32 %v10582, 16
      %v11120 = vshrl.u32 %v10583, 16
      %v11122 = vshll.u32 %v10583, 16
      %v11124 = vrot.slane %v11122, 1
      %v11125 = vor.u32 %v11120, %v11124
      %v11127 = vshll.u32 %v10585, 16
      %v11129 = vrot.slane %v11127, 1
      %v11130 = vsel %vm1147, %v11125, %v11129
      %v11132 = vshrl.u32 %v10584, 16
      %v11134 = vshll.u32 %v10584, 16
      %v11136 = vrot.slane %v11134, 1
      %v11137 = vor.u32 %v11132, %v11136
      %v11139 = vshll.u32 %v10586, 16
      %v11141 = vrot.slane %v11139, 1
      %v11142 = vsel %vm1147, %v11137, %v11141
      %v11143 = vshrl.u32 %v10585, 16
      %v11145 = vshrl.u32 %v10586, 16
      %v11148 = vshrl.u32 %v10587, 16
      %v11150 = vshll.u32 %v10587, 16
      %v11152 = vrot.slane %v11150, 1
      %v11153 = vor.u32 %v11148, %v11152
      %v11155 = vshll.u32 %v10589, 16
      %v11157 = vrot.slane %v11155, 1
      %v11158 = vsel %vm1147, %v11153, %v11157
      %v11160 = vshrl.u32 %v10588, 16
      %v11162 = vshll.u32 %v10588, 16
      %v11164 = vrot.slane %v11162, 1
      %v11165 = vor.u32 %v11160, %v11164
      %v11167 = vshll.u32 %v10590, 16
      %v11169 = vrot.slane %v11167, 1
      %v11170 = vsel %vm1147, %v11165, %v11169
      %v11171 = vshrl.u32 %v10589, 16
      %v11173 = vshrl.u32 %v10590, 16
      %v11176 = vshrl.u32 %v10591, 16
      %v11178 = vshll.u32 %v10591, 16
      %v11180 = vrot.slane %v11178, 1
      %v11181 = vor.u32 %v11176, %v11180
      %v11183 = vshll.u32 %v10593, 16
      %v11185 = vrot.slane %v11183, 1
      %v11186 = vsel %vm1147, %v11181, %v11185
      %v11188 = vshrl.u32 %v10592, 16
      %v11190 = vshll.u32 %v10592, 16
      %v11192 = vrot.slane %v11190, 1
      %v11193 = vor.u32 %v11188, %v11192
      %v11195 = vshll.u32 %v10594, 16
      %v11197 = vrot.slane %v11195, 1
      %v11198 = vsel %vm1147, %v11193, %v11197
      %v11199 = vshrl.u32 %v10593, 16
      %v11201 = vshrl.u32 %v10594, 16
      %v11204 = vshrl.u32 %v10595, 16
      %v11206 = vshll.u32 %v10595, 16
      %v11208 = vrot.slane %v11206, 1
      %v11209 = vor.u32 %v11204, %v11208
      %v11211 = vshll.u32 %v10597, 16
      %v11213 = vrot.slane %v11211, 1
      %v11214 = vsel %vm1147, %v11209, %v11213
      %v11216 = vshrl.u32 %v10596, 16
      %v11218 = vshll.u32 %v10596, 16
      %v11220 = vrot.slane %v11218, 1
      %v11221 = vor.u32 %v11216, %v11220
      %v11223 = vshll.u32 %v10598, 16
      %v11225 = vrot.slane %v11223, 1
      %v11226 = vsel %vm1147, %v11221, %v11225
      %v11227 = vshrl.u32 %v10597, 16
      %v11229 = vshrl.u32 %v10598, 16
      %v11232 = vshrl.u32 %v10599, 16
      %v11234 = vshll.u32 %v10599, 16
      %v11236 = vrot.slane %v11234, 1
      %v11237 = vor.u32 %v11232, %v11236
      %v11239 = vshll.u32 %v10601, 16
      %v11241 = vrot.slane %v11239, 1
      %v11242 = vsel %vm1147, %v11237, %v11241
      %v11244 = vshrl.u32 %v10600, 16
      %v11246 = vshll.u32 %v10600, 16
      %v11248 = vrot.slane %v11246, 1
      %v11249 = vor.u32 %v11244, %v11248
      %v11251 = vshll.u32 %v10602, 16
      %v11253 = vrot.slane %v11251, 1
      %v11254 = vsel %vm1147, %v11249, %v11253
      %v11255 = vshrl.u32 %v10601, 16
      %v11257 = vshrl.u32 %v10602, 16
      %v11260 = vshrl.u32 %v10603, 16
      %v11262 = vshll.u32 %v10603, 16
      %v11264 = vrot.slane %v11262, 1
      %v11265 = vor.u32 %v11260, %v11264
      %v11267 = vshll.u32 %v10605, 16
      %v11269 = vrot.slane %v11267, 1
      %v11270 = vsel %vm1147, %v11265, %v11269
      %v11272 = vshrl.u32 %v10604, 16
      %v11274 = vshll.u32 %v10604, 16
      %v11276 = vrot.slane %v11274, 1
      %v11277 = vor.u32 %v11272, %v11276
      %v11279 = vshll.u32 %v10606, 16
      %v11281 = vrot.slane %v11279, 1
      %v11282 = vsel %vm1147, %v11277, %v11281
      %v11283 = vshrl.u32 %v10605, 16
      %v11285 = vshrl.u32 %v10606, 16
      %v11288 = vshrl.u32 %v10607, 16
      %v11290 = vshll.u32 %v10607, 16
      %v11292 = vrot.slane %v11290, 1
      %v11293 = vor.u32 %v11288, %v11292
      %v11295 = vshll.u32 %v10609, 16
      %v11297 = vrot.slane %v11295, 1
      %v11298 = vsel %vm1147, %v11293, %v11297
      %v11300 = vshrl.u32 %v10608, 16
      %v11302 = vshll.u32 %v10608, 16
      %v11304 = vrot.slane %v11302, 1
      %v11305 = vor.u32 %v11300, %v11304
      %v11307 = vshll.u32 %v10610, 16
      %v11309 = vrot.slane %v11307, 1
      %v11310 = vsel %vm1147, %v11305, %v11309
      %v11311 = vshrl.u32 %v10609, 16
      %v11313 = vshrl.u32 %v10610, 16
      %v11316 = vshrl.u32 %v10611, 16
      %v11318 = vshll.u32 %v10611, 16
      %v11320 = vrot.slane %v11318, 1
      %v11321 = vor.u32 %v11316, %v11320
      %v11323 = vshll.u32 %v10613, 16
      %v11325 = vrot.slane %v11323, 1
      %v11326 = vsel %vm1147, %v11321, %v11325
      %v11328 = vshrl.u32 %v10612, 16
      %v11330 = vshll.u32 %v10612, 16
      %v11332 = vrot.slane %v11330, 1
      %v11333 = vor.u32 %v11328, %v11332
      %v11335 = vshll.u32 %v10614, 16
      %v11337 = vrot.slane %v11335, 1
      %v11338 = vsel %vm1147, %v11333, %v11337
      %v11339 = vshrl.u32 %v10613, 16
      %v11341 = vshrl.u32 %v10614, 16
      %v11344 = vshrl.u32 %v10615, 16
      %v11346 = vshll.u32 %v10615, 16
      %v11348 = vrot.slane %v11346, 1
      %v11349 = vor.u32 %v11344, %v11348
      %v11351 = vshll.u32 %v10617, 16
      %v11353 = vrot.slane %v11351, 1
      %v11354 = vsel %vm1147, %v11349, %v11353
      %v11356 = vshrl.u32 %v10616, 16
      %v11358 = vshll.u32 %v10616, 16
      %v11360 = vrot.slane %v11358, 1
      %v11361 = vor.u32 %v11356, %v11360
      %v11363 = vshll.u32 %v10618, 16
      %v11365 = vrot.slane %v11363, 1
      %v11366 = vsel %vm1147, %v11361, %v11365
      %v11367 = vshrl.u32 %v10617, 16
      %v11369 = vshrl.u32 %v10618, 16
      %v11372 = vshrl.u32 %v10619, 16
      %v11374 = vshll.u32 %v10619, 16
      %v11376 = vrot.slane %v11374, 1
      %v11377 = vor.u32 %v11372, %v11376
      %v11379 = vshll.u32 %v10621, 16
      %v11381 = vrot.slane %v11379, 1
      %v11382 = vsel %vm1147, %v11377, %v11381
      %v11384 = vshrl.u32 %v10620, 16
      %v11386 = vshll.u32 %v10620, 16
      %v11388 = vrot.slane %v11386, 1
      %v11389 = vor.u32 %v11384, %v11388
      %v11391 = vshll.u32 %v10622, 16
      %v11393 = vrot.slane %v11391, 1
      %v11394 = vsel %vm1147, %v11389, %v11393
      %v11395 = vshrl.u32 %v10621, 16
      %v11397 = vshrl.u32 %v10622, 16
      %v11400 = vshrl.u32 %v10623, 16
      %v11402 = vshll.u32 %v10623, 16
      %v11404 = vrot.slane %v11402, 1
      %v11405 = vor.u32 %v11400, %v11404
      %v11407 = vshll.u32 %v10625, 16
      %v11409 = vrot.slane %v11407, 1
      %v11410 = vsel %vm1147, %v11405, %v11409
      %v11412 = vshrl.u32 %v10624, 16
      %v11414 = vshll.u32 %v10624, 16
      %v11416 = vrot.slane %v11414, 1
      %v11417 = vor.u32 %v11412, %v11416
      %v11419 = vshll.u32 %v10626, 16
      %v11421 = vrot.slane %v11419, 1
      %v11422 = vsel %vm1147, %v11417, %v11421
      %v11423 = vshrl.u32 %v10625, 16
      %v11425 = vshrl.u32 %v10626, 16
      %v11428 = vshrl.u32 %v10627, 16
      %v11430 = vshll.u32 %v10627, 16
      %v11432 = vrot.slane %v11430, 1
      %v11433 = vor.u32 %v11428, %v11432
      %v11435 = vshll.u32 %v10629, 16
      %v11437 = vrot.slane %v11435, 1
      %v11438 = vsel %vm1147, %v11433, %v11437
      %v11440 = vshrl.u32 %v10628, 16
      %v11442 = vshll.u32 %v10628, 16
      %v11444 = vrot.slane %v11442, 1
      %v11445 = vor.u32 %v11440, %v11444
      %v11447 = vshll.u32 %v10630, 16
      %v11449 = vrot.slane %v11447, 1
      %v11450 = vsel %vm1147, %v11445, %v11449
      %v11451 = vshrl.u32 %v10629, 16
      %v11453 = vshrl.u32 %v10630, 16
      %v11456 = vshrl.u32 %v10631, 16
      %v11458 = vshll.u32 %v10631, 16
      %v11460 = vrot.slane %v11458, 1
      %v11461 = vor.u32 %v11456, %v11460
      %v11463 = vshll.u32 %v10633, 16
      %v11465 = vrot.slane %v11463, 1
      %v11466 = vsel %vm1147, %v11461, %v11465
      %v11468 = vshrl.u32 %v10632, 16
      %v11470 = vshll.u32 %v10632, 16
      %v11472 = vrot.slane %v11470, 1
      %v11473 = vor.u32 %v11468, %v11472
      %v11475 = vshll.u32 %v10634, 16
      %v11477 = vrot.slane %v11475, 1
      %v11478 = vsel %vm1147, %v11473, %v11477
      %v11479 = vshrl.u32 %v10633, 16
      %v11481 = vshrl.u32 %v10634, 16
      %v11484 = vshrl.u32 %v10635, 16
      %v11486 = vshll.u32 %v10635, 16
      %v11488 = vrot.slane %v11486, 1
      %v11489 = vor.u32 %v11484, %v11488
      %v11491 = vshll.u32 %v10637, 16
      %v11493 = vrot.slane %v11491, 1
      %v11494 = vsel %vm1147, %v11489, %v11493
      %v11496 = vshrl.u32 %v10636, 16
      %v11498 = vshll.u32 %v10636, 16
      %v11500 = vrot.slane %v11498, 1
      %v11501 = vor.u32 %v11496, %v11500
      %v11503 = vshll.u32 %v10638, 16
      %v11505 = vrot.slane %v11503, 1
      %v11506 = vsel %vm1147, %v11501, %v11505
      %v11507 = vshrl.u32 %v10637, 16
      %v11509 = vshrl.u32 %v10638, 16
      %v11512 = vshrl.u32 %v10639, 16
      %v11514 = vshll.u32 %v10639, 16
      %v11516 = vrot.slane %v11514, 1
      %v11517 = vor.u32 %v11512, %v11516
      %v11519 = vshll.u32 %v10641, 16
      %v11521 = vrot.slane %v11519, 1
      %v11522 = vsel %vm1147, %v11517, %v11521
      %v11524 = vshrl.u32 %v10640, 16
      %v11526 = vshll.u32 %v10640, 16
      %v11528 = vrot.slane %v11526, 1
      %v11529 = vor.u32 %v11524, %v11528
      %v11531 = vshll.u32 %v10642, 16
      %v11533 = vrot.slane %v11531, 1
      %v11534 = vsel %vm1147, %v11529, %v11533
      %v11535 = vshrl.u32 %v10641, 16
      %v11537 = vshrl.u32 %v10642, 16
      %v11540 = vshrl.u32 %v10163, 16
      %v11542 = vshll.u32 %v10163, 16
      %v11544 = vrot.slane %v11542, 1
      %v11545 = vor.u32 %v11540, %v11544
      %v11547 = vshll.u32 %v10165, 16
      %v11549 = vrot.slane %v11547, 1
      %v11550 = vsel %vm1147, %v11545, %v11549
      %v11552 = vshrl.u32 %v10164, 16
      %v11554 = vshll.u32 %v10164, 16
      %v11556 = vrot.slane %v11554, 1
      %v11557 = vor.u32 %v11552, %v11556
      %v11559 = vshll.u32 %v10166, 16
      %v11561 = vrot.slane %v11559, 1
      %v11562 = vsel %vm1147, %v11557, %v11561
      %v11564 = vshrl.u32 %v10654, 16
      %v11566 = vshll.u32 %v10654, 16
      %v11568 = vrot.slane %v11566, 1
      %v11569 = vor.u32 %v11564, %v11568
      %v11571 = vshll.u32 %v10667, 16
      %v11573 = vrot.slane %v11571, 1
      %v11574 = vsel %vm1147, %v11569, %v11573
      %v11576 = vshrl.u32 %v10666, 16
      %v11578 = vshll.u32 %v10666, 16
      %v11580 = vrot.slane %v11578, 1
      %v11581 = vor.u32 %v11576, %v11580
      %v11583 = vshll.u32 %v10669, 16
      %v11585 = vrot.slane %v11583, 1
      %v11586 = vsel %vm1147, %v11581, %v11585
      %v11588 = vshrl.u32 %v10451, 16
      %v11590 = vshll.u32 %v10451, 16
      %v11592 = vrot.slane %v11590, 1
      %v11593 = vor.u32 %v11588, %v11592
      %v11595 = vshll.u32 %v10453, 16
      %v11597 = vrot.slane %v11595, 1
      %v11598 = vsel %vm1147, %v11593, %v11597
      %v11600 = vshrl.u32 %v10452, 16
      %v11602 = vshll.u32 %v10452, 16
      %v11604 = vrot.slane %v11602, 1
      %v11605 = vor.u32 %v11600, %v11604
      %v11607 = vshll.u32 %v10454, 16
      %v11609 = vrot.slane %v11607, 1
      %v11610 = vsel %vm1147, %v11605, %v11609
      %v11612 = vshrl.u32 %v11102, 16
      %v11614 = vshll.u32 %v11102, 16
      %v11616 = vrot.slane %v11614, 1
      %v11617 = vor.u32 %v11612, %v11616
      %v11619 = vshll.u32 %v11115, 16
      %v11621 = vrot.slane %v11619, 1
      %v11622 = vsel %vm1147, %v11617, %v11621
      %v11624 = vshrl.u32 %v11114, 16
      %v11626 = vshll.u32 %v11114, 16
      %v11628 = vrot.slane %v11626, 1
      %v11629 = vor.u32 %v11624, %v11628
      %v11631 = vshll.u32 %v11117, 16
      %v11633 = vrot.slane %v11631, 1
      %v11634 = vsel %vm1147, %v11629, %v11633
      %v11636 = vshrl.u32 %v10167, 16
      %v11638 = vshll.u32 %v10167, 16
      %v11640 = vrot.slane %v11638, 1
      %v11641 = vor.u32 %v11636, %v11640
      %v11643 = vshll.u32 %v10169, 16
      %v11645 = vrot.slane %v11643, 1
      %v11646 = vsel %vm1147, %v11641, %v11645
      %v11648 = vshrl.u32 %v10168, 16
      %v11650 = vshll.u32 %v10168, 16
      %v11652 = vrot.slane %v11650, 1
      %v11653 = vor.u32 %v11648, %v11652
      %v11655 = vshll.u32 %v10170, 16
      %v11657 = vrot.slane %v11655, 1
      %v11658 = vsel %vm1147, %v11653, %v11657
      %v11660 = vshrl.u32 %v10682, 16
      %v11662 = vshll.u32 %v10682, 16
      %v11664 = vrot.slane %v11662, 1
      %v11665 = vor.u32 %v11660, %v11664
      %v11667 = vshll.u32 %v10695, 16
      %v11669 = vrot.slane %v11667, 1
      %v11670 = vsel %vm1147, %v11665, %v11669
      %v11672 = vshrl.u32 %v10694, 16
      %v11674 = vshll.u32 %v10694, 16
      %v11676 = vrot.slane %v11674, 1
      %v11677 = vor.u32 %v11672, %v11676
      %v11679 = vshll.u32 %v10697, 16
      %v11681 = vrot.slane %v11679, 1
      %v11682 = vsel %vm1147, %v11677, %v11681
      %v11684 = vshrl.u32 %v10455, 16
      %v11686 = vshll.u32 %v10455, 16
      %v11688 = vrot.slane %v11686, 1
      %v11689 = vor.u32 %v11684, %v11688
      %v11691 = vshll.u32 %v10457, 16
      %v11693 = vrot.slane %v11691, 1
      %v11694 = vsel %vm1147, %v11689, %v11693
      %v11696 = vshrl.u32 %v10456, 16
      %v11698 = vshll.u32 %v10456, 16
      %v11700 = vrot.slane %v11698, 1
      %v11701 = vor.u32 %v11696, %v11700
      %v11703 = vshll.u32 %v10458, 16
      %v11705 = vrot.slane %v11703, 1
      %v11706 = vsel %vm1147, %v11701, %v11705
      %v11708 = vshrl.u32 %v11130, 16
      %v11710 = vshll.u32 %v11130, 16
      %v11712 = vrot.slane %v11710, 1
      %v11713 = vor.u32 %v11708, %v11712
      %v11715 = vshll.u32 %v11143, 16
      %v11717 = vrot.slane %v11715, 1
      %v11718 = vsel %vm1147, %v11713, %v11717
      %v11720 = vshrl.u32 %v11142, 16
      %v11722 = vshll.u32 %v11142, 16
      %v11724 = vrot.slane %v11722, 1
      %v11725 = vor.u32 %v11720, %v11724
      %v11727 = vshll.u32 %v11145, 16
      %v11729 = vrot.slane %v11727, 1
      %v11730 = vsel %vm1147, %v11725, %v11729
      %v11732 = vshrl.u32 %v10171, 16
      %v11734 = vshll.u32 %v10171, 16
      %v11736 = vrot.slane %v11734, 1
      %v11737 = vor.u32 %v11732, %v11736
      %v11739 = vshll.u32 %v10173, 16
      %v11741 = vrot.slane %v11739, 1
      %v11742 = vsel %vm1147, %v11737, %v11741
      %v11744 = vshrl.u32 %v10172, 16
      %v11746 = vshll.u32 %v10172, 16
      %v11748 = vrot.slane %v11746, 1
      %v11749 = vor.u32 %v11744, %v11748
      %v11751 = vshll.u32 %v10174, 16
      %v11753 = vrot.slane %v11751, 1
      %v11754 = vsel %vm1147, %v11749, %v11753
      %v11756 = vshrl.u32 %v10710, 16
      %v11758 = vshll.u32 %v10710, 16
      %v11760 = vrot.slane %v11758, 1
      %v11761 = vor.u32 %v11756, %v11760
      %v11763 = vshll.u32 %v10723, 16
      %v11765 = vrot.slane %v11763, 1
      %v11766 = vsel %vm1147, %v11761, %v11765
      %v11768 = vshrl.u32 %v10722, 16
      %v11770 = vshll.u32 %v10722, 16
      %v11772 = vrot.slane %v11770, 1
      %v11773 = vor.u32 %v11768, %v11772
      %v11775 = vshll.u32 %v10725, 16
      %v11777 = vrot.slane %v11775, 1
      %v11778 = vsel %vm1147, %v11773, %v11777
      %v11780 = vshrl.u32 %v10459, 16
      %v11782 = vshll.u32 %v10459, 16
      %v11784 = vrot.slane %v11782, 1
      %v11785 = vor.u32 %v11780, %v11784
      %v11787 = vshll.u32 %v10461, 16
      %v11789 = vrot.slane %v11787, 1
      %v11790 = vsel %vm1147, %v11785, %v11789
      %v11792 = vshrl.u32 %v10460, 16
      %v11794 = vshll.u32 %v10460, 16
      %v11796 = vrot.slane %v11794, 1
      %v11797 = vor.u32 %v11792, %v11796
      %v11799 = vshll.u32 %v10462, 16
      %v11801 = vrot.slane %v11799, 1
      %v11802 = vsel %vm1147, %v11797, %v11801
      %v11804 = vshrl.u32 %v11158, 16
      %v11806 = vshll.u32 %v11158, 16
      %v11808 = vrot.slane %v11806, 1
      %v11809 = vor.u32 %v11804, %v11808
      %v11811 = vshll.u32 %v11171, 16
      %v11813 = vrot.slane %v11811, 1
      %v11814 = vsel %vm1147, %v11809, %v11813
      %v11816 = vshrl.u32 %v11170, 16
      %v11818 = vshll.u32 %v11170, 16
      %v11820 = vrot.slane %v11818, 1
      %v11821 = vor.u32 %v11816, %v11820
      %v11823 = vshll.u32 %v11173, 16
      %v11825 = vrot.slane %v11823, 1
      %v11826 = vsel %vm1147, %v11821, %v11825
      %v11828 = vshrl.u32 %v10175, 16
      %v11830 = vshll.u32 %v10175, 16
      %v11832 = vrot.slane %v11830, 1
      %v11833 = vor.u32 %v11828, %v11832
      %v11835 = vshll.u32 %v10177, 16
      %v11837 = vrot.slane %v11835, 1
      %v11838 = vsel %vm1147, %v11833, %v11837
      %v11840 = vshrl.u32 %v10176, 16
      %v11842 = vshll.u32 %v10176, 16
      %v11844 = vrot.slane %v11842, 1
      %v11845 = vor.u32 %v11840, %v11844
      %v11847 = vshll.u32 %v10178, 16
      %v11849 = vrot.slane %v11847, 1
      %v11850 = vsel %vm1147, %v11845, %v11849
      %v11852 = vshrl.u32 %v10738, 16
      %v11854 = vshll.u32 %v10738, 16
      %v11856 = vrot.slane %v11854, 1
      %v11857 = vor.u32 %v11852, %v11856
      %v11859 = vshll.u32 %v10751, 16
      %v11861 = vrot.slane %v11859, 1
      %v11862 = vsel %vm1147, %v11857, %v11861
      %v11864 = vshrl.u32 %v10750, 16
      %v11866 = vshll.u32 %v10750, 16
      %v11868 = vrot.slane %v11866, 1
      %v11869 = vor.u32 %v11864, %v11868
      %v11871 = vshll.u32 %v10753, 16
      %v11873 = vrot.slane %v11871, 1
      %v11874 = vsel %vm1147, %v11869, %v11873
      %v11876 = vshrl.u32 %v10463, 16
      %v11878 = vshll.u32 %v10463, 16
      %v11880 = vrot.slane %v11878, 1
      %v11881 = vor.u32 %v11876, %v11880
      %v11883 = vshll.u32 %v10465, 16
      %v11885 = vrot.slane %v11883, 1
      %v11886 = vsel %vm1147, %v11881, %v11885
      %v11888 = vshrl.u32 %v10464, 16
      %v11890 = vshll.u32 %v10464, 16
      %v11892 = vrot.slane %v11890, 1
      %v11893 = vor.u32 %v11888, %v11892
      %v11895 = vshll.u32 %v10466, 16
      %v11897 = vrot.slane %v11895, 1
      %v11898 = vsel %vm1147, %v11893, %v11897
      %v11900 = vshrl.u32 %v11186, 16
      %v11902 = vshll.u32 %v11186, 16
      %v11904 = vrot.slane %v11902, 1
      %v11905 = vor.u32 %v11900, %v11904
      %v11907 = vshll.u32 %v11199, 16
      %v11909 = vrot.slane %v11907, 1
      %v11910 = vsel %vm1147, %v11905, %v11909
      %v11912 = vshrl.u32 %v11198, 16
      %v11914 = vshll.u32 %v11198, 16
      %v11916 = vrot.slane %v11914, 1
      %v11917 = vor.u32 %v11912, %v11916
      %v11919 = vshll.u32 %v11201, 16
      %v11921 = vrot.slane %v11919, 1
      %v11922 = vsel %vm1147, %v11917, %v11921
      %v11924 = vshrl.u32 %v10179, 16
      %v11926 = vshll.u32 %v10179, 16
      %v11928 = vrot.slane %v11926, 1
      %v11929 = vor.u32 %v11924, %v11928
      %v11931 = vshll.u32 %v10181, 16
      %v11933 = vrot.slane %v11931, 1
      %v11934 = vsel %vm1147, %v11929, %v11933
      %v11936 = vshrl.u32 %v10180, 16
      %v11938 = vshll.u32 %v10180, 16
      %v11940 = vrot.slane %v11938, 1
      %v11941 = vor.u32 %v11936, %v11940
      %v11943 = vshll.u32 %v10182, 16
      %v11945 = vrot.slane %v11943, 1
      %v11946 = vsel %vm1147, %v11941, %v11945
      %v11948 = vshrl.u32 %v10766, 16
      %v11950 = vshll.u32 %v10766, 16
      %v11952 = vrot.slane %v11950, 1
      %v11953 = vor.u32 %v11948, %v11952
      %v11955 = vshll.u32 %v10779, 16
      %v11957 = vrot.slane %v11955, 1
      %v11958 = vsel %vm1147, %v11953, %v11957
      %v11960 = vshrl.u32 %v10778, 16
      %v11962 = vshll.u32 %v10778, 16
      %v11964 = vrot.slane %v11962, 1
      %v11965 = vor.u32 %v11960, %v11964
      %v11967 = vshll.u32 %v10781, 16
      %v11969 = vrot.slane %v11967, 1
      %v11970 = vsel %vm1147, %v11965, %v11969
      %v11972 = vshrl.u32 %v10467, 16
      %v11974 = vshll.u32 %v10467, 16
      %v11976 = vrot.slane %v11974, 1
      %v11977 = vor.u32 %v11972, %v11976
      %v11979 = vshll.u32 %v10469, 16
      %v11981 = vrot.slane %v11979, 1
      %v11982 = vsel %vm1147, %v11977, %v11981
      %v11984 = vshrl.u32 %v10468, 16
      %v11986 = vshll.u32 %v10468, 16
      %v11988 = vrot.slane %v11986, 1
      %v11989 = vor.u32 %v11984, %v11988
      %v11991 = vshll.u32 %v10470, 16
      %v11993 = vrot.slane %v11991, 1
      %v11994 = vsel %vm1147, %v11989, %v11993
      %v11996 = vshrl.u32 %v11214, 16
      %v11998 = vshll.u32 %v11214, 16
      %v12000 = vrot.slane %v11998, 1
      %v12001 = vor.u32 %v11996, %v12000
      %v12003 = vshll.u32 %v11227, 16
      %v12005 = vrot.slane %v12003, 1
      %v12006 = vsel %vm1147, %v12001, %v12005
      %v12008 = vshrl.u32 %v11226, 16
      %v12010 = vshll.u32 %v11226, 16
      %v12012 = vrot.slane %v12010, 1
      %v12013 = vor.u32 %v12008, %v12012
      %v12015 = vshll.u32 %v11229, 16
      %v12017 = vrot.slane %v12015, 1
      %v12018 = vsel %vm1147, %v12013, %v12017
      %v12020 = vshrl.u32 %v10183, 16
      %v12022 = vshll.u32 %v10183, 16
      %v12024 = vrot.slane %v12022, 1
      %v12025 = vor.u32 %v12020, %v12024
      %v12027 = vshll.u32 %v10185, 16
      %v12029 = vrot.slane %v12027, 1
      %v12030 = vsel %vm1147, %v12025, %v12029
      %v12032 = vshrl.u32 %v10184, 16
      %v12034 = vshll.u32 %v10184, 16
      %v12036 = vrot.slane %v12034, 1
      %v12037 = vor.u32 %v12032, %v12036
      %v12039 = vshll.u32 %v10186, 16
      %v12041 = vrot.slane %v12039, 1
      %v12042 = vsel %vm1147, %v12037, %v12041
      %v12044 = vshrl.u32 %v10794, 16
      %v12046 = vshll.u32 %v10794, 16
      %v12048 = vrot.slane %v12046, 1
      %v12049 = vor.u32 %v12044, %v12048
      %v12051 = vshll.u32 %v10807, 16
      %v12053 = vrot.slane %v12051, 1
      %v12054 = vsel %vm1147, %v12049, %v12053
      %v12056 = vshrl.u32 %v10806, 16
      %v12058 = vshll.u32 %v10806, 16
      %v12060 = vrot.slane %v12058, 1
      %v12061 = vor.u32 %v12056, %v12060
      %v12063 = vshll.u32 %v10809, 16
      %v12065 = vrot.slane %v12063, 1
      %v12066 = vsel %vm1147, %v12061, %v12065
      %v12068 = vshrl.u32 %v10471, 16
      %v12070 = vshll.u32 %v10471, 16
      %v12072 = vrot.slane %v12070, 1
      %v12073 = vor.u32 %v12068, %v12072
      %v12075 = vshll.u32 %v10473, 16
      %v12077 = vrot.slane %v12075, 1
      %v12078 = vsel %vm1147, %v12073, %v12077
      %v12080 = vshrl.u32 %v10472, 16
      %v12082 = vshll.u32 %v10472, 16
      %v12084 = vrot.slane %v12082, 1
      %v12085 = vor.u32 %v12080, %v12084
      %v12087 = vshll.u32 %v10474, 16
      %v12089 = vrot.slane %v12087, 1
      %v12090 = vsel %vm1147, %v12085, %v12089
      %v12092 = vshrl.u32 %v11242, 16
      %v12094 = vshll.u32 %v11242, 16
      %v12096 = vrot.slane %v12094, 1
      %v12097 = vor.u32 %v12092, %v12096
      %v12099 = vshll.u32 %v11255, 16
      %v12101 = vrot.slane %v12099, 1
      %v12102 = vsel %vm1147, %v12097, %v12101
      %v12104 = vshrl.u32 %v11254, 16
      %v12106 = vshll.u32 %v11254, 16
      %v12108 = vrot.slane %v12106, 1
      %v12109 = vor.u32 %v12104, %v12108
      %v12111 = vshll.u32 %v11257, 16
      %v12113 = vrot.slane %v12111, 1
      %v12114 = vsel %vm1147, %v12109, %v12113
      %v12116 = vshrl.u32 %v10187, 16
      %v12118 = vshll.u32 %v10187, 16
      %v12120 = vrot.slane %v12118, 1
      %v12121 = vor.u32 %v12116, %v12120
      %v12123 = vshll.u32 %v10189, 16
      %v12125 = vrot.slane %v12123, 1
      %v12126 = vsel %vm1147, %v12121, %v12125
      %v12128 = vshrl.u32 %v10188, 16
      %v12130 = vshll.u32 %v10188, 16
      %v12132 = vrot.slane %v12130, 1
      %v12133 = vor.u32 %v12128, %v12132
      %v12135 = vshll.u32 %v10190, 16
      %v12137 = vrot.slane %v12135, 1
      %v12138 = vsel %vm1147, %v12133, %v12137
      %v12140 = vshrl.u32 %v10822, 16
      %v12142 = vshll.u32 %v10822, 16
      %v12144 = vrot.slane %v12142, 1
      %v12145 = vor.u32 %v12140, %v12144
      %v12147 = vshll.u32 %v10835, 16
      %v12149 = vrot.slane %v12147, 1
      %v12150 = vsel %vm1147, %v12145, %v12149
      %v12152 = vshrl.u32 %v10834, 16
      %v12154 = vshll.u32 %v10834, 16
      %v12156 = vrot.slane %v12154, 1
      %v12157 = vor.u32 %v12152, %v12156
      %v12159 = vshll.u32 %v10837, 16
      %v12161 = vrot.slane %v12159, 1
      %v12162 = vsel %vm1147, %v12157, %v12161
      %v12164 = vshrl.u32 %v10475, 16
      %v12166 = vshll.u32 %v10475, 16
      %v12168 = vrot.slane %v12166, 1
      %v12169 = vor.u32 %v12164, %v12168
      %v12171 = vshll.u32 %v10477, 16
      %v12173 = vrot.slane %v12171, 1
      %v12174 = vsel %vm1147, %v12169, %v12173
      %v12176 = vshrl.u32 %v10476, 16
      %v12178 = vshll.u32 %v10476, 16
      %v12180 = vrot.slane %v12178, 1
      %v12181 = vor.u32 %v12176, %v12180
      %v12183 = vshll.u32 %v10478, 16
      %v12185 = vrot.slane %v12183, 1
      %v12186 = vsel %vm1147, %v12181, %v12185
      %v12188 = vshrl.u32 %v11270, 16
      %v12190 = vshll.u32 %v11270, 16
      %v12192 = vrot.slane %v12190, 1
      %v12193 = vor.u32 %v12188, %v12192
      %v12195 = vshll.u32 %v11283, 16
      %v12197 = vrot.slane %v12195, 1
      %v12198 = vsel %vm1147, %v12193, %v12197
      %v12200 = vshrl.u32 %v11282, 16
      %v12202 = vshll.u32 %v11282, 16
      %v12204 = vrot.slane %v12202, 1
      %v12205 = vor.u32 %v12200, %v12204
      %v12207 = vshll.u32 %v11285, 16
      %v12209 = vrot.slane %v12207, 1
      %v12210 = vsel %vm1147, %v12205, %v12209
      %v12212 = vshrl.u32 %v10191, 16
      %v12214 = vshll.u32 %v10191, 16
      %v12216 = vrot.slane %v12214, 1
      %v12217 = vor.u32 %v12212, %v12216
      %v12219 = vshll.u32 %v10193, 16
      %v12221 = vrot.slane %v12219, 1
      %v12222 = vsel %vm1147, %v12217, %v12221
      %v12224 = vshrl.u32 %v10192, 16
      %v12226 = vshll.u32 %v10192, 16
      %v12228 = vrot.slane %v12226, 1
      %v12229 = vor.u32 %v12224, %v12228
      %v12231 = vshll.u32 %v10194, 16
      %v12233 = vrot.slane %v12231, 1
      %v12234 = vsel %vm1147, %v12229, %v12233
      %v12236 = vshrl.u32 %v10850, 16
      %v12238 = vshll.u32 %v10850, 16
      %v12240 = vrot.slane %v12238, 1
      %v12241 = vor.u32 %v12236, %v12240
      %v12243 = vshll.u32 %v10863, 16
      %v12245 = vrot.slane %v12243, 1
      %v12246 = vsel %vm1147, %v12241, %v12245
      %v12248 = vshrl.u32 %v10862, 16
      %v12250 = vshll.u32 %v10862, 16
      %v12252 = vrot.slane %v12250, 1
      %v12253 = vor.u32 %v12248, %v12252
      %v12255 = vshll.u32 %v10865, 16
      %v12257 = vrot.slane %v12255, 1
      %v12258 = vsel %vm1147, %v12253, %v12257
      %v12260 = vshrl.u32 %v10479, 16
      %v12262 = vshll.u32 %v10479, 16
      %v12264 = vrot.slane %v12262, 1
      %v12265 = vor.u32 %v12260, %v12264
      %v12267 = vshll.u32 %v10481, 16
      %v12269 = vrot.slane %v12267, 1
      %v12270 = vsel %vm1147, %v12265, %v12269
      %v12272 = vshrl.u32 %v10480, 16
      %v12274 = vshll.u32 %v10480, 16
      %v12276 = vrot.slane %v12274, 1
      %v12277 = vor.u32 %v12272, %v12276
      %v12279 = vshll.u32 %v10482, 16
      %v12281 = vrot.slane %v12279, 1
      %v12282 = vsel %vm1147, %v12277, %v12281
      %v12284 = vshrl.u32 %v11298, 16
      %v12286 = vshll.u32 %v11298, 16
      %v12288 = vrot.slane %v12286, 1
      %v12289 = vor.u32 %v12284, %v12288
      %v12291 = vshll.u32 %v11311, 16
      %v12293 = vrot.slane %v12291, 1
      %v12294 = vsel %vm1147, %v12289, %v12293
      %v12296 = vshrl.u32 %v11310, 16
      %v12298 = vshll.u32 %v11310, 16
      %v12300 = vrot.slane %v12298, 1
      %v12301 = vor.u32 %v12296, %v12300
      %v12303 = vshll.u32 %v11313, 16
      %v12305 = vrot.slane %v12303, 1
      %v12306 = vsel %vm1147, %v12301, %v12305
      %v12308 = vshrl.u32 %v10195, 16
      %v12310 = vshll.u32 %v10195, 16
      %v12312 = vrot.slane %v12310, 1
      %v12313 = vor.u32 %v12308, %v12312
      %v12315 = vshll.u32 %v10197, 16
      %v12317 = vrot.slane %v12315, 1
      %v12318 = vsel %vm1147, %v12313, %v12317
      %v12320 = vshrl.u32 %v10196, 16
      %v12322 = vshll.u32 %v10196, 16
      %v12324 = vrot.slane %v12322, 1
      %v12325 = vor.u32 %v12320, %v12324
      %v12327 = vshll.u32 %v10198, 16
      %v12329 = vrot.slane %v12327, 1
      %v12330 = vsel %vm1147, %v12325, %v12329
      %v12332 = vshrl.u32 %v10878, 16
      %v12334 = vshll.u32 %v10878, 16
      %v12336 = vrot.slane %v12334, 1
      %v12337 = vor.u32 %v12332, %v12336
      %v12339 = vshll.u32 %v10891, 16
      %v12341 = vrot.slane %v12339, 1
      %v12342 = vsel %vm1147, %v12337, %v12341
      %v12344 = vshrl.u32 %v10890, 16
      %v12346 = vshll.u32 %v10890, 16
      %v12348 = vrot.slane %v12346, 1
      %v12349 = vor.u32 %v12344, %v12348
      %v12351 = vshll.u32 %v10893, 16
      %v12353 = vrot.slane %v12351, 1
      %v12354 = vsel %vm1147, %v12349, %v12353
      %v12356 = vshrl.u32 %v10483, 16
      %v12358 = vshll.u32 %v10483, 16
      %v12360 = vrot.slane %v12358, 1
      %v12361 = vor.u32 %v12356, %v12360
      %v12363 = vshll.u32 %v10485, 16
      %v12365 = vrot.slane %v12363, 1
      %v12366 = vsel %vm1147, %v12361, %v12365
      %v12368 = vshrl.u32 %v10484, 16
      %v12370 = vshll.u32 %v10484, 16
      %v12372 = vrot.slane %v12370, 1
      %v12373 = vor.u32 %v12368, %v12372
      %v12375 = vshll.u32 %v10486, 16
      %v12377 = vrot.slane %v12375, 1
      %v12378 = vsel %vm1147, %v12373, %v12377
      %v12380 = vshrl.u32 %v11326, 16
      %v12382 = vshll.u32 %v11326, 16
      %v12384 = vrot.slane %v12382, 1
      %v12385 = vor.u32 %v12380, %v12384
      %v12387 = vshll.u32 %v11339, 16
      %v12389 = vrot.slane %v12387, 1
      %v12390 = vsel %vm1147, %v12385, %v12389
      %v12392 = vshrl.u32 %v11338, 16
      %v12394 = vshll.u32 %v11338, 16
      %v12396 = vrot.slane %v12394, 1
      %v12397 = vor.u32 %v12392, %v12396
      %v12399 = vshll.u32 %v11341, 16
      %v12401 = vrot.slane %v12399, 1
      %v12402 = vsel %vm1147, %v12397, %v12401
      %v12404 = vshrl.u32 %v10199, 16
      %v12406 = vshll.u32 %v10199, 16
      %v12408 = vrot.slane %v12406, 1
      %v12409 = vor.u32 %v12404, %v12408
      %v12411 = vshll.u32 %v10201, 16
      %v12413 = vrot.slane %v12411, 1
      %v12414 = vsel %vm1147, %v12409, %v12413
      %v12416 = vshrl.u32 %v10200, 16
      %v12418 = vshll.u32 %v10200, 16
      %v12420 = vrot.slane %v12418, 1
      %v12421 = vor.u32 %v12416, %v12420
      %v12423 = vshll.u32 %v10202, 16
      %v12425 = vrot.slane %v12423, 1
      %v12426 = vsel %vm1147, %v12421, %v12425
      %v12428 = vshrl.u32 %v10906, 16
      %v12430 = vshll.u32 %v10906, 16
      %v12432 = vrot.slane %v12430, 1
      %v12433 = vor.u32 %v12428, %v12432
      %v12435 = vshll.u32 %v10919, 16
      %v12437 = vrot.slane %v12435, 1
      %v12438 = vsel %vm1147, %v12433, %v12437
      %v12440 = vshrl.u32 %v10918, 16
      %v12442 = vshll.u32 %v10918, 16
      %v12444 = vrot.slane %v12442, 1
      %v12445 = vor.u32 %v12440, %v12444
      %v12447 = vshll.u32 %v10921, 16
      %v12449 = vrot.slane %v12447, 1
      %v12450 = vsel %vm1147, %v12445, %v12449
      %v12452 = vshrl.u32 %v10487, 16
      %v12454 = vshll.u32 %v10487, 16
      %v12456 = vrot.slane %v12454, 1
      %v12457 = vor.u32 %v12452, %v12456
      %v12459 = vshll.u32 %v10489, 16
      %v12461 = vrot.slane %v12459, 1
      %v12462 = vsel %vm1147, %v12457, %v12461
      %v12464 = vshrl.u32 %v10488, 16
      %v12466 = vshll.u32 %v10488, 16
      %v12468 = vrot.slane %v12466, 1
      %v12469 = vor.u32 %v12464, %v12468
      %v12471 = vshll.u32 %v10490, 16
      %v12473 = vrot.slane %v12471, 1
      %v12474 = vsel %vm1147, %v12469, %v12473
      %v12476 = vshrl.u32 %v11354, 16
      %v12478 = vshll.u32 %v11354, 16
      %v12480 = vrot.slane %v12478, 1
      %v12481 = vor.u32 %v12476, %v12480
      %v12483 = vshll.u32 %v11367, 16
      %v12485 = vrot.slane %v12483, 1
      %v12486 = vsel %vm1147, %v12481, %v12485
      %v12488 = vshrl.u32 %v11366, 16
      %v12490 = vshll.u32 %v11366, 16
      %v12492 = vrot.slane %v12490, 1
      %v12493 = vor.u32 %v12488, %v12492
      %v12495 = vshll.u32 %v11369, 16
      %v12497 = vrot.slane %v12495, 1
      %v12498 = vsel %vm1147, %v12493, %v12497
      %v12500 = vshrl.u32 %v10203, 16
      %v12502 = vshll.u32 %v10203, 16
      %v12504 = vrot.slane %v12502, 1
      %v12505 = vor.u32 %v12500, %v12504
      %v12507 = vshll.u32 %v10205, 16
      %v12509 = vrot.slane %v12507, 1
      %v12510 = vsel %vm1147, %v12505, %v12509
      %v12512 = vshrl.u32 %v10204, 16
      %v12514 = vshll.u32 %v10204, 16
      %v12516 = vrot.slane %v12514, 1
      %v12517 = vor.u32 %v12512, %v12516
      %v12519 = vshll.u32 %v10206, 16
      %v12521 = vrot.slane %v12519, 1
      %v12522 = vsel %vm1147, %v12517, %v12521
      %v12524 = vshrl.u32 %v10934, 16
      %v12526 = vshll.u32 %v10934, 16
      %v12528 = vrot.slane %v12526, 1
      %v12529 = vor.u32 %v12524, %v12528
      %v12531 = vshll.u32 %v10947, 16
      %v12533 = vrot.slane %v12531, 1
      %v12534 = vsel %vm1147, %v12529, %v12533
      %v12536 = vshrl.u32 %v10946, 16
      %v12538 = vshll.u32 %v10946, 16
      %v12540 = vrot.slane %v12538, 1
      %v12541 = vor.u32 %v12536, %v12540
      %v12543 = vshll.u32 %v10949, 16
      %v12545 = vrot.slane %v12543, 1
      %v12546 = vsel %vm1147, %v12541, %v12545
      %v12548 = vshrl.u32 %v10491, 16
      %v12550 = vshll.u32 %v10491, 16
      %v12552 = vrot.slane %v12550, 1
      %v12553 = vor.u32 %v12548, %v12552
      %v12555 = vshll.u32 %v10493, 16
      %v12557 = vrot.slane %v12555, 1
      %v12558 = vsel %vm1147, %v12553, %v12557
      %v12560 = vshrl.u32 %v10492, 16
      %v12562 = vshll.u32 %v10492, 16
      %v12564 = vrot.slane %v12562, 1
      %v12565 = vor.u32 %v12560, %v12564
      %v12567 = vshll.u32 %v10494, 16
      %v12569 = vrot.slane %v12567, 1
      %v12570 = vsel %vm1147, %v12565, %v12569
      %v12572 = vshrl.u32 %v11382, 16
      %v12574 = vshll.u32 %v11382, 16
      %v12576 = vrot.slane %v12574, 1
      %v12577 = vor.u32 %v12572, %v12576
      %v12579 = vshll.u32 %v11395, 16
      %v12581 = vrot.slane %v12579, 1
      %v12582 = vsel %vm1147, %v12577, %v12581
      %v12584 = vshrl.u32 %v11394, 16
      %v12586 = vshll.u32 %v11394, 16
      %v12588 = vrot.slane %v12586, 1
      %v12589 = vor.u32 %v12584, %v12588
      %v12591 = vshll.u32 %v11397, 16
      %v12593 = vrot.slane %v12591, 1
      %v12594 = vsel %vm1147, %v12589, %v12593
      %v12596 = vshrl.u32 %v10207, 16
      %v12598 = vshll.u32 %v10207, 16
      %v12600 = vrot.slane %v12598, 1
      %v12601 = vor.u32 %v12596, %v12600
      %v12603 = vshll.u32 %v10209, 16
      %v12605 = vrot.slane %v12603, 1
      %v12606 = vsel %vm1147, %v12601, %v12605
      %v12608 = vshrl.u32 %v10208, 16
      %v12610 = vshll.u32 %v10208, 16
      %v12612 = vrot.slane %v12610, 1
      %v12613 = vor.u32 %v12608, %v12612
      %v12615 = vshll.u32 %v10210, 16
      %v12617 = vrot.slane %v12615, 1
      %v12618 = vsel %vm1147, %v12613, %v12617
      %v12620 = vshrl.u32 %v10962, 16
      %v12622 = vshll.u32 %v10962, 16
      %v12624 = vrot.slane %v12622, 1
      %v12625 = vor.u32 %v12620, %v12624
      %v12627 = vshll.u32 %v10975, 16
      %v12629 = vrot.slane %v12627, 1
      %v12630 = vsel %vm1147, %v12625, %v12629
      %v12632 = vshrl.u32 %v10974, 16
      %v12634 = vshll.u32 %v10974, 16
      %v12636 = vrot.slane %v12634, 1
      %v12637 = vor.u32 %v12632, %v12636
      %v12639 = vshll.u32 %v10977, 16
      %v12641 = vrot.slane %v12639, 1
      %v12642 = vsel %vm1147, %v12637, %v12641
      %v12644 = vshrl.u32 %v10495, 16
      %v12646 = vshll.u32 %v10495, 16
      %v12648 = vrot.slane %v12646, 1
      %v12649 = vor.u32 %v12644, %v12648
      %v12651 = vshll.u32 %v10497, 16
      %v12653 = vrot.slane %v12651, 1
      %v12654 = vsel %vm1147, %v12649, %v12653
      %v12656 = vshrl.u32 %v10496, 16
      %v12658 = vshll.u32 %v10496, 16
      %v12660 = vrot.slane %v12658, 1
      %v12661 = vor.u32 %v12656, %v12660
      %v12663 = vshll.u32 %v10498, 16
      %v12665 = vrot.slane %v12663, 1
      %v12666 = vsel %vm1147, %v12661, %v12665
      %v12668 = vshrl.u32 %v11410, 16
      %v12670 = vshll.u32 %v11410, 16
      %v12672 = vrot.slane %v12670, 1
      %v12673 = vor.u32 %v12668, %v12672
      %v12675 = vshll.u32 %v11423, 16
      %v12677 = vrot.slane %v12675, 1
      %v12678 = vsel %vm1147, %v12673, %v12677
      %v12680 = vshrl.u32 %v11422, 16
      %v12682 = vshll.u32 %v11422, 16
      %v12684 = vrot.slane %v12682, 1
      %v12685 = vor.u32 %v12680, %v12684
      %v12687 = vshll.u32 %v11425, 16
      %v12689 = vrot.slane %v12687, 1
      %v12690 = vsel %vm1147, %v12685, %v12689
      %v12692 = vshrl.u32 %v10211, 16
      %v12694 = vshll.u32 %v10211, 16
      %v12696 = vrot.slane %v12694, 1
      %v12697 = vor.u32 %v12692, %v12696
      %v12699 = vshll.u32 %v10213, 16
      %v12701 = vrot.slane %v12699, 1
      %v12702 = vsel %vm1147, %v12697, %v12701
      %v12704 = vshrl.u32 %v10212, 16
      %v12706 = vshll.u32 %v10212, 16
      %v12708 = vrot.slane %v12706, 1
      %v12709 = vor.u32 %v12704, %v12708
      %v12711 = vshll.u32 %v10214, 16
      %v12713 = vrot.slane %v12711, 1
      %v12714 = vsel %vm1147, %v12709, %v12713
      %v12716 = vshrl.u32 %v10990, 16
      %v12718 = vshll.u32 %v10990, 16
      %v12720 = vrot.slane %v12718, 1
      %v12721 = vor.u32 %v12716, %v12720
      %v12723 = vshll.u32 %v11003, 16
      %v12725 = vrot.slane %v12723, 1
      %v12726 = vsel %vm1147, %v12721, %v12725
      %v12728 = vshrl.u32 %v11002, 16
      %v12730 = vshll.u32 %v11002, 16
      %v12732 = vrot.slane %v12730, 1
      %v12733 = vor.u32 %v12728, %v12732
      %v12735 = vshll.u32 %v11005, 16
      %v12737 = vrot.slane %v12735, 1
      %v12738 = vsel %vm1147, %v12733, %v12737
      %v12740 = vshrl.u32 %v10499, 16
      %v12742 = vshll.u32 %v10499, 16
      %v12744 = vrot.slane %v12742, 1
      %v12745 = vor.u32 %v12740, %v12744
      %v12747 = vshll.u32 %v10501, 16
      %v12749 = vrot.slane %v12747, 1
      %v12750 = vsel %vm1147, %v12745, %v12749
      %v12752 = vshrl.u32 %v10500, 16
      %v12754 = vshll.u32 %v10500, 16
      %v12756 = vrot.slane %v12754, 1
      %v12757 = vor.u32 %v12752, %v12756
      %v12759 = vshll.u32 %v10502, 16
      %v12761 = vrot.slane %v12759, 1
      %v12762 = vsel %vm1147, %v12757, %v12761
      %v12764 = vshrl.u32 %v11438, 16
      %v12766 = vshll.u32 %v11438, 16
      %v12768 = vrot.slane %v12766, 1
      %v12769 = vor.u32 %v12764, %v12768
      %v12771 = vshll.u32 %v11451, 16
      %v12773 = vrot.slane %v12771, 1
      %v12774 = vsel %vm1147, %v12769, %v12773
      %v12776 = vshrl.u32 %v11450, 16
      %v12778 = vshll.u32 %v11450, 16
      %v12780 = vrot.slane %v12778, 1
      %v12781 = vor.u32 %v12776, %v12780
      %v12783 = vshll.u32 %v11453, 16
      %v12785 = vrot.slane %v12783, 1
      %v12786 = vsel %vm1147, %v12781, %v12785
      %v12788 = vshrl.u32 %v10215, 16
      %v12790 = vshll.u32 %v10215, 16
      %v12792 = vrot.slane %v12790, 1
      %v12793 = vor.u32 %v12788, %v12792
      %v12795 = vshll.u32 %v10217, 16
      %v12797 = vrot.slane %v12795, 1
      %v12798 = vsel %vm1147, %v12793, %v12797
      %v12800 = vshrl.u32 %v10216, 16
      %v12802 = vshll.u32 %v10216, 16
      %v12804 = vrot.slane %v12802, 1
      %v12805 = vor.u32 %v12800, %v12804
      %v12807 = vshll.u32 %v10218, 16
      %v12809 = vrot.slane %v12807, 1
      %v12810 = vsel %vm1147, %v12805, %v12809
      %v12812 = vshrl.u32 %v11018, 16
      %v12814 = vshll.u32 %v11018, 16
      %v12816 = vrot.slane %v12814, 1
      %v12817 = vor.u32 %v12812, %v12816
      %v12819 = vshll.u32 %v11031, 16
      %v12821 = vrot.slane %v12819, 1
      %v12822 = vsel %vm1147, %v12817, %v12821
      %v12824 = vshrl.u32 %v11030, 16
      %v12826 = vshll.u32 %v11030, 16
      %v12828 = vrot.slane %v12826, 1
      %v12829 = vor.u32 %v12824, %v12828
      %v12831 = vshll.u32 %v11033, 16
      %v12833 = vrot.slane %v12831, 1
      %v12834 = vsel %vm1147, %v12829, %v12833
      %v12836 = vshrl.u32 %v10503, 16
      %v12838 = vshll.u32 %v10503, 16
      %v12840 = vrot.slane %v12838, 1
      %v12841 = vor.u32 %v12836, %v12840
      %v12843 = vshll.u32 %v10505, 16
      %v12845 = vrot.slane %v12843, 1
      %v12846 = vsel %vm1147, %v12841, %v12845
      %v12848 = vshrl.u32 %v10504, 16
      %v12850 = vshll.u32 %v10504, 16
      %v12852 = vrot.slane %v12850, 1
      %v12853 = vor.u32 %v12848, %v12852
      %v12855 = vshll.u32 %v10506, 16
      %v12857 = vrot.slane %v12855, 1
      %v12858 = vsel %vm1147, %v12853, %v12857
      %v12860 = vshrl.u32 %v11466, 16
      %v12862 = vshll.u32 %v11466, 16
      %v12864 = vrot.slane %v12862, 1
      %v12865 = vor.u32 %v12860, %v12864
      %v12867 = vshll.u32 %v11479, 16
      %v12869 = vrot.slane %v12867, 1
      %v12870 = vsel %vm1147, %v12865, %v12869
      %v12872 = vshrl.u32 %v11478, 16
      %v12874 = vshll.u32 %v11478, 16
      %v12876 = vrot.slane %v12874, 1
      %v12877 = vor.u32 %v12872, %v12876
      %v12879 = vshll.u32 %v11481, 16
      %v12881 = vrot.slane %v12879, 1
      %v12882 = vsel %vm1147, %v12877, %v12881
      %v12884 = vshrl.u32 %v10219, 16
      %v12886 = vshll.u32 %v10219, 16
      %v12888 = vrot.slane %v12886, 1
      %v12889 = vor.u32 %v12884, %v12888
      %v12891 = vshll.u32 %v10221, 16
      %v12893 = vrot.slane %v12891, 1
      %v12894 = vsel %vm1147, %v12889, %v12893
      %v12896 = vshrl.u32 %v10220, 16
      %v12898 = vshll.u32 %v10220, 16
      %v12900 = vrot.slane %v12898, 1
      %v12901 = vor.u32 %v12896, %v12900
      %v12903 = vshll.u32 %v10222, 16
      %v12905 = vrot.slane %v12903, 1
      %v12906 = vsel %vm1147, %v12901, %v12905
      %v12908 = vshrl.u32 %v11046, 16
      %v12910 = vshll.u32 %v11046, 16
      %v12912 = vrot.slane %v12910, 1
      %v12913 = vor.u32 %v12908, %v12912
      %v12915 = vshll.u32 %v11059, 16
      %v12917 = vrot.slane %v12915, 1
      %v12918 = vsel %vm1147, %v12913, %v12917
      %v12920 = vshrl.u32 %v11058, 16
      %v12922 = vshll.u32 %v11058, 16
      %v12924 = vrot.slane %v12922, 1
      %v12925 = vor.u32 %v12920, %v12924
      %v12927 = vshll.u32 %v11061, 16
      %v12929 = vrot.slane %v12927, 1
      %v12930 = vsel %vm1147, %v12925, %v12929
      %v12932 = vshrl.u32 %v10507, 16
      %v12934 = vshll.u32 %v10507, 16
      %v12936 = vrot.slane %v12934, 1
      %v12937 = vor.u32 %v12932, %v12936
      %v12939 = vshll.u32 %v10509, 16
      %v12941 = vrot.slane %v12939, 1
      %v12942 = vsel %vm1147, %v12937, %v12941
      %v12944 = vshrl.u32 %v10508, 16
      %v12946 = vshll.u32 %v10508, 16
      %v12948 = vrot.slane %v12946, 1
      %v12949 = vor.u32 %v12944, %v12948
      %v12951 = vshll.u32 %v10510, 16
      %v12953 = vrot.slane %v12951, 1
      %v12954 = vsel %vm1147, %v12949, %v12953
      %v12956 = vshrl.u32 %v11494, 16
      %v12958 = vshll.u32 %v11494, 16
      %v12960 = vrot.slane %v12958, 1
      %v12961 = vor.u32 %v12956, %v12960
      %v12963 = vshll.u32 %v11507, 16
      %v12965 = vrot.slane %v12963, 1
      %v12966 = vsel %vm1147, %v12961, %v12965
      %v12968 = vshrl.u32 %v11506, 16
      %v12970 = vshll.u32 %v11506, 16
      %v12972 = vrot.slane %v12970, 1
      %v12973 = vor.u32 %v12968, %v12972
      %v12975 = vshll.u32 %v11509, 16
      %v12977 = vrot.slane %v12975, 1
      %v12978 = vsel %vm1147, %v12973, %v12977
      %v12980 = vshrl.u32 %v10223, 16
      %v12982 = vshll.u32 %v10223, 16
      %v12984 = vrot.slane %v12982, 1
      %v12985 = vor.u32 %v12980, %v12984
      %v12987 = vshll.u32 %v10225, 16
      %v12989 = vrot.slane %v12987, 1
      %v12990 = vsel %vm1147, %v12985, %v12989
      %v12992 = vshrl.u32 %v10224, 16
      %v12994 = vshll.u32 %v10224, 16
      %v12996 = vrot.slane %v12994, 1
      %v12997 = vor.u32 %v12992, %v12996
      %v12999 = vshll.u32 %v10226, 16
      %v13001 = vrot.slane %v12999, 1
      %v13002 = vsel %vm1147, %v12997, %v13001
      %v13004 = vshrl.u32 %v11074, 16
      %v13006 = vshll.u32 %v11074, 16
      %v13008 = vrot.slane %v13006, 1
      %v13009 = vor.u32 %v13004, %v13008
      %v13011 = vshll.u32 %v11087, 16
      %v13013 = vrot.slane %v13011, 1
      %v13014 = vsel %vm1147, %v13009, %v13013
      %v13016 = vshrl.u32 %v11086, 16
      %v13018 = vshll.u32 %v11086, 16
      %v13020 = vrot.slane %v13018, 1
      %v13021 = vor.u32 %v13016, %v13020
      %v13023 = vshll.u32 %v11089, 16
      %v13025 = vrot.slane %v13023, 1
      %v13026 = vsel %vm1147, %v13021, %v13025
      %v13028 = vshrl.u32 %v10511, 16
      %v13030 = vshll.u32 %v10511, 16
      %v13032 = vrot.slane %v13030, 1
      %v13033 = vor.u32 %v13028, %v13032
      %v13035 = vshll.u32 %v10513, 16
      %v13037 = vrot.slane %v13035, 1
      %v13038 = vsel %vm1147, %v13033, %v13037
      %v13040 = vshrl.u32 %v10512, 16
      %v13042 = vshll.u32 %v10512, 16
      %v13044 = vrot.slane %v13042, 1
      %v13045 = vor.u32 %v13040, %v13044
      %v13047 = vshll.u32 %v10514, 16
      %v13049 = vrot.slane %v13047, 1
      %v13050 = vsel %vm1147, %v13045, %v13049
      %v13052 = vshrl.u32 %v11522, 16
      %v13054 = vshll.u32 %v11522, 16
      %v13056 = vrot.slane %v13054, 1
      %v13057 = vor.u32 %v13052, %v13056
      %v13059 = vshll.u32 %v11535, 16
      %v13061 = vrot.slane %v13059, 1
      %v13062 = vsel %vm1147, %v13057, %v13061
      %v13064 = vshrl.u32 %v11534, 16
      %v13066 = vshll.u32 %v11534, 16
      %v13068 = vrot.slane %v13066, 1
      %v13069 = vor.u32 %v13064, %v13068
      %v13071 = vshll.u32 %v11537, 16
      %v13073 = vrot.slane %v13071, 1
      %v13074 = vsel %vm1147, %v13069, %v13073
      %s13203 = scalar_lea.vmem %s1, 1536
      %v13204 = vld [vmem:[%s13203] sm:$0xf]
      %v13205 = vld [vmem:[%s13203 + $0x4] sm:$0xf]
      %v13206 = vld [vmem:[%s13203 + $0x8] sm:$0xf]
      %v13207 = vld [vmem:[%s13203 + $0xc] sm:$0xf]
      %v13208 = vld [vmem:[%s13203 + $0x10] sm:$0xf]
      %v13209 = vld [vmem:[%s13203 + $0x14] sm:$0xf]
      %v13210 = vld [vmem:[%s13203 + $0x18] sm:$0xf]
      %v13211 = vld [vmem:[%s13203 + $0x1c] sm:$0xf]
      %v13212 = vld [vmem:[%s13203 + $0x20] sm:$0xf]
      %v13213 = vld [vmem:[%s13203 + $0x24] sm:$0xf]
      %v13214 = vld [vmem:[%s13203 + $0x28] sm:$0xf]
      %v13215 = vld [vmem:[%s13203 + $0x2c] sm:$0xf]
      %v13216 = vld [vmem:[%s13203 + $0x30] sm:$0xf]
      %v13217 = vld [vmem:[%s13203 + $0x34] sm:$0xf]
      %v13218 = vld [vmem:[%s13203 + $0x38] sm:$0xf]
      %v13219 = vld [vmem:[%s13203 + $0x3c] sm:$0xf]
      %v13220 = vld [vmem:[%s13203 + $0x40] sm:$0xf]
      %v13221 = vld [vmem:[%s13203 + $0x44] sm:$0xf]
      %v13222 = vld [vmem:[%s13203 + $0x48] sm:$0xf]
      %v13223 = vld [vmem:[%s13203 + $0x4c] sm:$0xf]
      %v13224 = vld [vmem:[%s13203 + $0x50] sm:$0xf]
      %v13225 = vld [vmem:[%s13203 + $0x54] sm:$0xf]
      %v13226 = vld [vmem:[%s13203 + $0x58] sm:$0xf]
      %v13227 = vld [vmem:[%s13203 + $0x5c] sm:$0xf]
      %v13228 = vld [vmem:[%s13203 + $0x60] sm:$0xf]
      %v13229 = vld [vmem:[%s13203 + $0x64] sm:$0xf]
      %v13230 = vld [vmem:[%s13203 + $0x68] sm:$0xf]
      %v13231 = vld [vmem:[%s13203 + $0x6c] sm:$0xf]
      %v13232 = vld [vmem:[%s13203 + $0x70] sm:$0xf]
      %v13233 = vld [vmem:[%s13203 + $0x74] sm:$0xf]
      %v13234 = vld [vmem:[%s13203 + $0x78] sm:$0xf]
      %v13235 = vld [vmem:[%s13203 + $0x7c] sm:$0xf]
      %v13236 = vld [vmem:[%s13203 + $0x80] sm:$0xf]
      %v13237 = vld [vmem:[%s13203 + $0x84] sm:$0xf]
      %v13238 = vld [vmem:[%s13203 + $0x88] sm:$0xf]
      %v13239 = vld [vmem:[%s13203 + $0x8c] sm:$0xf]
      %v13240 = vld [vmem:[%s13203 + $0x90] sm:$0xf]
      %v13241 = vld [vmem:[%s13203 + $0x94] sm:$0xf]
      %v13242 = vld [vmem:[%s13203 + $0x98] sm:$0xf]
      %v13243 = vld [vmem:[%s13203 + $0x9c] sm:$0xf]
      %v13244 = vld [vmem:[%s13203 + $0xa0] sm:$0xf]
      %v13245 = vld [vmem:[%s13203 + $0xa4] sm:$0xf]
      %v13246 = vld [vmem:[%s13203 + $0xa8] sm:$0xf]
      %v13247 = vld [vmem:[%s13203 + $0xac] sm:$0xf]
      %v13248 = vld [vmem:[%s13203 + $0xb0] sm:$0xf]
      %v13249 = vld [vmem:[%s13203 + $0xb4] sm:$0xf]
      %v13250 = vld [vmem:[%s13203 + $0xb8] sm:$0xf]
      %v13251 = vld [vmem:[%s13203 + $0xbc] sm:$0xf]
      %v13252 = vld [vmem:[%s13203 + $0xc0] sm:$0xf]
      %v13253 = vld [vmem:[%s13203 + $0xc4] sm:$0xf]
      %v13254 = vld [vmem:[%s13203 + $0xc8] sm:$0xf]
      %v13255 = vld [vmem:[%s13203 + $0xcc] sm:$0xf]
      %v13256 = vld [vmem:[%s13203 + $0xd0] sm:$0xf]
      %v13257 = vld [vmem:[%s13203 + $0xd4] sm:$0xf]
      %v13258 = vld [vmem:[%s13203 + $0xd8] sm:$0xf]
      %v13259 = vld [vmem:[%s13203 + $0xdc] sm:$0xf]
      %v13260 = vld [vmem:[%s13203 + $0xe0] sm:$0xf]
      %v13261 = vld [vmem:[%s13203 + $0xe4] sm:$0xf]
      %v13262 = vld [vmem:[%s13203 + $0xe8] sm:$0xf]
      %v13263 = vld [vmem:[%s13203 + $0xec] sm:$0xf]
      %v13264 = vld [vmem:[%s13203 + $0xf0] sm:$0xf]
      %v13265 = vld [vmem:[%s13203 + $0xf4] sm:$0xf]
      %v13266 = vld [vmem:[%s13203 + $0xf8] sm:$0xf]
      %v13267 = vld [vmem:[%s13203 + $0xfc] sm:$0xf]
      %v13268 = vld [vmem:[%s13203 + $0x100] sm:$0xf]
      %v13269 = vld [vmem:[%s13203 + $0x104] sm:$0xf]
      %v13270 = vld [vmem:[%s13203 + $0x108] sm:$0xf]
      %v13271 = vld [vmem:[%s13203 + $0x10c] sm:$0xf]
      %v13272 = vld [vmem:[%s13203 + $0x110] sm:$0xf]
      %v13273 = vld [vmem:[%s13203 + $0x114] sm:$0xf]
      %v13274 = vld [vmem:[%s13203 + $0x118] sm:$0xf]
      %v13275 = vld [vmem:[%s13203 + $0x11c] sm:$0xf]
      %v13276 = vld [vmem:[%s13203 + $0x120] sm:$0xf]
      %v13277 = vld [vmem:[%s13203 + $0x124] sm:$0xf]
      %v13278 = vld [vmem:[%s13203 + $0x128] sm:$0xf]
      %v13279 = vld [vmem:[%s13203 + $0x12c] sm:$0xf]
      %v13280 = vld [vmem:[%s13203 + $0x130] sm:$0xf]
      %v13281 = vld [vmem:[%s13203 + $0x134] sm:$0xf]
      %v13282 = vld [vmem:[%s13203 + $0x138] sm:$0xf]
      %v13283 = vld [vmem:[%s13203 + $0x13c] sm:$0xf]
      %v13284 = vld [vmem:[%s13203 + $0x140] sm:$0xf]
      %v13285 = vld [vmem:[%s13203 + $0x144] sm:$0xf]
      %v13286 = vld [vmem:[%s13203 + $0x148] sm:$0xf]
      %v13287 = vld [vmem:[%s13203 + $0x14c] sm:$0xf]
      %v13288 = vld [vmem:[%s13203 + $0x150] sm:$0xf]
      %v13289 = vld [vmem:[%s13203 + $0x154] sm:$0xf]
      %v13290 = vld [vmem:[%s13203 + $0x158] sm:$0xf]
      %v13291 = vld [vmem:[%s13203 + $0x15c] sm:$0xf]
      %v13292 = vld [vmem:[%s13203 + $0x160] sm:$0xf]
      %v13293 = vld [vmem:[%s13203 + $0x164] sm:$0xf]
      %v13294 = vld [vmem:[%s13203 + $0x168] sm:$0xf]
      %v13295 = vld [vmem:[%s13203 + $0x16c] sm:$0xf]
      %v13296 = vld [vmem:[%s13203 + $0x170] sm:$0xf]
      %v13297 = vld [vmem:[%s13203 + $0x174] sm:$0xf]
      %v13298 = vld [vmem:[%s13203 + $0x178] sm:$0xf]
      %v13299 = vld [vmem:[%s13203 + $0x17c] sm:$0xf]
      %v13300 = vld [vmem:[%s13203 + $0x180] sm:$0xf]
      %v13301 = vld [vmem:[%s13203 + $0x184] sm:$0xf]
      %v13302 = vld [vmem:[%s13203 + $0x188] sm:$0xf]
      %v13303 = vld [vmem:[%s13203 + $0x18c] sm:$0xf]
      %v13304 = vld [vmem:[%s13203 + $0x190] sm:$0xf]
      %v13305 = vld [vmem:[%s13203 + $0x194] sm:$0xf]
      %v13306 = vld [vmem:[%s13203 + $0x198] sm:$0xf]
      %v13307 = vld [vmem:[%s13203 + $0x19c] sm:$0xf]
      %v13308 = vld [vmem:[%s13203 + $0x1a0] sm:$0xf]
      %v13309 = vld [vmem:[%s13203 + $0x1a4] sm:$0xf]
      %v13310 = vld [vmem:[%s13203 + $0x1a8] sm:$0xf]
      %v13311 = vld [vmem:[%s13203 + $0x1ac] sm:$0xf]
      %v13312 = vld [vmem:[%s13203 + $0x1b0] sm:$0xf]
      %v13313 = vld [vmem:[%s13203 + $0x1b4] sm:$0xf]
      %v13314 = vld [vmem:[%s13203 + $0x1b8] sm:$0xf]
      %v13315 = vld [vmem:[%s13203 + $0x1bc] sm:$0xf]
      %v13316 = vld [vmem:[%s13203 + $0x1c0] sm:$0xf]
      %v13317 = vld [vmem:[%s13203 + $0x1c4] sm:$0xf]
      %v13318 = vld [vmem:[%s13203 + $0x1c8] sm:$0xf]
      %v13319 = vld [vmem:[%s13203 + $0x1cc] sm:$0xf]
      %v13320 = vld [vmem:[%s13203 + $0x1d0] sm:$0xf]
      %v13321 = vld [vmem:[%s13203 + $0x1d4] sm:$0xf]
      %v13322 = vld [vmem:[%s13203 + $0x1d8] sm:$0xf]
      %v13323 = vld [vmem:[%s13203 + $0x1dc] sm:$0xf]
      %v13324 = vld [vmem:[%s13203 + $0x1e0] sm:$0xf]
      %v13325 = vld [vmem:[%s13203 + $0x1e4] sm:$0xf]
      %v13326 = vld [vmem:[%s13203 + $0x1e8] sm:$0xf]
      %v13327 = vld [vmem:[%s13203 + $0x1ec] sm:$0xf]
      %v13328 = vld [vmem:[%s13203 + $0x1f0] sm:$0xf]
      %v13329 = vld [vmem:[%s13203 + $0x1f4] sm:$0xf]
      %v13330 = vld [vmem:[%s13203 + $0x1f8] sm:$0xf]
      %v13331 = vld [vmem:[%s13203 + $0x1fc] sm:$0xf]
      %v13460 = vunpack.c.l.b16 %v13204
      %v13461 = vunpack.c.l.b16 %v13205
      %v13462 = vunpack.c.l.b16 %v13206
      %v13463 = vunpack.c.l.b16 %v13207
      %v13464 = vunpack.c.l.b16 %v13208
      %v13465 = vunpack.c.l.b16 %v13209
      %v13466 = vunpack.c.l.b16 %v13210
      %v13467 = vunpack.c.l.b16 %v13211
      %v13468 = vunpack.c.l.b16 %v13212
      %v13469 = vunpack.c.l.b16 %v13213
      %v13470 = vunpack.c.l.b16 %v13214
      %v13471 = vunpack.c.l.b16 %v13215
      %v13472 = vunpack.c.l.b16 %v13216
      %v13473 = vunpack.c.l.b16 %v13217
      %v13474 = vunpack.c.l.b16 %v13218
      %v13475 = vunpack.c.l.b16 %v13219
      %v13476 = vunpack.c.l.b16 %v13220
      %v13477 = vunpack.c.l.b16 %v13221
      %v13478 = vunpack.c.l.b16 %v13222
      %v13479 = vunpack.c.l.b16 %v13223
      %v13480 = vunpack.c.l.b16 %v13224
      %v13481 = vunpack.c.l.b16 %v13225
      %v13482 = vunpack.c.l.b16 %v13226
      %v13483 = vunpack.c.l.b16 %v13227
      %v13484 = vunpack.c.l.b16 %v13228
      %v13485 = vunpack.c.l.b16 %v13229
      %v13486 = vunpack.c.l.b16 %v13230
      %v13487 = vunpack.c.l.b16 %v13231
      %v13488 = vunpack.c.l.b16 %v13232
      %v13489 = vunpack.c.l.b16 %v13233
      %v13490 = vunpack.c.l.b16 %v13234
      %v13491 = vunpack.c.l.b16 %v13235
      %v13492 = vunpack.c.l.b16 %v13236
      %v13493 = vunpack.c.l.b16 %v13237
      %v13494 = vunpack.c.l.b16 %v13238
      %v13495 = vunpack.c.l.b16 %v13239
      %v13496 = vunpack.c.l.b16 %v13240
      %v13497 = vunpack.c.l.b16 %v13241
      %v13498 = vunpack.c.l.b16 %v13242
      %v13499 = vunpack.c.l.b16 %v13243
      %v13500 = vunpack.c.l.b16 %v13244
      %v13501 = vunpack.c.l.b16 %v13245
      %v13502 = vunpack.c.l.b16 %v13246
      %v13503 = vunpack.c.l.b16 %v13247
      %v13504 = vunpack.c.l.b16 %v13248
      %v13505 = vunpack.c.l.b16 %v13249
      %v13506 = vunpack.c.l.b16 %v13250
      %v13507 = vunpack.c.l.b16 %v13251
      %v13508 = vunpack.c.l.b16 %v13252
      %v13509 = vunpack.c.l.b16 %v13253
      %v13510 = vunpack.c.l.b16 %v13254
      %v13511 = vunpack.c.l.b16 %v13255
      %v13512 = vunpack.c.l.b16 %v13256
      %v13513 = vunpack.c.l.b16 %v13257
      %v13514 = vunpack.c.l.b16 %v13258
      %v13515 = vunpack.c.l.b16 %v13259
      %v13516 = vunpack.c.l.b16 %v13260
      %v13517 = vunpack.c.l.b16 %v13261
      %v13518 = vunpack.c.l.b16 %v13262
      %v13519 = vunpack.c.l.b16 %v13263
      %v13520 = vunpack.c.l.b16 %v13264
      %v13521 = vunpack.c.l.b16 %v13265
      %v13522 = vunpack.c.l.b16 %v13266
      %v13523 = vunpack.c.l.b16 %v13267
      %v13524 = vunpack.c.l.b16 %v13268
      %v13525 = vunpack.c.l.b16 %v13269
      %v13526 = vunpack.c.l.b16 %v13270
      %v13527 = vunpack.c.l.b16 %v13271
      %v13528 = vunpack.c.l.b16 %v13272
      %v13529 = vunpack.c.l.b16 %v13273
      %v13530 = vunpack.c.l.b16 %v13274
      %v13531 = vunpack.c.l.b16 %v13275
      %v13532 = vunpack.c.l.b16 %v13276
      %v13533 = vunpack.c.l.b16 %v13277
      %v13534 = vunpack.c.l.b16 %v13278
      %v13535 = vunpack.c.l.b16 %v13279
      %v13536 = vunpack.c.l.b16 %v13280
      %v13537 = vunpack.c.l.b16 %v13281
      %v13538 = vunpack.c.l.b16 %v13282
      %v13539 = vunpack.c.l.b16 %v13283
      %v13540 = vunpack.c.l.b16 %v13284
      %v13541 = vunpack.c.l.b16 %v13285
      %v13542 = vunpack.c.l.b16 %v13286
      %v13543 = vunpack.c.l.b16 %v13287
      %v13544 = vunpack.c.l.b16 %v13288
      %v13545 = vunpack.c.l.b16 %v13289
      %v13546 = vunpack.c.l.b16 %v13290
      %v13547 = vunpack.c.l.b16 %v13291
      %v13548 = vunpack.c.l.b16 %v13292
      %v13549 = vunpack.c.l.b16 %v13293
      %v13550 = vunpack.c.l.b16 %v13294
      %v13551 = vunpack.c.l.b16 %v13295
      %v13552 = vunpack.c.l.b16 %v13296
      %v13553 = vunpack.c.l.b16 %v13297
      %v13554 = vunpack.c.l.b16 %v13298
      %v13555 = vunpack.c.l.b16 %v13299
      %v13556 = vunpack.c.l.b16 %v13300
      %v13557 = vunpack.c.l.b16 %v13301
      %v13558 = vunpack.c.l.b16 %v13302
      %v13559 = vunpack.c.l.b16 %v13303
      %v13560 = vunpack.c.l.b16 %v13304
      %v13561 = vunpack.c.l.b16 %v13305
      %v13562 = vunpack.c.l.b16 %v13306
      %v13563 = vunpack.c.l.b16 %v13307
      %v13564 = vunpack.c.l.b16 %v13308
      %v13565 = vunpack.c.l.b16 %v13309
      %v13566 = vunpack.c.l.b16 %v13310
      %v13567 = vunpack.c.l.b16 %v13311
      %v13568 = vunpack.c.l.b16 %v13312
      %v13569 = vunpack.c.l.b16 %v13313
      %v13570 = vunpack.c.l.b16 %v13314
      %v13571 = vunpack.c.l.b16 %v13315
      %v13572 = vunpack.c.l.b16 %v13316
      %v13573 = vunpack.c.l.b16 %v13317
      %v13574 = vunpack.c.l.b16 %v13318
      %v13575 = vunpack.c.l.b16 %v13319
      %v13576 = vunpack.c.l.b16 %v13320
      %v13577 = vunpack.c.l.b16 %v13321
      %v13578 = vunpack.c.l.b16 %v13322
      %v13579 = vunpack.c.l.b16 %v13323
      %v13580 = vunpack.c.l.b16 %v13324
      %v13581 = vunpack.c.l.b16 %v13325
      %v13582 = vunpack.c.l.b16 %v13326
      %v13583 = vunpack.c.l.b16 %v13327
      %v13584 = vunpack.c.l.b16 %v13328
      %v13585 = vunpack.c.l.b16 %v13329
      %v13586 = vunpack.c.l.b16 %v13330
      %v13587 = vunpack.c.l.b16 %v13331
      %v13588 = vpack.c.b16 %v13461, %v13460
      %v13589 = vpack.c.b16 %v13463, %v13462
      %v13590 = vpack.c.b16 %v13465, %v13464
      %v13591 = vpack.c.b16 %v13467, %v13466
      %v13592 = vpack.c.b16 %v13469, %v13468
      %v13593 = vpack.c.b16 %v13471, %v13470
      %v13594 = vpack.c.b16 %v13473, %v13472
      %v13595 = vpack.c.b16 %v13475, %v13474
      %v13596 = vpack.c.b16 %v13477, %v13476
      %v13597 = vpack.c.b16 %v13479, %v13478
      %v13598 = vpack.c.b16 %v13481, %v13480
      %v13599 = vpack.c.b16 %v13483, %v13482
      %v13600 = vpack.c.b16 %v13485, %v13484
      %v13601 = vpack.c.b16 %v13487, %v13486
      %v13602 = vpack.c.b16 %v13489, %v13488
      %v13603 = vpack.c.b16 %v13491, %v13490
      %v13604 = vpack.c.b16 %v13493, %v13492
      %v13605 = vpack.c.b16 %v13495, %v13494
      %v13606 = vpack.c.b16 %v13497, %v13496
      %v13607 = vpack.c.b16 %v13499, %v13498
      %v13608 = vpack.c.b16 %v13501, %v13500
      %v13609 = vpack.c.b16 %v13503, %v13502
      %v13610 = vpack.c.b16 %v13505, %v13504
      %v13611 = vpack.c.b16 %v13507, %v13506
      %v13612 = vpack.c.b16 %v13509, %v13508
      %v13613 = vpack.c.b16 %v13511, %v13510
      %v13614 = vpack.c.b16 %v13513, %v13512
      %v13615 = vpack.c.b16 %v13515, %v13514
      %v13616 = vpack.c.b16 %v13517, %v13516
      %v13617 = vpack.c.b16 %v13519, %v13518
      %v13618 = vpack.c.b16 %v13521, %v13520
      %v13619 = vpack.c.b16 %v13523, %v13522
      %v13620 = vpack.c.b16 %v13525, %v13524
      %v13621 = vpack.c.b16 %v13527, %v13526
      %v13622 = vpack.c.b16 %v13529, %v13528
      %v13623 = vpack.c.b16 %v13531, %v13530
      %v13624 = vpack.c.b16 %v13533, %v13532
      %v13625 = vpack.c.b16 %v13535, %v13534
      %v13626 = vpack.c.b16 %v13537, %v13536
      %v13627 = vpack.c.b16 %v13539, %v13538
      %v13628 = vpack.c.b16 %v13541, %v13540
      %v13629 = vpack.c.b16 %v13543, %v13542
      %v13630 = vpack.c.b16 %v13545, %v13544
      %v13631 = vpack.c.b16 %v13547, %v13546
      %v13632 = vpack.c.b16 %v13549, %v13548
      %v13633 = vpack.c.b16 %v13551, %v13550
      %v13634 = vpack.c.b16 %v13553, %v13552
      %v13635 = vpack.c.b16 %v13555, %v13554
      %v13636 = vpack.c.b16 %v13557, %v13556
      %v13637 = vpack.c.b16 %v13559, %v13558
      %v13638 = vpack.c.b16 %v13561, %v13560
      %v13639 = vpack.c.b16 %v13563, %v13562
      %v13640 = vpack.c.b16 %v13565, %v13564
      %v13641 = vpack.c.b16 %v13567, %v13566
      %v13642 = vpack.c.b16 %v13569, %v13568
      %v13643 = vpack.c.b16 %v13571, %v13570
      %v13644 = vpack.c.b16 %v13573, %v13572
      %v13645 = vpack.c.b16 %v13575, %v13574
      %v13646 = vpack.c.b16 %v13577, %v13576
      %v13647 = vpack.c.b16 %v13579, %v13578
      %v13648 = vpack.c.b16 %v13581, %v13580
      %v13649 = vpack.c.b16 %v13583, %v13582
      %v13650 = vpack.c.b16 %v13585, %v13584
      %v13651 = vpack.c.b16 %v13587, %v13586
      %13716 = vmatprep.subr.bf16.mxu0 0
      %13717 = vmatpush1.bf16.msra.mxu0 %v13595
      %13718 = vmatprep.subr.bf16.mxu0 0
      %13719 = vmatpush1.bf16.msra.mxu0 %v13594
      %13720 = vmatprep.subr.bf16.mxu0 0
      %13721 = vmatpush1.bf16.msra.mxu0 %v13593
      %13722 = vmatprep.subr.bf16.mxu0 0
      %13723 = vmatpush1.bf16.msra.mxu0 %v13592
      %13724 = vmatprep.subr.bf16.mxu0 0
      %13725 = vmatpush1.bf16.msra.mxu0 %v13591
      %13726 = vmatprep.subr.bf16.mxu0 0
      %13727 = vmatpush1.bf16.msra.mxu0 %v13590
      %13728 = vmatprep.subr.bf16.mxu0 0
      %13729 = vmatpush1.bf16.msra.mxu0 %v13589
      %13730 = vmatprep.subr.bf16.mxu0 0
      %13731 = vmatpush1.bf16.msra.mxu0 %v13588
      %13732 = vmatprep.subr.bf16.mxu0 0
      %13733 = vmatpush2.bf16.msra.mxu0 %v13603
      %13734 = vmatprep.subr.bf16.mxu0 0
      %13735 = vmatpush2.bf16.msra.mxu0 %v13602
      %13736 = vmatprep.subr.bf16.mxu0 0
      %13737 = vmatpush2.bf16.msra.mxu0 %v13601
      %13738 = vmatprep.subr.bf16.mxu0 0
      %13739 = vmatpush2.bf16.msra.mxu0 %v13600
      %13740 = vmatprep.subr.bf16.mxu0 0
      %13741 = vmatpush2.bf16.msra.mxu0 %v13599
      %13742 = vmatprep.subr.bf16.mxu0 0
      %13743 = vmatpush2.bf16.msra.mxu0 %v13598
      %13744 = vmatprep.subr.bf16.mxu0 0
      %13745 = vmatpush2.bf16.msra.mxu0 %v13597
      %13746 = vmatprep.subr.bf16.mxu0 0
      %13747 = vmatpush2.bf16.msra.mxu0 %v13596
      %13748 = vmatprep.mubr.bf16.mxu0 %v11562
      %13749 = vmatmul.mubr.bf16.gmra.mxu0 %v11550
      %v13750 = vpop.f32.mrf.mxu0
      %v13751 = vadd.f32 %v2112, %v13750
      %v13752 = vpop.f32.mrf.mxu0
      %v13753 = vpop.f32.mrf.mxu0
      %v13754 = vadd.f32 %v2112, %v13753
      %v13755 = vpop.f32.mrf.mxu0
      %13756 = vmatprep.mubr.bf16.mxu0 %v11658
      %13757 = vmatmul.mubr.bf16.gmra.mxu0 %v11646
      %v13758 = vpop.f32.mrf.mxu0
      %v13759 = vadd.f32 %v2112, %v13758
      %v13760 = vpop.f32.mrf.mxu0
      %v13761 = vpop.f32.mrf.mxu0
      %v13762 = vadd.f32 %v2112, %v13761
      %v13763 = vpop.f32.mrf.mxu0
      %13764 = vmatprep.mubr.bf16.mxu0 %v11754
      %13765 = vmatmul.mubr.bf16.gmra.mxu0 %v11742
      %v13766 = vpop.f32.mrf.mxu0
      %v13767 = vadd.f32 %v2112, %v13766
      %v13768 = vpop.f32.mrf.mxu0
      %v13769 = vpop.f32.mrf.mxu0
      %v13770 = vadd.f32 %v2112, %v13769
      %v13771 = vpop.f32.mrf.mxu0
      %13772 = vmatprep.mubr.bf16.mxu0 %v11850
      %13773 = vmatmul.mubr.bf16.gmra.mxu0 %v11838
      %v13774 = vpop.f32.mrf.mxu0
      %v13775 = vadd.f32 %v2112, %v13774
      %v13776 = vpop.f32.mrf.mxu0
      %v13777 = vpop.f32.mrf.mxu0
      %v13778 = vadd.f32 %v2112, %v13777
      %v13779 = vpop.f32.mrf.mxu0
      %13780 = vmatprep.mubr.bf16.mxu0 %v11946
      %13781 = vmatmul.mubr.bf16.gmra.mxu0 %v11934
      %v13782 = vpop.f32.mrf.mxu0
      %v13783 = vadd.f32 %v2112, %v13782
      %v13784 = vpop.f32.mrf.mxu0
      %v13785 = vpop.f32.mrf.mxu0
      %v13786 = vadd.f32 %v2112, %v13785
      %v13787 = vpop.f32.mrf.mxu0
      %13788 = vmatprep.mubr.bf16.mxu0 %v12042
      %13789 = vmatmul.mubr.bf16.gmra.mxu0 %v12030
      %v13790 = vpop.f32.mrf.mxu0
      %v13791 = vadd.f32 %v2112, %v13790
      %v13792 = vpop.f32.mrf.mxu0
      %v13793 = vpop.f32.mrf.mxu0
      %v13794 = vadd.f32 %v2112, %v13793
      %v13795 = vpop.f32.mrf.mxu0
      %13796 = vmatprep.mubr.bf16.mxu0 %v12138
      %13797 = vmatmul.mubr.bf16.gmra.mxu0 %v12126
      %v13798 = vpop.f32.mrf.mxu0
      %v13799 = vadd.f32 %v2112, %v13798
      %v13800 = vpop.f32.mrf.mxu0
      %v13801 = vpop.f32.mrf.mxu0
      %v13802 = vadd.f32 %v2112, %v13801
      %v13803 = vpop.f32.mrf.mxu0
      %13804 = vmatprep.mubr.bf16.mxu0 %v12234
      %13805 = vmatmul.mubr.bf16.gmra.mxu0 %v12222
      %v13806 = vpop.f32.mrf.mxu0
      %v13807 = vadd.f32 %v2112, %v13806
      %v13808 = vpop.f32.mrf.mxu0
      %v13809 = vpop.f32.mrf.mxu0
      %v13810 = vadd.f32 %v2112, %v13809
      %v13811 = vpop.f32.mrf.mxu0
      %13812 = vmatprep.mubr.bf16.mxu0 %v12330
      %13813 = vmatmul.mubr.bf16.gmra.mxu0 %v12318
      %v13814 = vpop.f32.mrf.mxu0
      %v13815 = vadd.f32 %v2112, %v13814
      %v13816 = vpop.f32.mrf.mxu0
      %v13817 = vpop.f32.mrf.mxu0
      %v13818 = vadd.f32 %v2112, %v13817
      %v13819 = vpop.f32.mrf.mxu0
      %13820 = vmatprep.mubr.bf16.mxu0 %v12426
      %13821 = vmatmul.mubr.bf16.gmra.mxu0 %v12414
      %v13822 = vpop.f32.mrf.mxu0
      %v13823 = vadd.f32 %v2112, %v13822
      %v13824 = vpop.f32.mrf.mxu0
      %v13825 = vpop.f32.mrf.mxu0
      %v13826 = vadd.f32 %v2112, %v13825
      %v13827 = vpop.f32.mrf.mxu0
      %13828 = vmatprep.mubr.bf16.mxu0 %v12522
      %13829 = vmatmul.mubr.bf16.gmra.mxu0 %v12510
      %v13830 = vpop.f32.mrf.mxu0
      %v13831 = vadd.f32 %v2112, %v13830
      %v13832 = vpop.f32.mrf.mxu0
      %v13833 = vpop.f32.mrf.mxu0
      %v13834 = vadd.f32 %v2112, %v13833
      %v13835 = vpop.f32.mrf.mxu0
      %13836 = vmatprep.mubr.bf16.mxu0 %v12618
      %13837 = vmatmul.mubr.bf16.gmra.mxu0 %v12606
      %v13838 = vpop.f32.mrf.mxu0
      %v13839 = vadd.f32 %v2112, %v13838
      %v13840 = vpop.f32.mrf.mxu0
      %v13841 = vpop.f32.mrf.mxu0
      %v13842 = vadd.f32 %v2112, %v13841
      %v13843 = vpop.f32.mrf.mxu0
      %13844 = vmatprep.mubr.bf16.mxu0 %v12714
      %13845 = vmatmul.mubr.bf16.gmra.mxu0 %v12702
      %v13846 = vpop.f32.mrf.mxu0
      %v13847 = vadd.f32 %v2112, %v13846
      %v13848 = vpop.f32.mrf.mxu0
      %v13849 = vpop.f32.mrf.mxu0
      %v13850 = vadd.f32 %v2112, %v13849
      %v13851 = vpop.f32.mrf.mxu0
      %13852 = vmatprep.mubr.bf16.mxu0 %v12810
      %13853 = vmatmul.mubr.bf16.gmra.mxu0 %v12798
      %v13854 = vpop.f32.mrf.mxu0
      %v13855 = vadd.f32 %v2112, %v13854
      %v13856 = vpop.f32.mrf.mxu0
      %v13857 = vpop.f32.mrf.mxu0
      %v13858 = vadd.f32 %v2112, %v13857
      %v13859 = vpop.f32.mrf.mxu0
      %13860 = vmatprep.mubr.bf16.mxu0 %v12906
      %13861 = vmatmul.mubr.bf16.gmra.mxu0 %v12894
      %v13862 = vpop.f32.mrf.mxu0
      %v13863 = vadd.f32 %v2112, %v13862
      %v13864 = vpop.f32.mrf.mxu0
      %v13865 = vpop.f32.mrf.mxu0
      %v13866 = vadd.f32 %v2112, %v13865
      %v13867 = vpop.f32.mrf.mxu0
      %13868 = vmatprep.mubr.bf16.mxu0 %v13002
      %13869 = vmatmul.mubr.bf16.gmra.mxu0 %v12990
      %v13870 = vpop.f32.mrf.mxu0
      %v13871 = vadd.f32 %v2112, %v13870
      %v13872 = vpop.f32.mrf.mxu0
      %v13873 = vpop.f32.mrf.mxu0
      %v13874 = vadd.f32 %v2112, %v13873
      %v13875 = vpop.f32.mrf.mxu0
      %13876 = vdwg.mxu0
      %13877 = vmatprep.subr.bf16.mxu0 0
      %13878 = vmatpush1.bf16.msra.mxu0 %v13611
      %13879 = vmatprep.subr.bf16.mxu0 0
      %13880 = vmatpush1.bf16.msra.mxu0 %v13610
      %13881 = vmatprep.subr.bf16.mxu0 0
      %13882 = vmatpush1.bf16.msra.mxu0 %v13609
      %13883 = vmatprep.subr.bf16.mxu0 0
      %13884 = vmatpush1.bf16.msra.mxu0 %v13608
      %13885 = vmatprep.subr.bf16.mxu0 0
      %13886 = vmatpush1.bf16.msra.mxu0 %v13607
      %13887 = vmatprep.subr.bf16.mxu0 0
      %13888 = vmatpush1.bf16.msra.mxu0 %v13606
      %13889 = vmatprep.subr.bf16.mxu0 0
      %13890 = vmatpush1.bf16.msra.mxu0 %v13605
      %13891 = vmatprep.subr.bf16.mxu0 0
      %13892 = vmatpush1.bf16.msra.mxu0 %v13604
      %13893 = vmatprep.subr.bf16.mxu0 0
      %13894 = vmatpush2.bf16.msra.mxu0 %v13619
      %13895 = vmatprep.subr.bf16.mxu0 0
      %13896 = vmatpush2.bf16.msra.mxu0 %v13618
      %13897 = vmatprep.subr.bf16.mxu0 0
      %13898 = vmatpush2.bf16.msra.mxu0 %v13617
      %13899 = vmatprep.subr.bf16.mxu0 0
      %13900 = vmatpush2.bf16.msra.mxu0 %v13616
      %13901 = vmatprep.subr.bf16.mxu0 0
      %13902 = vmatpush2.bf16.msra.mxu0 %v13615
      %13903 = vmatprep.subr.bf16.mxu0 0
      %13904 = vmatpush2.bf16.msra.mxu0 %v13614
      %13905 = vmatprep.subr.bf16.mxu0 0
      %13906 = vmatpush2.bf16.msra.mxu0 %v13613
      %13907 = vmatprep.subr.bf16.mxu0 0
      %13908 = vmatpush2.bf16.msra.mxu0 %v13612
      %13909 = vmatprep.mubr.bf16.mxu0 %v11586
      %13910 = vmatmul.mubr.bf16.gmra.mxu0 %v11574
      %v13911 = vpop.f32.mrf.mxu0
      %v13912 = vadd.f32 %v13751, %v13911
      %v13913 = vpop.f32.mrf.mxu0
      %v13914 = vpop.f32.mrf.mxu0
      %v13915 = vadd.f32 %v13754, %v13914
      %v13916 = vpop.f32.mrf.mxu0
      %13917 = vmatprep.mubr.bf16.mxu0 %v11682
      %13918 = vmatmul.mubr.bf16.gmra.mxu0 %v11670
      %v13919 = vpop.f32.mrf.mxu0
      %v13920 = vadd.f32 %v13759, %v13919
      %v13921 = vpop.f32.mrf.mxu0
      %v13922 = vpop.f32.mrf.mxu0
      %v13923 = vadd.f32 %v13762, %v13922
      %v13924 = vpop.f32.mrf.mxu0
      %13925 = vmatprep.mubr.bf16.mxu0 %v11778
      %13926 = vmatmul.mubr.bf16.gmra.mxu0 %v11766
      %v13927 = vpop.f32.mrf.mxu0
      %v13928 = vadd.f32 %v13767, %v13927
      %v13929 = vpop.f32.mrf.mxu0
      %v13930 = vpop.f32.mrf.mxu0
      %v13931 = vadd.f32 %v13770, %v13930
      %v13932 = vpop.f32.mrf.mxu0
      %13933 = vmatprep.mubr.bf16.mxu0 %v11874
      %13934 = vmatmul.mubr.bf16.gmra.mxu0 %v11862
      %v13935 = vpop.f32.mrf.mxu0
      %v13936 = vadd.f32 %v13775, %v13935
      %v13937 = vpop.f32.mrf.mxu0
      %v13938 = vpop.f32.mrf.mxu0
      %v13939 = vadd.f32 %v13778, %v13938
      %v13940 = vpop.f32.mrf.mxu0
      %13941 = vmatprep.mubr.bf16.mxu0 %v11970
      %13942 = vmatmul.mubr.bf16.gmra.mxu0 %v11958
      %v13943 = vpop.f32.mrf.mxu0
      %v13944 = vadd.f32 %v13783, %v13943
      %v13945 = vpop.f32.mrf.mxu0
      %v13946 = vpop.f32.mrf.mxu0
      %v13947 = vadd.f32 %v13786, %v13946
      %v13948 = vpop.f32.mrf.mxu0
      %13949 = vmatprep.mubr.bf16.mxu0 %v12066
      %13950 = vmatmul.mubr.bf16.gmra.mxu0 %v12054
      %v13951 = vpop.f32.mrf.mxu0
      %v13952 = vadd.f32 %v13791, %v13951
      %v13953 = vpop.f32.mrf.mxu0
      %v13954 = vpop.f32.mrf.mxu0
      %v13955 = vadd.f32 %v13794, %v13954
      %v13956 = vpop.f32.mrf.mxu0
      %13957 = vmatprep.mubr.bf16.mxu0 %v12162
      %13958 = vmatmul.mubr.bf16.gmra.mxu0 %v12150
      %v13959 = vpop.f32.mrf.mxu0
      %v13960 = vadd.f32 %v13799, %v13959
      %v13961 = vpop.f32.mrf.mxu0
      %v13962 = vpop.f32.mrf.mxu0
      %v13963 = vadd.f32 %v13802, %v13962
      %v13964 = vpop.f32.mrf.mxu0
      %13965 = vmatprep.mubr.bf16.mxu0 %v12258
      %13966 = vmatmul.mubr.bf16.gmra.mxu0 %v12246
      %v13967 = vpop.f32.mrf.mxu0
      %v13968 = vadd.f32 %v13807, %v13967
      %v13969 = vpop.f32.mrf.mxu0
      %v13970 = vpop.f32.mrf.mxu0
      %v13971 = vadd.f32 %v13810, %v13970
      %v13972 = vpop.f32.mrf.mxu0
      %13973 = vmatprep.mubr.bf16.mxu0 %v12354
      %13974 = vmatmul.mubr.bf16.gmra.mxu0 %v12342
      %v13975 = vpop.f32.mrf.mxu0
      %v13976 = vadd.f32 %v13815, %v13975
      %v13977 = vpop.f32.mrf.mxu0
      %v13978 = vpop.f32.mrf.mxu0
      %v13979 = vadd.f32 %v13818, %v13978
      %v13980 = vpop.f32.mrf.mxu0
      %13981 = vmatprep.mubr.bf16.mxu0 %v12450
      %13982 = vmatmul.mubr.bf16.gmra.mxu0 %v12438
      %v13983 = vpop.f32.mrf.mxu0
      %v13984 = vadd.f32 %v13823, %v13983
      %v13985 = vpop.f32.mrf.mxu0
      %v13986 = vpop.f32.mrf.mxu0
      %v13987 = vadd.f32 %v13826, %v13986
      %v13988 = vpop.f32.mrf.mxu0
      %13989 = vmatprep.mubr.bf16.mxu0 %v12546
      %13990 = vmatmul.mubr.bf16.gmra.mxu0 %v12534
      %v13991 = vpop.f32.mrf.mxu0
      %v13992 = vadd.f32 %v13831, %v13991
      %v13993 = vpop.f32.mrf.mxu0
      %v13994 = vpop.f32.mrf.mxu0
      %v13995 = vadd.f32 %v13834, %v13994
      %v13996 = vpop.f32.mrf.mxu0
      %13997 = vmatprep.mubr.bf16.mxu0 %v12642
      %13998 = vmatmul.mubr.bf16.gmra.mxu0 %v12630
      %v13999 = vpop.f32.mrf.mxu0
      %v14000 = vadd.f32 %v13839, %v13999
      %v14001 = vpop.f32.mrf.mxu0
      %v14002 = vpop.f32.mrf.mxu0
      %v14003 = vadd.f32 %v13842, %v14002
      %v14004 = vpop.f32.mrf.mxu0
      %14005 = vmatprep.mubr.bf16.mxu0 %v12738
      %14006 = vmatmul.mubr.bf16.gmra.mxu0 %v12726
      %v14007 = vpop.f32.mrf.mxu0
      %v14008 = vadd.f32 %v13847, %v14007
      %v14009 = vpop.f32.mrf.mxu0
      %v14010 = vpop.f32.mrf.mxu0
      %v14011 = vadd.f32 %v13850, %v14010
      %v14012 = vpop.f32.mrf.mxu0
      %14013 = vmatprep.mubr.bf16.mxu0 %v12834
      %14014 = vmatmul.mubr.bf16.gmra.mxu0 %v12822
      %v14015 = vpop.f32.mrf.mxu0
      %v14016 = vadd.f32 %v13855, %v14015
      %v14017 = vpop.f32.mrf.mxu0
      %v14018 = vpop.f32.mrf.mxu0
      %v14019 = vadd.f32 %v13858, %v14018
      %v14020 = vpop.f32.mrf.mxu0
      %14021 = vmatprep.mubr.bf16.mxu0 %v12930
      %14022 = vmatmul.mubr.bf16.gmra.mxu0 %v12918
      %v14023 = vpop.f32.mrf.mxu0
      %v14024 = vadd.f32 %v13863, %v14023
      %v14025 = vpop.f32.mrf.mxu0
      %v14026 = vpop.f32.mrf.mxu0
      %v14027 = vadd.f32 %v13866, %v14026
      %v14028 = vpop.f32.mrf.mxu0
      %14029 = vmatprep.mubr.bf16.mxu0 %v13026
      %14030 = vmatmul.mubr.bf16.gmra.mxu0 %v13014
      %v14031 = vpop.f32.mrf.mxu0
      %v14032 = vadd.f32 %v13871, %v14031
      %v14033 = vpop.f32.mrf.mxu0
      %v14034 = vpop.f32.mrf.mxu0
      %v14035 = vadd.f32 %v13874, %v14034
      %v14036 = vpop.f32.mrf.mxu0
      %14037 = vdwg.mxu0
      %14038 = vmatprep.subr.bf16.mxu0 0
      %14039 = vmatpush1.bf16.msra.mxu0 %v13627
      %14040 = vmatprep.subr.bf16.mxu0 0
      %14041 = vmatpush1.bf16.msra.mxu0 %v13626
      %14042 = vmatprep.subr.bf16.mxu0 0
      %14043 = vmatpush1.bf16.msra.mxu0 %v13625
      %14044 = vmatprep.subr.bf16.mxu0 0
      %14045 = vmatpush1.bf16.msra.mxu0 %v13624
      %14046 = vmatprep.subr.bf16.mxu0 0
      %14047 = vmatpush1.bf16.msra.mxu0 %v13623
      %14048 = vmatprep.subr.bf16.mxu0 0
      %14049 = vmatpush1.bf16.msra.mxu0 %v13622
      %14050 = vmatprep.subr.bf16.mxu0 0
      %14051 = vmatpush1.bf16.msra.mxu0 %v13621
      %14052 = vmatprep.subr.bf16.mxu0 0
      %14053 = vmatpush1.bf16.msra.mxu0 %v13620
      %14054 = vmatprep.subr.bf16.mxu0 0
      %14055 = vmatpush2.bf16.msra.mxu0 %v13635
      %14056 = vmatprep.subr.bf16.mxu0 0
      %14057 = vmatpush2.bf16.msra.mxu0 %v13634
      %14058 = vmatprep.subr.bf16.mxu0 0
      %14059 = vmatpush2.bf16.msra.mxu0 %v13633
      %14060 = vmatprep.subr.bf16.mxu0 0
      %14061 = vmatpush2.bf16.msra.mxu0 %v13632
      %14062 = vmatprep.subr.bf16.mxu0 0
      %14063 = vmatpush2.bf16.msra.mxu0 %v13631
      %14064 = vmatprep.subr.bf16.mxu0 0
      %14065 = vmatpush2.bf16.msra.mxu0 %v13630
      %14066 = vmatprep.subr.bf16.mxu0 0
      %14067 = vmatpush2.bf16.msra.mxu0 %v13629
      %14068 = vmatprep.subr.bf16.mxu0 0
      %14069 = vmatpush2.bf16.msra.mxu0 %v13628
      %14070 = vmatprep.mubr.bf16.mxu0 %v11610
      %14071 = vmatmul.mubr.bf16.gmra.mxu0 %v11598
      %v14072 = vpop.f32.mrf.mxu0
      %v14073 = vadd.f32 %v13912, %v14072
      %v14074 = vpop.f32.mrf.mxu0
      %v14075 = vpop.f32.mrf.mxu0
      %v14076 = vadd.f32 %v13915, %v14075
      %v14077 = vpop.f32.mrf.mxu0
      %14078 = vmatprep.mubr.bf16.mxu0 %v11706
      %14079 = vmatmul.mubr.bf16.gmra.mxu0 %v11694
      %v14080 = vpop.f32.mrf.mxu0
      %v14081 = vadd.f32 %v13920, %v14080
      %v14082 = vpop.f32.mrf.mxu0
      %v14083 = vpop.f32.mrf.mxu0
      %v14084 = vadd.f32 %v13923, %v14083
      %v14085 = vpop.f32.mrf.mxu0
      %14086 = vmatprep.mubr.bf16.mxu0 %v11802
      %14087 = vmatmul.mubr.bf16.gmra.mxu0 %v11790
      %v14088 = vpop.f32.mrf.mxu0
      %v14089 = vadd.f32 %v13928, %v14088
      %v14090 = vpop.f32.mrf.mxu0
      %v14091 = vpop.f32.mrf.mxu0
      %v14092 = vadd.f32 %v13931, %v14091
      %v14093 = vpop.f32.mrf.mxu0
      %14094 = vmatprep.mubr.bf16.mxu0 %v11898
      %14095 = vmatmul.mubr.bf16.gmra.mxu0 %v11886
      %v14096 = vpop.f32.mrf.mxu0
      %v14097 = vadd.f32 %v13936, %v14096
      %v14098 = vpop.f32.mrf.mxu0
      %v14099 = vpop.f32.mrf.mxu0
      %v14100 = vadd.f32 %v13939, %v14099
      %v14101 = vpop.f32.mrf.mxu0
      %14102 = vmatprep.mubr.bf16.mxu0 %v11994
      %14103 = vmatmul.mubr.bf16.gmra.mxu0 %v11982
      %v14104 = vpop.f32.mrf.mxu0
      %v14105 = vadd.f32 %v13944, %v14104
      %v14106 = vpop.f32.mrf.mxu0
      %v14107 = vpop.f32.mrf.mxu0
      %v14108 = vadd.f32 %v13947, %v14107
      %v14109 = vpop.f32.mrf.mxu0
      %14110 = vmatprep.mubr.bf16.mxu0 %v12090
      %14111 = vmatmul.mubr.bf16.gmra.mxu0 %v12078
      %v14112 = vpop.f32.mrf.mxu0
      %v14113 = vadd.f32 %v13952, %v14112
      %v14114 = vpop.f32.mrf.mxu0
      %v14115 = vpop.f32.mrf.mxu0
      %v14116 = vadd.f32 %v13955, %v14115
      %v14117 = vpop.f32.mrf.mxu0
      %14118 = vmatprep.mubr.bf16.mxu0 %v12186
      %14119 = vmatmul.mubr.bf16.gmra.mxu0 %v12174
      %v14120 = vpop.f32.mrf.mxu0
      %v14121 = vadd.f32 %v13960, %v14120
      %v14122 = vpop.f32.mrf.mxu0
      %v14123 = vpop.f32.mrf.mxu0
      %v14124 = vadd.f32 %v13963, %v14123
      %v14125 = vpop.f32.mrf.mxu0
      %14126 = vmatprep.mubr.bf16.mxu0 %v12282
      %14127 = vmatmul.mubr.bf16.gmra.mxu0 %v12270
      %v14128 = vpop.f32.mrf.mxu0
      %v14129 = vadd.f32 %v13968, %v14128
      %v14130 = vpop.f32.mrf.mxu0
      %v14131 = vpop.f32.mrf.mxu0
      %v14132 = vadd.f32 %v13971, %v14131
      %v14133 = vpop.f32.mrf.mxu0
      %14134 = vmatprep.mubr.bf16.mxu0 %v12378
      %14135 = vmatmul.mubr.bf16.gmra.mxu0 %v12366
      %v14136 = vpop.f32.mrf.mxu0
      %v14137 = vadd.f32 %v13976, %v14136
      %v14138 = vpop.f32.mrf.mxu0
      %v14139 = vpop.f32.mrf.mxu0
      %v14140 = vadd.f32 %v13979, %v14139
      %v14141 = vpop.f32.mrf.mxu0
      %14142 = vmatprep.mubr.bf16.mxu0 %v12474
      %14143 = vmatmul.mubr.bf16.gmra.mxu0 %v12462
      %v14144 = vpop.f32.mrf.mxu0
      %v14145 = vadd.f32 %v13984, %v14144
      %v14146 = vpop.f32.mrf.mxu0
      %v14147 = vpop.f32.mrf.mxu0
      %v14148 = vadd.f32 %v13987, %v14147
      %v14149 = vpop.f32.mrf.mxu0
      %14150 = vmatprep.mubr.bf16.mxu0 %v12570
      %14151 = vmatmul.mubr.bf16.gmra.mxu0 %v12558
      %v14152 = vpop.f32.mrf.mxu0
      %v14153 = vadd.f32 %v13992, %v14152
      %v14154 = vpop.f32.mrf.mxu0
      %v14155 = vpop.f32.mrf.mxu0
      %v14156 = vadd.f32 %v13995, %v14155
      %v14157 = vpop.f32.mrf.mxu0
      %14158 = vmatprep.mubr.bf16.mxu0 %v12666
      %14159 = vmatmul.mubr.bf16.gmra.mxu0 %v12654
      %v14160 = vpop.f32.mrf.mxu0
      %v14161 = vadd.f32 %v14000, %v14160
      %v14162 = vpop.f32.mrf.mxu0
      %v14163 = vpop.f32.mrf.mxu0
      %v14164 = vadd.f32 %v14003, %v14163
      %v14165 = vpop.f32.mrf.mxu0
      %14166 = vmatprep.mubr.bf16.mxu0 %v12762
      %14167 = vmatmul.mubr.bf16.gmra.mxu0 %v12750
      %v14168 = vpop.f32.mrf.mxu0
      %v14169 = vadd.f32 %v14008, %v14168
      %v14170 = vpop.f32.mrf.mxu0
      %v14171 = vpop.f32.mrf.mxu0
      %v14172 = vadd.f32 %v14011, %v14171
      %v14173 = vpop.f32.mrf.mxu0
      %14174 = vmatprep.mubr.bf16.mxu0 %v12858
      %14175 = vmatmul.mubr.bf16.gmra.mxu0 %v12846
      %v14176 = vpop.f32.mrf.mxu0
      %v14177 = vadd.f32 %v14016, %v14176
      %v14178 = vpop.f32.mrf.mxu0
      %v14179 = vpop.f32.mrf.mxu0
      %v14180 = vadd.f32 %v14019, %v14179
      %v14181 = vpop.f32.mrf.mxu0
      %14182 = vmatprep.mubr.bf16.mxu0 %v12954
      %14183 = vmatmul.mubr.bf16.gmra.mxu0 %v12942
      %v14184 = vpop.f32.mrf.mxu0
      %v14185 = vadd.f32 %v14024, %v14184
      %v14186 = vpop.f32.mrf.mxu0
      %v14187 = vpop.f32.mrf.mxu0
      %v14188 = vadd.f32 %v14027, %v14187
      %v14189 = vpop.f32.mrf.mxu0
      %14190 = vmatprep.mubr.bf16.mxu0 %v13050
      %14191 = vmatmul.mubr.bf16.gmra.mxu0 %v13038
      %v14192 = vpop.f32.mrf.mxu0
      %v14193 = vadd.f32 %v14032, %v14192
      %v14194 = vpop.f32.mrf.mxu0
      %v14195 = vpop.f32.mrf.mxu0
      %v14196 = vadd.f32 %v14035, %v14195
      %v14197 = vpop.f32.mrf.mxu0
      %14198 = vdwg.mxu0
      %14199 = vmatprep.subr.bf16.mxu0 0
      %14200 = vmatpush1.bf16.msra.mxu0 %v13643
      %14201 = vmatprep.subr.bf16.mxu0 0
      %14202 = vmatpush1.bf16.msra.mxu0 %v13642
      %14203 = vmatprep.subr.bf16.mxu0 0
      %14204 = vmatpush1.bf16.msra.mxu0 %v13641
      %14205 = vmatprep.subr.bf16.mxu0 0
      %14206 = vmatpush1.bf16.msra.mxu0 %v13640
      %14207 = vmatprep.subr.bf16.mxu0 0
      %14208 = vmatpush1.bf16.msra.mxu0 %v13639
      %14209 = vmatprep.subr.bf16.mxu0 0
      %14210 = vmatpush1.bf16.msra.mxu0 %v13638
      %14211 = vmatprep.subr.bf16.mxu0 0
      %14212 = vmatpush1.bf16.msra.mxu0 %v13637
      %14213 = vmatprep.subr.bf16.mxu0 0
      %14214 = vmatpush1.bf16.msra.mxu0 %v13636
      %14215 = vmatprep.subr.bf16.mxu0 0
      %14216 = vmatpush2.bf16.msra.mxu0 %v13651
      %14217 = vmatprep.subr.bf16.mxu0 0
      %14218 = vmatpush2.bf16.msra.mxu0 %v13650
      %14219 = vmatprep.subr.bf16.mxu0 0
      %14220 = vmatpush2.bf16.msra.mxu0 %v13649
      %14221 = vmatprep.subr.bf16.mxu0 0
      %14222 = vmatpush2.bf16.msra.mxu0 %v13648
      %14223 = vmatprep.subr.bf16.mxu0 0
      %14224 = vmatpush2.bf16.msra.mxu0 %v13647
      %14225 = vmatprep.subr.bf16.mxu0 0
      %14226 = vmatpush2.bf16.msra.mxu0 %v13646
      %14227 = vmatprep.subr.bf16.mxu0 0
      %14228 = vmatpush2.bf16.msra.mxu0 %v13645
      %14229 = vmatprep.subr.bf16.mxu0 0
      %14230 = vmatpush2.bf16.msra.mxu0 %v13644
      %14231 = vmatprep.mubr.bf16.mxu0 %v11634
      %14232 = vmatmul.mubr.bf16.gmra.mxu0 %v11622
      %v14233 = vpop.f32.mrf.mxu0
      %v14234 = vadd.f32 %v14073, %v14233
      %v14235 = vpop.f32.mrf.mxu0
      %v14236 = vpop.f32.mrf.mxu0
      %v14237 = vadd.f32 %v14076, %v14236
      %v14238 = vpop.f32.mrf.mxu0
      %14239 = vmatprep.mubr.bf16.mxu0 %v11730
      %14240 = vmatmul.mubr.bf16.gmra.mxu0 %v11718
      %v14241 = vpop.f32.mrf.mxu0
      %v14242 = vadd.f32 %v14081, %v14241
      %v14243 = vpop.f32.mrf.mxu0
      %v14244 = vpop.f32.mrf.mxu0
      %v14245 = vadd.f32 %v14084, %v14244
      %v14246 = vpop.f32.mrf.mxu0
      %14247 = vmatprep.mubr.bf16.mxu0 %v11826
      %14248 = vmatmul.mubr.bf16.gmra.mxu0 %v11814
      %v14249 = vpop.f32.mrf.mxu0
      %v14250 = vadd.f32 %v14089, %v14249
      %v14251 = vpop.f32.mrf.mxu0
      %v14252 = vpop.f32.mrf.mxu0
      %v14253 = vadd.f32 %v14092, %v14252
      %v14254 = vpop.f32.mrf.mxu0
      %14255 = vmatprep.mubr.bf16.mxu0 %v11922
      %14256 = vmatmul.mubr.bf16.gmra.mxu0 %v11910
      %v14257 = vpop.f32.mrf.mxu0
      %v14258 = vadd.f32 %v14097, %v14257
      %v14259 = vpop.f32.mrf.mxu0
      %v14260 = vpop.f32.mrf.mxu0
      %v14261 = vadd.f32 %v14100, %v14260
      %v14262 = vpop.f32.mrf.mxu0
      %14263 = vmatprep.mubr.bf16.mxu0 %v12018
      %14264 = vmatmul.mubr.bf16.gmra.mxu0 %v12006
      %v14265 = vpop.f32.mrf.mxu0
      %v14266 = vadd.f32 %v14105, %v14265
      %v14267 = vpop.f32.mrf.mxu0
      %v14268 = vpop.f32.mrf.mxu0
      %v14269 = vadd.f32 %v14108, %v14268
      %v14270 = vpop.f32.mrf.mxu0
      %14271 = vmatprep.mubr.bf16.mxu0 %v12114
      %14272 = vmatmul.mubr.bf16.gmra.mxu0 %v12102
      %v14273 = vpop.f32.mrf.mxu0
      %v14274 = vadd.f32 %v14113, %v14273
      %v14275 = vpop.f32.mrf.mxu0
      %v14276 = vpop.f32.mrf.mxu0
      %v14277 = vadd.f32 %v14116, %v14276
      %v14278 = vpop.f32.mrf.mxu0
      %14279 = vmatprep.mubr.bf16.mxu0 %v12210
      %14280 = vmatmul.mubr.bf16.gmra.mxu0 %v12198
      %v14281 = vpop.f32.mrf.mxu0
      %v14282 = vadd.f32 %v14121, %v14281
      %v14283 = vpop.f32.mrf.mxu0
      %v14284 = vpop.f32.mrf.mxu0
      %v14285 = vadd.f32 %v14124, %v14284
      %v14286 = vpop.f32.mrf.mxu0
      %14287 = vmatprep.mubr.bf16.mxu0 %v12306
      %14288 = vmatmul.mubr.bf16.gmra.mxu0 %v12294
      %v14289 = vpop.f32.mrf.mxu0
      %v14290 = vadd.f32 %v14129, %v14289
      %v14291 = vpop.f32.mrf.mxu0
      %v14292 = vpop.f32.mrf.mxu0
      %v14293 = vadd.f32 %v14132, %v14292
      %v14294 = vpop.f32.mrf.mxu0
      %14295 = vmatprep.mubr.bf16.mxu0 %v12402
      %14296 = vmatmul.mubr.bf16.gmra.mxu0 %v12390
      %v14297 = vpop.f32.mrf.mxu0
      %v14298 = vadd.f32 %v14137, %v14297
      %v14299 = vpop.f32.mrf.mxu0
      %v14300 = vpop.f32.mrf.mxu0
      %v14301 = vadd.f32 %v14140, %v14300
      %v14302 = vpop.f32.mrf.mxu0
      %14303 = vmatprep.mubr.bf16.mxu0 %v12498
      %14304 = vmatmul.mubr.bf16.gmra.mxu0 %v12486
      %v14305 = vpop.f32.mrf.mxu0
      %v14306 = vadd.f32 %v14145, %v14305
      %v14307 = vpop.f32.mrf.mxu0
      %v14308 = vpop.f32.mrf.mxu0
      %v14309 = vadd.f32 %v14148, %v14308
      %v14310 = vpop.f32.mrf.mxu0
      %14311 = vmatprep.mubr.bf16.mxu0 %v12594
      %14312 = vmatmul.mubr.bf16.gmra.mxu0 %v12582
      %v14313 = vpop.f32.mrf.mxu0
      %v14314 = vadd.f32 %v14153, %v14313
      %v14315 = vpop.f32.mrf.mxu0
      %v14316 = vpop.f32.mrf.mxu0
      %v14317 = vadd.f32 %v14156, %v14316
      %v14318 = vpop.f32.mrf.mxu0
      %14319 = vmatprep.mubr.bf16.mxu0 %v12690
      %14320 = vmatmul.mubr.bf16.gmra.mxu0 %v12678
      %v14321 = vpop.f32.mrf.mxu0
      %v14322 = vadd.f32 %v14161, %v14321
      %v14323 = vpop.f32.mrf.mxu0
      %v14324 = vpop.f32.mrf.mxu0
      %v14325 = vadd.f32 %v14164, %v14324
      %v14326 = vpop.f32.mrf.mxu0
      %14327 = vmatprep.mubr.bf16.mxu0 %v12786
      %14328 = vmatmul.mubr.bf16.gmra.mxu0 %v12774
      %v14329 = vpop.f32.mrf.mxu0
      %v14330 = vadd.f32 %v14169, %v14329
      %v14331 = vpop.f32.mrf.mxu0
      %v14332 = vpop.f32.mrf.mxu0
      %v14333 = vadd.f32 %v14172, %v14332
      %v14334 = vpop.f32.mrf.mxu0
      %14335 = vmatprep.mubr.bf16.mxu0 %v12882
      %14336 = vmatmul.mubr.bf16.gmra.mxu0 %v12870
      %v14337 = vpop.f32.mrf.mxu0
      %v14338 = vadd.f32 %v14177, %v14337
      %v14339 = vpop.f32.mrf.mxu0
      %v14340 = vpop.f32.mrf.mxu0
      %v14341 = vadd.f32 %v14180, %v14340
      %v14342 = vpop.f32.mrf.mxu0
      %14343 = vmatprep.mubr.bf16.mxu0 %v12978
      %14344 = vmatmul.mubr.bf16.gmra.mxu0 %v12966
      %v14345 = vpop.f32.mrf.mxu0
      %v14346 = vadd.f32 %v14185, %v14345
      %v14347 = vpop.f32.mrf.mxu0
      %v14348 = vpop.f32.mrf.mxu0
      %v14349 = vadd.f32 %v14188, %v14348
      %v14350 = vpop.f32.mrf.mxu0
      %14351 = vmatprep.mubr.bf16.mxu0 %v13074
      %14352 = vmatmul.mubr.bf16.gmra.mxu0 %v13062
      %v14353 = vpop.f32.mrf.mxu0
      %v14354 = vadd.f32 %v14193, %v14353
      %v14355 = vpop.f32.mrf.mxu0
      %v14356 = vpop.f32.mrf.mxu0
      %v14357 = vadd.f32 %v14196, %v14356
      %v14358 = vpop.f32.mrf.mxu0
      %14359 = vdwg.mxu0
      %v14360 = vmax.f32 %v14234, 0.0
      %v14361 = vmax.f32 %v14237, 0.0
      %v14362 = vmax.f32 %v14242, 0.0
      %v14363 = vmax.f32 %v14245, 0.0
      %v14364 = vmax.f32 %v14250, 0.0
      %v14365 = vmax.f32 %v14253, 0.0
      %v14366 = vmax.f32 %v14258, 0.0
      %v14367 = vmax.f32 %v14261, 0.0
      %v14368 = vmax.f32 %v14266, 0.0
      %v14369 = vmax.f32 %v14269, 0.0
      %v14370 = vmax.f32 %v14274, 0.0
      %v14371 = vmax.f32 %v14277, 0.0
      %v14372 = vmax.f32 %v14282, 0.0
      %v14373 = vmax.f32 %v14285, 0.0
      %v14374 = vmax.f32 %v14290, 0.0
      %v14375 = vmax.f32 %v14293, 0.0
      %v14376 = vmax.f32 %v14298, 0.0
      %v14377 = vmax.f32 %v14301, 0.0
      %v14378 = vmax.f32 %v14306, 0.0
      %v14379 = vmax.f32 %v14309, 0.0
      %v14380 = vmax.f32 %v14314, 0.0
      %v14381 = vmax.f32 %v14317, 0.0
      %v14382 = vmax.f32 %v14322, 0.0
      %v14383 = vmax.f32 %v14325, 0.0
      %v14384 = vmax.f32 %v14330, 0.0
      %v14385 = vmax.f32 %v14333, 0.0
      %v14386 = vmax.f32 %v14338, 0.0
      %v14387 = vmax.f32 %v14341, 0.0
      %v14388 = vmax.f32 %v14346, 0.0
      %v14389 = vmax.f32 %v14349, 0.0
      %v14390 = vmax.f32 %v14354, 0.0
      %v14391 = vmax.f32 %v14357, 0.0
      %s14392 = scalar_lea.vmem %s170, 768
      %14393 = vst [vmem:[%s14392] sm:$0xff] %v14360
      %14394 = vst [vmem:[%s14392 + $0x8] sm:$0xff] %v14361
      %14395 = vst [vmem:[%s14392 + $0x10] sm:$0xff] %v14362
      %14396 = vst [vmem:[%s14392 + $0x18] sm:$0xff] %v14363
      %14397 = vst [vmem:[%s14392 + $0x20] sm:$0xff] %v14364
      %14398 = vst [vmem:[%s14392 + $0x28] sm:$0xff] %v14365
      %14399 = vst [vmem:[%s14392 + $0x30] sm:$0xff] %v14366
      %14400 = vst [vmem:[%s14392 + $0x38] sm:$0xff] %v14367
      %14401 = vst [vmem:[%s14392 + $0x40] sm:$0xff] %v14368
      %14402 = vst [vmem:[%s14392 + $0x48] sm:$0xff] %v14369
      %14403 = vst [vmem:[%s14392 + $0x50] sm:$0xff] %v14370
      %14404 = vst [vmem:[%s14392 + $0x58] sm:$0xff] %v14371
      %14405 = vst [vmem:[%s14392 + $0x60] sm:$0xff] %v14372
      %14406 = vst [vmem:[%s14392 + $0x68] sm:$0xff] %v14373
      %14407 = vst [vmem:[%s14392 + $0x70] sm:$0xff] %v14374
      %14408 = vst [vmem:[%s14392 + $0x78] sm:$0xff] %v14375
      %14409 = vst [vmem:[%s14392 + $0x80] sm:$0xff] %v14376
      %14410 = vst [vmem:[%s14392 + $0x88] sm:$0xff] %v14377
      %14411 = vst [vmem:[%s14392 + $0x90] sm:$0xff] %v14378
      %14412 = vst [vmem:[%s14392 + $0x98] sm:$0xff] %v14379
      %14413 = vst [vmem:[%s14392 + $0xa0] sm:$0xff] %v14380
      %14414 = vst [vmem:[%s14392 + $0xa8] sm:$0xff] %v14381
      %14415 = vst [vmem:[%s14392 + $0xb0] sm:$0xff] %v14382
      %14416 = vst [vmem:[%s14392 + $0xb8] sm:$0xff] %v14383
      %14417 = vst [vmem:[%s14392 + $0xc0] sm:$0xff] %v14384
      %14418 = vst [vmem:[%s14392 + $0xc8] sm:$0xff] %v14385
      %14419 = vst [vmem:[%s14392 + $0xd0] sm:$0xff] %v14386
      %14420 = vst [vmem:[%s14392 + $0xd8] sm:$0xff] %v14387
      %14421 = vst [vmem:[%s14392 + $0xe0] sm:$0xff] %v14388
      %14422 = vst [vmem:[%s14392 + $0xe8] sm:$0xff] %v14389
      %14423 = vst [vmem:[%s14392 + $0xf0] sm:$0xff] %v14390
      %14424 = vst [vmem:[%s14392 + $0xf8] sm:$0xff] %v14391
      %p14425 = scmp.lt.s32.totalorder %s14, 1
      %s14426 = scalar_select %p14425, %s14, 1
      %s14427 = smul.addr %s14426, 128
      %s14428 = smul.addr %s14427, 8
      %s14429 = scalar_lea.vmem %s3, %s14428
      // Predicated region
      $region33: #{up_conv_forward.1} parent=31 // pred_check
        %p14430 = pneg %p100
      $region34: #{up_conv_forward.1} parent=31 // pred_check_branch
        %14432 = sbr.rel (%p14430) target = $region36
      $region35: #{up_conv_forward.1} parent=31 // pred_region
        _
      $region36: #{up_conv_forward.1} parent=31 // pred_fallthru
        _
    $region32: #{up_conv_forward.1} parent=5 // pred_fallthru
      _
    %p14433 = scmp.le.s32.totalorder 2, %s9
    // Predicated region
    $region37: #{up_conv_forward.1} parent=5 // pred_check
      %p14434 = pneg %p14433
    $region38: #{up_conv_forward.1} parent=5 // pred_check_branch
      %14436 = sbr.rel (%p14434) target = $region40
    $region39: #{up_conv_forward.1} parent=5 // pred_region
      %s14437 = ssub.s32 %s9, 2
      // Predicated region
      $region41: #{up_conv_forward.1} parent=39 // pred_check
        %p14438 = pneg %p106
      $region42: #{up_conv_forward.1} parent=39 // pred_check_branch
        %14440 = sbr.rel (%p14438) target = $region44
      $region43: #{up_conv_forward.1} parent=39 // pred_region
        %p14441 = scmp.lt.s32.totalorder %s15, 1
        %s14442 = scalar_select %p14441, %s15, 1
        %s14443 = smul.addr %s14442, 128
        %s14444 = smul.addr %s14443, 8
        %s14445 = scalar_lea.vmem %s3, %s14444
      $region44: #{up_conv_forward.1} parent=39 // pred_fallthru
        _
    $region40: #{up_conv_forward.1} parent=5 // pred_fallthru
      _
  $region6: #{up_conv_forward.1} parent=0 // loop_footer
    %s13 = sadd.s32 1, %s9
  $region7: #{up_conv_forward.1} parent=0 // loop_footer_branch
    %8 = sbr.rel target = $region3
  $region8: #{up_conv_forward.1} parent=0 // loop_exit
    _

</llo_original>
